<compile_context>
chip_gen: v6e
topology: v6e:2x2x1
jax: 0.10.0
libtpu: 0.0.40
codegen_flags: <defaults>
</compile_context>

<pallas_src>
import functools

import jax
import jax.numpy as jnp
from jax.experimental import pallas as pl
from jax.experimental.pallas import tpu as pltpu


# ----------------------------------------------------------------------------
# Kernel
# ----------------------------------------------------------------------------
def _rcab_kernel(xh_ref, w1b_ref, b1_ref, w2b_ref, b2_ref,
                 wd_ref, bd_ref, wu_ref, bu_ref,
                 o_ref, h1p_ref, *, res_scale):
    """Residual(RCAB) forward for one batch tile (batch folded into MXU M).

    xh_ref : (H+2, Bt, W*C) f32   zero-padded along H, batch-interleaved,
                                  W*C fused onto the lane axis
    w1b/w2b: (3, W*C, W*C) bf16   banded 3x3-conv weights (one matrix per dy)
    b1/b2  : (1, W*C)      f32    biases tiled per W position
    wd     : (W*C, Cs)     f32    squeeze weight, avg-pool + 1/(H*W) folded in,
                                  Cs padded up to >= 8
    bd     : (1, Cs)       f32
    wu     : (Cs, W*C)     f32    excite weight tiled per W position
    bu     : (1, W*C)      f32
    o_ref  : (H, Bt, W*C)
    h1p_ref: ((H+2)*Bt, W*C) bf16 VMEM scratch (H-padded conv1 output)
    """
    Hp2, Bt, WC = xh_ref.shape
    H = Hp2 - 2
    M = H * Bt                                          # MXU M dimension

    xh = xh_ref[...]                                    # (H+2, Bt, WC) f32
    # Cast to bf16 ONCE (not per-dy); the row merge is a layout no-op because
    # Bt is a multiple of the 8-sublane tile.
    xh_bf = xh.reshape(Hp2 * Bt, WC).astype(jnp.bfloat16)

    # ---- conv1 (3x3, SAME) + ReLU: 3 banded bf16 matmuls, M = H*Bt ---------
    acc1 = None
    for dy in range(3):
        lhs = xh_bf[dy * Bt:dy * Bt + M, :]             # leading-row slice
        t = jnp.dot(lhs, w1b_ref[dy], preferred_element_type=jnp.float32)
        acc1 = t if acc1 is None else acc1 + t
    h1 = jnp.maximum(acc1 + b1_ref[...], 0.0)           # (M, WC) f32

    # ---- H-padded intermediate in a bf16 scratch (W padding is in w2b) -----
    # Only the 2*Bt border rows are zeroed each step; interior fully rewritten,
    # so this is correct even though the scratch persists across grid steps.
    zrow = jnp.zeros((Bt, WC), jnp.bfloat16)
    h1p_ref[0:Bt, :] = zrow
    h1p_ref[(H + 1) * Bt:(H + 2) * Bt, :] = zrow
    h1p_ref[Bt:(H + 1) * Bt, :] = h1.astype(jnp.bfloat16)   # cast once
    h1p = h1p_ref[...]                                  # ((H+2)*Bt, WC) bf16

    # ---- conv2 (3x3, SAME): 3 banded bf16 matmuls ---------------------------
    acc2 = None
    for dy in range(3):
        lhs = h1p[dy * Bt:dy * Bt + M, :]
        t = jnp.dot(lhs, w2b_ref[dy], preferred_element_type=jnp.float32)
        acc2 = t if acc2 is None else acc2 + t
    acc2 = (acc2 + b2_ref[...]).reshape(H, Bt, WC)      # f32

    # ---- channel attention (AdaptiveAvgPool2d(1) + 1x1 convs) ---------------
    # Pool + squeeze/excite folded into lane-dense matmuls, batched to M = Bt,
    # squeeze width padded to >= 8 (no near-empty systolic passes).
    col_sum = jnp.sum(acc2, axis=0)                     # (Bt, WC)
    z = jnp.maximum(
        jnp.dot(col_sum, wd_ref[...], preferred_element_type=jnp.float32)
        + bd_ref[...], 0.0)                             # (Bt, Cs)
    att = jax.nn.sigmoid(
        jnp.dot(z, wu_ref[...], preferred_element_type=jnp.float32)
        + bu_ref[...])                                  # (Bt, WC) per-channel
    res = acc2 * att[None, :, :]                        # broadcast over H

    # ---- residual (exact f32 x path) ----------------------------------------
    if res_scale != 1.0:                                # static Python branch
        res = res * res_scale
    o_ref[...] = (res + xh[1:H + 1]).astype(o_ref.dtype)


# ----------------------------------------------------------------------------
# One-time parameter restructuring (hoisted out of the forward; cache per
# parameter set / (H, W)).
# ----------------------------------------------------------------------------
def _band_conv_weights(w, W):
    """HWIO 3x3 conv weight -> (3, W*C, W*C) banded matrices (one per dy).

    big[dy, (x+dx-1)*C + ci, x*C + co] = w[dy, dx, ci, co]  for 0 <= x+dx-1 < W
    so  out_row[y] = sum_dy in_row_padded_in_H[y+dy] @ big[dy]  is a SAME 3x3
    conv with the W-boundary zero padding folded into the weights.
    """
    mats = []
    for dy in range(3):
        m = None
        for dx in range(3):
            off = dx - 1
            shift = jnp.eye(W, k=-off, dtype=w.dtype)   # shift[x+off, x] = 1
            term = jnp.kron(shift, w[dy, dx])
            m = term if m is None else m + term
        mats.append(m)
    return jnp.stack(mats)


def prepare_rcab_params(params, H, W, squeeze_pad=8):
    """Banded conv weights, tiled biases, folded avg-pool, padded squeeze."""
    w1, b1, w2, b2, wd, bd, wu, bu = params
    csq = wd.shape[1]
    cs = max(squeeze_pad, csq)
    w1b = _band_conv_weights(w1, W).astype(jnp.bfloat16)     # (3, WC, WC)
    w2b = _band_conv_weights(w2, W).astype(jnp.bfloat16)
    b1r = jnp.tile(b1, (1, W))                               # (1, WC)
    b2r = jnp.tile(b2, (1, W))
    wdb = jnp.pad(jnp.tile(wd, (W, 1)) / float(H * W),       # pool folded in
                  ((0, 0), (0, cs - csq)))                   # (WC, Cs)
    bdp = jnp.pad(bd, ((0, 0), (0, cs - csq)))               # (1, Cs)
    wub = jnp.pad(jnp.tile(wu, (1, W)), ((0, cs - csq), (0, 0)))  # (Cs, WC)
    bur = jnp.tile(bu, (1, W))                               # (1, WC)
    return (w1b, b1r, w2b, b2r, wdb, bdp, wub, bur)


# ----------------------------------------------------------------------------
# Forward wrapper
# ----------------------------------------------------------------------------
def _const_spec(arr):
    """Whole-array, grid-invariant operand -> single pipeline buffer.

    The index_map is constant, so a second buffer would be pure VMEM waste
    (review item #3; matters most under v7x's 64 MiB budget)."""
    idx = lambda g, _nd=arr.ndim: (0,) * _nd
    try:
        return pl.BlockSpec(arr.shape, idx, pipeline_mode=pl.Buffered(1))
    except TypeError:      # very old JAX without pipeline_mode: default buffering
        return pl.BlockSpec(arr.shape, idx)


def rcab_forward(x, packed, res_scale=1.0, batch_tile=8):
    """x: (B, H, W, C) float32 NHWC.  packed: prepare_rcab_params output.

    batch_tile must be a multiple of 8; 8 keeps padded-batch waste minimal for
    tiny B, 16 reaches M = 256 (full v6e/v7x MXU width) and 16-aligns the bf16
    row offsets.
    """
    assert batch_tile % 8 == 0
    B, H, W, C = x.shape
    WC = W * C
    Bt = batch_tile
    n_g = -(-B // Bt)                                   # ceil-div: batch tiles
    Bp = n_g * Bt

    # Layout glue (outside the kernel): pad batch to Bp, interleave batch under
    # H, fuse (W, C) onto the lane axis, zero-pad H by 1 on each side.
    xr = jnp.pad(x.reshape(B, H, WC), ((0, Bp - B), (0, 0), (0, 0)))
    xh = jnp.pad(jnp.transpose(xr, (1, 0, 2)), ((1, 1), (0, 0), (0, 0)))

    w1b, b1r, w2b, b2r, wdb, bdp, wub, bur = packed

    kernel = functools.partial(_rcab_kernel, res_scale=res_scale)
    out = pl.pallas_call(
        kernel,
        out_shape=jax.ShapeDtypeStruct((H, Bp, WC), x.dtype),
        grid=(n_g,),
        in_specs=[
            pl.BlockSpec((H + 2, Bt, WC), lambda g: (0, g, 0)),
            _const_spec(w1b), _const_spec(b1r),
            _const_spec(w2b), _const_spec(b2r),
            _const_spec(wdb), _const_spec(bdp),
            _const_spec(wub), _const_spec(bur),
        ],
        out_specs=pl.BlockSpec((H, Bt, WC), lambda g: (0, g, 0)),
        scratch_shapes=[pltpu.VMEM(((H + 2) * Bt, WC), jnp.bfloat16)],
        compiler_params=pltpu.CompilerParams(
            # "parallel" only pays on v7x (2 TCs); harmless no-op on v5e/v6e.
            dimension_semantics=("parallel",),
            vmem_limit_bytes=32 * 1024 * 1024),
    )(xh, w1b, b1r, w2b, b2r, wdb, bdp, wub, bur)

    out = jnp.transpose(out, (1, 0, 2))[:B]             # drop batch padding
    return out.reshape(B, H, W, C)


# ----------------------------------------------------------------------------
# Pure-JAX reference (matches PyTorch semantics, NHWC layout)
# ----------------------------------------------------------------------------
def rcab_reference(x, params, res_scale=1.0):
    w1, b1, w2, b2, wd, bd, wu, bu = params
    dn = jax.lax.conv_dimension_numbers(x.shape, w1.shape,
                                        ('NHWC', 'HWIO', 'NHWC'))
    h = jax.lax.conv_general_dilated(x, w1, (1, 1), 'SAME',
                                     dimension_numbers=dn) + b1.reshape(1, 1, 1, -1)
    h = jnp.maximum(h, 0.0)
    h = jax.lax.conv_general_dilated(h, w2, (1, 1), 'SAME',
                                     dimension_numbers=dn) + b2.reshape(1, 1, 1, -1)
    pooled = h.mean(axis=(1, 2))                        # (B, C)
    z = jnp.maximum(pooled @ wd + bd, 0.0)
    att = jax.nn.sigmoid(z @ wu + bu)                   # (B, C)
    res = h * att[:, None, None, :]
    return res * res_scale + x


def make_params(key, num_feat, squeeze_factor):
    csq = num_feat // squeeze_factor
    ks = jax.random.split(key, 8)
    w1 = jax.random.normal(ks[0], (3, 3, num_feat, num_feat), jnp.float32) * 0.05
    b1 = jax.random.normal(ks[1], (1, num_feat), jnp.float32) * 0.01
    w2 = jax.random.normal(ks[2], (3, 3, num_feat, num_feat), jnp.float32) * 0.05
    b2 = jax.random.normal(ks[3], (1, num_feat), jnp.float32) * 0.01
    wd = jax.random.normal(ks[4], (num_feat, csq), jnp.float32) * 0.1
    bd = jax.random.normal(ks[5], (1, csq), jnp.float32) * 0.01
    wu = jax.random.normal(ks[6], (csq, num_feat), jnp.float32) * 0.1
    bu = jax.random.normal(ks[7], (1, num_feat), jnp.float32) * 0.01
    return (w1, b1, w2, b2, wd, bd, wu, bu)


if __name__ == "__main__":
    B, H, W, C = 2, 16, 16, 32          # num_feat=32, squeeze_factor=16 -> Csq=2
    squeeze_factor = 16
    res_scale = 1.0

    root = jax.random.PRNGKey(0)
    k_params, k_x = jax.random.split(root)
    params = make_params(k_params, C, squeeze_factor)
    x = jax.random.normal(k_x, (B, H, W, C), jnp.float32)

    # One-time parameter restructuring, hoisted out of the forward path.
    packed = prepare_rcab_params(params, H, W)

    out = jax.block_until_ready(rcab_forward(x, packed, res_scale))
    ref = rcab_reference(x, params, res_scale)

    assert out.shape == (B, H, W, C)
    # bf16 matmul operands (f32 accumulation) -> loosened tolerance vs f32 ref.
    err = jnp.max(jnp.abs(out - ref))
    assert jnp.allclose(out, ref, atol=5e-2, rtol=5e-2), f"max abs diff {err}"

    print("KERNEL_OK")
</pallas_src>

<mosaic_0001>
module attributes {stable_mosaic.version = 11 : i64} {
  func.func @_rcab_kernel(%arg0: i32, %arg1: memref<18x8x512xf32, #tpu.memory_space<vmem>>, %arg2: memref<3x512x512xbf16, #tpu.memory_space<vmem>>, %arg3: memref<1x512xf32, #tpu.memory_space<vmem>>, %arg4: memref<3x512x512xbf16, #tpu.memory_space<vmem>>, %arg5: memref<1x512xf32, #tpu.memory_space<vmem>>, %arg6: memref<512x8xf32, #tpu.memory_space<vmem>>, %arg7: memref<1x8xf32, #tpu.memory_space<vmem>>, %arg8: memref<8x512xf32, #tpu.memory_space<vmem>>, %arg9: memref<1x512xf32, #tpu.memory_space<vmem>>, %arg10: memref<16x8x512xf32, #tpu.memory_space<vmem>>, %arg11: memref<144x512xbf16, #tpu.memory_space<vmem>>) attributes {dimension_semantics = [#tpu.dimension_semantics<parallel>], iteration_bounds = array<i64: 1>, scalar_prefetch = 0 : i64, scratch_operands = 1 : i64, tpu.core_type = #tpu.core_type<tc>, window_params = [{transform_indices = @transform_0, window_bounds = array<i64: 18, 8, 512>}, {pipeline_mode = #tpu.pipeline_mode<synchronous>, transform_indices = @transform_1, window_bounds = array<i64: 3, 512, 512>}, {pipeline_mode = #tpu.pipeline_mode<synchronous>, transform_indices = @transform_2, window_bounds = array<i64: 1, 512>}, {pipeline_mode = #tpu.pipeline_mode<synchronous>, transform_indices = @transform_3, window_bounds = array<i64: 3, 512, 512>}, {pipeline_mode = #tpu.pipeline_mode<synchronous>, transform_indices = @transform_4, window_bounds = array<i64: 1, 512>}, {pipeline_mode = #tpu.pipeline_mode<synchronous>, transform_indices = @transform_5, window_bounds = array<i64: 512, 8>}, {pipeline_mode = #tpu.pipeline_mode<synchronous>, transform_indices = @transform_6, window_bounds = array<i64: 1, 8>}, {pipeline_mode = #tpu.pipeline_mode<synchronous>, transform_indices = @transform_7, window_bounds = array<i64: 8, 512>}, {pipeline_mode = #tpu.pipeline_mode<synchronous>, transform_indices = @transform_8, window_bounds = array<i64: 1, 512>}, {transform_indices = @transform_9, window_bounds = array<i64: 16, 8, 512>}]} {
    %c0 = arith.constant 0 : index
    %c0_0 = arith.constant 0 : index
    %c0_1 = arith.constant 0 : index
    %0 = vector.load %arg1[%c0, %c0_0, %c0_1] : memref<18x8x512xf32, #tpu.memory_space<vmem>>, vector<18x8x512xf32>
    %1 = vector.shape_cast %0 : vector<18x8x512xf32> to vector<144x512xf32>
    %2 = arith.truncf %1 : vector<144x512xf32> to vector<144x512xbf16>
    %3 = vector.extract_strided_slice %2 {offsets = [0, 0], sizes = [128, 512], strides = [1, 1]} : vector<144x512xbf16> to vector<128x512xbf16>
    %c0_2 = arith.constant 0 : index
    %c0_3 = arith.constant 0 : index
    %c0_4 = arith.constant 0 : index
    %4 = vector.load %arg2[%c0_2, %c0_3, %c0_4] : memref<3x512x512xbf16, #tpu.memory_space<vmem>>, vector<1x512x512xbf16>
    %5 = vector.shape_cast %4 : vector<1x512x512xbf16> to vector<512x512xbf16>
    %cst = arith.constant dense<0.000000e+00> : vector<128x512xf32>
    %6 = tpu.matmul %3, %5, %cst {dimension_numbers = #tpu.dot_dimension_numbers<[1], [0], [0], [1], [0, 0, 1, 1], [], []>} : vector<128x512xbf16>, vector<512x512xbf16>, vector<128x512xf32> -> vector<128x512xf32>
    %7 = vector.extract_strided_slice %2 {offsets = [8, 0], sizes = [128, 512], strides = [1, 1]} : vector<144x512xbf16> to vector<128x512xbf16>
    %c1 = arith.constant 1 : index
    %c0_5 = arith.constant 0 : index
    %c0_6 = arith.constant 0 : index
    %8 = vector.load %arg2[%c1, %c0_5, %c0_6] : memref<3x512x512xbf16, #tpu.memory_space<vmem>>, vector<1x512x512xbf16>
    %9 = vector.shape_cast %8 : vector<1x512x512xbf16> to vector<512x512xbf16>
    %cst_7 = arith.constant dense<0.000000e+00> : vector<128x512xf32>
    %10 = tpu.matmul %7, %9, %cst_7 {dimension_numbers = #tpu.dot_dimension_numbers<[1], [0], [0], [1], [0, 0, 1, 1], [], []>} : vector<128x512xbf16>, vector<512x512xbf16>, vector<128x512xf32> -> vector<128x512xf32>
    %11 = arith.addf %6, %10 : vector<128x512xf32>
    %12 = vector.extract_strided_slice %2 {offsets = [16, 0], sizes = [128, 512], strides = [1, 1]} : vector<144x512xbf16> to vector<128x512xbf16>
    %c2 = arith.constant 2 : index
    %c0_8 = arith.constant 0 : index
    %c0_9 = arith.constant 0 : index
    %13 = vector.load %arg2[%c2, %c0_8, %c0_9] : memref<3x512x512xbf16, #tpu.memory_space<vmem>>, vector<1x512x512xbf16>
    %14 = vector.shape_cast %13 : vector<1x512x512xbf16> to vector<512x512xbf16>
    %cst_10 = arith.constant dense<0.000000e+00> : vector<128x512xf32>
    %15 = tpu.matmul %12, %14, %cst_10 {dimension_numbers = #tpu.dot_dimension_numbers<[1], [0], [0], [1], [0, 0, 1, 1], [], []>} : vector<128x512xbf16>, vector<512x512xbf16>, vector<128x512xf32> -> vector<128x512xf32>
    %16 = arith.addf %11, %15 : vector<128x512xf32>
    %c0_11 = arith.constant 0 : index
    %c0_12 = arith.constant 0 : index
    %17 = vector.load %arg3[%c0_11, %c0_12] : memref<1x512xf32, #tpu.memory_space<vmem>>, vector<1x512xf32>
    %18 = vector.broadcast %17 : vector<1x512xf32> to vector<128x512xf32>
    %19 = arith.addf %16, %18 : vector<128x512xf32>
    %cst_13 = arith.constant 0.000000e+00 : f32
    %20 = vector.broadcast %cst_13 : f32 to vector<128x512xf32>
    %21 = arith.maximumf %19, %20 : vector<128x512xf32>
    %cst_14 = arith.constant 0.000000e+00 : bf16
    %22 = vector.broadcast %cst_14 : bf16 to vector<8x512xbf16>
    %c0_15 = arith.constant 0 : index
    %c0_16 = arith.constant 0 : index
    %23 = vector.load %arg11[%c0_15, %c0_16] : memref<144x512xbf16, #tpu.memory_space<vmem>>, vector<8x512xbf16>
    tpu.vector_store %arg11[%c0_15, %c0_16], %22 {strides = array<i32>} : memref<144x512xbf16, #tpu.memory_space<vmem>>, vector<8x512xbf16>,
    %c136 = arith.constant 136 : index
    %c0_17 = arith.constant 0 : index
    %24 = vector.load %arg11[%c136, %c0_17] : memref<144x512xbf16, #tpu.memory_space<vmem>>, vector<8x512xbf16>
    tpu.vector_store %arg11[%c136, %c0_17], %22 {strides = array<i32>} : memref<144x512xbf16, #tpu.memory_space<vmem>>, vector<8x512xbf16>,
    %25 = arith.truncf %21 : vector<128x512xf32> to vector<128x512xbf16>
    %c8 = arith.constant 8 : index
    %c0_18 = arith.constant 0 : index
    %26 = vector.load %arg11[%c8, %c0_18] : memref<144x512xbf16, #tpu.memory_space<vmem>>, vector<128x512xbf16>
    tpu.vector_store %arg11[%c8, %c0_18], %25 {strides = array<i32>} : memref<144x512xbf16, #tpu.memory_space<vmem>>, vector<128x512xbf16>,
    %c0_19 = arith.constant 0 : index
    %c0_20 = arith.constant 0 : index
    %27 = vector.load %arg11[%c0_19, %c0_20] : memref<144x512xbf16, #tpu.memory_space<vmem>>, vector<144x512xbf16>
    %28 = vector.extract_strided_slice %27 {offsets = [0, 0], sizes = [128, 512], strides = [1, 1]} : vector<144x512xbf16> to vector<128x512xbf16>
    %c0_21 = arith.constant 0 : index
    %c0_22 = arith.constant 0 : index
    %c0_23 = arith.constant 0 : index
    %29 = vector.load %arg4[%c0_21, %c0_22, %c0_23] : memref<3x512x512xbf16, #tpu.memory_space<vmem>>, vector<1x512x512xbf16>
    %30 = vector.shape_cast %29 : vector<1x512x512xbf16> to vector<512x512xbf16>
    %cst_24 = arith.constant dense<0.000000e+00> : vector<128x512xf32>
    %31 = tpu.matmul %28, %30, %cst_24 {dimension_numbers = #tpu.dot_dimension_numbers<[1], [0], [0], [1], [0, 0, 1, 1], [], []>} : vector<128x512xbf16>, vector<512x512xbf16>, vector<128x512xf32> -> vector<128x512xf32>
    %32 = vector.extract_strided_slice %27 {offsets = [8, 0], sizes = [128, 512], strides = [1, 1]} : vector<144x512xbf16> to vector<128x512xbf16>
    %c1_25 = arith.constant 1 : index
    %c0_26 = arith.constant 0 : index
    %c0_27 = arith.constant 0 : index
    %33 = vector.load %arg4[%c1_25, %c0_26, %c0_27] : memref<3x512x512xbf16, #tpu.memory_space<vmem>>, vector<1x512x512xbf16>
    %34 = vector.shape_cast %33 : vector<1x512x512xbf16> to vector<512x512xbf16>
    %cst_28 = arith.constant dense<0.000000e+00> : vector<128x512xf32>
    %35 = tpu.matmul %32, %34, %cst_28 {dimension_numbers = #tpu.dot_dimension_numbers<[1], [0], [0], [1], [0, 0, 1, 1], [], []>} : vector<128x512xbf16>, vector<512x512xbf16>, vector<128x512xf32> -> vector<128x512xf32>
    %36 = arith.addf %31, %35 : vector<128x512xf32>
    %37 = vector.extract_strided_slice %27 {offsets = [16, 0], sizes = [128, 512], strides = [1, 1]} : vector<144x512xbf16> to vector<128x512xbf16>
    %c2_29 = arith.constant 2 : index
    %c0_30 = arith.constant 0 : index
    %c0_31 = arith.constant 0 : index
    %38 = vector.load %arg4[%c2_29, %c0_30, %c0_31] : memref<3x512x512xbf16, #tpu.memory_space<vmem>>, vector<1x512x512xbf16>
    %39 = vector.shape_cast %38 : vector<1x512x512xbf16> to vector<512x512xbf16>
    %cst_32 = arith.constant dense<0.000000e+00> : vector<128x512xf32>
    %40 = tpu.matmul %37, %39, %cst_32 {dimension_numbers = #tpu.dot_dimension_numbers<[1], [0], [0], [1], [0, 0, 1, 1], [], []>} : vector<128x512xbf16>, vector<512x512xbf16>, vector<128x512xf32> -> vector<128x512xf32>
    %41 = arith.addf %36, %40 : vector<128x512xf32>
    %c0_33 = arith.constant 0 : index
    %c0_34 = arith.constant 0 : index
    %42 = vector.load %arg5[%c0_33, %c0_34] : memref<1x512xf32, #tpu.memory_space<vmem>>, vector<1x512xf32>
    %43 = vector.broadcast %42 : vector<1x512xf32> to vector<128x512xf32>
    %44 = arith.addf %41, %43 : vector<128x512xf32>
    %45 = vector.shape_cast %44 : vector<128x512xf32> to vector<16x8x512xf32>
    %cst_35 = arith.constant dense<0.000000e+00> : vector<8x512xf32>
    %46 = vector.multi_reduction <add>, %45, %cst_35 [0] : vector<16x8x512xf32> to vector<8x512xf32>
    %c0_36 = arith.constant 0 : index
    %c0_37 = arith.constant 0 : index
    %47 = vector.load %arg6[%c0_36, %c0_37] : memref<512x8xf32, #tpu.memory_space<vmem>>, vector<512x8xf32>
    %cst_38 = arith.constant dense<0.000000e+00> : vector<8x8xf32>
    %48 = tpu.matmul %46, %47, %cst_38 {dimension_numbers = #tpu.dot_dimension_numbers<[1], [0], [0], [1], [0, 0, 1, 1], [], []>} : vector<8x512xf32>, vector<512x8xf32>, vector<8x8xf32> -> vector<8x8xf32>
    %c0_39 = arith.constant 0 : index
    %c0_40 = arith.constant 0 : index
    %49 = vector.load %arg7[%c0_39, %c0_40] : memref<1x8xf32, #tpu.memory_space<vmem>>, vector<1x8xf32>
    %50 = vector.broadcast %49 : vector<1x8xf32> to vector<8x8xf32>
    %51 = arith.addf %48, %50 : vector<8x8xf32>
    %cst_41 = arith.constant 0.000000e+00 : f32
    %52 = vector.broadcast %cst_41 : f32 to vector<8x8xf32>
    %53 = arith.maximumf %51, %52 : vector<8x8xf32>
    %c0_42 = arith.constant 0 : index
    %c0_43 = arith.constant 0 : index
    %54 = vector.load %arg8[%c0_42, %c0_43] : memref<8x512xf32, #tpu.memory_space<vmem>>, vector<8x512xf32>
    %cst_44 = arith.constant dense<0.000000e+00> : vector<8x512xf32>
    %55 = tpu.matmul %53, %54, %cst_44 {dimension_numbers = #tpu.dot_dimension_numbers<[1], [0], [0], [1], [0, 0, 1, 1], [], []>} : vector<8x8xf32>, vector<8x512xf32>, vector<8x512xf32> -> vector<8x512xf32>
    %c0_45 = arith.constant 0 : index
    %c0_46 = arith.constant 0 : index
    %56 = vector.load %arg9[%c0_45, %c0_46] : memref<1x512xf32, #tpu.memory_space<vmem>>, vector<1x512xf32>
    %57 = vector.broadcast %56 : vector<1x512xf32> to vector<8x512xf32>
    %58 = arith.addf %55, %57 : vector<8x512xf32>
    %59 = arith.negf %58 : vector<8x512xf32>
    %60 = math.exp %59 : vector<8x512xf32>
    %cst_47 = arith.constant 1.000000e+00 : f32
    %61 = vector.broadcast %cst_47 : f32 to vector<8x512xf32>
    %62 = arith.addf %61, %60 : vector<8x512xf32>
    %63 = arith.divf %61, %62 : vector<8x512xf32>
    %64 = vector.shape_cast %63 : vector<8x512xf32> to vector<1x8x512xf32>
    %65 = vector.broadcast %64 : vector<1x8x512xf32> to vector<16x8x512xf32>
    %66 = arith.mulf %45, %65 : vector<16x8x512xf32>
    %67 = vector.extract_strided_slice %0 {offsets = [1, 0, 0], sizes = [16, 8, 512], strides = [1, 1, 1]} : vector<18x8x512xf32> to vector<16x8x512xf32>
    %68 = arith.addf %66, %67 : vector<16x8x512xf32>
    %c0_48 = arith.constant 0 : index
    %c0_49 = arith.constant 0 : index
    %c0_50 = arith.constant 0 : index
    %69 = vector.load %arg10[%c0_48, %c0_49, %c0_50] : memref<16x8x512xf32, #tpu.memory_space<vmem>>, vector<16x8x512xf32>
    tpu.vector_store %arg10[%c0_48, %c0_49, %c0_50], %68 {strides = array<i32>} : memref<16x8x512xf32, #tpu.memory_space<vmem>>, vector<16x8x512xf32>,
    return
  }
  func.func @transform_0(%arg0: i32) -> (i32, i32, i32) {
    %c0_i32 = arith.constant 0 : i32
    %c0_i32_0 = arith.constant 0 : i32
    %c0_i32_1 = arith.constant 0 : i32
    return %c0_i32, %arg0, %c0_i32_0 : i32, i32, i32
  }
  func.func @transform_1(%arg0: i32) -> (i32, i32, i32) {
    %c0_i32 = arith.constant 0 : i32
    %c0_i32_0 = arith.constant 0 : i32
    %c0_i32_1 = arith.constant 0 : i32
    %c0_i32_2 = arith.constant 0 : i32
    return %c0_i32, %c0_i32_0, %c0_i32_1 : i32, i32, i32
  }
  func.func @transform_2(%arg0: i32) -> (i32, i32) {
    %c0_i32 = arith.constant 0 : i32
    %c0_i32_0 = arith.constant 0 : i32
    %c0_i32_1 = arith.constant 0 : i32
    return %c0_i32, %c0_i32_0 : i32, i32
  }
  func.func @transform_3(%arg0: i32) -> (i32, i32, i32) {
    %c0_i32 = arith.constant 0 : i32
    %c0_i32_0 = arith.constant 0 : i32
    %c0_i32_1 = arith.constant 0 : i32
    %c0_i32_2 = arith.constant 0 : i32
    return %c0_i32, %c0_i32_0, %c0_i32_1 : i32, i32, i32
  }
  func.func @transform_4(%arg0: i32) -> (i32, i32) {
    %c0_i32 = arith.constant 0 : i32
    %c0_i32_0 = arith.constant 0 : i32
    %c0_i32_1 = arith.constant 0 : i32
    return %c0_i32, %c0_i32_0 : i32, i32
  }
  func.func @transform_5(%arg0: i32) -> (i32, i32) {
    %c0_i32 = arith.constant 0 : i32
    %c0_i32_0 = arith.constant 0 : i32
    %c0_i32_1 = arith.constant 0 : i32
    return %c0_i32, %c0_i32_0 : i32, i32
  }
  func.func @transform_6(%arg0: i32) -> (i32, i32) {
    %c0_i32 = arith.constant 0 : i32
    %c0_i32_0 = arith.constant 0 : i32
    %c0_i32_1 = arith.constant 0 : i32
    return %c0_i32, %c0_i32_0 : i32, i32
  }
  func.func @transform_7(%arg0: i32) -> (i32, i32) {
    %c0_i32 = arith.constant 0 : i32
    %c0_i32_0 = arith.constant 0 : i32
    %c0_i32_1 = arith.constant 0 : i32
    return %c0_i32, %c0_i32_0 : i32, i32
  }
  func.func @transform_8(%arg0: i32) -> (i32, i32) {
    %c0_i32 = arith.constant 0 : i32
    %c0_i32_0 = arith.constant 0 : i32
    %c0_i32_1 = arith.constant 0 : i32
    return %c0_i32, %c0_i32_0 : i32, i32
  }
  func.func @transform_9(%arg0: i32) -> (i32, i32, i32) {
    %c0_i32 = arith.constant 0 : i32
    %c0_i32_0 = arith.constant 0 : i32
    %c0_i32_1 = arith.constant 0 : i32
    return %c0_i32, %arg0, %c0_i32_0 : i32, i32, i32
  }
}

</mosaic_0001>

<llo_original>
// kernel: tpu_custom_call.1
$region0: #{tpu_custom_call.1}
  #allocation0 [shape = 'u32[]', space=smem, size = 0x4, offset = 0x4, fixed_abs, tag = 'smem constant byte address 0x4 - core index']
  #allocation1 [shape = 'u32[144,128]{1,0:T(1,128)}', space=vmem, size = 0x12000, scoped, tag = 'internal scratch']
  #allocation2 [shape = 'bf16[144,512]{1,0:T(8,128)(2,1)}', space=vmem, size = 0x24000, scoped, tag = 'scratch operand']
  %s0 = inlined_call_operand.hbm [shape: f32[18,8,512], index: 0, kind: input, shape index: {}]
  %s1 = inlined_call_operand.hbm [shape: bf16[3,512,512], index: 1, kind: input, shape index: {}]
  %s2 = inlined_call_operand.hbm [shape: f32[1,512], index: 2, kind: input, shape index: {}]
  %s3 = inlined_call_operand.hbm [shape: bf16[3,512,512], index: 3, kind: input, shape index: {}]
  %s4 = inlined_call_operand.hbm [shape: f32[1,512], index: 4, kind: input, shape index: {}]
  %s5 = inlined_call_operand.vmem [shape: f32[512,8], index: 5, kind: input, shape index: {}]
  %s6 = inlined_call_operand.hbm [shape: f32[1,8], index: 6, kind: input, shape index: {}]
  %s7 = inlined_call_operand.hbm [shape: f32[8,512], index: 7, kind: input, shape index: {}]
  %s8 = inlined_call_operand.hbm [shape: f32[1,512], index: 8, kind: input, shape index: {}]
  %s9 = inlined_call_operand.hbm [shape: f32[16,8,512], index: 9, kind: output, shape index: {}]
  %s10 = sld [smem:[#allocation0]]
  $region78: #{tpu_custom_call.1} parent=0
    _
  %s12 = ssub.s32 1, %s10
  %s13 = scalar_select 0, %s12, %s10
  $region1: #{tpu_custom_call.1} parent=0
    #allocation3 [shape = 'u8[294912]{0}', space=vmem, size = 0x48000, scoped, tag = 'input window, operand 0, single buffered']
    #allocation4 [shape = 's32[1]{0}', space=sflag, size = 0x4, scoped, tag = 'scoped memory for tpu_custom_call.1']
    #allocation5 [shape = 's32[1]{0}', space=sflag, size = 0x4, scoped, tag = 'scoped memory for tpu_custom_call.1']
    #allocation6 [shape = 'u8[1572864]{0}', space=vmem, size = 0x180000, scoped, tag = 'input window, operand 1, single buffered']
    #allocation7 [shape = 's32[1]{0}', space=sflag, size = 0x4, scoped, tag = 'scoped memory for tpu_custom_call.1']
    #allocation8 [shape = 'u8[2048]{0}', space=vmem, size = 0x800, scoped, tag = 'input window, operand 2, single buffered']
    #allocation9 [shape = 'u8[1572864]{0}', space=vmem, size = 0x180000, scoped, tag = 'input window, operand 3, single buffered']
    #allocation10 [shape = 's32[1]{0}', space=sflag, size = 0x4, scoped, tag = 'scoped memory for tpu_custom_call.1']
    #allocation11 [shape = 'u8[2048]{0}', space=vmem, size = 0x800, scoped, tag = 'input window, operand 4, single buffered']
    #allocation12 [shape = 'u8[512]{0}', space=vmem, size = 0x400, scoped, tag = 'input window, operand 6, single buffered']
    #allocation13 [shape = 's32[1]{0}', space=sflag, size = 0x4, scoped, tag = 'scoped memory for tpu_custom_call.1']
    #allocation14 [shape = 'u8[16384]{0}', space=vmem, size = 0x4000, scoped, tag = 'input window, operand 7, single buffered']
    #allocation15 [shape = 'u8[2048]{0}', space=vmem, size = 0x800, scoped, tag = 'input window, operand 8, single buffered']
    #allocation16 [shape = 's32[1]{0}', space=sflag, size = 0x4, scoped, tag = 'scoped memory for tpu_custom_call.1']
    #allocation17 [shape = 'u8[262144]{0}', space=vmem, size = 0x40000, scoped, tag = 'output window, operand 0, single buffered']
    %14 = vsyncpa [#allocation4], 0
    %15 = vsyncpa [#allocation7], 0
    %16 = vsyncpa [#allocation10], 0
    %17 = vsyncpa [#allocation13], 0
    %18 = vsyncpa [#allocation16], 0
    %19 = vsyncpa [#allocation5], 0
    // Predicated region
    $region2: #{tpu_custom_call.1} parent=1 // pred_check
      _
    $region3: #{tpu_custom_call.1} parent=1 // pred_check_branch
      %21 = sbr.rel (0) target = $region5
    $region4: #{tpu_custom_call.1} parent=1 // pred_region
      %s23 = ssub.s32 9216, 9216
      %24 = vsyncadd [#allocation4], %s23
      %s25 = sshll.u32 [#allocation3], 4
      %s26 = int_to_ptr.vmem [resolvable:$true] %s25
      %31 = dma.hbm_to_vmem [thread:$0]  %s0, 9216, %s26, [#allocation4], 512, 512, 32
    $region5: #{tpu_custom_call.1} parent=1 // pred_fallthru
      _
    // Predicated region
    $region6: #{tpu_custom_call.1} parent=1 // pred_check
      _
    $region7: #{tpu_custom_call.1} parent=1 // pred_check_branch
      %33 = sbr.rel (0) target = $region9
    $region8: #{tpu_custom_call.1} parent=1 // pred_region
      %s35 = ssub.s32 49152, 49152
      %36 = vsyncadd [#allocation7], %s35
      %s37 = sshll.u32 [#allocation6], 4
      %s38 = int_to_ptr.vmem [resolvable:$true] %s37
      %43 = dma.hbm_to_vmem [thread:$0]  %s1, 49152, %s38, [#allocation7], 256, 256, 16
    $region9: #{tpu_custom_call.1} parent=1 // pred_fallthru
      _
    // Predicated region
    $region10: #{tpu_custom_call.1} parent=1 // pred_check
      _
    $region11: #{tpu_custom_call.1} parent=1 // pred_check_branch
      %45 = sbr.rel (0) target = $region13
    $region12: #{tpu_custom_call.1} parent=1 // pred_region
      %s47 = ssub.s32 64, 64
      %48 = vsyncadd [#allocation7], %s47
      %s50 = sshll.u32 [#allocation8], 4
      %s51 = int_to_ptr.vmem [resolvable:$true] %s50
      %53 = dma.hbm_to_vmem [thread:$0]  %s2, 64, %s51, [#allocation7]
    $region13: #{tpu_custom_call.1} parent=1 // pred_fallthru
      _
    // Predicated region
    $region14: #{tpu_custom_call.1} parent=1 // pred_check
      _
    $region15: #{tpu_custom_call.1} parent=1 // pred_check_branch
      %55 = sbr.rel (0) target = $region17
    $region16: #{tpu_custom_call.1} parent=1 // pred_region
      %s57 = ssub.s32 49152, 49152
      %58 = vsyncadd [#allocation10], %s57
      %s59 = sshll.u32 [#allocation9], 4
      %s60 = int_to_ptr.vmem [resolvable:$true] %s59
      %65 = dma.hbm_to_vmem [thread:$0]  %s3, 49152, %s60, [#allocation10], 256, 256, 16
    $region17: #{tpu_custom_call.1} parent=1 // pred_fallthru
      _
    // Predicated region
    $region18: #{tpu_custom_call.1} parent=1 // pred_check
      _
    $region19: #{tpu_custom_call.1} parent=1 // pred_check_branch
      %67 = sbr.rel (0) target = $region21
    $region20: #{tpu_custom_call.1} parent=1 // pred_region
      %s69 = ssub.s32 64, 64
      %70 = vsyncadd [#allocation10], %s69
      %s72 = sshll.u32 [#allocation11], 4
      %s73 = int_to_ptr.vmem [resolvable:$true] %s72
      %75 = dma.hbm_to_vmem [thread:$0]  %s4, 64, %s73, [#allocation10]
    $region21: #{tpu_custom_call.1} parent=1 // pred_fallthru
      _
    // Predicated region
    $region22: #{tpu_custom_call.1} parent=1 // pred_check
      _
    $region23: #{tpu_custom_call.1} parent=1 // pred_check_branch
      %77 = sbr.rel (0) target = $region25
    $region24: #{tpu_custom_call.1} parent=1 // pred_region
      _
    $region25: #{tpu_custom_call.1} parent=1 // pred_fallthru
      _
    // Predicated region
    $region26: #{tpu_custom_call.1} parent=1 // pred_check
      _
    $region27: #{tpu_custom_call.1} parent=1 // pred_check_branch
      %79 = sbr.rel (0) target = $region29
    $region28: #{tpu_custom_call.1} parent=1 // pred_region
      %s81 = ssub.s32 16, 16
      %82 = vsyncadd [#allocation13], %s81
      %s84 = sshll.u32 [#allocation12], 4
      %s85 = int_to_ptr.vmem [resolvable:$true] %s84
      %87 = dma.hbm_to_vmem [thread:$0]  %s6, 16, %s85, [#allocation13]
    $region29: #{tpu_custom_call.1} parent=1 // pred_fallthru
      _
    // Predicated region
    $region30: #{tpu_custom_call.1} parent=1 // pred_check
      _
    $region31: #{tpu_custom_call.1} parent=1 // pred_check_branch
      %89 = sbr.rel (0) target = $region33
    $region32: #{tpu_custom_call.1} parent=1 // pred_region
      %s91 = ssub.s32 512, 512
      %92 = vsyncadd [#allocation13], %s91
      %s94 = sshll.u32 [#allocation14], 4
      %s95 = int_to_ptr.vmem [resolvable:$true] %s94
      %97 = dma.hbm_to_vmem [thread:$0]  %s7, 512, %s95, [#allocation13]
    $region33: #{tpu_custom_call.1} parent=1 // pred_fallthru
      _
    // Predicated region
    $region34: #{tpu_custom_call.1} parent=1 // pred_check
      _
    $region35: #{tpu_custom_call.1} parent=1 // pred_check_branch
      %99 = sbr.rel (0) target = $region37
    $region36: #{tpu_custom_call.1} parent=1 // pred_region
      %s101 = ssub.s32 64, 64
      %102 = vsyncadd [#allocation16], %s101
      %s104 = sshll.u32 [#allocation15], 4
      %s105 = int_to_ptr.vmem [resolvable:$true] %s104
      %107 = dma.hbm_to_vmem [thread:$0]  %s8, 64, %s105, [#allocation16]
    $region37: #{tpu_custom_call.1} parent=1 // pred_fallthru
      _
    // Predicated region
    $region38: #{tpu_custom_call.1} parent=1 // pred_check
      _
    $region39: #{tpu_custom_call.1} parent=1 // pred_check_branch
      %109 = sbr.rel (0) target = $region41
    $region40: #{tpu_custom_call.1} parent=1 // pred_region
      %110 = dma.done [#allocation4], 9216
    $region41: #{tpu_custom_call.1} parent=1 // pred_fallthru
      _
    // Predicated region
    $region42: #{tpu_custom_call.1} parent=1 // pred_check
      _
    $region43: #{tpu_custom_call.1} parent=1 // pred_check_branch
      %112 = sbr.rel (0) target = $region45
    $region44: #{tpu_custom_call.1} parent=1 // pred_region
      %113 = dma.done [#allocation7], 49152
    $region45: #{tpu_custom_call.1} parent=1 // pred_fallthru
      _
    // Predicated region
    $region46: #{tpu_custom_call.1} parent=1 // pred_check
      _
    $region47: #{tpu_custom_call.1} parent=1 // pred_check_branch
      %115 = sbr.rel (0) target = $region49
    $region48: #{tpu_custom_call.1} parent=1 // pred_region
      %116 = dma.done [#allocation7], 64
    $region49: #{tpu_custom_call.1} parent=1 // pred_fallthru
      _
    // Predicated region
    $region50: #{tpu_custom_call.1} parent=1 // pred_check
      _
    $region51: #{tpu_custom_call.1} parent=1 // pred_check_branch
      %118 = sbr.rel (0) target = $region53
    $region52: #{tpu_custom_call.1} parent=1 // pred_region
      %119 = dma.done [#allocation10], 49152
    $region53: #{tpu_custom_call.1} parent=1 // pred_fallthru
      _
    // Predicated region
    $region54: #{tpu_custom_call.1} parent=1 // pred_check
      _
    $region55: #{tpu_custom_call.1} parent=1 // pred_check_branch
      %121 = sbr.rel (0) target = $region57
    $region56: #{tpu_custom_call.1} parent=1 // pred_region
      %122 = dma.done [#allocation10], 64
    $region57: #{tpu_custom_call.1} parent=1 // pred_fallthru
      _
    // Predicated region
    $region58: #{tpu_custom_call.1} parent=1 // pred_check
      _
    $region59: #{tpu_custom_call.1} parent=1 // pred_check_branch
      %124 = sbr.rel (0) target = $region61
    $region60: #{tpu_custom_call.1} parent=1 // pred_region
      %125 = dma.done [#allocation13], 16
    $region61: #{tpu_custom_call.1} parent=1 // pred_fallthru
      _
    // Predicated region
    $region62: #{tpu_custom_call.1} parent=1 // pred_check
      _
    $region63: #{tpu_custom_call.1} parent=1 // pred_check_branch
      %127 = sbr.rel (0) target = $region65
    $region64: #{tpu_custom_call.1} parent=1 // pred_region
      %128 = dma.done [#allocation13], 512
    $region65: #{tpu_custom_call.1} parent=1 // pred_fallthru
      _
    // Predicated region
    $region66: #{tpu_custom_call.1} parent=1 // pred_check
      _
    $region67: #{tpu_custom_call.1} parent=1 // pred_check_branch
      %130 = sbr.rel (0) target = $region69
    $region68: #{tpu_custom_call.1} parent=1 // pred_region
      %131 = dma.done [#allocation16], 64
    $region69: #{tpu_custom_call.1} parent=1 // pred_fallthru
      _
    %v133 = vld [vmem:[#allocation3] sm:$0xff]
    %v134 = vld [vmem:[#allocation3 + $0x8] sm:$0xff]
    %v135 = vld [vmem:[#allocation3 + $0x10] sm:$0xff]
    %v136 = vld [vmem:[#allocation3 + $0x18] sm:$0xff]
    %v137 = vld [vmem:[#allocation3 + $0x20] sm:$0xff]
    %v138 = vld [vmem:[#allocation3 + $0x28] sm:$0xff]
    %v139 = vld [vmem:[#allocation3 + $0x30] sm:$0xff]
    %v140 = vld [vmem:[#allocation3 + $0x38] sm:$0xff]
    %v141 = vld [vmem:[#allocation3 + $0x40] sm:$0xff]
    %v142 = vld [vmem:[#allocation3 + $0x48] sm:$0xff]
    %v143 = vld [vmem:[#allocation3 + $0x50] sm:$0xff]
    %v144 = vld [vmem:[#allocation3 + $0x58] sm:$0xff]
    %v145 = vld [vmem:[#allocation3 + $0x60] sm:$0xff]
    %v146 = vld [vmem:[#allocation3 + $0x68] sm:$0xff]
    %v147 = vld [vmem:[#allocation3 + $0x70] sm:$0xff]
    %v148 = vld [vmem:[#allocation3 + $0x78] sm:$0xff]
    %v149 = vld [vmem:[#allocation3 + $0x80] sm:$0xff]
    %v150 = vld [vmem:[#allocation3 + $0x88] sm:$0xff]
    %v151 = vld [vmem:[#allocation3 + $0x90] sm:$0xff]
    %v152 = vld [vmem:[#allocation3 + $0x98] sm:$0xff]
    %v153 = vld [vmem:[#allocation3 + $0xa0] sm:$0xff]
    %v154 = vld [vmem:[#allocation3 + $0xa8] sm:$0xff]
    %v155 = vld [vmem:[#allocation3 + $0xb0] sm:$0xff]
    %v156 = vld [vmem:[#allocation3 + $0xb8] sm:$0xff]
    %v157 = vld [vmem:[#allocation3 + $0xc0] sm:$0xff]
    %v158 = vld [vmem:[#allocation3 + $0xc8] sm:$0xff]
    %v159 = vld [vmem:[#allocation3 + $0xd0] sm:$0xff]
    %v160 = vld [vmem:[#allocation3 + $0xd8] sm:$0xff]
    %v161 = vld [vmem:[#allocation3 + $0xe0] sm:$0xff]
    %v162 = vld [vmem:[#allocation3 + $0xe8] sm:$0xff]
    %v163 = vld [vmem:[#allocation3 + $0xf0] sm:$0xff]
    %v164 = vld [vmem:[#allocation3 + $0xf8] sm:$0xff]
    %v165 = vld [vmem:[#allocation3 + $0x100] sm:$0xff]
    %v166 = vld [vmem:[#allocation3 + $0x108] sm:$0xff]
    %v167 = vld [vmem:[#allocation3 + $0x110] sm:$0xff]
    %v168 = vld [vmem:[#allocation3 + $0x118] sm:$0xff]
    %v169 = vld [vmem:[#allocation3 + $0x120] sm:$0xff]
    %v170 = vld [vmem:[#allocation3 + $0x128] sm:$0xff]
    %v171 = vld [vmem:[#allocation3 + $0x130] sm:$0xff]
    %v172 = vld [vmem:[#allocation3 + $0x138] sm:$0xff]
    %v173 = vld [vmem:[#allocation3 + $0x140] sm:$0xff]
    %v174 = vld [vmem:[#allocation3 + $0x148] sm:$0xff]
    %v175 = vld [vmem:[#allocation3 + $0x150] sm:$0xff]
    %v176 = vld [vmem:[#allocation3 + $0x158] sm:$0xff]
    %v177 = vld [vmem:[#allocation3 + $0x160] sm:$0xff]
    %v178 = vld [vmem:[#allocation3 + $0x168] sm:$0xff]
    %v179 = vld [vmem:[#allocation3 + $0x170] sm:$0xff]
    %v180 = vld [vmem:[#allocation3 + $0x178] sm:$0xff]
    %v181 = vld [vmem:[#allocation3 + $0x180] sm:$0xff]
    %v182 = vld [vmem:[#allocation3 + $0x188] sm:$0xff]
    %v183 = vld [vmem:[#allocation3 + $0x190] sm:$0xff]
    %v184 = vld [vmem:[#allocation3 + $0x198] sm:$0xff]
    %v185 = vld [vmem:[#allocation3 + $0x1a0] sm:$0xff]
    %v186 = vld [vmem:[#allocation3 + $0x1a8] sm:$0xff]
    %v187 = vld [vmem:[#allocation3 + $0x1b0] sm:$0xff]
    %v188 = vld [vmem:[#allocation3 + $0x1b8] sm:$0xff]
    %v189 = vld [vmem:[#allocation3 + $0x1c0] sm:$0xff]
    %v190 = vld [vmem:[#allocation3 + $0x1c8] sm:$0xff]
    %v191 = vld [vmem:[#allocation3 + $0x1d0] sm:$0xff]
    %v192 = vld [vmem:[#allocation3 + $0x1d8] sm:$0xff]
    %v193 = vld [vmem:[#allocation3 + $0x1e0] sm:$0xff]
    %v194 = vld [vmem:[#allocation3 + $0x1e8] sm:$0xff]
    %v195 = vld [vmem:[#allocation3 + $0x1f0] sm:$0xff]
    %v196 = vld [vmem:[#allocation3 + $0x1f8] sm:$0xff]
    %v197 = vld [vmem:[#allocation3 + $0x200] sm:$0xff]
    %v198 = vld [vmem:[#allocation3 + $0x208] sm:$0xff]
    %v199 = vld [vmem:[#allocation3 + $0x210] sm:$0xff]
    %v200 = vld [vmem:[#allocation3 + $0x218] sm:$0xff]
    %v201 = vld [vmem:[#allocation3 + $0x220] sm:$0xff]
    %v202 = vld [vmem:[#allocation3 + $0x228] sm:$0xff]
    %v203 = vld [vmem:[#allocation3 + $0x230] sm:$0xff]
    %v204 = vld [vmem:[#allocation3 + $0x238] sm:$0xff]
    %v205 = vpack.c.bf16 %v137, %v133
    %v206 = vpack.c.bf16 %v138, %v134
    %v207 = vpack.c.bf16 %v139, %v135
    %v208 = vpack.c.bf16 %v140, %v136
    %v209 = vpack.c.bf16 %v145, %v141
    %v210 = vpack.c.bf16 %v146, %v142
    %v211 = vpack.c.bf16 %v147, %v143
    %v212 = vpack.c.bf16 %v148, %v144
    %v213 = vpack.c.bf16 %v153, %v149
    %v214 = vpack.c.bf16 %v154, %v150
    %v215 = vpack.c.bf16 %v155, %v151
    %v216 = vpack.c.bf16 %v156, %v152
    %v217 = vpack.c.bf16 %v161, %v157
    %v218 = vpack.c.bf16 %v162, %v158
    %v219 = vpack.c.bf16 %v163, %v159
    %v220 = vpack.c.bf16 %v164, %v160
    %v221 = vpack.c.bf16 %v169, %v165
    %v222 = vpack.c.bf16 %v170, %v166
    %v223 = vpack.c.bf16 %v171, %v167
    %v224 = vpack.c.bf16 %v172, %v168
    %v225 = vpack.c.bf16 %v177, %v173
    %v226 = vpack.c.bf16 %v178, %v174
    %v227 = vpack.c.bf16 %v179, %v175
    %v228 = vpack.c.bf16 %v180, %v176
    %v229 = vpack.c.bf16 %v185, %v181
    %v230 = vpack.c.bf16 %v186, %v182
    %v231 = vpack.c.bf16 %v187, %v183
    %v232 = vpack.c.bf16 %v188, %v184
    %v233 = vpack.c.bf16 %v193, %v189
    %v234 = vpack.c.bf16 %v194, %v190
    %v235 = vpack.c.bf16 %v195, %v191
    %v236 = vpack.c.bf16 %v196, %v192
    %v237 = vpack.c.bf16 %v201, %v197
    %v238 = vpack.c.bf16 %v202, %v198
    %v239 = vpack.c.bf16 %v203, %v199
    %v240 = vpack.c.bf16 %v204, %v200
    %v241 = vld [vmem:[#allocation6] sm:$0xff]
    %v242 = vld [vmem:[#allocation6 + $0x8] sm:$0xff]
    %v243 = vld [vmem:[#allocation6 + $0x10] sm:$0xff]
    %v244 = vld [vmem:[#allocation6 + $0x18] sm:$0xff]
    %v245 = vld [vmem:[#allocation6 + $0x20] sm:$0xff]
    %v246 = vld [vmem:[#allocation6 + $0x28] sm:$0xff]
    %v247 = vld [vmem:[#allocation6 + $0x30] sm:$0xff]
    %v248 = vld [vmem:[#allocation6 + $0x38] sm:$0xff]
    %v249 = vld [vmem:[#allocation6 + $0x40] sm:$0xff]
    %v250 = vld [vmem:[#allocation6 + $0x48] sm:$0xff]
    %v251 = vld [vmem:[#allocation6 + $0x50] sm:$0xff]
    %v252 = vld [vmem:[#allocation6 + $0x58] sm:$0xff]
    %v253 = vld [vmem:[#allocation6 + $0x60] sm:$0xff]
    %v254 = vld [vmem:[#allocation6 + $0x68] sm:$0xff]
    %v255 = vld [vmem:[#allocation6 + $0x70] sm:$0xff]
    %v256 = vld [vmem:[#allocation6 + $0x78] sm:$0xff]
    %v257 = vld [vmem:[#allocation6 + $0x80] sm:$0xff]
    %v258 = vld [vmem:[#allocation6 + $0x88] sm:$0xff]
    %v259 = vld [vmem:[#allocation6 + $0x90] sm:$0xff]
    %v260 = vld [vmem:[#allocation6 + $0x98] sm:$0xff]
    %v261 = vld [vmem:[#allocation6 + $0xa0] sm:$0xff]
    %v262 = vld [vmem:[#allocation6 + $0xa8] sm:$0xff]
    %v263 = vld [vmem:[#allocation6 + $0xb0] sm:$0xff]
    %v264 = vld [vmem:[#allocation6 + $0xb8] sm:$0xff]
    %v265 = vld [vmem:[#allocation6 + $0xc0] sm:$0xff]
    %v266 = vld [vmem:[#allocation6 + $0xc8] sm:$0xff]
    %v267 = vld [vmem:[#allocation6 + $0xd0] sm:$0xff]
    %v268 = vld [vmem:[#allocation6 + $0xd8] sm:$0xff]
    %v269 = vld [vmem:[#allocation6 + $0xe0] sm:$0xff]
    %v270 = vld [vmem:[#allocation6 + $0xe8] sm:$0xff]
    %v271 = vld [vmem:[#allocation6 + $0xf0] sm:$0xff]
    %v272 = vld [vmem:[#allocation6 + $0xf8] sm:$0xff]
    %v273 = vld [vmem:[#allocation6 + $0x100] sm:$0xff]
    %v274 = vld [vmem:[#allocation6 + $0x108] sm:$0xff]
    %v275 = vld [vmem:[#allocation6 + $0x110] sm:$0xff]
    %v276 = vld [vmem:[#allocation6 + $0x118] sm:$0xff]
    %v277 = vld [vmem:[#allocation6 + $0x120] sm:$0xff]
    %v278 = vld [vmem:[#allocation6 + $0x128] sm:$0xff]
    %v279 = vld [vmem:[#allocation6 + $0x130] sm:$0xff]
    %v280 = vld [vmem:[#allocation6 + $0x138] sm:$0xff]
    %v281 = vld [vmem:[#allocation6 + $0x140] sm:$0xff]
    %v282 = vld [vmem:[#allocation6 + $0x148] sm:$0xff]
    %v283 = vld [vmem:[#allocation6 + $0x150] sm:$0xff]
    %v284 = vld [vmem:[#allocation6 + $0x158] sm:$0xff]
    %v285 = vld [vmem:[#allocation6 + $0x160] sm:$0xff]
    %v286 = vld [vmem:[#allocation6 + $0x168] sm:$0xff]
    %v287 = vld [vmem:[#allocation6 + $0x170] sm:$0xff]
    %v288 = vld [vmem:[#allocation6 + $0x178] sm:$0xff]
    %v289 = vld [vmem:[#allocation6 + $0x180] sm:$0xff]
    %v290 = vld [vmem:[#allocation6 + $0x188] sm:$0xff]
    %v291 = vld [vmem:[#allocation6 + $0x190] sm:$0xff]
    %v292 = vld [vmem:[#allocation6 + $0x198] sm:$0xff]
    %v293 = vld [vmem:[#allocation6 + $0x1a0] sm:$0xff]
    %v294 = vld [vmem:[#allocation6 + $0x1a8] sm:$0xff]
    %v295 = vld [vmem:[#allocation6 + $0x1b0] sm:$0xff]
    %v296 = vld [vmem:[#allocation6 + $0x1b8] sm:$0xff]
    %v297 = vld [vmem:[#allocation6 + $0x1c0] sm:$0xff]
    %v298 = vld [vmem:[#allocation6 + $0x1c8] sm:$0xff]
    %v299 = vld [vmem:[#allocation6 + $0x1d0] sm:$0xff]
    %v300 = vld [vmem:[#allocation6 + $0x1d8] sm:$0xff]
    %v301 = vld [vmem:[#allocation6 + $0x1e0] sm:$0xff]
    %v302 = vld [vmem:[#allocation6 + $0x1e8] sm:$0xff]
    %v303 = vld [vmem:[#allocation6 + $0x1f0] sm:$0xff]
    %v304 = vld [vmem:[#allocation6 + $0x1f8] sm:$0xff]
    %v305 = vld [vmem:[#allocation6 + $0x200] sm:$0xff]
    %v306 = vld [vmem:[#allocation6 + $0x208] sm:$0xff]
    %v307 = vld [vmem:[#allocation6 + $0x210] sm:$0xff]
    %v308 = vld [vmem:[#allocation6 + $0x218] sm:$0xff]
    %v309 = vld [vmem:[#allocation6 + $0x220] sm:$0xff]
    %v310 = vld [vmem:[#allocation6 + $0x228] sm:$0xff]
    %v311 = vld [vmem:[#allocation6 + $0x230] sm:$0xff]
    %v312 = vld [vmem:[#allocation6 + $0x238] sm:$0xff]
    %v313 = vld [vmem:[#allocation6 + $0x240] sm:$0xff]
    %v314 = vld [vmem:[#allocation6 + $0x248] sm:$0xff]
    %v315 = vld [vmem:[#allocation6 + $0x250] sm:$0xff]
    %v316 = vld [vmem:[#allocation6 + $0x258] sm:$0xff]
    %v317 = vld [vmem:[#allocation6 + $0x260] sm:$0xff]
    %v318 = vld [vmem:[#allocation6 + $0x268] sm:$0xff]
    %v319 = vld [vmem:[#allocation6 + $0x270] sm:$0xff]
    %v320 = vld [vmem:[#allocation6 + $0x278] sm:$0xff]
    %v321 = vld [vmem:[#allocation6 + $0x280] sm:$0xff]
    %v322 = vld [vmem:[#allocation6 + $0x288] sm:$0xff]
    %v323 = vld [vmem:[#allocation6 + $0x290] sm:$0xff]
    %v324 = vld [vmem:[#allocation6 + $0x298] sm:$0xff]
    %v325 = vld [vmem:[#allocation6 + $0x2a0] sm:$0xff]
    %v326 = vld [vmem:[#allocation6 + $0x2a8] sm:$0xff]
    %v327 = vld [vmem:[#allocation6 + $0x2b0] sm:$0xff]
    %v328 = vld [vmem:[#allocation6 + $0x2b8] sm:$0xff]
    %v329 = vld [vmem:[#allocation6 + $0x2c0] sm:$0xff]
    %v330 = vld [vmem:[#allocation6 + $0x2c8] sm:$0xff]
    %v331 = vld [vmem:[#allocation6 + $0x2d0] sm:$0xff]
    %v332 = vld [vmem:[#allocation6 + $0x2d8] sm:$0xff]
    %v333 = vld [vmem:[#allocation6 + $0x2e0] sm:$0xff]
    %v334 = vld [vmem:[#allocation6 + $0x2e8] sm:$0xff]
    %v335 = vld [vmem:[#allocation6 + $0x2f0] sm:$0xff]
    %v336 = vld [vmem:[#allocation6 + $0x2f8] sm:$0xff]
    %v337 = vld [vmem:[#allocation6 + $0x300] sm:$0xff]
    %v338 = vld [vmem:[#allocation6 + $0x308] sm:$0xff]
    %v339 = vld [vmem:[#allocation6 + $0x310] sm:$0xff]
    %v340 = vld [vmem:[#allocation6 + $0x318] sm:$0xff]
    %v341 = vld [vmem:[#allocation6 + $0x320] sm:$0xff]
    %v342 = vld [vmem:[#allocation6 + $0x328] sm:$0xff]
    %v343 = vld [vmem:[#allocation6 + $0x330] sm:$0xff]
    %v344 = vld [vmem:[#allocation6 + $0x338] sm:$0xff]
    %v345 = vld [vmem:[#allocation6 + $0x340] sm:$0xff]
    %v346 = vld [vmem:[#allocation6 + $0x348] sm:$0xff]
    %v347 = vld [vmem:[#allocation6 + $0x350] sm:$0xff]
    %v348 = vld [vmem:[#allocation6 + $0x358] sm:$0xff]
    %v349 = vld [vmem:[#allocation6 + $0x360] sm:$0xff]
    %v350 = vld [vmem:[#allocation6 + $0x368] sm:$0xff]
    %v351 = vld [vmem:[#allocation6 + $0x370] sm:$0xff]
    %v352 = vld [vmem:[#allocation6 + $0x378] sm:$0xff]
    %v353 = vld [vmem:[#allocation6 + $0x380] sm:$0xff]
    %v354 = vld [vmem:[#allocation6 + $0x388] sm:$0xff]
    %v355 = vld [vmem:[#allocation6 + $0x390] sm:$0xff]
    %v356 = vld [vmem:[#allocation6 + $0x398] sm:$0xff]
    %v357 = vld [vmem:[#allocation6 + $0x3a0] sm:$0xff]
    %v358 = vld [vmem:[#allocation6 + $0x3a8] sm:$0xff]
    %v359 = vld [vmem:[#allocation6 + $0x3b0] sm:$0xff]
    %v360 = vld [vmem:[#allocation6 + $0x3b8] sm:$0xff]
    %v361 = vld [vmem:[#allocation6 + $0x3c0] sm:$0xff]
    %v362 = vld [vmem:[#allocation6 + $0x3c8] sm:$0xff]
    %v363 = vld [vmem:[#allocation6 + $0x3d0] sm:$0xff]
    %v364 = vld [vmem:[#allocation6 + $0x3d8] sm:$0xff]
    %v365 = vld [vmem:[#allocation6 + $0x3e0] sm:$0xff]
    %v366 = vld [vmem:[#allocation6 + $0x3e8] sm:$0xff]
    %v367 = vld [vmem:[#allocation6 + $0x3f0] sm:$0xff]
    %v368 = vld [vmem:[#allocation6 + $0x3f8] sm:$0xff]
    %s369 = scalar_lea.vmem [#allocation6], 1024
    %v370 = vld [vmem:[%s369] sm:$0xff]
    %v371 = vld [vmem:[%s369 + $0x8] sm:$0xff]
    %v372 = vld [vmem:[%s369 + $0x10] sm:$0xff]
    %v373 = vld [vmem:[%s369 + $0x18] sm:$0xff]
    %v374 = vld [vmem:[%s369 + $0x20] sm:$0xff]
    %v375 = vld [vmem:[%s369 + $0x28] sm:$0xff]
    %v376 = vld [vmem:[%s369 + $0x30] sm:$0xff]
    %v377 = vld [vmem:[%s369 + $0x38] sm:$0xff]
    %v378 = vld [vmem:[%s369 + $0x40] sm:$0xff]
    %v379 = vld [vmem:[%s369 + $0x48] sm:$0xff]
    %v380 = vld [vmem:[%s369 + $0x50] sm:$0xff]
    %v381 = vld [vmem:[%s369 + $0x58] sm:$0xff]
    %v382 = vld [vmem:[%s369 + $0x60] sm:$0xff]
    %v383 = vld [vmem:[%s369 + $0x68] sm:$0xff]
    %v384 = vld [vmem:[%s369 + $0x70] sm:$0xff]
    %v385 = vld [vmem:[%s369 + $0x78] sm:$0xff]
    %v386 = vld [vmem:[%s369 + $0x80] sm:$0xff]
    %v387 = vld [vmem:[%s369 + $0x88] sm:$0xff]
    %v388 = vld [vmem:[%s369 + $0x90] sm:$0xff]
    %v389 = vld [vmem:[%s369 + $0x98] sm:$0xff]
    %v390 = vld [vmem:[%s369 + $0xa0] sm:$0xff]
    %v391 = vld [vmem:[%s369 + $0xa8] sm:$0xff]
    %v392 = vld [vmem:[%s369 + $0xb0] sm:$0xff]
    %v393 = vld [vmem:[%s369 + $0xb8] sm:$0xff]
    %v394 = vld [vmem:[%s369 + $0xc0] sm:$0xff]
    %v395 = vld [vmem:[%s369 + $0xc8] sm:$0xff]
    %v396 = vld [vmem:[%s369 + $0xd0] sm:$0xff]
    %v397 = vld [vmem:[%s369 + $0xd8] sm:$0xff]
    %v398 = vld [vmem:[%s369 + $0xe0] sm:$0xff]
    %v399 = vld [vmem:[%s369 + $0xe8] sm:$0xff]
    %v400 = vld [vmem:[%s369 + $0xf0] sm:$0xff]
    %v401 = vld [vmem:[%s369 + $0xf8] sm:$0xff]
    %v402 = vld [vmem:[%s369 + $0x100] sm:$0xff]
    %v403 = vld [vmem:[%s369 + $0x108] sm:$0xff]
    %v404 = vld [vmem:[%s369 + $0x110] sm:$0xff]
    %v405 = vld [vmem:[%s369 + $0x118] sm:$0xff]
    %v406 = vld [vmem:[%s369 + $0x120] sm:$0xff]
    %v407 = vld [vmem:[%s369 + $0x128] sm:$0xff]
    %v408 = vld [vmem:[%s369 + $0x130] sm:$0xff]
    %v409 = vld [vmem:[%s369 + $0x138] sm:$0xff]
    %v410 = vld [vmem:[%s369 + $0x140] sm:$0xff]
    %v411 = vld [vmem:[%s369 + $0x148] sm:$0xff]
    %v412 = vld [vmem:[%s369 + $0x150] sm:$0xff]
    %v413 = vld [vmem:[%s369 + $0x158] sm:$0xff]
    %v414 = vld [vmem:[%s369 + $0x160] sm:$0xff]
    %v415 = vld [vmem:[%s369 + $0x168] sm:$0xff]
    %v416 = vld [vmem:[%s369 + $0x170] sm:$0xff]
    %v417 = vld [vmem:[%s369 + $0x178] sm:$0xff]
    %v418 = vld [vmem:[%s369 + $0x180] sm:$0xff]
    %v419 = vld [vmem:[%s369 + $0x188] sm:$0xff]
    %v420 = vld [vmem:[%s369 + $0x190] sm:$0xff]
    %v421 = vld [vmem:[%s369 + $0x198] sm:$0xff]
    %v422 = vld [vmem:[%s369 + $0x1a0] sm:$0xff]
    %v423 = vld [vmem:[%s369 + $0x1a8] sm:$0xff]
    %v424 = vld [vmem:[%s369 + $0x1b0] sm:$0xff]
    %v425 = vld [vmem:[%s369 + $0x1b8] sm:$0xff]
    %v426 = vld [vmem:[%s369 + $0x1c0] sm:$0xff]
    %v427 = vld [vmem:[%s369 + $0x1c8] sm:$0xff]
    %v428 = vld [vmem:[%s369 + $0x1d0] sm:$0xff]
    %v429 = vld [vmem:[%s369 + $0x1d8] sm:$0xff]
    %v430 = vld [vmem:[%s369 + $0x1e0] sm:$0xff]
    %v431 = vld [vmem:[%s369 + $0x1e8] sm:$0xff]
    %v432 = vld [vmem:[%s369 + $0x1f0] sm:$0xff]
    %v433 = vld [vmem:[%s369 + $0x1f8] sm:$0xff]
    %v434 = vld [vmem:[%s369 + $0x200] sm:$0xff]
    %v435 = vld [vmem:[%s369 + $0x208] sm:$0xff]
    %v436 = vld [vmem:[%s369 + $0x210] sm:$0xff]
    %v437 = vld [vmem:[%s369 + $0x218] sm:$0xff]
    %v438 = vld [vmem:[%s369 + $0x220] sm:$0xff]
    %v439 = vld [vmem:[%s369 + $0x228] sm:$0xff]
    %v440 = vld [vmem:[%s369 + $0x230] sm:$0xff]
    %v441 = vld [vmem:[%s369 + $0x238] sm:$0xff]
    %v442 = vld [vmem:[%s369 + $0x240] sm:$0xff]
    %v443 = vld [vmem:[%s369 + $0x248] sm:$0xff]
    %v444 = vld [vmem:[%s369 + $0x250] sm:$0xff]
    %v445 = vld [vmem:[%s369 + $0x258] sm:$0xff]
    %v446 = vld [vmem:[%s369 + $0x260] sm:$0xff]
    %v447 = vld [vmem:[%s369 + $0x268] sm:$0xff]
    %v448 = vld [vmem:[%s369 + $0x270] sm:$0xff]
    %v449 = vld [vmem:[%s369 + $0x278] sm:$0xff]
    %v450 = vld [vmem:[%s369 + $0x280] sm:$0xff]
    %v451 = vld [vmem:[%s369 + $0x288] sm:$0xff]
    %v452 = vld [vmem:[%s369 + $0x290] sm:$0xff]
    %v453 = vld [vmem:[%s369 + $0x298] sm:$0xff]
    %v454 = vld [vmem:[%s369 + $0x2a0] sm:$0xff]
    %v455 = vld [vmem:[%s369 + $0x2a8] sm:$0xff]
    %v456 = vld [vmem:[%s369 + $0x2b0] sm:$0xff]
    %v457 = vld [vmem:[%s369 + $0x2b8] sm:$0xff]
    %v458 = vld [vmem:[%s369 + $0x2c0] sm:$0xff]
    %v459 = vld [vmem:[%s369 + $0x2c8] sm:$0xff]
    %v460 = vld [vmem:[%s369 + $0x2d0] sm:$0xff]
    %v461 = vld [vmem:[%s369 + $0x2d8] sm:$0xff]
    %v462 = vld [vmem:[%s369 + $0x2e0] sm:$0xff]
    %v463 = vld [vmem:[%s369 + $0x2e8] sm:$0xff]
    %v464 = vld [vmem:[%s369 + $0x2f0] sm:$0xff]
    %v465 = vld [vmem:[%s369 + $0x2f8] sm:$0xff]
    %v466 = vld [vmem:[%s369 + $0x300] sm:$0xff]
    %v467 = vld [vmem:[%s369 + $0x308] sm:$0xff]
    %v468 = vld [vmem:[%s369 + $0x310] sm:$0xff]
    %v469 = vld [vmem:[%s369 + $0x318] sm:$0xff]
    %v470 = vld [vmem:[%s369 + $0x320] sm:$0xff]
    %v471 = vld [vmem:[%s369 + $0x328] sm:$0xff]
    %v472 = vld [vmem:[%s369 + $0x330] sm:$0xff]
    %v473 = vld [vmem:[%s369 + $0x338] sm:$0xff]
    %v474 = vld [vmem:[%s369 + $0x340] sm:$0xff]
    %v475 = vld [vmem:[%s369 + $0x348] sm:$0xff]
    %v476 = vld [vmem:[%s369 + $0x350] sm:$0xff]
    %v477 = vld [vmem:[%s369 + $0x358] sm:$0xff]
    %v478 = vld [vmem:[%s369 + $0x360] sm:$0xff]
    %v479 = vld [vmem:[%s369 + $0x368] sm:$0xff]
    %v480 = vld [vmem:[%s369 + $0x370] sm:$0xff]
    %v481 = vld [vmem:[%s369 + $0x378] sm:$0xff]
    %v482 = vld [vmem:[%s369 + $0x380] sm:$0xff]
    %v483 = vld [vmem:[%s369 + $0x388] sm:$0xff]
    %v484 = vld [vmem:[%s369 + $0x390] sm:$0xff]
    %v485 = vld [vmem:[%s369 + $0x398] sm:$0xff]
    %v486 = vld [vmem:[%s369 + $0x3a0] sm:$0xff]
    %v487 = vld [vmem:[%s369 + $0x3a8] sm:$0xff]
    %v488 = vld [vmem:[%s369 + $0x3b0] sm:$0xff]
    %v489 = vld [vmem:[%s369 + $0x3b8] sm:$0xff]
    %v490 = vld [vmem:[%s369 + $0x3c0] sm:$0xff]
    %v491 = vld [vmem:[%s369 + $0x3c8] sm:$0xff]
    %v492 = vld [vmem:[%s369 + $0x3d0] sm:$0xff]
    %v493 = vld [vmem:[%s369 + $0x3d8] sm:$0xff]
    %v494 = vld [vmem:[%s369 + $0x3e0] sm:$0xff]
    %v495 = vld [vmem:[%s369 + $0x3e8] sm:$0xff]
    %v496 = vld [vmem:[%s369 + $0x3f0] sm:$0xff]
    %v497 = vld [vmem:[%s369 + $0x3f8] sm:$0xff]
    %vm534 = vcmask 1043456
    %v535 = vrot.slane %v205, 4
    %v536 = vrot.slane %v209, 4
    %v537 = vsel %vm534, %v535, %v536
    %v538 = vrot.slane %v206, 4
    %v539 = vrot.slane %v210, 4
    %v540 = vsel %vm534, %v538, %v539
    %v541 = vrot.slane %v207, 4
    %v542 = vrot.slane %v211, 4
    %v543 = vsel %vm534, %v541, %v542
    %v544 = vrot.slane %v208, 4
    %v545 = vrot.slane %v212, 4
    %v546 = vsel %vm534, %v544, %v545
    %v547 = vrot.slane %v213, 4
    %v548 = vsel %vm534, %v536, %v547
    %v549 = vrot.slane %v214, 4
    %v550 = vsel %vm534, %v539, %v549
    %v551 = vrot.slane %v215, 4
    %v552 = vsel %vm534, %v542, %v551
    %v553 = vrot.slane %v216, 4
    %v554 = vsel %vm534, %v545, %v553
    %v555 = vrot.slane %v217, 4
    %v556 = vsel %vm534, %v547, %v555
    %v557 = vrot.slane %v218, 4
    %v558 = vsel %vm534, %v549, %v557
    %v559 = vrot.slane %v219, 4
    %v560 = vsel %vm534, %v551, %v559
    %v561 = vrot.slane %v220, 4
    %v562 = vsel %vm534, %v553, %v561
    %v563 = vrot.slane %v221, 4
    %v564 = vsel %vm534, %v555, %v563
    %v565 = vrot.slane %v222, 4
    %v566 = vsel %vm534, %v557, %v565
    %v567 = vrot.slane %v223, 4
    %v568 = vsel %vm534, %v559, %v567
    %v569 = vrot.slane %v224, 4
    %v570 = vsel %vm534, %v561, %v569
    %v571 = vrot.slane %v225, 4
    %v572 = vsel %vm534, %v563, %v571
    %v573 = vrot.slane %v226, 4
    %v574 = vsel %vm534, %v565, %v573
    %v575 = vrot.slane %v227, 4
    %v576 = vsel %vm534, %v567, %v575
    %v577 = vrot.slane %v228, 4
    %v578 = vsel %vm534, %v569, %v577
    %v579 = vrot.slane %v229, 4
    %v580 = vsel %vm534, %v571, %v579
    %v581 = vrot.slane %v230, 4
    %v582 = vsel %vm534, %v573, %v581
    %v583 = vrot.slane %v231, 4
    %v584 = vsel %vm534, %v575, %v583
    %v585 = vrot.slane %v232, 4
    %v586 = vsel %vm534, %v577, %v585
    %v587 = vrot.slane %v233, 4
    %v588 = vsel %vm534, %v579, %v587
    %v589 = vrot.slane %v234, 4
    %v590 = vsel %vm534, %v581, %v589
    %v591 = vrot.slane %v235, 4
    %v592 = vsel %vm534, %v583, %v591
    %v593 = vrot.slane %v236, 4
    %v594 = vsel %vm534, %v585, %v593
    %v595 = vrot.slane %v237, 4
    %v596 = vsel %vm534, %v587, %v595
    %v597 = vrot.slane %v238, 4
    %v598 = vsel %vm534, %v589, %v597
    %v599 = vrot.slane %v239, 4
    %v600 = vsel %vm534, %v591, %v599
    %v601 = vrot.slane %v240, 4
    %v602 = vsel %vm534, %v593, %v601
    %v763 = vunpack.c.l.b16 %v370
    %v764 = vunpack.c.h.b16 %v370
    %v765 = vunpack.c.l.b16 %v371
    %v766 = vunpack.c.h.b16 %v371
    %v767 = vunpack.c.l.b16 %v372
    %v768 = vunpack.c.h.b16 %v372
    %v769 = vunpack.c.l.b16 %v373
    %v770 = vunpack.c.h.b16 %v373
    %v771 = vunpack.c.l.b16 %v374
    %v772 = vunpack.c.h.b16 %v374
    %v773 = vunpack.c.l.b16 %v375
    %v774 = vunpack.c.h.b16 %v375
    %v775 = vunpack.c.l.b16 %v376
    %v776 = vunpack.c.h.b16 %v376
    %v777 = vunpack.c.l.b16 %v377
    %v778 = vunpack.c.h.b16 %v377
    %v779 = vunpack.c.l.b16 %v378
    %v780 = vunpack.c.h.b16 %v378
    %v781 = vunpack.c.l.b16 %v379
    %v782 = vunpack.c.h.b16 %v379
    %v783 = vunpack.c.l.b16 %v380
    %v784 = vunpack.c.h.b16 %v380
    %v785 = vunpack.c.l.b16 %v381
    %v786 = vunpack.c.h.b16 %v381
    %v787 = vunpack.c.l.b16 %v382
    %v788 = vunpack.c.h.b16 %v382
    %v789 = vunpack.c.l.b16 %v383
    %v790 = vunpack.c.h.b16 %v383
    %v791 = vunpack.c.l.b16 %v384
    %v792 = vunpack.c.h.b16 %v384
    %v793 = vunpack.c.l.b16 %v385
    %v794 = vunpack.c.h.b16 %v385
    %v795 = vunpack.c.l.b16 %v386
    %v796 = vunpack.c.h.b16 %v386
    %v797 = vunpack.c.l.b16 %v387
    %v798 = vunpack.c.h.b16 %v387
    %v799 = vunpack.c.l.b16 %v388
    %v800 = vunpack.c.h.b16 %v388
    %v801 = vunpack.c.l.b16 %v389
    %v802 = vunpack.c.h.b16 %v389
    %v803 = vunpack.c.l.b16 %v390
    %v804 = vunpack.c.h.b16 %v390
    %v805 = vunpack.c.l.b16 %v391
    %v806 = vunpack.c.h.b16 %v391
    %v807 = vunpack.c.l.b16 %v392
    %v808 = vunpack.c.h.b16 %v392
    %v809 = vunpack.c.l.b16 %v393
    %v810 = vunpack.c.h.b16 %v393
    %v811 = vunpack.c.l.b16 %v394
    %v812 = vunpack.c.h.b16 %v394
    %v813 = vunpack.c.l.b16 %v395
    %v814 = vunpack.c.h.b16 %v395
    %v815 = vunpack.c.l.b16 %v396
    %v816 = vunpack.c.h.b16 %v396
    %v817 = vunpack.c.l.b16 %v397
    %v818 = vunpack.c.h.b16 %v397
    %v819 = vunpack.c.l.b16 %v398
    %v820 = vunpack.c.h.b16 %v398
    %v821 = vunpack.c.l.b16 %v399
    %v822 = vunpack.c.h.b16 %v399
    %v823 = vunpack.c.l.b16 %v400
    %v824 = vunpack.c.h.b16 %v400
    %v825 = vunpack.c.l.b16 %v401
    %v826 = vunpack.c.h.b16 %v401
    %v827 = vunpack.c.l.b16 %v402
    %v828 = vunpack.c.h.b16 %v402
    %v829 = vunpack.c.l.b16 %v403
    %v830 = vunpack.c.h.b16 %v403
    %v831 = vunpack.c.l.b16 %v404
    %v832 = vunpack.c.h.b16 %v404
    %v833 = vunpack.c.l.b16 %v405
    %v834 = vunpack.c.h.b16 %v405
    %v835 = vunpack.c.l.b16 %v406
    %v836 = vunpack.c.h.b16 %v406
    %v837 = vunpack.c.l.b16 %v407
    %v838 = vunpack.c.h.b16 %v407
    %v839 = vunpack.c.l.b16 %v408
    %v840 = vunpack.c.h.b16 %v408
    %v841 = vunpack.c.l.b16 %v409
    %v842 = vunpack.c.h.b16 %v409
    %v843 = vunpack.c.l.b16 %v410
    %v844 = vunpack.c.h.b16 %v410
    %v845 = vunpack.c.l.b16 %v411
    %v846 = vunpack.c.h.b16 %v411
    %v847 = vunpack.c.l.b16 %v412
    %v848 = vunpack.c.h.b16 %v412
    %v849 = vunpack.c.l.b16 %v413
    %v850 = vunpack.c.h.b16 %v413
    %v851 = vunpack.c.l.b16 %v414
    %v852 = vunpack.c.h.b16 %v414
    %v853 = vunpack.c.l.b16 %v415
    %v854 = vunpack.c.h.b16 %v415
    %v855 = vunpack.c.l.b16 %v416
    %v856 = vunpack.c.h.b16 %v416
    %v857 = vunpack.c.l.b16 %v417
    %v858 = vunpack.c.h.b16 %v417
    %v859 = vunpack.c.l.b16 %v418
    %v860 = vunpack.c.h.b16 %v418
    %v861 = vunpack.c.l.b16 %v419
    %v862 = vunpack.c.h.b16 %v419
    %v863 = vunpack.c.l.b16 %v420
    %v864 = vunpack.c.h.b16 %v420
    %v865 = vunpack.c.l.b16 %v421
    %v866 = vunpack.c.h.b16 %v421
    %v867 = vunpack.c.l.b16 %v422
    %v868 = vunpack.c.h.b16 %v422
    %v869 = vunpack.c.l.b16 %v423
    %v870 = vunpack.c.h.b16 %v423
    %v871 = vunpack.c.l.b16 %v424
    %v872 = vunpack.c.h.b16 %v424
    %v873 = vunpack.c.l.b16 %v425
    %v874 = vunpack.c.h.b16 %v425
    %v875 = vunpack.c.l.b16 %v426
    %v876 = vunpack.c.h.b16 %v426
    %v877 = vunpack.c.l.b16 %v427
    %v878 = vunpack.c.h.b16 %v427
    %v879 = vunpack.c.l.b16 %v428
    %v880 = vunpack.c.h.b16 %v428
    %v881 = vunpack.c.l.b16 %v429
    %v882 = vunpack.c.h.b16 %v429
    %v883 = vunpack.c.l.b16 %v430
    %v884 = vunpack.c.h.b16 %v430
    %v885 = vunpack.c.l.b16 %v431
    %v886 = vunpack.c.h.b16 %v431
    %v887 = vunpack.c.l.b16 %v432
    %v888 = vunpack.c.h.b16 %v432
    %v889 = vunpack.c.l.b16 %v433
    %v890 = vunpack.c.h.b16 %v433
    %v891 = vunpack.c.l.b16 %v434
    %v892 = vunpack.c.h.b16 %v434
    %v893 = vunpack.c.l.b16 %v435
    %v894 = vunpack.c.h.b16 %v435
    %v895 = vunpack.c.l.b16 %v436
    %v896 = vunpack.c.h.b16 %v436
    %v897 = vunpack.c.l.b16 %v437
    %v898 = vunpack.c.h.b16 %v437
    %v899 = vunpack.c.l.b16 %v438
    %v900 = vunpack.c.h.b16 %v438
    %v901 = vunpack.c.l.b16 %v439
    %v902 = vunpack.c.h.b16 %v439
    %v903 = vunpack.c.l.b16 %v440
    %v904 = vunpack.c.h.b16 %v440
    %v905 = vunpack.c.l.b16 %v441
    %v906 = vunpack.c.h.b16 %v441
    %v907 = vunpack.c.l.b16 %v442
    %v908 = vunpack.c.h.b16 %v442
    %v909 = vunpack.c.l.b16 %v443
    %v910 = vunpack.c.h.b16 %v443
    %v911 = vunpack.c.l.b16 %v444
    %v912 = vunpack.c.h.b16 %v444
    %v913 = vunpack.c.l.b16 %v445
    %v914 = vunpack.c.h.b16 %v445
    %v915 = vunpack.c.l.b16 %v446
    %v916 = vunpack.c.h.b16 %v446
    %v917 = vunpack.c.l.b16 %v447
    %v918 = vunpack.c.h.b16 %v447
    %v919 = vunpack.c.l.b16 %v448
    %v920 = vunpack.c.h.b16 %v448
    %v921 = vunpack.c.l.b16 %v449
    %v922 = vunpack.c.h.b16 %v449
    %v923 = vunpack.c.l.b16 %v450
    %v924 = vunpack.c.h.b16 %v450
    %v925 = vunpack.c.l.b16 %v451
    %v926 = vunpack.c.h.b16 %v451
    %v927 = vunpack.c.l.b16 %v452
    %v928 = vunpack.c.h.b16 %v452
    %v929 = vunpack.c.l.b16 %v453
    %v930 = vunpack.c.h.b16 %v453
    %v931 = vunpack.c.l.b16 %v454
    %v932 = vunpack.c.h.b16 %v454
    %v933 = vunpack.c.l.b16 %v455
    %v934 = vunpack.c.h.b16 %v455
    %v935 = vunpack.c.l.b16 %v456
    %v936 = vunpack.c.h.b16 %v456
    %v937 = vunpack.c.l.b16 %v457
    %v938 = vunpack.c.h.b16 %v457
    %v939 = vunpack.c.l.b16 %v458
    %v940 = vunpack.c.h.b16 %v458
    %v941 = vunpack.c.l.b16 %v459
    %v942 = vunpack.c.h.b16 %v459
    %v943 = vunpack.c.l.b16 %v460
    %v944 = vunpack.c.h.b16 %v460
    %v945 = vunpack.c.l.b16 %v461
    %v946 = vunpack.c.h.b16 %v461
    %v947 = vunpack.c.l.b16 %v462
    %v948 = vunpack.c.h.b16 %v462
    %v949 = vunpack.c.l.b16 %v463
    %v950 = vunpack.c.h.b16 %v463
    %v951 = vunpack.c.l.b16 %v464
    %v952 = vunpack.c.h.b16 %v464
    %v953 = vunpack.c.l.b16 %v465
    %v954 = vunpack.c.h.b16 %v465
    %v955 = vunpack.c.l.b16 %v466
    %v956 = vunpack.c.h.b16 %v466
    %v957 = vunpack.c.l.b16 %v467
    %v958 = vunpack.c.h.b16 %v467
    %v959 = vunpack.c.l.b16 %v468
    %v960 = vunpack.c.h.b16 %v468
    %v961 = vunpack.c.l.b16 %v469
    %v962 = vunpack.c.h.b16 %v469
    %v963 = vunpack.c.l.b16 %v470
    %v964 = vunpack.c.h.b16 %v470
    %v965 = vunpack.c.l.b16 %v471
    %v966 = vunpack.c.h.b16 %v471
    %v967 = vunpack.c.l.b16 %v472
    %v968 = vunpack.c.h.b16 %v472
    %v969 = vunpack.c.l.b16 %v473
    %v970 = vunpack.c.h.b16 %v473
    %v971 = vunpack.c.l.b16 %v474
    %v972 = vunpack.c.h.b16 %v474
    %v973 = vunpack.c.l.b16 %v475
    %v974 = vunpack.c.h.b16 %v475
    %v975 = vunpack.c.l.b16 %v476
    %v976 = vunpack.c.h.b16 %v476
    %v977 = vunpack.c.l.b16 %v477
    %v978 = vunpack.c.h.b16 %v477
    %v979 = vunpack.c.l.b16 %v478
    %v980 = vunpack.c.h.b16 %v478
    %v981 = vunpack.c.l.b16 %v479
    %v982 = vunpack.c.h.b16 %v479
    %v983 = vunpack.c.l.b16 %v480
    %v984 = vunpack.c.h.b16 %v480
    %v985 = vunpack.c.l.b16 %v481
    %v986 = vunpack.c.h.b16 %v481
    %v987 = vunpack.c.l.b16 %v482
    %v988 = vunpack.c.h.b16 %v482
    %v989 = vunpack.c.l.b16 %v483
    %v990 = vunpack.c.h.b16 %v483
    %v991 = vunpack.c.l.b16 %v484
    %v992 = vunpack.c.h.b16 %v484
    %v993 = vunpack.c.l.b16 %v485
    %v994 = vunpack.c.h.b16 %v485
    %v995 = vunpack.c.l.b16 %v486
    %v996 = vunpack.c.h.b16 %v486
    %v997 = vunpack.c.l.b16 %v487
    %v998 = vunpack.c.h.b16 %v487
    %v999 = vunpack.c.l.b16 %v488
    %v1000 = vunpack.c.h.b16 %v488
    %v1001 = vunpack.c.l.b16 %v489
    %v1002 = vunpack.c.h.b16 %v489
    %v1003 = vunpack.c.l.b16 %v490
    %v1004 = vunpack.c.h.b16 %v490
    %v1005 = vunpack.c.l.b16 %v491
    %v1006 = vunpack.c.h.b16 %v491
    %v1007 = vunpack.c.l.b16 %v492
    %v1008 = vunpack.c.h.b16 %v492
    %v1009 = vunpack.c.l.b16 %v493
    %v1010 = vunpack.c.h.b16 %v493
    %v1011 = vunpack.c.l.b16 %v494
    %v1012 = vunpack.c.h.b16 %v494
    %v1013 = vunpack.c.l.b16 %v495
    %v1014 = vunpack.c.h.b16 %v495
    %v1015 = vunpack.c.l.b16 %v496
    %v1016 = vunpack.c.h.b16 %v496
    %v1017 = vunpack.c.l.b16 %v497
    %v1018 = vunpack.c.h.b16 %v497
    %v1019 = vpack.c.b16 %v767, %v763
    %v1020 = vpack.c.b16 %v768, %v764
    %v1021 = vpack.c.b16 %v769, %v765
    %v1022 = vpack.c.b16 %v770, %v766
    %v1023 = vpack.c.b16 %v775, %v771
    %v1024 = vpack.c.b16 %v776, %v772
    %v1025 = vpack.c.b16 %v777, %v773
    %v1026 = vpack.c.b16 %v778, %v774
    %v1027 = vpack.c.b16 %v783, %v779
    %v1028 = vpack.c.b16 %v784, %v780
    %v1029 = vpack.c.b16 %v785, %v781
    %v1030 = vpack.c.b16 %v786, %v782
    %v1031 = vpack.c.b16 %v791, %v787
    %v1032 = vpack.c.b16 %v792, %v788
    %v1033 = vpack.c.b16 %v793, %v789
    %v1034 = vpack.c.b16 %v794, %v790
    %v1035 = vpack.c.b16 %v799, %v795
    %v1036 = vpack.c.b16 %v800, %v796
    %v1037 = vpack.c.b16 %v801, %v797
    %v1038 = vpack.c.b16 %v802, %v798
    %v1039 = vpack.c.b16 %v807, %v803
    %v1040 = vpack.c.b16 %v808, %v804
    %v1041 = vpack.c.b16 %v809, %v805
    %v1042 = vpack.c.b16 %v810, %v806
    %v1043 = vpack.c.b16 %v815, %v811
    %v1044 = vpack.c.b16 %v816, %v812
    %v1045 = vpack.c.b16 %v817, %v813
    %v1046 = vpack.c.b16 %v818, %v814
    %v1047 = vpack.c.b16 %v823, %v819
    %v1048 = vpack.c.b16 %v824, %v820
    %v1049 = vpack.c.b16 %v825, %v821
    %v1050 = vpack.c.b16 %v826, %v822
    %v1051 = vpack.c.b16 %v831, %v827
    %v1052 = vpack.c.b16 %v832, %v828
    %v1053 = vpack.c.b16 %v833, %v829
    %v1054 = vpack.c.b16 %v834, %v830
    %v1055 = vpack.c.b16 %v839, %v835
    %v1056 = vpack.c.b16 %v840, %v836
    %v1057 = vpack.c.b16 %v841, %v837
    %v1058 = vpack.c.b16 %v842, %v838
    %v1059 = vpack.c.b16 %v847, %v843
    %v1060 = vpack.c.b16 %v848, %v844
    %v1061 = vpack.c.b16 %v849, %v845
    %v1062 = vpack.c.b16 %v850, %v846
    %v1063 = vpack.c.b16 %v855, %v851
    %v1064 = vpack.c.b16 %v856, %v852
    %v1065 = vpack.c.b16 %v857, %v853
    %v1066 = vpack.c.b16 %v858, %v854
    %v1067 = vpack.c.b16 %v863, %v859
    %v1068 = vpack.c.b16 %v864, %v860
    %v1069 = vpack.c.b16 %v865, %v861
    %v1070 = vpack.c.b16 %v866, %v862
    %v1071 = vpack.c.b16 %v871, %v867
    %v1072 = vpack.c.b16 %v872, %v868
    %v1073 = vpack.c.b16 %v873, %v869
    %v1074 = vpack.c.b16 %v874, %v870
    %v1075 = vpack.c.b16 %v879, %v875
    %v1076 = vpack.c.b16 %v880, %v876
    %v1077 = vpack.c.b16 %v881, %v877
    %v1078 = vpack.c.b16 %v882, %v878
    %v1079 = vpack.c.b16 %v887, %v883
    %v1080 = vpack.c.b16 %v888, %v884
    %v1081 = vpack.c.b16 %v889, %v885
    %v1082 = vpack.c.b16 %v890, %v886
    %v1083 = vpack.c.b16 %v895, %v891
    %v1084 = vpack.c.b16 %v896, %v892
    %v1085 = vpack.c.b16 %v897, %v893
    %v1086 = vpack.c.b16 %v898, %v894
    %v1087 = vpack.c.b16 %v903, %v899
    %v1088 = vpack.c.b16 %v904, %v900
    %v1089 = vpack.c.b16 %v905, %v901
    %v1090 = vpack.c.b16 %v906, %v902
    %v1091 = vpack.c.b16 %v911, %v907
    %v1092 = vpack.c.b16 %v912, %v908
    %v1093 = vpack.c.b16 %v913, %v909
    %v1094 = vpack.c.b16 %v914, %v910
    %v1095 = vpack.c.b16 %v919, %v915
    %v1096 = vpack.c.b16 %v920, %v916
    %v1097 = vpack.c.b16 %v921, %v917
    %v1098 = vpack.c.b16 %v922, %v918
    %v1099 = vpack.c.b16 %v927, %v923
    %v1100 = vpack.c.b16 %v928, %v924
    %v1101 = vpack.c.b16 %v929, %v925
    %v1102 = vpack.c.b16 %v930, %v926
    %v1103 = vpack.c.b16 %v935, %v931
    %v1104 = vpack.c.b16 %v936, %v932
    %v1105 = vpack.c.b16 %v937, %v933
    %v1106 = vpack.c.b16 %v938, %v934
    %v1107 = vpack.c.b16 %v943, %v939
    %v1108 = vpack.c.b16 %v944, %v940
    %v1109 = vpack.c.b16 %v945, %v941
    %v1110 = vpack.c.b16 %v946, %v942
    %v1111 = vpack.c.b16 %v951, %v947
    %v1112 = vpack.c.b16 %v952, %v948
    %v1113 = vpack.c.b16 %v953, %v949
    %v1114 = vpack.c.b16 %v954, %v950
    %v1115 = vpack.c.b16 %v959, %v955
    %v1116 = vpack.c.b16 %v960, %v956
    %v1117 = vpack.c.b16 %v961, %v957
    %v1118 = vpack.c.b16 %v962, %v958
    %v1119 = vpack.c.b16 %v967, %v963
    %v1120 = vpack.c.b16 %v968, %v964
    %v1121 = vpack.c.b16 %v969, %v965
    %v1122 = vpack.c.b16 %v970, %v966
    %v1123 = vpack.c.b16 %v975, %v971
    %v1124 = vpack.c.b16 %v976, %v972
    %v1125 = vpack.c.b16 %v977, %v973
    %v1126 = vpack.c.b16 %v978, %v974
    %v1127 = vpack.c.b16 %v983, %v979
    %v1128 = vpack.c.b16 %v984, %v980
    %v1129 = vpack.c.b16 %v985, %v981
    %v1130 = vpack.c.b16 %v986, %v982
    %v1131 = vpack.c.b16 %v991, %v987
    %v1132 = vpack.c.b16 %v992, %v988
    %v1133 = vpack.c.b16 %v993, %v989
    %v1134 = vpack.c.b16 %v994, %v990
    %v1135 = vpack.c.b16 %v999, %v995
    %v1136 = vpack.c.b16 %v1000, %v996
    %v1137 = vpack.c.b16 %v1001, %v997
    %v1138 = vpack.c.b16 %v1002, %v998
    %v1139 = vpack.c.b16 %v1007, %v1003
    %v1140 = vpack.c.b16 %v1008, %v1004
    %v1141 = vpack.c.b16 %v1009, %v1005
    %v1142 = vpack.c.b16 %v1010, %v1006
    %v1143 = vpack.c.b16 %v1015, %v1011
    %v1144 = vpack.c.b16 %v1016, %v1012
    %v1145 = vpack.c.b16 %v1017, %v1013
    %v1146 = vpack.c.b16 %v1018, %v1014
    %1275 = vmatprep.subr.bf16.mxu0 %v1048
    %1276 = vmatpush1.bf16.msra.mxu0 %v1047
    %1277 = vmatprep.subr.bf16.mxu0 %v1044
    %1278 = vmatpush1.bf16.msra.mxu0 %v1043
    %1279 = vmatprep.subr.bf16.mxu0 %v1040
    %1280 = vmatpush1.bf16.msra.mxu0 %v1039
    %1281 = vmatprep.subr.bf16.mxu0 %v1036
    %1282 = vmatpush1.bf16.msra.mxu0 %v1035
    %1283 = vmatprep.subr.bf16.mxu0 %v1032
    %1284 = vmatpush1.bf16.msra.mxu0 %v1031
    %1285 = vmatprep.subr.bf16.mxu0 %v1028
    %1286 = vmatpush1.bf16.msra.mxu0 %v1027
    %1287 = vmatprep.subr.bf16.mxu0 %v1024
    %1288 = vmatpush1.bf16.msra.mxu0 %v1023
    %1289 = vmatprep.subr.bf16.mxu0 %v1020
    %1290 = vmatpush1.bf16.msra.mxu0 %v1019
    %1291 = vmatprep.subr.bf16.mxu0 %v1080
    %1292 = vmatpush2.bf16.msra.mxu0 %v1079
    %1293 = vmatprep.subr.bf16.mxu0 %v1076
    %1294 = vmatpush2.bf16.msra.mxu0 %v1075
    %1295 = vmatprep.subr.bf16.mxu0 %v1072
    %1296 = vmatpush2.bf16.msra.mxu0 %v1071
    %1297 = vmatprep.subr.bf16.mxu0 %v1068
    %1298 = vmatpush2.bf16.msra.mxu0 %v1067
    %1299 = vmatprep.subr.bf16.mxu0 %v1064
    %1300 = vmatpush2.bf16.msra.mxu0 %v1063
    %1301 = vmatprep.subr.bf16.mxu0 %v1060
    %1302 = vmatpush2.bf16.msra.mxu0 %v1059
    %1303 = vmatprep.subr.bf16.mxu0 %v1056
    %1304 = vmatpush2.bf16.msra.mxu0 %v1055
    %1305 = vmatprep.subr.bf16.mxu0 %v1052
    %1306 = vmatpush2.bf16.msra.mxu0 %v1051
    %1307 = vmatprep.mubr.bf16.mxu0 %v540
    %1308 = vmatmul.mubr.bf16.gmra.mxu0 %v537
    %v1309 = vpop.f32.mrf.mxu0
    %v1310 = vadd.f32 0.0, %v1309
    %v1311 = vpop.f32.mrf.mxu0
    %v1312 = vadd.f32 0.0, %v1311
    %v1313 = vpop.f32.mrf.mxu0
    %v1314 = vadd.f32 0.0, %v1313
    %v1315 = vpop.f32.mrf.mxu0
    %v1316 = vadd.f32 0.0, %v1315
    %1317 = vmatprep.mubr.bf16.mxu0 %v550
    %1318 = vmatmul.mubr.bf16.gmra.mxu0 %v548
    %v1319 = vpop.f32.mrf.mxu0
    %v1320 = vadd.f32 0.0, %v1319
    %v1321 = vpop.f32.mrf.mxu0
    %v1322 = vadd.f32 0.0, %v1321
    %v1323 = vpop.f32.mrf.mxu0
    %v1324 = vadd.f32 0.0, %v1323
    %v1325 = vpop.f32.mrf.mxu0
    %v1326 = vadd.f32 0.0, %v1325
    %1327 = vmatprep.mubr.bf16.mxu0 %v558
    %1328 = vmatmul.mubr.bf16.gmra.mxu0 %v556
    %v1329 = vpop.f32.mrf.mxu0
    %v1330 = vadd.f32 0.0, %v1329
    %v1331 = vpop.f32.mrf.mxu0
    %v1332 = vadd.f32 0.0, %v1331
    %v1333 = vpop.f32.mrf.mxu0
    %v1334 = vadd.f32 0.0, %v1333
    %v1335 = vpop.f32.mrf.mxu0
    %v1336 = vadd.f32 0.0, %v1335
    %1337 = vmatprep.mubr.bf16.mxu0 %v566
    %1338 = vmatmul.mubr.bf16.gmra.mxu0 %v564
    %v1339 = vpop.f32.mrf.mxu0
    %v1340 = vadd.f32 0.0, %v1339
    %v1341 = vpop.f32.mrf.mxu0
    %v1342 = vadd.f32 0.0, %v1341
    %v1343 = vpop.f32.mrf.mxu0
    %v1344 = vadd.f32 0.0, %v1343
    %v1345 = vpop.f32.mrf.mxu0
    %v1346 = vadd.f32 0.0, %v1345
    %1347 = vmatprep.mubr.bf16.mxu0 %v574
    %1348 = vmatmul.mubr.bf16.gmra.mxu0 %v572
    %v1349 = vpop.f32.mrf.mxu0
    %v1350 = vadd.f32 0.0, %v1349
    %v1351 = vpop.f32.mrf.mxu0
    %v1352 = vadd.f32 0.0, %v1351
    %v1353 = vpop.f32.mrf.mxu0
    %v1354 = vadd.f32 0.0, %v1353
    %v1355 = vpop.f32.mrf.mxu0
    %v1356 = vadd.f32 0.0, %v1355
    %1357 = vmatprep.mubr.bf16.mxu0 %v582
    %1358 = vmatmul.mubr.bf16.gmra.mxu0 %v580
    %v1359 = vpop.f32.mrf.mxu0
    %v1360 = vadd.f32 0.0, %v1359
    %v1361 = vpop.f32.mrf.mxu0
    %v1362 = vadd.f32 0.0, %v1361
    %v1363 = vpop.f32.mrf.mxu0
    %v1364 = vadd.f32 0.0, %v1363
    %v1365 = vpop.f32.mrf.mxu0
    %v1366 = vadd.f32 0.0, %v1365
    %1367 = vmatprep.mubr.bf16.mxu0 %v590
    %1368 = vmatmul.mubr.bf16.gmra.mxu0 %v588
    %v1369 = vpop.f32.mrf.mxu0
    %v1370 = vadd.f32 0.0, %v1369
    %v1371 = vpop.f32.mrf.mxu0
    %v1372 = vadd.f32 0.0, %v1371
    %v1373 = vpop.f32.mrf.mxu0
    %v1374 = vadd.f32 0.0, %v1373
    %v1375 = vpop.f32.mrf.mxu0
    %v1376 = vadd.f32 0.0, %v1375
    %1377 = vmatprep.mubr.bf16.mxu0 %v598
    %1378 = vmatmul.mubr.bf16.gmra.mxu0 %v596
    %v1379 = vpop.f32.mrf.mxu0
    %v1380 = vadd.f32 0.0, %v1379
    %v1381 = vpop.f32.mrf.mxu0
    %v1382 = vadd.f32 0.0, %v1381
    %v1383 = vpop.f32.mrf.mxu0
    %v1384 = vadd.f32 0.0, %v1383
    %v1385 = vpop.f32.mrf.mxu0
    %v1386 = vadd.f32 0.0, %v1385
    %1387 = vdwg.mxu0
    %1388 = vmatprep.subr.bf16.mxu0 %v1112
    %1389 = vmatpush1.bf16.msra.mxu0 %v1111
    %1390 = vmatprep.subr.bf16.mxu0 %v1108
    %1391 = vmatpush1.bf16.msra.mxu0 %v1107
    %1392 = vmatprep.subr.bf16.mxu0 %v1104
    %1393 = vmatpush1.bf16.msra.mxu0 %v1103
    %1394 = vmatprep.subr.bf16.mxu0 %v1100
    %1395 = vmatpush1.bf16.msra.mxu0 %v1099
    %1396 = vmatprep.subr.bf16.mxu0 %v1096
    %1397 = vmatpush1.bf16.msra.mxu0 %v1095
    %1398 = vmatprep.subr.bf16.mxu0 %v1092
    %1399 = vmatpush1.bf16.msra.mxu0 %v1091
    %1400 = vmatprep.subr.bf16.mxu0 %v1088
    %1401 = vmatpush1.bf16.msra.mxu0 %v1087
    %1402 = vmatprep.subr.bf16.mxu0 %v1084
    %1403 = vmatpush1.bf16.msra.mxu0 %v1083
    %1404 = vmatprep.subr.bf16.mxu0 %v1144
    %1405 = vmatpush2.bf16.msra.mxu0 %v1143
    %1406 = vmatprep.subr.bf16.mxu0 %v1140
    %1407 = vmatpush2.bf16.msra.mxu0 %v1139
    %1408 = vmatprep.subr.bf16.mxu0 %v1136
    %1409 = vmatpush2.bf16.msra.mxu0 %v1135
    %1410 = vmatprep.subr.bf16.mxu0 %v1132
    %1411 = vmatpush2.bf16.msra.mxu0 %v1131
    %1412 = vmatprep.subr.bf16.mxu0 %v1128
    %1413 = vmatpush2.bf16.msra.mxu0 %v1127
    %1414 = vmatprep.subr.bf16.mxu0 %v1124
    %1415 = vmatpush2.bf16.msra.mxu0 %v1123
    %1416 = vmatprep.subr.bf16.mxu0 %v1120
    %1417 = vmatpush2.bf16.msra.mxu0 %v1119
    %1418 = vmatprep.subr.bf16.mxu0 %v1116
    %1419 = vmatpush2.bf16.msra.mxu0 %v1115
    %1420 = vmatprep.mubr.bf16.mxu0 %v546
    %1421 = vmatmul.mubr.bf16.gmra.mxu0 %v543
    %v1422 = vpop.f32.mrf.mxu0
    %v1423 = vadd.f32 %v1310, %v1422
    %v1424 = vpop.f32.mrf.mxu0
    %v1425 = vadd.f32 %v1312, %v1424
    %v1426 = vpop.f32.mrf.mxu0
    %v1427 = vadd.f32 %v1314, %v1426
    %v1428 = vpop.f32.mrf.mxu0
    %v1429 = vadd.f32 %v1316, %v1428
    %1430 = vmatprep.mubr.bf16.mxu0 %v554
    %1431 = vmatmul.mubr.bf16.gmra.mxu0 %v552
    %v1432 = vpop.f32.mrf.mxu0
    %v1433 = vadd.f32 %v1320, %v1432
    %v1434 = vpop.f32.mrf.mxu0
    %v1435 = vadd.f32 %v1322, %v1434
    %v1436 = vpop.f32.mrf.mxu0
    %v1437 = vadd.f32 %v1324, %v1436
    %v1438 = vpop.f32.mrf.mxu0
    %v1439 = vadd.f32 %v1326, %v1438
    %1440 = vmatprep.mubr.bf16.mxu0 %v562
    %1441 = vmatmul.mubr.bf16.gmra.mxu0 %v560
    %v1442 = vpop.f32.mrf.mxu0
    %v1443 = vadd.f32 %v1330, %v1442
    %v1444 = vpop.f32.mrf.mxu0
    %v1445 = vadd.f32 %v1332, %v1444
    %v1446 = vpop.f32.mrf.mxu0
    %v1447 = vadd.f32 %v1334, %v1446
    %v1448 = vpop.f32.mrf.mxu0
    %v1449 = vadd.f32 %v1336, %v1448
    %1450 = vmatprep.mubr.bf16.mxu0 %v570
    %1451 = vmatmul.mubr.bf16.gmra.mxu0 %v568
    %v1452 = vpop.f32.mrf.mxu0
    %v1453 = vadd.f32 %v1340, %v1452
    %v1454 = vpop.f32.mrf.mxu0
    %v1455 = vadd.f32 %v1342, %v1454
    %v1456 = vpop.f32.mrf.mxu0
    %v1457 = vadd.f32 %v1344, %v1456
    %v1458 = vpop.f32.mrf.mxu0
    %v1459 = vadd.f32 %v1346, %v1458
    %1460 = vmatprep.mubr.bf16.mxu0 %v578
    %1461 = vmatmul.mubr.bf16.gmra.mxu0 %v576
    %v1462 = vpop.f32.mrf.mxu0
    %v1463 = vadd.f32 %v1350, %v1462
    %v1464 = vpop.f32.mrf.mxu0
    %v1465 = vadd.f32 %v1352, %v1464
    %v1466 = vpop.f32.mrf.mxu0
    %v1467 = vadd.f32 %v1354, %v1466
    %v1468 = vpop.f32.mrf.mxu0
    %v1469 = vadd.f32 %v1356, %v1468
    %1470 = vmatprep.mubr.bf16.mxu0 %v586
    %1471 = vmatmul.mubr.bf16.gmra.mxu0 %v584
    %v1472 = vpop.f32.mrf.mxu0
    %v1473 = vadd.f32 %v1360, %v1472
    %v1474 = vpop.f32.mrf.mxu0
    %v1475 = vadd.f32 %v1362, %v1474
    %v1476 = vpop.f32.mrf.mxu0
    %v1477 = vadd.f32 %v1364, %v1476
    %v1478 = vpop.f32.mrf.mxu0
    %v1479 = vadd.f32 %v1366, %v1478
    %1480 = vmatprep.mubr.bf16.mxu0 %v594
    %1481 = vmatmul.mubr.bf16.gmra.mxu0 %v592
    %v1482 = vpop.f32.mrf.mxu0
    %v1483 = vadd.f32 %v1370, %v1482
    %v1484 = vpop.f32.mrf.mxu0
    %v1485 = vadd.f32 %v1372, %v1484
    %v1486 = vpop.f32.mrf.mxu0
    %v1487 = vadd.f32 %v1374, %v1486
    %v1488 = vpop.f32.mrf.mxu0
    %v1489 = vadd.f32 %v1376, %v1488
    %1490 = vmatprep.mubr.bf16.mxu0 %v602
    %1491 = vmatmul.mubr.bf16.gmra.mxu0 %v600
    %v1492 = vpop.f32.mrf.mxu0
    %v1493 = vadd.f32 %v1380, %v1492
    %v1494 = vpop.f32.mrf.mxu0
    %v1495 = vadd.f32 %v1382, %v1494
    %v1496 = vpop.f32.mrf.mxu0
    %v1497 = vadd.f32 %v1384, %v1496
    %v1498 = vpop.f32.mrf.mxu0
    %v1499 = vadd.f32 %v1386, %v1498
    %1500 = vdwg.mxu0
    %1501 = vmatprep.subr.bf16.mxu0 %v1050
    %1502 = vmatpush1.bf16.msra.mxu0 %v1049
    %1503 = vmatprep.subr.bf16.mxu0 %v1046
    %1504 = vmatpush1.bf16.msra.mxu0 %v1045
    %1505 = vmatprep.subr.bf16.mxu0 %v1042
    %1506 = vmatpush1.bf16.msra.mxu0 %v1041
    %1507 = vmatprep.subr.bf16.mxu0 %v1038
    %1508 = vmatpush1.bf16.msra.mxu0 %v1037
    %1509 = vmatprep.subr.bf16.mxu0 %v1034
    %1510 = vmatpush1.bf16.msra.mxu0 %v1033
    %1511 = vmatprep.subr.bf16.mxu0 %v1030
    %1512 = vmatpush1.bf16.msra.mxu0 %v1029
    %1513 = vmatprep.subr.bf16.mxu0 %v1026
    %1514 = vmatpush1.bf16.msra.mxu0 %v1025
    %1515 = vmatprep.subr.bf16.mxu0 %v1022
    %1516 = vmatpush1.bf16.msra.mxu0 %v1021
    %1517 = vmatprep.subr.bf16.mxu0 %v1082
    %1518 = vmatpush2.bf16.msra.mxu0 %v1081
    %1519 = vmatprep.subr.bf16.mxu0 %v1078
    %1520 = vmatpush2.bf16.msra.mxu0 %v1077
    %1521 = vmatprep.subr.bf16.mxu0 %v1074
    %1522 = vmatpush2.bf16.msra.mxu0 %v1073
    %1523 = vmatprep.subr.bf16.mxu0 %v1070
    %1524 = vmatpush2.bf16.msra.mxu0 %v1069
    %1525 = vmatprep.subr.bf16.mxu0 %v1066
    %1526 = vmatpush2.bf16.msra.mxu0 %v1065
    %1527 = vmatprep.subr.bf16.mxu0 %v1062
    %1528 = vmatpush2.bf16.msra.mxu0 %v1061
    %1529 = vmatprep.subr.bf16.mxu0 %v1058
    %1530 = vmatpush2.bf16.msra.mxu0 %v1057
    %1531 = vmatprep.subr.bf16.mxu0 %v1054
    %1532 = vmatpush2.bf16.msra.mxu0 %v1053
    %1533 = vmatprep.mubr.bf16.mxu0 %v540
    %1534 = vmatmul.mubr.bf16.gmra.mxu0 %v537
    %v1535 = vpop.f32.mrf.mxu0
    %v1536 = vadd.f32 0.0, %v1535
    %v1537 = vpop.f32.mrf.mxu0
    %v1538 = vadd.f32 0.0, %v1537
    %v1539 = vpop.f32.mrf.mxu0
    %v1540 = vadd.f32 0.0, %v1539
    %v1541 = vpop.f32.mrf.mxu0
    %v1542 = vadd.f32 0.0, %v1541
    %1543 = vmatprep.mubr.bf16.mxu0 %v550
    %1544 = vmatmul.mubr.bf16.gmra.mxu0 %v548
    %v1545 = vpop.f32.mrf.mxu0
    %v1546 = vadd.f32 0.0, %v1545
    %v1547 = vpop.f32.mrf.mxu0
    %v1548 = vadd.f32 0.0, %v1547
    %v1549 = vpop.f32.mrf.mxu0
    %v1550 = vadd.f32 0.0, %v1549
    %v1551 = vpop.f32.mrf.mxu0
    %v1552 = vadd.f32 0.0, %v1551
    %1553 = vmatprep.mubr.bf16.mxu0 %v558
    %1554 = vmatmul.mubr.bf16.gmra.mxu0 %v556
    %v1555 = vpop.f32.mrf.mxu0
    %v1556 = vadd.f32 0.0, %v1555
    %v1557 = vpop.f32.mrf.mxu0
    %v1558 = vadd.f32 0.0, %v1557
    %v1559 = vpop.f32.mrf.mxu0
    %v1560 = vadd.f32 0.0, %v1559
    %v1561 = vpop.f32.mrf.mxu0
    %v1562 = vadd.f32 0.0, %v1561
    %1563 = vmatprep.mubr.bf16.mxu0 %v566
    %1564 = vmatmul.mubr.bf16.gmra.mxu0 %v564
    %v1565 = vpop.f32.mrf.mxu0
    %v1566 = vadd.f32 0.0, %v1565
    %v1567 = vpop.f32.mrf.mxu0
    %v1568 = vadd.f32 0.0, %v1567
    %v1569 = vpop.f32.mrf.mxu0
    %v1570 = vadd.f32 0.0, %v1569
    %v1571 = vpop.f32.mrf.mxu0
    %v1572 = vadd.f32 0.0, %v1571
    %1573 = vmatprep.mubr.bf16.mxu0 %v574
    %1574 = vmatmul.mubr.bf16.gmra.mxu0 %v572
    %v1575 = vpop.f32.mrf.mxu0
    %v1576 = vadd.f32 0.0, %v1575
    %v1577 = vpop.f32.mrf.mxu0
    %v1578 = vadd.f32 0.0, %v1577
    %v1579 = vpop.f32.mrf.mxu0
    %v1580 = vadd.f32 0.0, %v1579
    %v1581 = vpop.f32.mrf.mxu0
    %v1582 = vadd.f32 0.0, %v1581
    %1583 = vmatprep.mubr.bf16.mxu0 %v582
    %1584 = vmatmul.mubr.bf16.gmra.mxu0 %v580
    %v1585 = vpop.f32.mrf.mxu0
    %v1586 = vadd.f32 0.0, %v1585
    %v1587 = vpop.f32.mrf.mxu0
    %v1588 = vadd.f32 0.0, %v1587
    %v1589 = vpop.f32.mrf.mxu0
    %v1590 = vadd.f32 0.0, %v1589
    %v1591 = vpop.f32.mrf.mxu0
    %v1592 = vadd.f32 0.0, %v1591
    %1593 = vmatprep.mubr.bf16.mxu0 %v590
    %1594 = vmatmul.mubr.bf16.gmra.mxu0 %v588
    %v1595 = vpop.f32.mrf.mxu0
    %v1596 = vadd.f32 0.0, %v1595
    %v1597 = vpop.f32.mrf.mxu0
    %v1598 = vadd.f32 0.0, %v1597
    %v1599 = vpop.f32.mrf.mxu0
    %v1600 = vadd.f32 0.0, %v1599
    %v1601 = vpop.f32.mrf.mxu0
    %v1602 = vadd.f32 0.0, %v1601
    %1603 = vmatprep.mubr.bf16.mxu0 %v598
    %1604 = vmatmul.mubr.bf16.gmra.mxu0 %v596
    %v1605 = vpop.f32.mrf.mxu0
    %v1606 = vadd.f32 0.0, %v1605
    %v1607 = vpop.f32.mrf.mxu0
    %v1608 = vadd.f32 0.0, %v1607
    %v1609 = vpop.f32.mrf.mxu0
    %v1610 = vadd.f32 0.0, %v1609
    %v1611 = vpop.f32.mrf.mxu0
    %v1612 = vadd.f32 0.0, %v1611
    %1613 = vdwg.mxu0
    %1614 = vmatprep.subr.bf16.mxu0 %v1114
    %1615 = vmatpush1.bf16.msra.mxu0 %v1113
    %1616 = vmatprep.subr.bf16.mxu0 %v1110
    %1617 = vmatpush1.bf16.msra.mxu0 %v1109
    %1618 = vmatprep.subr.bf16.mxu0 %v1106
    %1619 = vmatpush1.bf16.msra.mxu0 %v1105
    %1620 = vmatprep.subr.bf16.mxu0 %v1102
    %1621 = vmatpush1.bf16.msra.mxu0 %v1101
    %1622 = vmatprep.subr.bf16.mxu0 %v1098
    %1623 = vmatpush1.bf16.msra.mxu0 %v1097
    %1624 = vmatprep.subr.bf16.mxu0 %v1094
    %1625 = vmatpush1.bf16.msra.mxu0 %v1093
    %1626 = vmatprep.subr.bf16.mxu0 %v1090
    %1627 = vmatpush1.bf16.msra.mxu0 %v1089
    %1628 = vmatprep.subr.bf16.mxu0 %v1086
    %1629 = vmatpush1.bf16.msra.mxu0 %v1085
    %1630 = vmatprep.subr.bf16.mxu0 %v1146
    %1631 = vmatpush2.bf16.msra.mxu0 %v1145
    %1632 = vmatprep.subr.bf16.mxu0 %v1142
    %1633 = vmatpush2.bf16.msra.mxu0 %v1141
    %1634 = vmatprep.subr.bf16.mxu0 %v1138
    %1635 = vmatpush2.bf16.msra.mxu0 %v1137
    %1636 = vmatprep.subr.bf16.mxu0 %v1134
    %1637 = vmatpush2.bf16.msra.mxu0 %v1133
    %1638 = vmatprep.subr.bf16.mxu0 %v1130
    %1639 = vmatpush2.bf16.msra.mxu0 %v1129
    %1640 = vmatprep.subr.bf16.mxu0 %v1126
    %1641 = vmatpush2.bf16.msra.mxu0 %v1125
    %1642 = vmatprep.subr.bf16.mxu0 %v1122
    %1643 = vmatpush2.bf16.msra.mxu0 %v1121
    %1644 = vmatprep.subr.bf16.mxu0 %v1118
    %1645 = vmatpush2.bf16.msra.mxu0 %v1117
    %1646 = vmatprep.mubr.bf16.mxu0 %v546
    %1647 = vmatmul.mubr.bf16.gmra.mxu0 %v543
    %v1648 = vpop.f32.mrf.mxu0
    %v1649 = vadd.f32 %v1536, %v1648
    %v1650 = vpop.f32.mrf.mxu0
    %v1651 = vadd.f32 %v1538, %v1650
    %v1652 = vpop.f32.mrf.mxu0
    %v1653 = vadd.f32 %v1540, %v1652
    %v1654 = vpop.f32.mrf.mxu0
    %v1655 = vadd.f32 %v1542, %v1654
    %1656 = vmatprep.mubr.bf16.mxu0 %v554
    %1657 = vmatmul.mubr.bf16.gmra.mxu0 %v552
    %v1658 = vpop.f32.mrf.mxu0
    %v1659 = vadd.f32 %v1546, %v1658
    %v1660 = vpop.f32.mrf.mxu0
    %v1661 = vadd.f32 %v1548, %v1660
    %v1662 = vpop.f32.mrf.mxu0
    %v1663 = vadd.f32 %v1550, %v1662
    %v1664 = vpop.f32.mrf.mxu0
    %v1665 = vadd.f32 %v1552, %v1664
    %1666 = vmatprep.mubr.bf16.mxu0 %v562
    %1667 = vmatmul.mubr.bf16.gmra.mxu0 %v560
    %v1668 = vpop.f32.mrf.mxu0
    %v1669 = vadd.f32 %v1556, %v1668
    %v1670 = vpop.f32.mrf.mxu0
    %v1671 = vadd.f32 %v1558, %v1670
    %v1672 = vpop.f32.mrf.mxu0
    %v1673 = vadd.f32 %v1560, %v1672
    %v1674 = vpop.f32.mrf.mxu0
    %v1675 = vadd.f32 %v1562, %v1674
    %1676 = vmatprep.mubr.bf16.mxu0 %v570
    %1677 = vmatmul.mubr.bf16.gmra.mxu0 %v568
    %v1678 = vpop.f32.mrf.mxu0
    %v1679 = vadd.f32 %v1566, %v1678
    %v1680 = vpop.f32.mrf.mxu0
    %v1681 = vadd.f32 %v1568, %v1680
    %v1682 = vpop.f32.mrf.mxu0
    %v1683 = vadd.f32 %v1570, %v1682
    %v1684 = vpop.f32.mrf.mxu0
    %v1685 = vadd.f32 %v1572, %v1684
    %1686 = vmatprep.mubr.bf16.mxu0 %v578
    %1687 = vmatmul.mubr.bf16.gmra.mxu0 %v576
    %v1688 = vpop.f32.mrf.mxu0
    %v1689 = vadd.f32 %v1576, %v1688
    %v1690 = vpop.f32.mrf.mxu0
    %v1691 = vadd.f32 %v1578, %v1690
    %v1692 = vpop.f32.mrf.mxu0
    %v1693 = vadd.f32 %v1580, %v1692
    %v1694 = vpop.f32.mrf.mxu0
    %v1695 = vadd.f32 %v1582, %v1694
    %1696 = vmatprep.mubr.bf16.mxu0 %v586
    %1697 = vmatmul.mubr.bf16.gmra.mxu0 %v584
    %v1698 = vpop.f32.mrf.mxu0
    %v1699 = vadd.f32 %v1586, %v1698
    %v1700 = vpop.f32.mrf.mxu0
    %v1701 = vadd.f32 %v1588, %v1700
    %v1702 = vpop.f32.mrf.mxu0
    %v1703 = vadd.f32 %v1590, %v1702
    %v1704 = vpop.f32.mrf.mxu0
    %v1705 = vadd.f32 %v1592, %v1704
    %1706 = vmatprep.mubr.bf16.mxu0 %v594
    %1707 = vmatmul.mubr.bf16.gmra.mxu0 %v592
    %v1708 = vpop.f32.mrf.mxu0
    %v1709 = vadd.f32 %v1596, %v1708
    %v1710 = vpop.f32.mrf.mxu0
    %v1711 = vadd.f32 %v1598, %v1710
    %v1712 = vpop.f32.mrf.mxu0
    %v1713 = vadd.f32 %v1600, %v1712
    %v1714 = vpop.f32.mrf.mxu0
    %v1715 = vadd.f32 %v1602, %v1714
    %1716 = vmatprep.mubr.bf16.mxu0 %v602
    %1717 = vmatmul.mubr.bf16.gmra.mxu0 %v600
    %v1718 = vpop.f32.mrf.mxu0
    %v1719 = vadd.f32 %v1606, %v1718
    %v1720 = vpop.f32.mrf.mxu0
    %v1721 = vadd.f32 %v1608, %v1720
    %v1722 = vpop.f32.mrf.mxu0
    %v1723 = vadd.f32 %v1610, %v1722
    %v1724 = vpop.f32.mrf.mxu0
    %v1725 = vadd.f32 %v1612, %v1724
    %1726 = vdwg.mxu0
    %v1855 = vunpack.c.l.b16 %v241
    %v1856 = vunpack.c.h.b16 %v241
    %v1857 = vunpack.c.l.b16 %v242
    %v1858 = vunpack.c.h.b16 %v242
    %v1859 = vunpack.c.l.b16 %v243
    %v1860 = vunpack.c.h.b16 %v243
    %v1861 = vunpack.c.l.b16 %v244
    %v1862 = vunpack.c.h.b16 %v244
    %v1863 = vunpack.c.l.b16 %v245
    %v1864 = vunpack.c.h.b16 %v245
    %v1865 = vunpack.c.l.b16 %v246
    %v1866 = vunpack.c.h.b16 %v246
    %v1867 = vunpack.c.l.b16 %v247
    %v1868 = vunpack.c.h.b16 %v247
    %v1869 = vunpack.c.l.b16 %v248
    %v1870 = vunpack.c.h.b16 %v248
    %v1871 = vunpack.c.l.b16 %v249
    %v1872 = vunpack.c.h.b16 %v249
    %v1873 = vunpack.c.l.b16 %v250
    %v1874 = vunpack.c.h.b16 %v250
    %v1875 = vunpack.c.l.b16 %v251
    %v1876 = vunpack.c.h.b16 %v251
    %v1877 = vunpack.c.l.b16 %v252
    %v1878 = vunpack.c.h.b16 %v252
    %v1879 = vunpack.c.l.b16 %v253
    %v1880 = vunpack.c.h.b16 %v253
    %v1881 = vunpack.c.l.b16 %v254
    %v1882 = vunpack.c.h.b16 %v254
    %v1883 = vunpack.c.l.b16 %v255
    %v1884 = vunpack.c.h.b16 %v255
    %v1885 = vunpack.c.l.b16 %v256
    %v1886 = vunpack.c.h.b16 %v256
    %v1887 = vunpack.c.l.b16 %v257
    %v1888 = vunpack.c.h.b16 %v257
    %v1889 = vunpack.c.l.b16 %v258
    %v1890 = vunpack.c.h.b16 %v258
    %v1891 = vunpack.c.l.b16 %v259
    %v1892 = vunpack.c.h.b16 %v259
    %v1893 = vunpack.c.l.b16 %v260
    %v1894 = vunpack.c.h.b16 %v260
    %v1895 = vunpack.c.l.b16 %v261
    %v1896 = vunpack.c.h.b16 %v261
    %v1897 = vunpack.c.l.b16 %v262
    %v1898 = vunpack.c.h.b16 %v262
    %v1899 = vunpack.c.l.b16 %v263
    %v1900 = vunpack.c.h.b16 %v263
    %v1901 = vunpack.c.l.b16 %v264
    %v1902 = vunpack.c.h.b16 %v264
    %v1903 = vunpack.c.l.b16 %v265
    %v1904 = vunpack.c.h.b16 %v265
    %v1905 = vunpack.c.l.b16 %v266
    %v1906 = vunpack.c.h.b16 %v266
    %v1907 = vunpack.c.l.b16 %v267
    %v1908 = vunpack.c.h.b16 %v267
    %v1909 = vunpack.c.l.b16 %v268
    %v1910 = vunpack.c.h.b16 %v268
    %v1911 = vunpack.c.l.b16 %v269
    %v1912 = vunpack.c.h.b16 %v269
    %v1913 = vunpack.c.l.b16 %v270
    %v1914 = vunpack.c.h.b16 %v270
    %v1915 = vunpack.c.l.b16 %v271
    %v1916 = vunpack.c.h.b16 %v271
    %v1917 = vunpack.c.l.b16 %v272
    %v1918 = vunpack.c.h.b16 %v272
    %v1919 = vunpack.c.l.b16 %v273
    %v1920 = vunpack.c.h.b16 %v273
    %v1921 = vunpack.c.l.b16 %v274
    %v1922 = vunpack.c.h.b16 %v274
    %v1923 = vunpack.c.l.b16 %v275
    %v1924 = vunpack.c.h.b16 %v275
    %v1925 = vunpack.c.l.b16 %v276
    %v1926 = vunpack.c.h.b16 %v276
    %v1927 = vunpack.c.l.b16 %v277
    %v1928 = vunpack.c.h.b16 %v277
    %v1929 = vunpack.c.l.b16 %v278
    %v1930 = vunpack.c.h.b16 %v278
    %v1931 = vunpack.c.l.b16 %v279
    %v1932 = vunpack.c.h.b16 %v279
    %v1933 = vunpack.c.l.b16 %v280
    %v1934 = vunpack.c.h.b16 %v280
    %v1935 = vunpack.c.l.b16 %v281
    %v1936 = vunpack.c.h.b16 %v281
    %v1937 = vunpack.c.l.b16 %v282
    %v1938 = vunpack.c.h.b16 %v282
    %v1939 = vunpack.c.l.b16 %v283
    %v1940 = vunpack.c.h.b16 %v283
    %v1941 = vunpack.c.l.b16 %v284
    %v1942 = vunpack.c.h.b16 %v284
    %v1943 = vunpack.c.l.b16 %v285
    %v1944 = vunpack.c.h.b16 %v285
    %v1945 = vunpack.c.l.b16 %v286
    %v1946 = vunpack.c.h.b16 %v286
    %v1947 = vunpack.c.l.b16 %v287
    %v1948 = vunpack.c.h.b16 %v287
    %v1949 = vunpack.c.l.b16 %v288
    %v1950 = vunpack.c.h.b16 %v288
    %v1951 = vunpack.c.l.b16 %v289
    %v1952 = vunpack.c.h.b16 %v289
    %v1953 = vunpack.c.l.b16 %v290
    %v1954 = vunpack.c.h.b16 %v290
    %v1955 = vunpack.c.l.b16 %v291
    %v1956 = vunpack.c.h.b16 %v291
    %v1957 = vunpack.c.l.b16 %v292
    %v1958 = vunpack.c.h.b16 %v292
    %v1959 = vunpack.c.l.b16 %v293
    %v1960 = vunpack.c.h.b16 %v293
    %v1961 = vunpack.c.l.b16 %v294
    %v1962 = vunpack.c.h.b16 %v294
    %v1963 = vunpack.c.l.b16 %v295
    %v1964 = vunpack.c.h.b16 %v295
    %v1965 = vunpack.c.l.b16 %v296
    %v1966 = vunpack.c.h.b16 %v296
    %v1967 = vunpack.c.l.b16 %v297
    %v1968 = vunpack.c.h.b16 %v297
    %v1969 = vunpack.c.l.b16 %v298
    %v1970 = vunpack.c.h.b16 %v298
    %v1971 = vunpack.c.l.b16 %v299
    %v1972 = vunpack.c.h.b16 %v299
    %v1973 = vunpack.c.l.b16 %v300
    %v1974 = vunpack.c.h.b16 %v300
    %v1975 = vunpack.c.l.b16 %v301
    %v1976 = vunpack.c.h.b16 %v301
    %v1977 = vunpack.c.l.b16 %v302
    %v1978 = vunpack.c.h.b16 %v302
    %v1979 = vunpack.c.l.b16 %v303
    %v1980 = vunpack.c.h.b16 %v303
    %v1981 = vunpack.c.l.b16 %v304
    %v1982 = vunpack.c.h.b16 %v304
    %v1983 = vunpack.c.l.b16 %v305
    %v1984 = vunpack.c.h.b16 %v305
    %v1985 = vunpack.c.l.b16 %v306
    %v1986 = vunpack.c.h.b16 %v306
    %v1987 = vunpack.c.l.b16 %v307
    %v1988 = vunpack.c.h.b16 %v307
    %v1989 = vunpack.c.l.b16 %v308
    %v1990 = vunpack.c.h.b16 %v308
    %v1991 = vunpack.c.l.b16 %v309
    %v1992 = vunpack.c.h.b16 %v309
    %v1993 = vunpack.c.l.b16 %v310
    %v1994 = vunpack.c.h.b16 %v310
    %v1995 = vunpack.c.l.b16 %v311
    %v1996 = vunpack.c.h.b16 %v311
    %v1997 = vunpack.c.l.b16 %v312
    %v1998 = vunpack.c.h.b16 %v312
    %v1999 = vunpack.c.l.b16 %v313
    %v2000 = vunpack.c.h.b16 %v313
    %v2001 = vunpack.c.l.b16 %v314
    %v2002 = vunpack.c.h.b16 %v314
    %v2003 = vunpack.c.l.b16 %v315
    %v2004 = vunpack.c.h.b16 %v315
    %v2005 = vunpack.c.l.b16 %v316
    %v2006 = vunpack.c.h.b16 %v316
    %v2007 = vunpack.c.l.b16 %v317
    %v2008 = vunpack.c.h.b16 %v317
    %v2009 = vunpack.c.l.b16 %v318
    %v2010 = vunpack.c.h.b16 %v318
    %v2011 = vunpack.c.l.b16 %v319
    %v2012 = vunpack.c.h.b16 %v319
    %v2013 = vunpack.c.l.b16 %v320
    %v2014 = vunpack.c.h.b16 %v320
    %v2015 = vunpack.c.l.b16 %v321
    %v2016 = vunpack.c.h.b16 %v321
    %v2017 = vunpack.c.l.b16 %v322
    %v2018 = vunpack.c.h.b16 %v322
    %v2019 = vunpack.c.l.b16 %v323
    %v2020 = vunpack.c.h.b16 %v323
    %v2021 = vunpack.c.l.b16 %v324
    %v2022 = vunpack.c.h.b16 %v324
    %v2023 = vunpack.c.l.b16 %v325
    %v2024 = vunpack.c.h.b16 %v325
    %v2025 = vunpack.c.l.b16 %v326
    %v2026 = vunpack.c.h.b16 %v326
    %v2027 = vunpack.c.l.b16 %v327
    %v2028 = vunpack.c.h.b16 %v327
    %v2029 = vunpack.c.l.b16 %v328
    %v2030 = vunpack.c.h.b16 %v328
    %v2031 = vunpack.c.l.b16 %v329
    %v2032 = vunpack.c.h.b16 %v329
    %v2033 = vunpack.c.l.b16 %v330
    %v2034 = vunpack.c.h.b16 %v330
    %v2035 = vunpack.c.l.b16 %v331
    %v2036 = vunpack.c.h.b16 %v331
    %v2037 = vunpack.c.l.b16 %v332
    %v2038 = vunpack.c.h.b16 %v332
    %v2039 = vunpack.c.l.b16 %v333
    %v2040 = vunpack.c.h.b16 %v333
    %v2041 = vunpack.c.l.b16 %v334
    %v2042 = vunpack.c.h.b16 %v334
    %v2043 = vunpack.c.l.b16 %v335
    %v2044 = vunpack.c.h.b16 %v335
    %v2045 = vunpack.c.l.b16 %v336
    %v2046 = vunpack.c.h.b16 %v336
    %v2047 = vunpack.c.l.b16 %v337
    %v2048 = vunpack.c.h.b16 %v337
    %v2049 = vunpack.c.l.b16 %v338
    %v2050 = vunpack.c.h.b16 %v338
    %v2051 = vunpack.c.l.b16 %v339
    %v2052 = vunpack.c.h.b16 %v339
    %v2053 = vunpack.c.l.b16 %v340
    %v2054 = vunpack.c.h.b16 %v340
    %v2055 = vunpack.c.l.b16 %v341
    %v2056 = vunpack.c.h.b16 %v341
    %v2057 = vunpack.c.l.b16 %v342
    %v2058 = vunpack.c.h.b16 %v342
    %v2059 = vunpack.c.l.b16 %v343
    %v2060 = vunpack.c.h.b16 %v343
    %v2061 = vunpack.c.l.b16 %v344
    %v2062 = vunpack.c.h.b16 %v344
    %v2063 = vunpack.c.l.b16 %v345
    %v2064 = vunpack.c.h.b16 %v345
    %v2065 = vunpack.c.l.b16 %v346
    %v2066 = vunpack.c.h.b16 %v346
    %v2067 = vunpack.c.l.b16 %v347
    %v2068 = vunpack.c.h.b16 %v347
    %v2069 = vunpack.c.l.b16 %v348
    %v2070 = vunpack.c.h.b16 %v348
    %v2071 = vunpack.c.l.b16 %v349
    %v2072 = vunpack.c.h.b16 %v349
    %v2073 = vunpack.c.l.b16 %v350
    %v2074 = vunpack.c.h.b16 %v350
    %v2075 = vunpack.c.l.b16 %v351
    %v2076 = vunpack.c.h.b16 %v351
    %v2077 = vunpack.c.l.b16 %v352
    %v2078 = vunpack.c.h.b16 %v352
    %v2079 = vunpack.c.l.b16 %v353
    %v2080 = vunpack.c.h.b16 %v353
    %v2081 = vunpack.c.l.b16 %v354
    %v2082 = vunpack.c.h.b16 %v354
    %v2083 = vunpack.c.l.b16 %v355
    %v2084 = vunpack.c.h.b16 %v355
    %v2085 = vunpack.c.l.b16 %v356
    %v2086 = vunpack.c.h.b16 %v356
    %v2087 = vunpack.c.l.b16 %v357
    %v2088 = vunpack.c.h.b16 %v357
    %v2089 = vunpack.c.l.b16 %v358
    %v2090 = vunpack.c.h.b16 %v358
    %v2091 = vunpack.c.l.b16 %v359
    %v2092 = vunpack.c.h.b16 %v359
    %v2093 = vunpack.c.l.b16 %v360
    %v2094 = vunpack.c.h.b16 %v360
    %v2095 = vunpack.c.l.b16 %v361
    %v2096 = vunpack.c.h.b16 %v361
    %v2097 = vunpack.c.l.b16 %v362
    %v2098 = vunpack.c.h.b16 %v362
    %v2099 = vunpack.c.l.b16 %v363
    %v2100 = vunpack.c.h.b16 %v363
    %v2101 = vunpack.c.l.b16 %v364
    %v2102 = vunpack.c.h.b16 %v364
    %v2103 = vunpack.c.l.b16 %v365
    %v2104 = vunpack.c.h.b16 %v365
    %v2105 = vunpack.c.l.b16 %v366
    %v2106 = vunpack.c.h.b16 %v366
    %v2107 = vunpack.c.l.b16 %v367
    %v2108 = vunpack.c.h.b16 %v367
    %v2109 = vunpack.c.l.b16 %v368
    %v2110 = vunpack.c.h.b16 %v368
    %v2111 = vpack.c.b16 %v1859, %v1855
    %v2112 = vpack.c.b16 %v1860, %v1856
    %v2113 = vpack.c.b16 %v1861, %v1857
    %v2114 = vpack.c.b16 %v1862, %v1858
    %v2115 = vpack.c.b16 %v1867, %v1863
    %v2116 = vpack.c.b16 %v1868, %v1864
    %v2117 = vpack.c.b16 %v1869, %v1865
    %v2118 = vpack.c.b16 %v1870, %v1866
    %v2119 = vpack.c.b16 %v1875, %v1871
    %v2120 = vpack.c.b16 %v1876, %v1872
    %v2121 = vpack.c.b16 %v1877, %v1873
    %v2122 = vpack.c.b16 %v1878, %v1874
    %v2123 = vpack.c.b16 %v1883, %v1879
    %v2124 = vpack.c.b16 %v1884, %v1880
    %v2125 = vpack.c.b16 %v1885, %v1881
    %v2126 = vpack.c.b16 %v1886, %v1882
    %v2127 = vpack.c.b16 %v1891, %v1887
    %v2128 = vpack.c.b16 %v1892, %v1888
    %v2129 = vpack.c.b16 %v1893, %v1889
    %v2130 = vpack.c.b16 %v1894, %v1890
    %v2131 = vpack.c.b16 %v1899, %v1895
    %v2132 = vpack.c.b16 %v1900, %v1896
    %v2133 = vpack.c.b16 %v1901, %v1897
    %v2134 = vpack.c.b16 %v1902, %v1898
    %v2135 = vpack.c.b16 %v1907, %v1903
    %v2136 = vpack.c.b16 %v1908, %v1904
    %v2137 = vpack.c.b16 %v1909, %v1905
    %v2138 = vpack.c.b16 %v1910, %v1906
    %v2139 = vpack.c.b16 %v1915, %v1911
    %v2140 = vpack.c.b16 %v1916, %v1912
    %v2141 = vpack.c.b16 %v1917, %v1913
    %v2142 = vpack.c.b16 %v1918, %v1914
    %v2143 = vpack.c.b16 %v1923, %v1919
    %v2144 = vpack.c.b16 %v1924, %v1920
    %v2145 = vpack.c.b16 %v1925, %v1921
    %v2146 = vpack.c.b16 %v1926, %v1922
    %v2147 = vpack.c.b16 %v1931, %v1927
    %v2148 = vpack.c.b16 %v1932, %v1928
    %v2149 = vpack.c.b16 %v1933, %v1929
    %v2150 = vpack.c.b16 %v1934, %v1930
    %v2151 = vpack.c.b16 %v1939, %v1935
    %v2152 = vpack.c.b16 %v1940, %v1936
    %v2153 = vpack.c.b16 %v1941, %v1937
    %v2154 = vpack.c.b16 %v1942, %v1938
    %v2155 = vpack.c.b16 %v1947, %v1943
    %v2156 = vpack.c.b16 %v1948, %v1944
    %v2157 = vpack.c.b16 %v1949, %v1945
    %v2158 = vpack.c.b16 %v1950, %v1946
    %v2159 = vpack.c.b16 %v1955, %v1951
    %v2160 = vpack.c.b16 %v1956, %v1952
    %v2161 = vpack.c.b16 %v1957, %v1953
    %v2162 = vpack.c.b16 %v1958, %v1954
    %v2163 = vpack.c.b16 %v1963, %v1959
    %v2164 = vpack.c.b16 %v1964, %v1960
    %v2165 = vpack.c.b16 %v1965, %v1961
    %v2166 = vpack.c.b16 %v1966, %v1962
    %v2167 = vpack.c.b16 %v1971, %v1967
    %v2168 = vpack.c.b16 %v1972, %v1968
    %v2169 = vpack.c.b16 %v1973, %v1969
    %v2170 = vpack.c.b16 %v1974, %v1970
    %v2171 = vpack.c.b16 %v1979, %v1975
    %v2172 = vpack.c.b16 %v1980, %v1976
    %v2173 = vpack.c.b16 %v1981, %v1977
    %v2174 = vpack.c.b16 %v1982, %v1978
    %v2175 = vpack.c.b16 %v1987, %v1983
    %v2176 = vpack.c.b16 %v1988, %v1984
    %v2177 = vpack.c.b16 %v1989, %v1985
    %v2178 = vpack.c.b16 %v1990, %v1986
    %v2179 = vpack.c.b16 %v1995, %v1991
    %v2180 = vpack.c.b16 %v1996, %v1992
    %v2181 = vpack.c.b16 %v1997, %v1993
    %v2182 = vpack.c.b16 %v1998, %v1994
    %v2183 = vpack.c.b16 %v2003, %v1999
    %v2184 = vpack.c.b16 %v2004, %v2000
    %v2185 = vpack.c.b16 %v2005, %v2001
    %v2186 = vpack.c.b16 %v2006, %v2002
    %v2187 = vpack.c.b16 %v2011, %v2007
    %v2188 = vpack.c.b16 %v2012, %v2008
    %v2189 = vpack.c.b16 %v2013, %v2009
    %v2190 = vpack.c.b16 %v2014, %v2010
    %v2191 = vpack.c.b16 %v2019, %v2015
    %v2192 = vpack.c.b16 %v2020, %v2016
    %v2193 = vpack.c.b16 %v2021, %v2017
    %v2194 = vpack.c.b16 %v2022, %v2018
    %v2195 = vpack.c.b16 %v2027, %v2023
    %v2196 = vpack.c.b16 %v2028, %v2024
    %v2197 = vpack.c.b16 %v2029, %v2025
    %v2198 = vpack.c.b16 %v2030, %v2026
    %v2199 = vpack.c.b16 %v2035, %v2031
    %v2200 = vpack.c.b16 %v2036, %v2032
    %v2201 = vpack.c.b16 %v2037, %v2033
    %v2202 = vpack.c.b16 %v2038, %v2034
    %v2203 = vpack.c.b16 %v2043, %v2039
    %v2204 = vpack.c.b16 %v2044, %v2040
    %v2205 = vpack.c.b16 %v2045, %v2041
    %v2206 = vpack.c.b16 %v2046, %v2042
    %v2207 = vpack.c.b16 %v2051, %v2047
    %v2208 = vpack.c.b16 %v2052, %v2048
    %v2209 = vpack.c.b16 %v2053, %v2049
    %v2210 = vpack.c.b16 %v2054, %v2050
    %v2211 = vpack.c.b16 %v2059, %v2055
    %v2212 = vpack.c.b16 %v2060, %v2056
    %v2213 = vpack.c.b16 %v2061, %v2057
    %v2214 = vpack.c.b16 %v2062, %v2058
    %v2215 = vpack.c.b16 %v2067, %v2063
    %v2216 = vpack.c.b16 %v2068, %v2064
    %v2217 = vpack.c.b16 %v2069, %v2065
    %v2218 = vpack.c.b16 %v2070, %v2066
    %v2219 = vpack.c.b16 %v2075, %v2071
    %v2220 = vpack.c.b16 %v2076, %v2072
    %v2221 = vpack.c.b16 %v2077, %v2073
    %v2222 = vpack.c.b16 %v2078, %v2074
    %v2223 = vpack.c.b16 %v2083, %v2079
    %v2224 = vpack.c.b16 %v2084, %v2080
    %v2225 = vpack.c.b16 %v2085, %v2081
    %v2226 = vpack.c.b16 %v2086, %v2082
    %v2227 = vpack.c.b16 %v2091, %v2087
    %v2228 = vpack.c.b16 %v2092, %v2088
    %v2229 = vpack.c.b16 %v2093, %v2089
    %v2230 = vpack.c.b16 %v2094, %v2090
    %v2231 = vpack.c.b16 %v2099, %v2095
    %v2232 = vpack.c.b16 %v2100, %v2096
    %v2233 = vpack.c.b16 %v2101, %v2097
    %v2234 = vpack.c.b16 %v2102, %v2098
    %v2235 = vpack.c.b16 %v2107, %v2103
    %v2236 = vpack.c.b16 %v2108, %v2104
    %v2237 = vpack.c.b16 %v2109, %v2105
    %v2238 = vpack.c.b16 %v2110, %v2106
    %2367 = vmatprep.subr.bf16.mxu0 %v2140
    %2368 = vmatpush1.bf16.msra.mxu0 %v2139
    %2369 = vmatprep.subr.bf16.mxu0 %v2136
    %2370 = vmatpush1.bf16.msra.mxu0 %v2135
    %2371 = vmatprep.subr.bf16.mxu0 %v2132
    %2372 = vmatpush1.bf16.msra.mxu0 %v2131
    %2373 = vmatprep.subr.bf16.mxu0 %v2128
    %2374 = vmatpush1.bf16.msra.mxu0 %v2127
    %2375 = vmatprep.subr.bf16.mxu0 %v2124
    %2376 = vmatpush1.bf16.msra.mxu0 %v2123
    %2377 = vmatprep.subr.bf16.mxu0 %v2120
    %2378 = vmatpush1.bf16.msra.mxu0 %v2119
    %2379 = vmatprep.subr.bf16.mxu0 %v2116
    %2380 = vmatpush1.bf16.msra.mxu0 %v2115
    %2381 = vmatprep.subr.bf16.mxu0 %v2112
    %2382 = vmatpush1.bf16.msra.mxu0 %v2111
    %2383 = vmatprep.subr.bf16.mxu0 %v2172
    %2384 = vmatpush2.bf16.msra.mxu0 %v2171
    %2385 = vmatprep.subr.bf16.mxu0 %v2168
    %2386 = vmatpush2.bf16.msra.mxu0 %v2167
    %2387 = vmatprep.subr.bf16.mxu0 %v2164
    %2388 = vmatpush2.bf16.msra.mxu0 %v2163
    %2389 = vmatprep.subr.bf16.mxu0 %v2160
    %2390 = vmatpush2.bf16.msra.mxu0 %v2159
    %2391 = vmatprep.subr.bf16.mxu0 %v2156
    %2392 = vmatpush2.bf16.msra.mxu0 %v2155
    %2393 = vmatprep.subr.bf16.mxu0 %v2152
    %2394 = vmatpush2.bf16.msra.mxu0 %v2151
    %2395 = vmatprep.subr.bf16.mxu0 %v2148
    %2396 = vmatpush2.bf16.msra.mxu0 %v2147
    %2397 = vmatprep.subr.bf16.mxu0 %v2144
    %2398 = vmatpush2.bf16.msra.mxu0 %v2143
    %2399 = vmatprep.mubr.bf16.mxu0 %v206
    %2400 = vmatmul.mubr.bf16.gmra.mxu0 %v205
    %v2401 = vpop.f32.mrf.mxu0
    %v2402 = vadd.f32 %v1423, %v2401
    %v2403 = vpop.f32.mrf.mxu0
    %v2404 = vadd.f32 %v1425, %v2403
    %v2405 = vpop.f32.mrf.mxu0
    %v2406 = vadd.f32 %v1427, %v2405
    %v2407 = vpop.f32.mrf.mxu0
    %v2408 = vadd.f32 %v1429, %v2407
    %2409 = vmatprep.mubr.bf16.mxu0 %v210
    %2410 = vmatmul.mubr.bf16.gmra.mxu0 %v209
    %v2411 = vpop.f32.mrf.mxu0
    %v2412 = vadd.f32 %v1433, %v2411
    %v2413 = vpop.f32.mrf.mxu0
    %v2414 = vadd.f32 %v1435, %v2413
    %v2415 = vpop.f32.mrf.mxu0
    %v2416 = vadd.f32 %v1437, %v2415
    %v2417 = vpop.f32.mrf.mxu0
    %v2418 = vadd.f32 %v1439, %v2417
    %2419 = vmatprep.mubr.bf16.mxu0 %v214
    %2420 = vmatmul.mubr.bf16.gmra.mxu0 %v213
    %v2421 = vpop.f32.mrf.mxu0
    %v2422 = vadd.f32 %v1443, %v2421
    %v2423 = vpop.f32.mrf.mxu0
    %v2424 = vadd.f32 %v1445, %v2423
    %v2425 = vpop.f32.mrf.mxu0
    %v2426 = vadd.f32 %v1447, %v2425
    %v2427 = vpop.f32.mrf.mxu0
    %v2428 = vadd.f32 %v1449, %v2427
    %2429 = vmatprep.mubr.bf16.mxu0 %v218
    %2430 = vmatmul.mubr.bf16.gmra.mxu0 %v217
    %v2431 = vpop.f32.mrf.mxu0
    %v2432 = vadd.f32 %v1453, %v2431
    %v2433 = vpop.f32.mrf.mxu0
    %v2434 = vadd.f32 %v1455, %v2433
    %v2435 = vpop.f32.mrf.mxu0
    %v2436 = vadd.f32 %v1457, %v2435
    %v2437 = vpop.f32.mrf.mxu0
    %v2438 = vadd.f32 %v1459, %v2437
    %2439 = vmatprep.mubr.bf16.mxu0 %v222
    %2440 = vmatmul.mubr.bf16.gmra.mxu0 %v221
    %v2441 = vpop.f32.mrf.mxu0
    %v2442 = vadd.f32 %v1463, %v2441
    %v2443 = vpop.f32.mrf.mxu0
    %v2444 = vadd.f32 %v1465, %v2443
    %v2445 = vpop.f32.mrf.mxu0
    %v2446 = vadd.f32 %v1467, %v2445
    %v2447 = vpop.f32.mrf.mxu0
    %v2448 = vadd.f32 %v1469, %v2447
    %2449 = vmatprep.mubr.bf16.mxu0 %v226
    %2450 = vmatmul.mubr.bf16.gmra.mxu0 %v225
    %v2451 = vpop.f32.mrf.mxu0
    %v2452 = vadd.f32 %v1473, %v2451
    %v2453 = vpop.f32.mrf.mxu0
    %v2454 = vadd.f32 %v1475, %v2453
    %v2455 = vpop.f32.mrf.mxu0
    %v2456 = vadd.f32 %v1477, %v2455
    %v2457 = vpop.f32.mrf.mxu0
    %v2458 = vadd.f32 %v1479, %v2457
    %2459 = vmatprep.mubr.bf16.mxu0 %v230
    %2460 = vmatmul.mubr.bf16.gmra.mxu0 %v229
    %v2461 = vpop.f32.mrf.mxu0
    %v2462 = vadd.f32 %v1483, %v2461
    %v2463 = vpop.f32.mrf.mxu0
    %v2464 = vadd.f32 %v1485, %v2463
    %v2465 = vpop.f32.mrf.mxu0
    %v2466 = vadd.f32 %v1487, %v2465
    %v2467 = vpop.f32.mrf.mxu0
    %v2468 = vadd.f32 %v1489, %v2467
    %2469 = vmatprep.mubr.bf16.mxu0 %v234
    %2470 = vmatmul.mubr.bf16.gmra.mxu0 %v233
    %v2471 = vpop.f32.mrf.mxu0
    %v2472 = vadd.f32 %v1493, %v2471
    %v2473 = vpop.f32.mrf.mxu0
    %v2474 = vadd.f32 %v1495, %v2473
    %v2475 = vpop.f32.mrf.mxu0
    %v2476 = vadd.f32 %v1497, %v2475
    %v2477 = vpop.f32.mrf.mxu0
    %v2478 = vadd.f32 %v1499, %v2477
    %2479 = vdwg.mxu0
    %2480 = vmatprep.subr.bf16.mxu0 %v2204
    %2481 = vmatpush1.bf16.msra.mxu0 %v2203
    %2482 = vmatprep.subr.bf16.mxu0 %v2200
    %2483 = vmatpush1.bf16.msra.mxu0 %v2199
    %2484 = vmatprep.subr.bf16.mxu0 %v2196
    %2485 = vmatpush1.bf16.msra.mxu0 %v2195
    %2486 = vmatprep.subr.bf16.mxu0 %v2192
    %2487 = vmatpush1.bf16.msra.mxu0 %v2191
    %2488 = vmatprep.subr.bf16.mxu0 %v2188
    %2489 = vmatpush1.bf16.msra.mxu0 %v2187
    %2490 = vmatprep.subr.bf16.mxu0 %v2184
    %2491 = vmatpush1.bf16.msra.mxu0 %v2183
    %2492 = vmatprep.subr.bf16.mxu0 %v2180
    %2493 = vmatpush1.bf16.msra.mxu0 %v2179
    %2494 = vmatprep.subr.bf16.mxu0 %v2176
    %2495 = vmatpush1.bf16.msra.mxu0 %v2175
    %2496 = vmatprep.subr.bf16.mxu0 %v2236
    %2497 = vmatpush2.bf16.msra.mxu0 %v2235
    %2498 = vmatprep.subr.bf16.mxu0 %v2232
    %2499 = vmatpush2.bf16.msra.mxu0 %v2231
    %2500 = vmatprep.subr.bf16.mxu0 %v2228
    %2501 = vmatpush2.bf16.msra.mxu0 %v2227
    %2502 = vmatprep.subr.bf16.mxu0 %v2224
    %2503 = vmatpush2.bf16.msra.mxu0 %v2223
    %2504 = vmatprep.subr.bf16.mxu0 %v2220
    %2505 = vmatpush2.bf16.msra.mxu0 %v2219
    %2506 = vmatprep.subr.bf16.mxu0 %v2216
    %2507 = vmatpush2.bf16.msra.mxu0 %v2215
    %2508 = vmatprep.subr.bf16.mxu0 %v2212
    %2509 = vmatpush2.bf16.msra.mxu0 %v2211
    %2510 = vmatprep.subr.bf16.mxu0 %v2208
    %2511 = vmatpush2.bf16.msra.mxu0 %v2207
    %2512 = vmatprep.mubr.bf16.mxu0 %v208
    %2513 = vmatmul.mubr.bf16.gmra.mxu0 %v207
    %v2514 = vpop.f32.mrf.mxu0
    %v2515 = vadd.f32 %v2402, %v2514
    %v2516 = vpop.f32.mrf.mxu0
    %v2517 = vadd.f32 %v2404, %v2516
    %v2518 = vpop.f32.mrf.mxu0
    %v2519 = vadd.f32 %v2406, %v2518
    %v2520 = vpop.f32.mrf.mxu0
    %v2521 = vadd.f32 %v2408, %v2520
    %2522 = vmatprep.mubr.bf16.mxu0 %v212
    %2523 = vmatmul.mubr.bf16.gmra.mxu0 %v211
    %v2524 = vpop.f32.mrf.mxu0
    %v2525 = vadd.f32 %v2412, %v2524
    %v2526 = vpop.f32.mrf.mxu0
    %v2527 = vadd.f32 %v2414, %v2526
    %v2528 = vpop.f32.mrf.mxu0
    %v2529 = vadd.f32 %v2416, %v2528
    %v2530 = vpop.f32.mrf.mxu0
    %v2531 = vadd.f32 %v2418, %v2530
    %2532 = vmatprep.mubr.bf16.mxu0 %v216
    %2533 = vmatmul.mubr.bf16.gmra.mxu0 %v215
    %v2534 = vpop.f32.mrf.mxu0
    %v2535 = vadd.f32 %v2422, %v2534
    %v2536 = vpop.f32.mrf.mxu0
    %v2537 = vadd.f32 %v2424, %v2536
    %v2538 = vpop.f32.mrf.mxu0
    %v2539 = vadd.f32 %v2426, %v2538
    %v2540 = vpop.f32.mrf.mxu0
    %v2541 = vadd.f32 %v2428, %v2540
    %2542 = vmatprep.mubr.bf16.mxu0 %v220
    %2543 = vmatmul.mubr.bf16.gmra.mxu0 %v219
    %v2544 = vpop.f32.mrf.mxu0
    %v2545 = vadd.f32 %v2432, %v2544
    %v2546 = vpop.f32.mrf.mxu0
    %v2547 = vadd.f32 %v2434, %v2546
    %v2548 = vpop.f32.mrf.mxu0
    %v2549 = vadd.f32 %v2436, %v2548
    %v2550 = vpop.f32.mrf.mxu0
    %v2551 = vadd.f32 %v2438, %v2550
    %2552 = vmatprep.mubr.bf16.mxu0 %v224
    %2553 = vmatmul.mubr.bf16.gmra.mxu0 %v223
    %v2554 = vpop.f32.mrf.mxu0
    %v2555 = vadd.f32 %v2442, %v2554
    %v2556 = vpop.f32.mrf.mxu0
    %v2557 = vadd.f32 %v2444, %v2556
    %v2558 = vpop.f32.mrf.mxu0
    %v2559 = vadd.f32 %v2446, %v2558
    %v2560 = vpop.f32.mrf.mxu0
    %v2561 = vadd.f32 %v2448, %v2560
    %2562 = vmatprep.mubr.bf16.mxu0 %v228
    %2563 = vmatmul.mubr.bf16.gmra.mxu0 %v227
    %v2564 = vpop.f32.mrf.mxu0
    %v2565 = vadd.f32 %v2452, %v2564
    %v2566 = vpop.f32.mrf.mxu0
    %v2567 = vadd.f32 %v2454, %v2566
    %v2568 = vpop.f32.mrf.mxu0
    %v2569 = vadd.f32 %v2456, %v2568
    %v2570 = vpop.f32.mrf.mxu0
    %v2571 = vadd.f32 %v2458, %v2570
    %2572 = vmatprep.mubr.bf16.mxu0 %v232
    %2573 = vmatmul.mubr.bf16.gmra.mxu0 %v231
    %v2574 = vpop.f32.mrf.mxu0
    %v2575 = vadd.f32 %v2462, %v2574
    %v2576 = vpop.f32.mrf.mxu0
    %v2577 = vadd.f32 %v2464, %v2576
    %v2578 = vpop.f32.mrf.mxu0
    %v2579 = vadd.f32 %v2466, %v2578
    %v2580 = vpop.f32.mrf.mxu0
    %v2581 = vadd.f32 %v2468, %v2580
    %2582 = vmatprep.mubr.bf16.mxu0 %v236
    %2583 = vmatmul.mubr.bf16.gmra.mxu0 %v235
    %v2584 = vpop.f32.mrf.mxu0
    %v2585 = vadd.f32 %v2472, %v2584
    %v2586 = vpop.f32.mrf.mxu0
    %v2587 = vadd.f32 %v2474, %v2586
    %v2588 = vpop.f32.mrf.mxu0
    %v2589 = vadd.f32 %v2476, %v2588
    %v2590 = vpop.f32.mrf.mxu0
    %v2591 = vadd.f32 %v2478, %v2590
    %2592 = vdwg.mxu0
    %2593 = vmatprep.subr.bf16.mxu0 %v2142
    %2594 = vmatpush1.bf16.msra.mxu0 %v2141
    %2595 = vmatprep.subr.bf16.mxu0 %v2138
    %2596 = vmatpush1.bf16.msra.mxu0 %v2137
    %2597 = vmatprep.subr.bf16.mxu0 %v2134
    %2598 = vmatpush1.bf16.msra.mxu0 %v2133
    %2599 = vmatprep.subr.bf16.mxu0 %v2130
    %2600 = vmatpush1.bf16.msra.mxu0 %v2129
    %2601 = vmatprep.subr.bf16.mxu0 %v2126
    %2602 = vmatpush1.bf16.msra.mxu0 %v2125
    %2603 = vmatprep.subr.bf16.mxu0 %v2122
    %2604 = vmatpush1.bf16.msra.mxu0 %v2121
    %2605 = vmatprep.subr.bf16.mxu0 %v2118
    %2606 = vmatpush1.bf16.msra.mxu0 %v2117
    %2607 = vmatprep.subr.bf16.mxu0 %v2114
    %2608 = vmatpush1.bf16.msra.mxu0 %v2113
    %2609 = vmatprep.subr.bf16.mxu0 %v2174
    %2610 = vmatpush2.bf16.msra.mxu0 %v2173
    %2611 = vmatprep.subr.bf16.mxu0 %v2170
    %2612 = vmatpush2.bf16.msra.mxu0 %v2169
    %2613 = vmatprep.subr.bf16.mxu0 %v2166
    %2614 = vmatpush2.bf16.msra.mxu0 %v2165
    %2615 = vmatprep.subr.bf16.mxu0 %v2162
    %2616 = vmatpush2.bf16.msra.mxu0 %v2161
    %2617 = vmatprep.subr.bf16.mxu0 %v2158
    %2618 = vmatpush2.bf16.msra.mxu0 %v2157
    %2619 = vmatprep.subr.bf16.mxu0 %v2154
    %2620 = vmatpush2.bf16.msra.mxu0 %v2153
    %2621 = vmatprep.subr.bf16.mxu0 %v2150
    %2622 = vmatpush2.bf16.msra.mxu0 %v2149
    %2623 = vmatprep.subr.bf16.mxu0 %v2146
    %2624 = vmatpush2.bf16.msra.mxu0 %v2145
    %2625 = vmatprep.mubr.bf16.mxu0 %v206
    %2626 = vmatmul.mubr.bf16.gmra.mxu0 %v205
    %v2627 = vpop.f32.mrf.mxu0
    %v2628 = vadd.f32 %v1649, %v2627
    %v2629 = vpop.f32.mrf.mxu0
    %v2630 = vadd.f32 %v1651, %v2629
    %v2631 = vpop.f32.mrf.mxu0
    %v2632 = vadd.f32 %v1653, %v2631
    %v2633 = vpop.f32.mrf.mxu0
    %v2634 = vadd.f32 %v1655, %v2633
    %2635 = vmatprep.mubr.bf16.mxu0 %v210
    %2636 = vmatmul.mubr.bf16.gmra.mxu0 %v209
    %v2637 = vpop.f32.mrf.mxu0
    %v2638 = vadd.f32 %v1659, %v2637
    %v2639 = vpop.f32.mrf.mxu0
    %v2640 = vadd.f32 %v1661, %v2639
    %v2641 = vpop.f32.mrf.mxu0
    %v2642 = vadd.f32 %v1663, %v2641
    %v2643 = vpop.f32.mrf.mxu0
    %v2644 = vadd.f32 %v1665, %v2643
    %2645 = vmatprep.mubr.bf16.mxu0 %v214
    %2646 = vmatmul.mubr.bf16.gmra.mxu0 %v213
    %v2647 = vpop.f32.mrf.mxu0
    %v2648 = vadd.f32 %v1669, %v2647
    %v2649 = vpop.f32.mrf.mxu0
    %v2650 = vadd.f32 %v1671, %v2649
    %v2651 = vpop.f32.mrf.mxu0
    %v2652 = vadd.f32 %v1673, %v2651
    %v2653 = vpop.f32.mrf.mxu0
    %v2654 = vadd.f32 %v1675, %v2653
    %2655 = vmatprep.mubr.bf16.mxu0 %v218
    %2656 = vmatmul.mubr.bf16.gmra.mxu0 %v217
    %v2657 = vpop.f32.mrf.mxu0
    %v2658 = vadd.f32 %v1679, %v2657
    %v2659 = vpop.f32.mrf.mxu0
    %v2660 = vadd.f32 %v1681, %v2659
    %v2661 = vpop.f32.mrf.mxu0
    %v2662 = vadd.f32 %v1683, %v2661
    %v2663 = vpop.f32.mrf.mxu0
    %v2664 = vadd.f32 %v1685, %v2663
    %2665 = vmatprep.mubr.bf16.mxu0 %v222
    %2666 = vmatmul.mubr.bf16.gmra.mxu0 %v221
    %v2667 = vpop.f32.mrf.mxu0
    %v2668 = vadd.f32 %v1689, %v2667
    %v2669 = vpop.f32.mrf.mxu0
    %v2670 = vadd.f32 %v1691, %v2669
    %v2671 = vpop.f32.mrf.mxu0
    %v2672 = vadd.f32 %v1693, %v2671
    %v2673 = vpop.f32.mrf.mxu0
    %v2674 = vadd.f32 %v1695, %v2673
    %2675 = vmatprep.mubr.bf16.mxu0 %v226
    %2676 = vmatmul.mubr.bf16.gmra.mxu0 %v225
    %v2677 = vpop.f32.mrf.mxu0
    %v2678 = vadd.f32 %v1699, %v2677
    %v2679 = vpop.f32.mrf.mxu0
    %v2680 = vadd.f32 %v1701, %v2679
    %v2681 = vpop.f32.mrf.mxu0
    %v2682 = vadd.f32 %v1703, %v2681
    %v2683 = vpop.f32.mrf.mxu0
    %v2684 = vadd.f32 %v1705, %v2683
    %2685 = vmatprep.mubr.bf16.mxu0 %v230
    %2686 = vmatmul.mubr.bf16.gmra.mxu0 %v229
    %v2687 = vpop.f32.mrf.mxu0
    %v2688 = vadd.f32 %v1709, %v2687
    %v2689 = vpop.f32.mrf.mxu0
    %v2690 = vadd.f32 %v1711, %v2689
    %v2691 = vpop.f32.mrf.mxu0
    %v2692 = vadd.f32 %v1713, %v2691
    %v2693 = vpop.f32.mrf.mxu0
    %v2694 = vadd.f32 %v1715, %v2693
    %2695 = vmatprep.mubr.bf16.mxu0 %v234
    %2696 = vmatmul.mubr.bf16.gmra.mxu0 %v233
    %v2697 = vpop.f32.mrf.mxu0
    %v2698 = vadd.f32 %v1719, %v2697
    %v2699 = vpop.f32.mrf.mxu0
    %v2700 = vadd.f32 %v1721, %v2699
    %v2701 = vpop.f32.mrf.mxu0
    %v2702 = vadd.f32 %v1723, %v2701
    %v2703 = vpop.f32.mrf.mxu0
    %v2704 = vadd.f32 %v1725, %v2703
    %2705 = vdwg.mxu0
    %2706 = vmatprep.subr.bf16.mxu0 %v2206
    %2707 = vmatpush1.bf16.msra.mxu0 %v2205
    %2708 = vmatprep.subr.bf16.mxu0 %v2202
    %2709 = vmatpush1.bf16.msra.mxu0 %v2201
    %2710 = vmatprep.subr.bf16.mxu0 %v2198
    %2711 = vmatpush1.bf16.msra.mxu0 %v2197
    %2712 = vmatprep.subr.bf16.mxu0 %v2194
    %2713 = vmatpush1.bf16.msra.mxu0 %v2193
    %2714 = vmatprep.subr.bf16.mxu0 %v2190
    %2715 = vmatpush1.bf16.msra.mxu0 %v2189
    %2716 = vmatprep.subr.bf16.mxu0 %v2186
    %2717 = vmatpush1.bf16.msra.mxu0 %v2185
    %2718 = vmatprep.subr.bf16.mxu0 %v2182
    %2719 = vmatpush1.bf16.msra.mxu0 %v2181
    %2720 = vmatprep.subr.bf16.mxu0 %v2178
    %2721 = vmatpush1.bf16.msra.mxu0 %v2177
    %2722 = vmatprep.subr.bf16.mxu0 %v2238
    %2723 = vmatpush2.bf16.msra.mxu0 %v2237
    %2724 = vmatprep.subr.bf16.mxu0 %v2234
    %2725 = vmatpush2.bf16.msra.mxu0 %v2233
    %2726 = vmatprep.subr.bf16.mxu0 %v2230
    %2727 = vmatpush2.bf16.msra.mxu0 %v2229
    %2728 = vmatprep.subr.bf16.mxu0 %v2226
    %2729 = vmatpush2.bf16.msra.mxu0 %v2225
    %2730 = vmatprep.subr.bf16.mxu0 %v2222
    %2731 = vmatpush2.bf16.msra.mxu0 %v2221
    %2732 = vmatprep.subr.bf16.mxu0 %v2218
    %2733 = vmatpush2.bf16.msra.mxu0 %v2217
    %2734 = vmatprep.subr.bf16.mxu0 %v2214
    %2735 = vmatpush2.bf16.msra.mxu0 %v2213
    %2736 = vmatprep.subr.bf16.mxu0 %v2210
    %2737 = vmatpush2.bf16.msra.mxu0 %v2209
    %2738 = vmatprep.mubr.bf16.mxu0 %v208
    %2739 = vmatmul.mubr.bf16.gmra.mxu0 %v207
    %v2740 = vpop.f32.mrf.mxu0
    %v2741 = vadd.f32 %v2628, %v2740
    %v2742 = vpop.f32.mrf.mxu0
    %v2743 = vadd.f32 %v2630, %v2742
    %v2744 = vpop.f32.mrf.mxu0
    %v2745 = vadd.f32 %v2632, %v2744
    %v2746 = vpop.f32.mrf.mxu0
    %v2747 = vadd.f32 %v2634, %v2746
    %2748 = vmatprep.mubr.bf16.mxu0 %v212
    %2749 = vmatmul.mubr.bf16.gmra.mxu0 %v211
    %v2750 = vpop.f32.mrf.mxu0
    %v2751 = vadd.f32 %v2638, %v2750
    %v2752 = vpop.f32.mrf.mxu0
    %v2753 = vadd.f32 %v2640, %v2752
    %v2754 = vpop.f32.mrf.mxu0
    %v2755 = vadd.f32 %v2642, %v2754
    %v2756 = vpop.f32.mrf.mxu0
    %v2757 = vadd.f32 %v2644, %v2756
    %2758 = vmatprep.mubr.bf16.mxu0 %v216
    %2759 = vmatmul.mubr.bf16.gmra.mxu0 %v215
    %v2760 = vpop.f32.mrf.mxu0
    %v2761 = vadd.f32 %v2648, %v2760
    %v2762 = vpop.f32.mrf.mxu0
    %v2763 = vadd.f32 %v2650, %v2762
    %v2764 = vpop.f32.mrf.mxu0
    %v2765 = vadd.f32 %v2652, %v2764
    %v2766 = vpop.f32.mrf.mxu0
    %v2767 = vadd.f32 %v2654, %v2766
    %2768 = vmatprep.mubr.bf16.mxu0 %v220
    %2769 = vmatmul.mubr.bf16.gmra.mxu0 %v219
    %v2770 = vpop.f32.mrf.mxu0
    %v2771 = vadd.f32 %v2658, %v2770
    %v2772 = vpop.f32.mrf.mxu0
    %v2773 = vadd.f32 %v2660, %v2772
    %v2774 = vpop.f32.mrf.mxu0
    %v2775 = vadd.f32 %v2662, %v2774
    %v2776 = vpop.f32.mrf.mxu0
    %v2777 = vadd.f32 %v2664, %v2776
    %2778 = vmatprep.mubr.bf16.mxu0 %v224
    %2779 = vmatmul.mubr.bf16.gmra.mxu0 %v223
    %v2780 = vpop.f32.mrf.mxu0
    %v2781 = vadd.f32 %v2668, %v2780
    %v2782 = vpop.f32.mrf.mxu0
    %v2783 = vadd.f32 %v2670, %v2782
    %v2784 = vpop.f32.mrf.mxu0
    %v2785 = vadd.f32 %v2672, %v2784
    %v2786 = vpop.f32.mrf.mxu0
    %v2787 = vadd.f32 %v2674, %v2786
    %2788 = vmatprep.mubr.bf16.mxu0 %v228
    %2789 = vmatmul.mubr.bf16.gmra.mxu0 %v227
    %v2790 = vpop.f32.mrf.mxu0
    %v2791 = vadd.f32 %v2678, %v2790
    %v2792 = vpop.f32.mrf.mxu0
    %v2793 = vadd.f32 %v2680, %v2792
    %v2794 = vpop.f32.mrf.mxu0
    %v2795 = vadd.f32 %v2682, %v2794
    %v2796 = vpop.f32.mrf.mxu0
    %v2797 = vadd.f32 %v2684, %v2796
    %2798 = vmatprep.mubr.bf16.mxu0 %v232
    %2799 = vmatmul.mubr.bf16.gmra.mxu0 %v231
    %v2800 = vpop.f32.mrf.mxu0
    %v2801 = vadd.f32 %v2688, %v2800
    %v2802 = vpop.f32.mrf.mxu0
    %v2803 = vadd.f32 %v2690, %v2802
    %v2804 = vpop.f32.mrf.mxu0
    %v2805 = vadd.f32 %v2692, %v2804
    %v2806 = vpop.f32.mrf.mxu0
    %v2807 = vadd.f32 %v2694, %v2806
    %2808 = vmatprep.mubr.bf16.mxu0 %v236
    %2809 = vmatmul.mubr.bf16.gmra.mxu0 %v235
    %v2810 = vpop.f32.mrf.mxu0
    %v2811 = vadd.f32 %v2698, %v2810
    %v2812 = vpop.f32.mrf.mxu0
    %v2813 = vadd.f32 %v2700, %v2812
    %v2814 = vpop.f32.mrf.mxu0
    %v2815 = vadd.f32 %v2702, %v2814
    %v2816 = vpop.f32.mrf.mxu0
    %v2817 = vadd.f32 %v2704, %v2816
    %2818 = vdwg.mxu0
    %s2819 = scalar_lea.vmem [#allocation6], 2048
    %v2820 = vld [vmem:[%s2819] sm:$0xff]
    %v2821 = vld [vmem:[%s2819 + $0x8] sm:$0xff]
    %v2822 = vld [vmem:[%s2819 + $0x10] sm:$0xff]
    %v2823 = vld [vmem:[%s2819 + $0x18] sm:$0xff]
    %v2824 = vld [vmem:[%s2819 + $0x20] sm:$0xff]
    %v2825 = vld [vmem:[%s2819 + $0x28] sm:$0xff]
    %v2826 = vld [vmem:[%s2819 + $0x30] sm:$0xff]
    %v2827 = vld [vmem:[%s2819 + $0x38] sm:$0xff]
    %v2828 = vld [vmem:[%s2819 + $0x40] sm:$0xff]
    %v2829 = vld [vmem:[%s2819 + $0x48] sm:$0xff]
    %v2830 = vld [vmem:[%s2819 + $0x50] sm:$0xff]
    %v2831 = vld [vmem:[%s2819 + $0x58] sm:$0xff]
    %v2832 = vld [vmem:[%s2819 + $0x60] sm:$0xff]
    %v2833 = vld [vmem:[%s2819 + $0x68] sm:$0xff]
    %v2834 = vld [vmem:[%s2819 + $0x70] sm:$0xff]
    %v2835 = vld [vmem:[%s2819 + $0x78] sm:$0xff]
    %v2836 = vld [vmem:[%s2819 + $0x80] sm:$0xff]
    %v2837 = vld [vmem:[%s2819 + $0x88] sm:$0xff]
    %v2838 = vld [vmem:[%s2819 + $0x90] sm:$0xff]
    %v2839 = vld [vmem:[%s2819 + $0x98] sm:$0xff]
    %v2840 = vld [vmem:[%s2819 + $0xa0] sm:$0xff]
    %v2841 = vld [vmem:[%s2819 + $0xa8] sm:$0xff]
    %v2842 = vld [vmem:[%s2819 + $0xb0] sm:$0xff]
    %v2843 = vld [vmem:[%s2819 + $0xb8] sm:$0xff]
    %v2844 = vld [vmem:[%s2819 + $0xc0] sm:$0xff]
    %v2845 = vld [vmem:[%s2819 + $0xc8] sm:$0xff]
    %v2846 = vld [vmem:[%s2819 + $0xd0] sm:$0xff]
    %v2847 = vld [vmem:[%s2819 + $0xd8] sm:$0xff]
    %v2848 = vld [vmem:[%s2819 + $0xe0] sm:$0xff]
    %v2849 = vld [vmem:[%s2819 + $0xe8] sm:$0xff]
    %v2850 = vld [vmem:[%s2819 + $0xf0] sm:$0xff]
    %v2851 = vld [vmem:[%s2819 + $0xf8] sm:$0xff]
    %v2852 = vld [vmem:[%s2819 + $0x100] sm:$0xff]
    %v2853 = vld [vmem:[%s2819 + $0x108] sm:$0xff]
    %v2854 = vld [vmem:[%s2819 + $0x110] sm:$0xff]
    %v2855 = vld [vmem:[%s2819 + $0x118] sm:$0xff]
    %v2856 = vld [vmem:[%s2819 + $0x120] sm:$0xff]
    %v2857 = vld [vmem:[%s2819 + $0x128] sm:$0xff]
    %v2858 = vld [vmem:[%s2819 + $0x130] sm:$0xff]
    %v2859 = vld [vmem:[%s2819 + $0x138] sm:$0xff]
    %v2860 = vld [vmem:[%s2819 + $0x140] sm:$0xff]
    %v2861 = vld [vmem:[%s2819 + $0x148] sm:$0xff]
    %v2862 = vld [vmem:[%s2819 + $0x150] sm:$0xff]
    %v2863 = vld [vmem:[%s2819 + $0x158] sm:$0xff]
    %v2864 = vld [vmem:[%s2819 + $0x160] sm:$0xff]
    %v2865 = vld [vmem:[%s2819 + $0x168] sm:$0xff]
    %v2866 = vld [vmem:[%s2819 + $0x170] sm:$0xff]
    %v2867 = vld [vmem:[%s2819 + $0x178] sm:$0xff]
    %v2868 = vld [vmem:[%s2819 + $0x180] sm:$0xff]
    %v2869 = vld [vmem:[%s2819 + $0x188] sm:$0xff]
    %v2870 = vld [vmem:[%s2819 + $0x190] sm:$0xff]
    %v2871 = vld [vmem:[%s2819 + $0x198] sm:$0xff]
    %v2872 = vld [vmem:[%s2819 + $0x1a0] sm:$0xff]
    %v2873 = vld [vmem:[%s2819 + $0x1a8] sm:$0xff]
    %v2874 = vld [vmem:[%s2819 + $0x1b0] sm:$0xff]
    %v2875 = vld [vmem:[%s2819 + $0x1b8] sm:$0xff]
    %v2876 = vld [vmem:[%s2819 + $0x1c0] sm:$0xff]
    %v2877 = vld [vmem:[%s2819 + $0x1c8] sm:$0xff]
    %v2878 = vld [vmem:[%s2819 + $0x1d0] sm:$0xff]
    %v2879 = vld [vmem:[%s2819 + $0x1d8] sm:$0xff]
    %v2880 = vld [vmem:[%s2819 + $0x1e0] sm:$0xff]
    %v2881 = vld [vmem:[%s2819 + $0x1e8] sm:$0xff]
    %v2882 = vld [vmem:[%s2819 + $0x1f0] sm:$0xff]
    %v2883 = vld [vmem:[%s2819 + $0x1f8] sm:$0xff]
    %v2884 = vld [vmem:[%s2819 + $0x200] sm:$0xff]
    %v2885 = vld [vmem:[%s2819 + $0x208] sm:$0xff]
    %v2886 = vld [vmem:[%s2819 + $0x210] sm:$0xff]
    %v2887 = vld [vmem:[%s2819 + $0x218] sm:$0xff]
    %v2888 = vld [vmem:[%s2819 + $0x220] sm:$0xff]
    %v2889 = vld [vmem:[%s2819 + $0x228] sm:$0xff]
    %v2890 = vld [vmem:[%s2819 + $0x230] sm:$0xff]
    %v2891 = vld [vmem:[%s2819 + $0x238] sm:$0xff]
    %v2892 = vld [vmem:[%s2819 + $0x240] sm:$0xff]
    %v2893 = vld [vmem:[%s2819 + $0x248] sm:$0xff]
    %v2894 = vld [vmem:[%s2819 + $0x250] sm:$0xff]
    %v2895 = vld [vmem:[%s2819 + $0x258] sm:$0xff]
    %v2896 = vld [vmem:[%s2819 + $0x260] sm:$0xff]
    %v2897 = vld [vmem:[%s2819 + $0x268] sm:$0xff]
    %v2898 = vld [vmem:[%s2819 + $0x270] sm:$0xff]
    %v2899 = vld [vmem:[%s2819 + $0x278] sm:$0xff]
    %v2900 = vld [vmem:[%s2819 + $0x280] sm:$0xff]
    %v2901 = vld [vmem:[%s2819 + $0x288] sm:$0xff]
    %v2902 = vld [vmem:[%s2819 + $0x290] sm:$0xff]
    %v2903 = vld [vmem:[%s2819 + $0x298] sm:$0xff]
    %v2904 = vld [vmem:[%s2819 + $0x2a0] sm:$0xff]
    %v2905 = vld [vmem:[%s2819 + $0x2a8] sm:$0xff]
    %v2906 = vld [vmem:[%s2819 + $0x2b0] sm:$0xff]
    %v2907 = vld [vmem:[%s2819 + $0x2b8] sm:$0xff]
    %v2908 = vld [vmem:[%s2819 + $0x2c0] sm:$0xff]
    %v2909 = vld [vmem:[%s2819 + $0x2c8] sm:$0xff]
    %v2910 = vld [vmem:[%s2819 + $0x2d0] sm:$0xff]
    %v2911 = vld [vmem:[%s2819 + $0x2d8] sm:$0xff]
    %v2912 = vld [vmem:[%s2819 + $0x2e0] sm:$0xff]
    %v2913 = vld [vmem:[%s2819 + $0x2e8] sm:$0xff]
    %v2914 = vld [vmem:[%s2819 + $0x2f0] sm:$0xff]
    %v2915 = vld [vmem:[%s2819 + $0x2f8] sm:$0xff]
    %v2916 = vld [vmem:[%s2819 + $0x300] sm:$0xff]
    %v2917 = vld [vmem:[%s2819 + $0x308] sm:$0xff]
    %v2918 = vld [vmem:[%s2819 + $0x310] sm:$0xff]
    %v2919 = vld [vmem:[%s2819 + $0x318] sm:$0xff]
    %v2920 = vld [vmem:[%s2819 + $0x320] sm:$0xff]
    %v2921 = vld [vmem:[%s2819 + $0x328] sm:$0xff]
    %v2922 = vld [vmem:[%s2819 + $0x330] sm:$0xff]
    %v2923 = vld [vmem:[%s2819 + $0x338] sm:$0xff]
    %v2924 = vld [vmem:[%s2819 + $0x340] sm:$0xff]
    %v2925 = vld [vmem:[%s2819 + $0x348] sm:$0xff]
    %v2926 = vld [vmem:[%s2819 + $0x350] sm:$0xff]
    %v2927 = vld [vmem:[%s2819 + $0x358] sm:$0xff]
    %v2928 = vld [vmem:[%s2819 + $0x360] sm:$0xff]
    %v2929 = vld [vmem:[%s2819 + $0x368] sm:$0xff]
    %v2930 = vld [vmem:[%s2819 + $0x370] sm:$0xff]
    %v2931 = vld [vmem:[%s2819 + $0x378] sm:$0xff]
    %v2932 = vld [vmem:[%s2819 + $0x380] sm:$0xff]
    %v2933 = vld [vmem:[%s2819 + $0x388] sm:$0xff]
    %v2934 = vld [vmem:[%s2819 + $0x390] sm:$0xff]
    %v2935 = vld [vmem:[%s2819 + $0x398] sm:$0xff]
    %v2936 = vld [vmem:[%s2819 + $0x3a0] sm:$0xff]
    %v2937 = vld [vmem:[%s2819 + $0x3a8] sm:$0xff]
    %v2938 = vld [vmem:[%s2819 + $0x3b0] sm:$0xff]
    %v2939 = vld [vmem:[%s2819 + $0x3b8] sm:$0xff]
    %v2940 = vld [vmem:[%s2819 + $0x3c0] sm:$0xff]
    %v2941 = vld [vmem:[%s2819 + $0x3c8] sm:$0xff]
    %v2942 = vld [vmem:[%s2819 + $0x3d0] sm:$0xff]
    %v2943 = vld [vmem:[%s2819 + $0x3d8] sm:$0xff]
    %v2944 = vld [vmem:[%s2819 + $0x3e0] sm:$0xff]
    %v2945 = vld [vmem:[%s2819 + $0x3e8] sm:$0xff]
    %v2946 = vld [vmem:[%s2819 + $0x3f0] sm:$0xff]
    %v2947 = vld [vmem:[%s2819 + $0x3f8] sm:$0xff]
    %v3076 = vunpack.c.l.b16 %v2820
    %v3077 = vunpack.c.h.b16 %v2820
    %v3078 = vunpack.c.l.b16 %v2821
    %v3079 = vunpack.c.h.b16 %v2821
    %v3080 = vunpack.c.l.b16 %v2822
    %v3081 = vunpack.c.h.b16 %v2822
    %v3082 = vunpack.c.l.b16 %v2823
    %v3083 = vunpack.c.h.b16 %v2823
    %v3084 = vunpack.c.l.b16 %v2824
    %v3085 = vunpack.c.h.b16 %v2824
    %v3086 = vunpack.c.l.b16 %v2825
    %v3087 = vunpack.c.h.b16 %v2825
    %v3088 = vunpack.c.l.b16 %v2826
    %v3089 = vunpack.c.h.b16 %v2826
    %v3090 = vunpack.c.l.b16 %v2827
    %v3091 = vunpack.c.h.b16 %v2827
    %v3092 = vunpack.c.l.b16 %v2828
    %v3093 = vunpack.c.h.b16 %v2828
    %v3094 = vunpack.c.l.b16 %v2829
    %v3095 = vunpack.c.h.b16 %v2829
    %v3096 = vunpack.c.l.b16 %v2830
    %v3097 = vunpack.c.h.b16 %v2830
    %v3098 = vunpack.c.l.b16 %v2831
    %v3099 = vunpack.c.h.b16 %v2831
    %v3100 = vunpack.c.l.b16 %v2832
    %v3101 = vunpack.c.h.b16 %v2832
    %v3102 = vunpack.c.l.b16 %v2833
    %v3103 = vunpack.c.h.b16 %v2833
    %v3104 = vunpack.c.l.b16 %v2834
    %v3105 = vunpack.c.h.b16 %v2834
    %v3106 = vunpack.c.l.b16 %v2835
    %v3107 = vunpack.c.h.b16 %v2835
    %v3108 = vunpack.c.l.b16 %v2836
    %v3109 = vunpack.c.h.b16 %v2836
    %v3110 = vunpack.c.l.b16 %v2837
    %v3111 = vunpack.c.h.b16 %v2837
    %v3112 = vunpack.c.l.b16 %v2838
    %v3113 = vunpack.c.h.b16 %v2838
    %v3114 = vunpack.c.l.b16 %v2839
    %v3115 = vunpack.c.h.b16 %v2839
    %v3116 = vunpack.c.l.b16 %v2840
    %v3117 = vunpack.c.h.b16 %v2840
    %v3118 = vunpack.c.l.b16 %v2841
    %v3119 = vunpack.c.h.b16 %v2841
    %v3120 = vunpack.c.l.b16 %v2842
    %v3121 = vunpack.c.h.b16 %v2842
    %v3122 = vunpack.c.l.b16 %v2843
    %v3123 = vunpack.c.h.b16 %v2843
    %v3124 = vunpack.c.l.b16 %v2844
    %v3125 = vunpack.c.h.b16 %v2844
    %v3126 = vunpack.c.l.b16 %v2845
    %v3127 = vunpack.c.h.b16 %v2845
    %v3128 = vunpack.c.l.b16 %v2846
    %v3129 = vunpack.c.h.b16 %v2846
    %v3130 = vunpack.c.l.b16 %v2847
    %v3131 = vunpack.c.h.b16 %v2847
    %v3132 = vunpack.c.l.b16 %v2848
    %v3133 = vunpack.c.h.b16 %v2848
    %v3134 = vunpack.c.l.b16 %v2849
    %v3135 = vunpack.c.h.b16 %v2849
    %v3136 = vunpack.c.l.b16 %v2850
    %v3137 = vunpack.c.h.b16 %v2850
    %v3138 = vunpack.c.l.b16 %v2851
    %v3139 = vunpack.c.h.b16 %v2851
    %v3140 = vunpack.c.l.b16 %v2852
    %v3141 = vunpack.c.h.b16 %v2852
    %v3142 = vunpack.c.l.b16 %v2853
    %v3143 = vunpack.c.h.b16 %v2853
    %v3144 = vunpack.c.l.b16 %v2854
    %v3145 = vunpack.c.h.b16 %v2854
    %v3146 = vunpack.c.l.b16 %v2855
    %v3147 = vunpack.c.h.b16 %v2855
    %v3148 = vunpack.c.l.b16 %v2856
    %v3149 = vunpack.c.h.b16 %v2856
    %v3150 = vunpack.c.l.b16 %v2857
    %v3151 = vunpack.c.h.b16 %v2857
    %v3152 = vunpack.c.l.b16 %v2858
    %v3153 = vunpack.c.h.b16 %v2858
    %v3154 = vunpack.c.l.b16 %v2859
    %v3155 = vunpack.c.h.b16 %v2859
    %v3156 = vunpack.c.l.b16 %v2860
    %v3157 = vunpack.c.h.b16 %v2860
    %v3158 = vunpack.c.l.b16 %v2861
    %v3159 = vunpack.c.h.b16 %v2861
    %v3160 = vunpack.c.l.b16 %v2862
    %v3161 = vunpack.c.h.b16 %v2862
    %v3162 = vunpack.c.l.b16 %v2863
    %v3163 = vunpack.c.h.b16 %v2863
    %v3164 = vunpack.c.l.b16 %v2864
    %v3165 = vunpack.c.h.b16 %v2864
    %v3166 = vunpack.c.l.b16 %v2865
    %v3167 = vunpack.c.h.b16 %v2865
    %v3168 = vunpack.c.l.b16 %v2866
    %v3169 = vunpack.c.h.b16 %v2866
    %v3170 = vunpack.c.l.b16 %v2867
    %v3171 = vunpack.c.h.b16 %v2867
    %v3172 = vunpack.c.l.b16 %v2868
    %v3173 = vunpack.c.h.b16 %v2868
    %v3174 = vunpack.c.l.b16 %v2869
    %v3175 = vunpack.c.h.b16 %v2869
    %v3176 = vunpack.c.l.b16 %v2870
    %v3177 = vunpack.c.h.b16 %v2870
    %v3178 = vunpack.c.l.b16 %v2871
    %v3179 = vunpack.c.h.b16 %v2871
    %v3180 = vunpack.c.l.b16 %v2872
    %v3181 = vunpack.c.h.b16 %v2872
    %v3182 = vunpack.c.l.b16 %v2873
    %v3183 = vunpack.c.h.b16 %v2873
    %v3184 = vunpack.c.l.b16 %v2874
    %v3185 = vunpack.c.h.b16 %v2874
    %v3186 = vunpack.c.l.b16 %v2875
    %v3187 = vunpack.c.h.b16 %v2875
    %v3188 = vunpack.c.l.b16 %v2876
    %v3189 = vunpack.c.h.b16 %v2876
    %v3190 = vunpack.c.l.b16 %v2877
    %v3191 = vunpack.c.h.b16 %v2877
    %v3192 = vunpack.c.l.b16 %v2878
    %v3193 = vunpack.c.h.b16 %v2878
    %v3194 = vunpack.c.l.b16 %v2879
    %v3195 = vunpack.c.h.b16 %v2879
    %v3196 = vunpack.c.l.b16 %v2880
    %v3197 = vunpack.c.h.b16 %v2880
    %v3198 = vunpack.c.l.b16 %v2881
    %v3199 = vunpack.c.h.b16 %v2881
    %v3200 = vunpack.c.l.b16 %v2882
    %v3201 = vunpack.c.h.b16 %v2882
    %v3202 = vunpack.c.l.b16 %v2883
    %v3203 = vunpack.c.h.b16 %v2883
    %v3204 = vunpack.c.l.b16 %v2884
    %v3205 = vunpack.c.h.b16 %v2884
    %v3206 = vunpack.c.l.b16 %v2885
    %v3207 = vunpack.c.h.b16 %v2885
    %v3208 = vunpack.c.l.b16 %v2886
    %v3209 = vunpack.c.h.b16 %v2886
    %v3210 = vunpack.c.l.b16 %v2887
    %v3211 = vunpack.c.h.b16 %v2887
    %v3212 = vunpack.c.l.b16 %v2888
    %v3213 = vunpack.c.h.b16 %v2888
    %v3214 = vunpack.c.l.b16 %v2889
    %v3215 = vunpack.c.h.b16 %v2889
    %v3216 = vunpack.c.l.b16 %v2890
    %v3217 = vunpack.c.h.b16 %v2890
    %v3218 = vunpack.c.l.b16 %v2891
    %v3219 = vunpack.c.h.b16 %v2891
    %v3220 = vunpack.c.l.b16 %v2892
    %v3221 = vunpack.c.h.b16 %v2892
    %v3222 = vunpack.c.l.b16 %v2893
    %v3223 = vunpack.c.h.b16 %v2893
    %v3224 = vunpack.c.l.b16 %v2894
    %v3225 = vunpack.c.h.b16 %v2894
    %v3226 = vunpack.c.l.b16 %v2895
    %v3227 = vunpack.c.h.b16 %v2895
    %v3228 = vunpack.c.l.b16 %v2896
    %v3229 = vunpack.c.h.b16 %v2896
    %v3230 = vunpack.c.l.b16 %v2897
    %v3231 = vunpack.c.h.b16 %v2897
    %v3232 = vunpack.c.l.b16 %v2898
    %v3233 = vunpack.c.h.b16 %v2898
    %v3234 = vunpack.c.l.b16 %v2899
    %v3235 = vunpack.c.h.b16 %v2899
    %v3236 = vunpack.c.l.b16 %v2900
    %v3237 = vunpack.c.h.b16 %v2900
    %v3238 = vunpack.c.l.b16 %v2901
    %v3239 = vunpack.c.h.b16 %v2901
    %v3240 = vunpack.c.l.b16 %v2902
    %v3241 = vunpack.c.h.b16 %v2902
    %v3242 = vunpack.c.l.b16 %v2903
    %v3243 = vunpack.c.h.b16 %v2903
    %v3244 = vunpack.c.l.b16 %v2904
    %v3245 = vunpack.c.h.b16 %v2904
    %v3246 = vunpack.c.l.b16 %v2905
    %v3247 = vunpack.c.h.b16 %v2905
    %v3248 = vunpack.c.l.b16 %v2906
    %v3249 = vunpack.c.h.b16 %v2906
    %v3250 = vunpack.c.l.b16 %v2907
    %v3251 = vunpack.c.h.b16 %v2907
    %v3252 = vunpack.c.l.b16 %v2908
    %v3253 = vunpack.c.h.b16 %v2908
    %v3254 = vunpack.c.l.b16 %v2909
    %v3255 = vunpack.c.h.b16 %v2909
    %v3256 = vunpack.c.l.b16 %v2910
    %v3257 = vunpack.c.h.b16 %v2910
    %v3258 = vunpack.c.l.b16 %v2911
    %v3259 = vunpack.c.h.b16 %v2911
    %v3260 = vunpack.c.l.b16 %v2912
    %v3261 = vunpack.c.h.b16 %v2912
    %v3262 = vunpack.c.l.b16 %v2913
    %v3263 = vunpack.c.h.b16 %v2913
    %v3264 = vunpack.c.l.b16 %v2914
    %v3265 = vunpack.c.h.b16 %v2914
    %v3266 = vunpack.c.l.b16 %v2915
    %v3267 = vunpack.c.h.b16 %v2915
    %v3268 = vunpack.c.l.b16 %v2916
    %v3269 = vunpack.c.h.b16 %v2916
    %v3270 = vunpack.c.l.b16 %v2917
    %v3271 = vunpack.c.h.b16 %v2917
    %v3272 = vunpack.c.l.b16 %v2918
    %v3273 = vunpack.c.h.b16 %v2918
    %v3274 = vunpack.c.l.b16 %v2919
    %v3275 = vunpack.c.h.b16 %v2919
    %v3276 = vunpack.c.l.b16 %v2920
    %v3277 = vunpack.c.h.b16 %v2920
    %v3278 = vunpack.c.l.b16 %v2921
    %v3279 = vunpack.c.h.b16 %v2921
    %v3280 = vunpack.c.l.b16 %v2922
    %v3281 = vunpack.c.h.b16 %v2922
    %v3282 = vunpack.c.l.b16 %v2923
    %v3283 = vunpack.c.h.b16 %v2923
    %v3284 = vunpack.c.l.b16 %v2924
    %v3285 = vunpack.c.h.b16 %v2924
    %v3286 = vunpack.c.l.b16 %v2925
    %v3287 = vunpack.c.h.b16 %v2925
    %v3288 = vunpack.c.l.b16 %v2926
    %v3289 = vunpack.c.h.b16 %v2926
    %v3290 = vunpack.c.l.b16 %v2927
    %v3291 = vunpack.c.h.b16 %v2927
    %v3292 = vunpack.c.l.b16 %v2928
    %v3293 = vunpack.c.h.b16 %v2928
    %v3294 = vunpack.c.l.b16 %v2929
    %v3295 = vunpack.c.h.b16 %v2929
    %v3296 = vunpack.c.l.b16 %v2930
    %v3297 = vunpack.c.h.b16 %v2930
    %v3298 = vunpack.c.l.b16 %v2931
    %v3299 = vunpack.c.h.b16 %v2931
    %v3300 = vunpack.c.l.b16 %v2932
    %v3301 = vunpack.c.h.b16 %v2932
    %v3302 = vunpack.c.l.b16 %v2933
    %v3303 = vunpack.c.h.b16 %v2933
    %v3304 = vunpack.c.l.b16 %v2934
    %v3305 = vunpack.c.h.b16 %v2934
    %v3306 = vunpack.c.l.b16 %v2935
    %v3307 = vunpack.c.h.b16 %v2935
    %v3308 = vunpack.c.l.b16 %v2936
    %v3309 = vunpack.c.h.b16 %v2936
    %v3310 = vunpack.c.l.b16 %v2937
    %v3311 = vunpack.c.h.b16 %v2937
    %v3312 = vunpack.c.l.b16 %v2938
    %v3313 = vunpack.c.h.b16 %v2938
    %v3314 = vunpack.c.l.b16 %v2939
    %v3315 = vunpack.c.h.b16 %v2939
    %v3316 = vunpack.c.l.b16 %v2940
    %v3317 = vunpack.c.h.b16 %v2940
    %v3318 = vunpack.c.l.b16 %v2941
    %v3319 = vunpack.c.h.b16 %v2941
    %v3320 = vunpack.c.l.b16 %v2942
    %v3321 = vunpack.c.h.b16 %v2942
    %v3322 = vunpack.c.l.b16 %v2943
    %v3323 = vunpack.c.h.b16 %v2943
    %v3324 = vunpack.c.l.b16 %v2944
    %v3325 = vunpack.c.h.b16 %v2944
    %v3326 = vunpack.c.l.b16 %v2945
    %v3327 = vunpack.c.h.b16 %v2945
    %v3328 = vunpack.c.l.b16 %v2946
    %v3329 = vunpack.c.h.b16 %v2946
    %v3330 = vunpack.c.l.b16 %v2947
    %v3331 = vunpack.c.h.b16 %v2947
    %v3332 = vpack.c.b16 %v3080, %v3076
    %v3333 = vpack.c.b16 %v3081, %v3077
    %v3334 = vpack.c.b16 %v3082, %v3078
    %v3335 = vpack.c.b16 %v3083, %v3079
    %v3336 = vpack.c.b16 %v3088, %v3084
    %v3337 = vpack.c.b16 %v3089, %v3085
    %v3338 = vpack.c.b16 %v3090, %v3086
    %v3339 = vpack.c.b16 %v3091, %v3087
    %v3340 = vpack.c.b16 %v3096, %v3092
    %v3341 = vpack.c.b16 %v3097, %v3093
    %v3342 = vpack.c.b16 %v3098, %v3094
    %v3343 = vpack.c.b16 %v3099, %v3095
    %v3344 = vpack.c.b16 %v3104, %v3100
    %v3345 = vpack.c.b16 %v3105, %v3101
    %v3346 = vpack.c.b16 %v3106, %v3102
    %v3347 = vpack.c.b16 %v3107, %v3103
    %v3348 = vpack.c.b16 %v3112, %v3108
    %v3349 = vpack.c.b16 %v3113, %v3109
    %v3350 = vpack.c.b16 %v3114, %v3110
    %v3351 = vpack.c.b16 %v3115, %v3111
    %v3352 = vpack.c.b16 %v3120, %v3116
    %v3353 = vpack.c.b16 %v3121, %v3117
    %v3354 = vpack.c.b16 %v3122, %v3118
    %v3355 = vpack.c.b16 %v3123, %v3119
    %v3356 = vpack.c.b16 %v3128, %v3124
    %v3357 = vpack.c.b16 %v3129, %v3125
    %v3358 = vpack.c.b16 %v3130, %v3126
    %v3359 = vpack.c.b16 %v3131, %v3127
    %v3360 = vpack.c.b16 %v3136, %v3132
    %v3361 = vpack.c.b16 %v3137, %v3133
    %v3362 = vpack.c.b16 %v3138, %v3134
    %v3363 = vpack.c.b16 %v3139, %v3135
    %v3364 = vpack.c.b16 %v3144, %v3140
    %v3365 = vpack.c.b16 %v3145, %v3141
    %v3366 = vpack.c.b16 %v3146, %v3142
    %v3367 = vpack.c.b16 %v3147, %v3143
    %v3368 = vpack.c.b16 %v3152, %v3148
    %v3369 = vpack.c.b16 %v3153, %v3149
    %v3370 = vpack.c.b16 %v3154, %v3150
    %v3371 = vpack.c.b16 %v3155, %v3151
    %v3372 = vpack.c.b16 %v3160, %v3156
    %v3373 = vpack.c.b16 %v3161, %v3157
    %v3374 = vpack.c.b16 %v3162, %v3158
    %v3375 = vpack.c.b16 %v3163, %v3159
    %v3376 = vpack.c.b16 %v3168, %v3164
    %v3377 = vpack.c.b16 %v3169, %v3165
    %v3378 = vpack.c.b16 %v3170, %v3166
    %v3379 = vpack.c.b16 %v3171, %v3167
    %v3380 = vpack.c.b16 %v3176, %v3172
    %v3381 = vpack.c.b16 %v3177, %v3173
    %v3382 = vpack.c.b16 %v3178, %v3174
    %v3383 = vpack.c.b16 %v3179, %v3175
    %v3384 = vpack.c.b16 %v3184, %v3180
    %v3385 = vpack.c.b16 %v3185, %v3181
    %v3386 = vpack.c.b16 %v3186, %v3182
    %v3387 = vpack.c.b16 %v3187, %v3183
    %v3388 = vpack.c.b16 %v3192, %v3188
    %v3389 = vpack.c.b16 %v3193, %v3189
    %v3390 = vpack.c.b16 %v3194, %v3190
    %v3391 = vpack.c.b16 %v3195, %v3191
    %v3392 = vpack.c.b16 %v3200, %v3196
    %v3393 = vpack.c.b16 %v3201, %v3197
    %v3394 = vpack.c.b16 %v3202, %v3198
    %v3395 = vpack.c.b16 %v3203, %v3199
    %v3396 = vpack.c.b16 %v3208, %v3204
    %v3397 = vpack.c.b16 %v3209, %v3205
    %v3398 = vpack.c.b16 %v3210, %v3206
    %v3399 = vpack.c.b16 %v3211, %v3207
    %v3400 = vpack.c.b16 %v3216, %v3212
    %v3401 = vpack.c.b16 %v3217, %v3213
    %v3402 = vpack.c.b16 %v3218, %v3214
    %v3403 = vpack.c.b16 %v3219, %v3215
    %v3404 = vpack.c.b16 %v3224, %v3220
    %v3405 = vpack.c.b16 %v3225, %v3221
    %v3406 = vpack.c.b16 %v3226, %v3222
    %v3407 = vpack.c.b16 %v3227, %v3223
    %v3408 = vpack.c.b16 %v3232, %v3228
    %v3409 = vpack.c.b16 %v3233, %v3229
    %v3410 = vpack.c.b16 %v3234, %v3230
    %v3411 = vpack.c.b16 %v3235, %v3231
    %v3412 = vpack.c.b16 %v3240, %v3236
    %v3413 = vpack.c.b16 %v3241, %v3237
    %v3414 = vpack.c.b16 %v3242, %v3238
    %v3415 = vpack.c.b16 %v3243, %v3239
    %v3416 = vpack.c.b16 %v3248, %v3244
    %v3417 = vpack.c.b16 %v3249, %v3245
    %v3418 = vpack.c.b16 %v3250, %v3246
    %v3419 = vpack.c.b16 %v3251, %v3247
    %v3420 = vpack.c.b16 %v3256, %v3252
    %v3421 = vpack.c.b16 %v3257, %v3253
    %v3422 = vpack.c.b16 %v3258, %v3254
    %v3423 = vpack.c.b16 %v3259, %v3255
    %v3424 = vpack.c.b16 %v3264, %v3260
    %v3425 = vpack.c.b16 %v3265, %v3261
    %v3426 = vpack.c.b16 %v3266, %v3262
    %v3427 = vpack.c.b16 %v3267, %v3263
    %v3428 = vpack.c.b16 %v3272, %v3268
    %v3429 = vpack.c.b16 %v3273, %v3269
    %v3430 = vpack.c.b16 %v3274, %v3270
    %v3431 = vpack.c.b16 %v3275, %v3271
    %v3432 = vpack.c.b16 %v3280, %v3276
    %v3433 = vpack.c.b16 %v3281, %v3277
    %v3434 = vpack.c.b16 %v3282, %v3278
    %v3435 = vpack.c.b16 %v3283, %v3279
    %v3436 = vpack.c.b16 %v3288, %v3284
    %v3437 = vpack.c.b16 %v3289, %v3285
    %v3438 = vpack.c.b16 %v3290, %v3286
    %v3439 = vpack.c.b16 %v3291, %v3287
    %v3440 = vpack.c.b16 %v3296, %v3292
    %v3441 = vpack.c.b16 %v3297, %v3293
    %v3442 = vpack.c.b16 %v3298, %v3294
    %v3443 = vpack.c.b16 %v3299, %v3295
    %v3444 = vpack.c.b16 %v3304, %v3300
    %v3445 = vpack.c.b16 %v3305, %v3301
    %v3446 = vpack.c.b16 %v3306, %v3302
    %v3447 = vpack.c.b16 %v3307, %v3303
    %v3448 = vpack.c.b16 %v3312, %v3308
    %v3449 = vpack.c.b16 %v3313, %v3309
    %v3450 = vpack.c.b16 %v3314, %v3310
    %v3451 = vpack.c.b16 %v3315, %v3311
    %v3452 = vpack.c.b16 %v3320, %v3316
    %v3453 = vpack.c.b16 %v3321, %v3317
    %v3454 = vpack.c.b16 %v3322, %v3318
    %v3455 = vpack.c.b16 %v3323, %v3319
    %v3456 = vpack.c.b16 %v3328, %v3324
    %v3457 = vpack.c.b16 %v3329, %v3325
    %v3458 = vpack.c.b16 %v3330, %v3326
    %v3459 = vpack.c.b16 %v3331, %v3327
    %3588 = vmatprep.subr.bf16.mxu0 %v3361
    %3589 = vmatpush1.bf16.msra.mxu0 %v3360
    %3590 = vmatprep.subr.bf16.mxu0 %v3357
    %3591 = vmatpush1.bf16.msra.mxu0 %v3356
    %3592 = vmatprep.subr.bf16.mxu0 %v3353
    %3593 = vmatpush1.bf16.msra.mxu0 %v3352
    %3594 = vmatprep.subr.bf16.mxu0 %v3349
    %3595 = vmatpush1.bf16.msra.mxu0 %v3348
    %3596 = vmatprep.subr.bf16.mxu0 %v3345
    %3597 = vmatpush1.bf16.msra.mxu0 %v3344
    %3598 = vmatprep.subr.bf16.mxu0 %v3341
    %3599 = vmatpush1.bf16.msra.mxu0 %v3340
    %3600 = vmatprep.subr.bf16.mxu0 %v3337
    %3601 = vmatpush1.bf16.msra.mxu0 %v3336
    %3602 = vmatprep.subr.bf16.mxu0 %v3333
    %3603 = vmatpush1.bf16.msra.mxu0 %v3332
    %3604 = vmatprep.subr.bf16.mxu0 %v3393
    %3605 = vmatpush2.bf16.msra.mxu0 %v3392
    %3606 = vmatprep.subr.bf16.mxu0 %v3389
    %3607 = vmatpush2.bf16.msra.mxu0 %v3388
    %3608 = vmatprep.subr.bf16.mxu0 %v3385
    %3609 = vmatpush2.bf16.msra.mxu0 %v3384
    %3610 = vmatprep.subr.bf16.mxu0 %v3381
    %3611 = vmatpush2.bf16.msra.mxu0 %v3380
    %3612 = vmatprep.subr.bf16.mxu0 %v3377
    %3613 = vmatpush2.bf16.msra.mxu0 %v3376
    %3614 = vmatprep.subr.bf16.mxu0 %v3373
    %3615 = vmatpush2.bf16.msra.mxu0 %v3372
    %3616 = vmatprep.subr.bf16.mxu0 %v3369
    %3617 = vmatpush2.bf16.msra.mxu0 %v3368
    %3618 = vmatprep.subr.bf16.mxu0 %v3365
    %3619 = vmatpush2.bf16.msra.mxu0 %v3364
    %3620 = vmatprep.mubr.bf16.mxu0 %v210
    %3621 = vmatmul.mubr.bf16.gmra.mxu0 %v209
    %v3622 = vpop.f32.mrf.mxu0
    %v3623 = vadd.f32 0.0, %v3622
    %v3624 = vpop.f32.mrf.mxu0
    %v3625 = vadd.f32 0.0, %v3624
    %v3626 = vpop.f32.mrf.mxu0
    %v3627 = vadd.f32 0.0, %v3626
    %v3628 = vpop.f32.mrf.mxu0
    %v3629 = vadd.f32 0.0, %v3628
    %3630 = vmatprep.mubr.bf16.mxu0 %v214
    %3631 = vmatmul.mubr.bf16.gmra.mxu0 %v213
    %v3632 = vpop.f32.mrf.mxu0
    %v3633 = vadd.f32 0.0, %v3632
    %v3634 = vpop.f32.mrf.mxu0
    %v3635 = vadd.f32 0.0, %v3634
    %v3636 = vpop.f32.mrf.mxu0
    %v3637 = vadd.f32 0.0, %v3636
    %v3638 = vpop.f32.mrf.mxu0
    %v3639 = vadd.f32 0.0, %v3638
    %3640 = vmatprep.mubr.bf16.mxu0 %v218
    %3641 = vmatmul.mubr.bf16.gmra.mxu0 %v217
    %v3642 = vpop.f32.mrf.mxu0
    %v3643 = vadd.f32 0.0, %v3642
    %v3644 = vpop.f32.mrf.mxu0
    %v3645 = vadd.f32 0.0, %v3644
    %v3646 = vpop.f32.mrf.mxu0
    %v3647 = vadd.f32 0.0, %v3646
    %v3648 = vpop.f32.mrf.mxu0
    %v3649 = vadd.f32 0.0, %v3648
    %3650 = vmatprep.mubr.bf16.mxu0 %v222
    %3651 = vmatmul.mubr.bf16.gmra.mxu0 %v221
    %v3652 = vpop.f32.mrf.mxu0
    %v3653 = vadd.f32 0.0, %v3652
    %v3654 = vpop.f32.mrf.mxu0
    %v3655 = vadd.f32 0.0, %v3654
    %v3656 = vpop.f32.mrf.mxu0
    %v3657 = vadd.f32 0.0, %v3656
    %v3658 = vpop.f32.mrf.mxu0
    %v3659 = vadd.f32 0.0, %v3658
    %3660 = vmatprep.mubr.bf16.mxu0 %v226
    %3661 = vmatmul.mubr.bf16.gmra.mxu0 %v225
    %v3662 = vpop.f32.mrf.mxu0
    %v3663 = vadd.f32 0.0, %v3662
    %v3664 = vpop.f32.mrf.mxu0
    %v3665 = vadd.f32 0.0, %v3664
    %v3666 = vpop.f32.mrf.mxu0
    %v3667 = vadd.f32 0.0, %v3666
    %v3668 = vpop.f32.mrf.mxu0
    %v3669 = vadd.f32 0.0, %v3668
    %3670 = vmatprep.mubr.bf16.mxu0 %v230
    %3671 = vmatmul.mubr.bf16.gmra.mxu0 %v229
    %v3672 = vpop.f32.mrf.mxu0
    %v3673 = vadd.f32 0.0, %v3672
    %v3674 = vpop.f32.mrf.mxu0
    %v3675 = vadd.f32 0.0, %v3674
    %v3676 = vpop.f32.mrf.mxu0
    %v3677 = vadd.f32 0.0, %v3676
    %v3678 = vpop.f32.mrf.mxu0
    %v3679 = vadd.f32 0.0, %v3678
    %3680 = vmatprep.mubr.bf16.mxu0 %v234
    %3681 = vmatmul.mubr.bf16.gmra.mxu0 %v233
    %v3682 = vpop.f32.mrf.mxu0
    %v3683 = vadd.f32 0.0, %v3682
    %v3684 = vpop.f32.mrf.mxu0
    %v3685 = vadd.f32 0.0, %v3684
    %v3686 = vpop.f32.mrf.mxu0
    %v3687 = vadd.f32 0.0, %v3686
    %v3688 = vpop.f32.mrf.mxu0
    %v3689 = vadd.f32 0.0, %v3688
    %3690 = vmatprep.mubr.bf16.mxu0 %v238
    %3691 = vmatmul.mubr.bf16.gmra.mxu0 %v237
    %v3692 = vpop.f32.mrf.mxu0
    %v3693 = vadd.f32 0.0, %v3692
    %v3694 = vpop.f32.mrf.mxu0
    %v3695 = vadd.f32 0.0, %v3694
    %v3696 = vpop.f32.mrf.mxu0
    %v3697 = vadd.f32 0.0, %v3696
    %v3698 = vpop.f32.mrf.mxu0
    %v3699 = vadd.f32 0.0, %v3698
    %3700 = vdwg.mxu0
    %3701 = vmatprep.subr.bf16.mxu0 %v3425
    %3702 = vmatpush1.bf16.msra.mxu0 %v3424
    %3703 = vmatprep.subr.bf16.mxu0 %v3421
    %3704 = vmatpush1.bf16.msra.mxu0 %v3420
    %3705 = vmatprep.subr.bf16.mxu0 %v3417
    %3706 = vmatpush1.bf16.msra.mxu0 %v3416
    %3707 = vmatprep.subr.bf16.mxu0 %v3413
    %3708 = vmatpush1.bf16.msra.mxu0 %v3412
    %3709 = vmatprep.subr.bf16.mxu0 %v3409
    %3710 = vmatpush1.bf16.msra.mxu0 %v3408
    %3711 = vmatprep.subr.bf16.mxu0 %v3405
    %3712 = vmatpush1.bf16.msra.mxu0 %v3404
    %3713 = vmatprep.subr.bf16.mxu0 %v3401
    %3714 = vmatpush1.bf16.msra.mxu0 %v3400
    %3715 = vmatprep.subr.bf16.mxu0 %v3397
    %3716 = vmatpush1.bf16.msra.mxu0 %v3396
    %3717 = vmatprep.subr.bf16.mxu0 %v3457
    %3718 = vmatpush2.bf16.msra.mxu0 %v3456
    %3719 = vmatprep.subr.bf16.mxu0 %v3453
    %3720 = vmatpush2.bf16.msra.mxu0 %v3452
    %3721 = vmatprep.subr.bf16.mxu0 %v3449
    %3722 = vmatpush2.bf16.msra.mxu0 %v3448
    %3723 = vmatprep.subr.bf16.mxu0 %v3445
    %3724 = vmatpush2.bf16.msra.mxu0 %v3444
    %3725 = vmatprep.subr.bf16.mxu0 %v3441
    %3726 = vmatpush2.bf16.msra.mxu0 %v3440
    %3727 = vmatprep.subr.bf16.mxu0 %v3437
    %3728 = vmatpush2.bf16.msra.mxu0 %v3436
    %3729 = vmatprep.subr.bf16.mxu0 %v3433
    %3730 = vmatpush2.bf16.msra.mxu0 %v3432
    %3731 = vmatprep.subr.bf16.mxu0 %v3429
    %3732 = vmatpush2.bf16.msra.mxu0 %v3428
    %3733 = vmatprep.mubr.bf16.mxu0 %v212
    %3734 = vmatmul.mubr.bf16.gmra.mxu0 %v211
    %v3735 = vpop.f32.mrf.mxu0
    %v3736 = vadd.f32 %v3623, %v3735
    %v3737 = vpop.f32.mrf.mxu0
    %v3738 = vadd.f32 %v3625, %v3737
    %v3739 = vpop.f32.mrf.mxu0
    %v3740 = vadd.f32 %v3627, %v3739
    %v3741 = vpop.f32.mrf.mxu0
    %v3742 = vadd.f32 %v3629, %v3741
    %3743 = vmatprep.mubr.bf16.mxu0 %v216
    %3744 = vmatmul.mubr.bf16.gmra.mxu0 %v215
    %v3745 = vpop.f32.mrf.mxu0
    %v3746 = vadd.f32 %v3633, %v3745
    %v3747 = vpop.f32.mrf.mxu0
    %v3748 = vadd.f32 %v3635, %v3747
    %v3749 = vpop.f32.mrf.mxu0
    %v3750 = vadd.f32 %v3637, %v3749
    %v3751 = vpop.f32.mrf.mxu0
    %v3752 = vadd.f32 %v3639, %v3751
    %3753 = vmatprep.mubr.bf16.mxu0 %v220
    %3754 = vmatmul.mubr.bf16.gmra.mxu0 %v219
    %v3755 = vpop.f32.mrf.mxu0
    %v3756 = vadd.f32 %v3643, %v3755
    %v3757 = vpop.f32.mrf.mxu0
    %v3758 = vadd.f32 %v3645, %v3757
    %v3759 = vpop.f32.mrf.mxu0
    %v3760 = vadd.f32 %v3647, %v3759
    %v3761 = vpop.f32.mrf.mxu0
    %v3762 = vadd.f32 %v3649, %v3761
    %3763 = vmatprep.mubr.bf16.mxu0 %v224
    %3764 = vmatmul.mubr.bf16.gmra.mxu0 %v223
    %v3765 = vpop.f32.mrf.mxu0
    %v3766 = vadd.f32 %v3653, %v3765
    %v3767 = vpop.f32.mrf.mxu0
    %v3768 = vadd.f32 %v3655, %v3767
    %v3769 = vpop.f32.mrf.mxu0
    %v3770 = vadd.f32 %v3657, %v3769
    %v3771 = vpop.f32.mrf.mxu0
    %v3772 = vadd.f32 %v3659, %v3771
    %3773 = vmatprep.mubr.bf16.mxu0 %v228
    %3774 = vmatmul.mubr.bf16.gmra.mxu0 %v227
    %v3775 = vpop.f32.mrf.mxu0
    %v3776 = vadd.f32 %v3663, %v3775
    %v3777 = vpop.f32.mrf.mxu0
    %v3778 = vadd.f32 %v3665, %v3777
    %v3779 = vpop.f32.mrf.mxu0
    %v3780 = vadd.f32 %v3667, %v3779
    %v3781 = vpop.f32.mrf.mxu0
    %v3782 = vadd.f32 %v3669, %v3781
    %3783 = vmatprep.mubr.bf16.mxu0 %v232
    %3784 = vmatmul.mubr.bf16.gmra.mxu0 %v231
    %v3785 = vpop.f32.mrf.mxu0
    %v3786 = vadd.f32 %v3673, %v3785
    %v3787 = vpop.f32.mrf.mxu0
    %v3788 = vadd.f32 %v3675, %v3787
    %v3789 = vpop.f32.mrf.mxu0
    %v3790 = vadd.f32 %v3677, %v3789
    %v3791 = vpop.f32.mrf.mxu0
    %v3792 = vadd.f32 %v3679, %v3791
    %3793 = vmatprep.mubr.bf16.mxu0 %v236
    %3794 = vmatmul.mubr.bf16.gmra.mxu0 %v235
    %v3795 = vpop.f32.mrf.mxu0
    %v3796 = vadd.f32 %v3683, %v3795
    %v3797 = vpop.f32.mrf.mxu0
    %v3798 = vadd.f32 %v3685, %v3797
    %v3799 = vpop.f32.mrf.mxu0
    %v3800 = vadd.f32 %v3687, %v3799
    %v3801 = vpop.f32.mrf.mxu0
    %v3802 = vadd.f32 %v3689, %v3801
    %3803 = vmatprep.mubr.bf16.mxu0 %v240
    %3804 = vmatmul.mubr.bf16.gmra.mxu0 %v239
    %v3805 = vpop.f32.mrf.mxu0
    %v3806 = vadd.f32 %v3693, %v3805
    %v3807 = vpop.f32.mrf.mxu0
    %v3808 = vadd.f32 %v3695, %v3807
    %v3809 = vpop.f32.mrf.mxu0
    %v3810 = vadd.f32 %v3697, %v3809
    %v3811 = vpop.f32.mrf.mxu0
    %v3812 = vadd.f32 %v3699, %v3811
    %3813 = vdwg.mxu0
    %3814 = vmatprep.subr.bf16.mxu0 %v3363
    %3815 = vmatpush1.bf16.msra.mxu0 %v3362
    %3816 = vmatprep.subr.bf16.mxu0 %v3359
    %3817 = vmatpush1.bf16.msra.mxu0 %v3358
    %3818 = vmatprep.subr.bf16.mxu0 %v3355
    %3819 = vmatpush1.bf16.msra.mxu0 %v3354
    %3820 = vmatprep.subr.bf16.mxu0 %v3351
    %3821 = vmatpush1.bf16.msra.mxu0 %v3350
    %3822 = vmatprep.subr.bf16.mxu0 %v3347
    %3823 = vmatpush1.bf16.msra.mxu0 %v3346
    %3824 = vmatprep.subr.bf16.mxu0 %v3343
    %3825 = vmatpush1.bf16.msra.mxu0 %v3342
    %3826 = vmatprep.subr.bf16.mxu0 %v3339
    %3827 = vmatpush1.bf16.msra.mxu0 %v3338
    %3828 = vmatprep.subr.bf16.mxu0 %v3335
    %3829 = vmatpush1.bf16.msra.mxu0 %v3334
    %3830 = vmatprep.subr.bf16.mxu0 %v3395
    %3831 = vmatpush2.bf16.msra.mxu0 %v3394
    %3832 = vmatprep.subr.bf16.mxu0 %v3391
    %3833 = vmatpush2.bf16.msra.mxu0 %v3390
    %3834 = vmatprep.subr.bf16.mxu0 %v3387
    %3835 = vmatpush2.bf16.msra.mxu0 %v3386
    %3836 = vmatprep.subr.bf16.mxu0 %v3383
    %3837 = vmatpush2.bf16.msra.mxu0 %v3382
    %3838 = vmatprep.subr.bf16.mxu0 %v3379
    %3839 = vmatpush2.bf16.msra.mxu0 %v3378
    %3840 = vmatprep.subr.bf16.mxu0 %v3375
    %3841 = vmatpush2.bf16.msra.mxu0 %v3374
    %3842 = vmatprep.subr.bf16.mxu0 %v3371
    %3843 = vmatpush2.bf16.msra.mxu0 %v3370
    %3844 = vmatprep.subr.bf16.mxu0 %v3367
    %3845 = vmatpush2.bf16.msra.mxu0 %v3366
    %3846 = vmatprep.mubr.bf16.mxu0 %v210
    %3847 = vmatmul.mubr.bf16.gmra.mxu0 %v209
    %v3848 = vpop.f32.mrf.mxu0
    %v3849 = vadd.f32 0.0, %v3848
    %v3850 = vpop.f32.mrf.mxu0
    %v3851 = vadd.f32 0.0, %v3850
    %v3852 = vpop.f32.mrf.mxu0
    %v3853 = vadd.f32 0.0, %v3852
    %v3854 = vpop.f32.mrf.mxu0
    %v3855 = vadd.f32 0.0, %v3854
    %3856 = vmatprep.mubr.bf16.mxu0 %v214
    %3857 = vmatmul.mubr.bf16.gmra.mxu0 %v213
    %v3858 = vpop.f32.mrf.mxu0
    %v3859 = vadd.f32 0.0, %v3858
    %v3860 = vpop.f32.mrf.mxu0
    %v3861 = vadd.f32 0.0, %v3860
    %v3862 = vpop.f32.mrf.mxu0
    %v3863 = vadd.f32 0.0, %v3862
    %v3864 = vpop.f32.mrf.mxu0
    %v3865 = vadd.f32 0.0, %v3864
    %3866 = vmatprep.mubr.bf16.mxu0 %v218
    %3867 = vmatmul.mubr.bf16.gmra.mxu0 %v217
    %v3868 = vpop.f32.mrf.mxu0
    %v3869 = vadd.f32 0.0, %v3868
    %v3870 = vpop.f32.mrf.mxu0
    %v3871 = vadd.f32 0.0, %v3870
    %v3872 = vpop.f32.mrf.mxu0
    %v3873 = vadd.f32 0.0, %v3872
    %v3874 = vpop.f32.mrf.mxu0
    %v3875 = vadd.f32 0.0, %v3874
    %3876 = vmatprep.mubr.bf16.mxu0 %v222
    %3877 = vmatmul.mubr.bf16.gmra.mxu0 %v221
    %v3878 = vpop.f32.mrf.mxu0
    %v3879 = vadd.f32 0.0, %v3878
    %v3880 = vpop.f32.mrf.mxu0
    %v3881 = vadd.f32 0.0, %v3880
    %v3882 = vpop.f32.mrf.mxu0
    %v3883 = vadd.f32 0.0, %v3882
    %v3884 = vpop.f32.mrf.mxu0
    %v3885 = vadd.f32 0.0, %v3884
    %3886 = vmatprep.mubr.bf16.mxu0 %v226
    %3887 = vmatmul.mubr.bf16.gmra.mxu0 %v225
    %v3888 = vpop.f32.mrf.mxu0
    %v3889 = vadd.f32 0.0, %v3888
    %v3890 = vpop.f32.mrf.mxu0
    %v3891 = vadd.f32 0.0, %v3890
    %v3892 = vpop.f32.mrf.mxu0
    %v3893 = vadd.f32 0.0, %v3892
    %v3894 = vpop.f32.mrf.mxu0
    %v3895 = vadd.f32 0.0, %v3894
    %3896 = vmatprep.mubr.bf16.mxu0 %v230
    %3897 = vmatmul.mubr.bf16.gmra.mxu0 %v229
    %v3898 = vpop.f32.mrf.mxu0
    %v3899 = vadd.f32 0.0, %v3898
    %v3900 = vpop.f32.mrf.mxu0
    %v3901 = vadd.f32 0.0, %v3900
    %v3902 = vpop.f32.mrf.mxu0
    %v3903 = vadd.f32 0.0, %v3902
    %v3904 = vpop.f32.mrf.mxu0
    %v3905 = vadd.f32 0.0, %v3904
    %3906 = vmatprep.mubr.bf16.mxu0 %v234
    %3907 = vmatmul.mubr.bf16.gmra.mxu0 %v233
    %v3908 = vpop.f32.mrf.mxu0
    %v3909 = vadd.f32 0.0, %v3908
    %v3910 = vpop.f32.mrf.mxu0
    %v3911 = vadd.f32 0.0, %v3910
    %v3912 = vpop.f32.mrf.mxu0
    %v3913 = vadd.f32 0.0, %v3912
    %v3914 = vpop.f32.mrf.mxu0
    %v3915 = vadd.f32 0.0, %v3914
    %3916 = vmatprep.mubr.bf16.mxu0 %v238
    %3917 = vmatmul.mubr.bf16.gmra.mxu0 %v237
    %v3918 = vpop.f32.mrf.mxu0
    %v3919 = vadd.f32 0.0, %v3918
    %v3920 = vpop.f32.mrf.mxu0
    %v3921 = vadd.f32 0.0, %v3920
    %v3922 = vpop.f32.mrf.mxu0
    %v3923 = vadd.f32 0.0, %v3922
    %v3924 = vpop.f32.mrf.mxu0
    %v3925 = vadd.f32 0.0, %v3924
    %3926 = vdwg.mxu0
    %3927 = vmatprep.subr.bf16.mxu0 %v3427
    %3928 = vmatpush1.bf16.msra.mxu0 %v3426
    %3929 = vmatprep.subr.bf16.mxu0 %v3423
    %3930 = vmatpush1.bf16.msra.mxu0 %v3422
    %3931 = vmatprep.subr.bf16.mxu0 %v3419
    %3932 = vmatpush1.bf16.msra.mxu0 %v3418
    %3933 = vmatprep.subr.bf16.mxu0 %v3415
    %3934 = vmatpush1.bf16.msra.mxu0 %v3414
    %3935 = vmatprep.subr.bf16.mxu0 %v3411
    %3936 = vmatpush1.bf16.msra.mxu0 %v3410
    %3937 = vmatprep.subr.bf16.mxu0 %v3407
    %3938 = vmatpush1.bf16.msra.mxu0 %v3406
    %3939 = vmatprep.subr.bf16.mxu0 %v3403
    %3940 = vmatpush1.bf16.msra.mxu0 %v3402
    %3941 = vmatprep.subr.bf16.mxu0 %v3399
    %3942 = vmatpush1.bf16.msra.mxu0 %v3398
    %3943 = vmatprep.subr.bf16.mxu0 %v3459
    %3944 = vmatpush2.bf16.msra.mxu0 %v3458
    %3945 = vmatprep.subr.bf16.mxu0 %v3455
    %3946 = vmatpush2.bf16.msra.mxu0 %v3454
    %3947 = vmatprep.subr.bf16.mxu0 %v3451
    %3948 = vmatpush2.bf16.msra.mxu0 %v3450
    %3949 = vmatprep.subr.bf16.mxu0 %v3447
    %3950 = vmatpush2.bf16.msra.mxu0 %v3446
    %3951 = vmatprep.subr.bf16.mxu0 %v3443
    %3952 = vmatpush2.bf16.msra.mxu0 %v3442
    %3953 = vmatprep.subr.bf16.mxu0 %v3439
    %3954 = vmatpush2.bf16.msra.mxu0 %v3438
    %3955 = vmatprep.subr.bf16.mxu0 %v3435
    %3956 = vmatpush2.bf16.msra.mxu0 %v3434
    %3957 = vmatprep.subr.bf16.mxu0 %v3431
    %3958 = vmatpush2.bf16.msra.mxu0 %v3430
    %3959 = vmatprep.mubr.bf16.mxu0 %v212
    %3960 = vmatmul.mubr.bf16.gmra.mxu0 %v211
    %v3961 = vpop.f32.mrf.mxu0
    %v3962 = vadd.f32 %v3849, %v3961
    %v3963 = vpop.f32.mrf.mxu0
    %v3964 = vadd.f32 %v3851, %v3963
    %v3965 = vpop.f32.mrf.mxu0
    %v3966 = vadd.f32 %v3853, %v3965
    %v3967 = vpop.f32.mrf.mxu0
    %v3968 = vadd.f32 %v3855, %v3967
    %3969 = vmatprep.mubr.bf16.mxu0 %v216
    %3970 = vmatmul.mubr.bf16.gmra.mxu0 %v215
    %v3971 = vpop.f32.mrf.mxu0
    %v3972 = vadd.f32 %v3859, %v3971
    %v3973 = vpop.f32.mrf.mxu0
    %v3974 = vadd.f32 %v3861, %v3973
    %v3975 = vpop.f32.mrf.mxu0
    %v3976 = vadd.f32 %v3863, %v3975
    %v3977 = vpop.f32.mrf.mxu0
    %v3978 = vadd.f32 %v3865, %v3977
    %3979 = vmatprep.mubr.bf16.mxu0 %v220
    %3980 = vmatmul.mubr.bf16.gmra.mxu0 %v219
    %v3981 = vpop.f32.mrf.mxu0
    %v3982 = vadd.f32 %v3869, %v3981
    %v3983 = vpop.f32.mrf.mxu0
    %v3984 = vadd.f32 %v3871, %v3983
    %v3985 = vpop.f32.mrf.mxu0
    %v3986 = vadd.f32 %v3873, %v3985
    %v3987 = vpop.f32.mrf.mxu0
    %v3988 = vadd.f32 %v3875, %v3987
    %3989 = vmatprep.mubr.bf16.mxu0 %v224
    %3990 = vmatmul.mubr.bf16.gmra.mxu0 %v223
    %v3991 = vpop.f32.mrf.mxu0
    %v3992 = vadd.f32 %v3879, %v3991
    %v3993 = vpop.f32.mrf.mxu0
    %v3994 = vadd.f32 %v3881, %v3993
    %v3995 = vpop.f32.mrf.mxu0
    %v3996 = vadd.f32 %v3883, %v3995
    %v3997 = vpop.f32.mrf.mxu0
    %v3998 = vadd.f32 %v3885, %v3997
    %3999 = vmatprep.mubr.bf16.mxu0 %v228
    %4000 = vmatmul.mubr.bf16.gmra.mxu0 %v227
    %v4001 = vpop.f32.mrf.mxu0
    %v4002 = vadd.f32 %v3889, %v4001
    %v4003 = vpop.f32.mrf.mxu0
    %v4004 = vadd.f32 %v3891, %v4003
    %v4005 = vpop.f32.mrf.mxu0
    %v4006 = vadd.f32 %v3893, %v4005
    %v4007 = vpop.f32.mrf.mxu0
    %v4008 = vadd.f32 %v3895, %v4007
    %4009 = vmatprep.mubr.bf16.mxu0 %v232
    %4010 = vmatmul.mubr.bf16.gmra.mxu0 %v231
    %v4011 = vpop.f32.mrf.mxu0
    %v4012 = vadd.f32 %v3899, %v4011
    %v4013 = vpop.f32.mrf.mxu0
    %v4014 = vadd.f32 %v3901, %v4013
    %v4015 = vpop.f32.mrf.mxu0
    %v4016 = vadd.f32 %v3903, %v4015
    %v4017 = vpop.f32.mrf.mxu0
    %v4018 = vadd.f32 %v3905, %v4017
    %4019 = vmatprep.mubr.bf16.mxu0 %v236
    %4020 = vmatmul.mubr.bf16.gmra.mxu0 %v235
    %v4021 = vpop.f32.mrf.mxu0
    %v4022 = vadd.f32 %v3909, %v4021
    %v4023 = vpop.f32.mrf.mxu0
    %v4024 = vadd.f32 %v3911, %v4023
    %v4025 = vpop.f32.mrf.mxu0
    %v4026 = vadd.f32 %v3913, %v4025
    %v4027 = vpop.f32.mrf.mxu0
    %v4028 = vadd.f32 %v3915, %v4027
    %4029 = vmatprep.mubr.bf16.mxu0 %v240
    %4030 = vmatmul.mubr.bf16.gmra.mxu0 %v239
    %v4031 = vpop.f32.mrf.mxu0
    %v4032 = vadd.f32 %v3919, %v4031
    %v4033 = vpop.f32.mrf.mxu0
    %v4034 = vadd.f32 %v3921, %v4033
    %v4035 = vpop.f32.mrf.mxu0
    %v4036 = vadd.f32 %v3923, %v4035
    %v4037 = vpop.f32.mrf.mxu0
    %v4038 = vadd.f32 %v3925, %v4037
    %4039 = vdwg.mxu0
    %v4040 = vadd.f32 %v2515, %v3736
    %v4041 = vadd.f32 %v2517, %v3738
    %v4042 = vadd.f32 %v2741, %v3962
    %v4043 = vadd.f32 %v2743, %v3964
    %v4044 = vadd.f32 %v2519, %v3740
    %v4045 = vadd.f32 %v2521, %v3742
    %v4046 = vadd.f32 %v2745, %v3966
    %v4047 = vadd.f32 %v2747, %v3968
    %v4048 = vadd.f32 %v2525, %v3746
    %v4049 = vadd.f32 %v2527, %v3748
    %v4050 = vadd.f32 %v2751, %v3972
    %v4051 = vadd.f32 %v2753, %v3974
    %v4052 = vadd.f32 %v2529, %v3750
    %v4053 = vadd.f32 %v2531, %v3752
    %v4054 = vadd.f32 %v2755, %v3976
    %v4055 = vadd.f32 %v2757, %v3978
    %v4056 = vadd.f32 %v2535, %v3756
    %v4057 = vadd.f32 %v2537, %v3758
    %v4058 = vadd.f32 %v2761, %v3982
    %v4059 = vadd.f32 %v2763, %v3984
    %v4060 = vadd.f32 %v2539, %v3760
    %v4061 = vadd.f32 %v2541, %v3762
    %v4062 = vadd.f32 %v2765, %v3986
    %v4063 = vadd.f32 %v2767, %v3988
    %v4064 = vadd.f32 %v2545, %v3766
    %v4065 = vadd.f32 %v2547, %v3768
    %v4066 = vadd.f32 %v2771, %v3992
    %v4067 = vadd.f32 %v2773, %v3994
    %v4068 = vadd.f32 %v2549, %v3770
    %v4069 = vadd.f32 %v2551, %v3772
    %v4070 = vadd.f32 %v2775, %v3996
    %v4071 = vadd.f32 %v2777, %v3998
    %v4072 = vadd.f32 %v2555, %v3776
    %v4073 = vadd.f32 %v2557, %v3778
    %v4074 = vadd.f32 %v2781, %v4002
    %v4075 = vadd.f32 %v2783, %v4004
    %v4076 = vadd.f32 %v2559, %v3780
    %v4077 = vadd.f32 %v2561, %v3782
    %v4078 = vadd.f32 %v2785, %v4006
    %v4079 = vadd.f32 %v2787, %v4008
    %v4080 = vadd.f32 %v2565, %v3786
    %v4081 = vadd.f32 %v2567, %v3788
    %v4082 = vadd.f32 %v2791, %v4012
    %v4083 = vadd.f32 %v2793, %v4014
    %v4084 = vadd.f32 %v2569, %v3790
    %v4085 = vadd.f32 %v2571, %v3792
    %v4086 = vadd.f32 %v2795, %v4016
    %v4087 = vadd.f32 %v2797, %v4018
    %v4088 = vadd.f32 %v2575, %v3796
    %v4089 = vadd.f32 %v2577, %v3798
    %v4090 = vadd.f32 %v2801, %v4022
    %v4091 = vadd.f32 %v2803, %v4024
    %v4092 = vadd.f32 %v2579, %v3800
    %v4093 = vadd.f32 %v2581, %v3802
    %v4094 = vadd.f32 %v2805, %v4026
    %v4095 = vadd.f32 %v2807, %v4028
    %v4096 = vadd.f32 %v2585, %v3806
    %v4097 = vadd.f32 %v2587, %v3808
    %v4098 = vadd.f32 %v2811, %v4032
    %v4099 = vadd.f32 %v2813, %v4034
    %v4100 = vadd.f32 %v2589, %v3810
    %v4101 = vadd.f32 %v2591, %v3812
    %v4102 = vadd.f32 %v2815, %v4036
    %v4103 = vadd.f32 %v2817, %v4038
    %v4104 = vld [vmem:[#allocation8] sm:$0xf]
    %v4106 = vlaneseq
    %v4107 = vshrl.u32 %v4106, 7
    %v4108 = vsub.s32 0, %v4107
    %v4109 = vrot.slane %v4104, %v4108
    %v4110 = vlaneseq
    %v4111 = vshrl.u32 %v4110, 7
    %v4112 = vsub.s32 1, %v4111
    %v4113 = vrot.slane %v4104, %v4112
    %v4114 = vlaneseq
    %v4115 = vshrl.u32 %v4114, 7
    %v4116 = vsub.s32 2, %v4115
    %v4117 = vrot.slane %v4104, %v4116
    %v4118 = vlaneseq
    %v4119 = vshrl.u32 %v4118, 7
    %v4120 = vsub.s32 3, %v4119
    %v4121 = vrot.slane %v4104, %v4120
    %v4126 = vadd.f32 %v4040, %v4109
    %v4127 = vadd.f32 %v4041, %v4113
    %v4128 = vadd.f32 %v4042, %v4117
    %v4129 = vadd.f32 %v4043, %v4121
    %v4130 = vadd.f32 %v4044, %v4109
    %v4131 = vadd.f32 %v4045, %v4113
    %v4132 = vadd.f32 %v4046, %v4117
    %v4133 = vadd.f32 %v4047, %v4121
    %v4134 = vadd.f32 %v4048, %v4109
    %v4135 = vadd.f32 %v4049, %v4113
    %v4136 = vadd.f32 %v4050, %v4117
    %v4137 = vadd.f32 %v4051, %v4121
    %v4138 = vadd.f32 %v4052, %v4109
    %v4139 = vadd.f32 %v4053, %v4113
    %v4140 = vadd.f32 %v4054, %v4117
    %v4141 = vadd.f32 %v4055, %v4121
    %v4142 = vadd.f32 %v4056, %v4109
    %v4143 = vadd.f32 %v4057, %v4113
    %v4144 = vadd.f32 %v4058, %v4117
    %v4145 = vadd.f32 %v4059, %v4121
    %v4146 = vadd.f32 %v4060, %v4109
    %v4147 = vadd.f32 %v4061, %v4113
    %v4148 = vadd.f32 %v4062, %v4117
    %v4149 = vadd.f32 %v4063, %v4121
    %v4150 = vadd.f32 %v4064, %v4109
    %v4151 = vadd.f32 %v4065, %v4113
    %v4152 = vadd.f32 %v4066, %v4117
    %v4153 = vadd.f32 %v4067, %v4121
    %v4154 = vadd.f32 %v4068, %v4109
    %v4155 = vadd.f32 %v4069, %v4113
    %v4156 = vadd.f32 %v4070, %v4117
    %v4157 = vadd.f32 %v4071, %v4121
    %v4158 = vadd.f32 %v4072, %v4109
    %v4159 = vadd.f32 %v4073, %v4113
    %v4160 = vadd.f32 %v4074, %v4117
    %v4161 = vadd.f32 %v4075, %v4121
    %v4162 = vadd.f32 %v4076, %v4109
    %v4163 = vadd.f32 %v4077, %v4113
    %v4164 = vadd.f32 %v4078, %v4117
    %v4165 = vadd.f32 %v4079, %v4121
    %v4166 = vadd.f32 %v4080, %v4109
    %v4167 = vadd.f32 %v4081, %v4113
    %v4168 = vadd.f32 %v4082, %v4117
    %v4169 = vadd.f32 %v4083, %v4121
    %v4170 = vadd.f32 %v4084, %v4109
    %v4171 = vadd.f32 %v4085, %v4113
    %v4172 = vadd.f32 %v4086, %v4117
    %v4173 = vadd.f32 %v4087, %v4121
    %v4174 = vadd.f32 %v4088, %v4109
    %v4175 = vadd.f32 %v4089, %v4113
    %v4176 = vadd.f32 %v4090, %v4117
    %v4177 = vadd.f32 %v4091, %v4121
    %v4178 = vadd.f32 %v4092, %v4109
    %v4179 = vadd.f32 %v4093, %v4113
    %v4180 = vadd.f32 %v4094, %v4117
    %v4181 = vadd.f32 %v4095, %v4121
    %v4182 = vadd.f32 %v4096, %v4109
    %v4183 = vadd.f32 %v4097, %v4113
    %v4184 = vadd.f32 %v4098, %v4117
    %v4185 = vadd.f32 %v4099, %v4121
    %v4186 = vadd.f32 %v4100, %v4109
    %v4187 = vadd.f32 %v4101, %v4113
    %v4188 = vadd.f32 %v4102, %v4117
    %v4189 = vadd.f32 %v4103, %v4121
    %v4190 = vmax.f32 %v4126, 0.0
    %v4191 = vmax.f32 %v4127, 0.0
    %v4192 = vmax.f32 %v4128, 0.0
    %v4193 = vmax.f32 %v4129, 0.0
    %v4194 = vmax.f32 %v4130, 0.0
    %v4195 = vmax.f32 %v4131, 0.0
    %v4196 = vmax.f32 %v4132, 0.0
    %v4197 = vmax.f32 %v4133, 0.0
    %v4198 = vmax.f32 %v4134, 0.0
    %v4199 = vmax.f32 %v4135, 0.0
    %v4200 = vmax.f32 %v4136, 0.0
    %v4201 = vmax.f32 %v4137, 0.0
    %v4202 = vmax.f32 %v4138, 0.0
    %v4203 = vmax.f32 %v4139, 0.0
    %v4204 = vmax.f32 %v4140, 0.0
    %v4205 = vmax.f32 %v4141, 0.0
    %v4206 = vmax.f32 %v4142, 0.0
    %v4207 = vmax.f32 %v4143, 0.0
    %v4208 = vmax.f32 %v4144, 0.0
    %v4209 = vmax.f32 %v4145, 0.0
    %v4210 = vmax.f32 %v4146, 0.0
    %v4211 = vmax.f32 %v4147, 0.0
    %v4212 = vmax.f32 %v4148, 0.0
    %v4213 = vmax.f32 %v4149, 0.0
    %v4214 = vmax.f32 %v4150, 0.0
    %v4215 = vmax.f32 %v4151, 0.0
    %v4216 = vmax.f32 %v4152, 0.0
    %v4217 = vmax.f32 %v4153, 0.0
    %v4218 = vmax.f32 %v4154, 0.0
    %v4219 = vmax.f32 %v4155, 0.0
    %v4220 = vmax.f32 %v4156, 0.0
    %v4221 = vmax.f32 %v4157, 0.0
    %v4222 = vmax.f32 %v4158, 0.0
    %v4223 = vmax.f32 %v4159, 0.0
    %v4224 = vmax.f32 %v4160, 0.0
    %v4225 = vmax.f32 %v4161, 0.0
    %v4226 = vmax.f32 %v4162, 0.0
    %v4227 = vmax.f32 %v4163, 0.0
    %v4228 = vmax.f32 %v4164, 0.0
    %v4229 = vmax.f32 %v4165, 0.0
    %v4230 = vmax.f32 %v4166, 0.0
    %v4231 = vmax.f32 %v4167, 0.0
    %v4232 = vmax.f32 %v4168, 0.0
    %v4233 = vmax.f32 %v4169, 0.0
    %v4234 = vmax.f32 %v4170, 0.0
    %v4235 = vmax.f32 %v4171, 0.0
    %v4236 = vmax.f32 %v4172, 0.0
    %v4237 = vmax.f32 %v4173, 0.0
    %v4238 = vmax.f32 %v4174, 0.0
    %v4239 = vmax.f32 %v4175, 0.0
    %v4240 = vmax.f32 %v4176, 0.0
    %v4241 = vmax.f32 %v4177, 0.0
    %v4242 = vmax.f32 %v4178, 0.0
    %v4243 = vmax.f32 %v4179, 0.0
    %v4244 = vmax.f32 %v4180, 0.0
    %v4245 = vmax.f32 %v4181, 0.0
    %v4246 = vmax.f32 %v4182, 0.0
    %v4247 = vmax.f32 %v4183, 0.0
    %v4248 = vmax.f32 %v4184, 0.0
    %v4249 = vmax.f32 %v4185, 0.0
    %v4250 = vmax.f32 %v4186, 0.0
    %v4251 = vmax.f32 %v4187, 0.0
    %v4252 = vmax.f32 %v4188, 0.0
    %v4253 = vmax.f32 %v4189, 0.0
    %4254 = vst [vmem:[#allocation2] sm:$0xff] 0
    %4255 = vst [vmem:[#allocation2 + $0x8] sm:$0xff] 0
    %4256 = vst [vmem:[#allocation2 + $0x110] sm:$0xff] 0
    %4257 = vst [vmem:[#allocation2 + $0x118] sm:$0xff] 0
    %v4258 = vpack.c.bf16 %v4194, %v4190
    %v4259 = vpack.c.bf16 %v4195, %v4191
    %v4260 = vpack.c.bf16 %v4196, %v4192
    %v4261 = vpack.c.bf16 %v4197, %v4193
    %v4262 = vpack.c.bf16 %v4202, %v4198
    %v4263 = vpack.c.bf16 %v4203, %v4199
    %v4264 = vpack.c.bf16 %v4204, %v4200
    %v4265 = vpack.c.bf16 %v4205, %v4201
    %v4266 = vpack.c.bf16 %v4210, %v4206
    %v4267 = vpack.c.bf16 %v4211, %v4207
    %v4268 = vpack.c.bf16 %v4212, %v4208
    %v4269 = vpack.c.bf16 %v4213, %v4209
    %v4270 = vpack.c.bf16 %v4218, %v4214
    %v4271 = vpack.c.bf16 %v4219, %v4215
    %v4272 = vpack.c.bf16 %v4220, %v4216
    %v4273 = vpack.c.bf16 %v4221, %v4217
    %v4274 = vpack.c.bf16 %v4226, %v4222
    %v4275 = vpack.c.bf16 %v4227, %v4223
    %v4276 = vpack.c.bf16 %v4228, %v4224
    %v4277 = vpack.c.bf16 %v4229, %v4225
    %v4278 = vpack.c.bf16 %v4234, %v4230
    %v4279 = vpack.c.bf16 %v4235, %v4231
    %v4280 = vpack.c.bf16 %v4236, %v4232
    %v4281 = vpack.c.bf16 %v4237, %v4233
    %v4282 = vpack.c.bf16 %v4242, %v4238
    %v4283 = vpack.c.bf16 %v4243, %v4239
    %v4284 = vpack.c.bf16 %v4244, %v4240
    %v4285 = vpack.c.bf16 %v4245, %v4241
    %v4286 = vpack.c.bf16 %v4250, %v4246
    %v4287 = vpack.c.bf16 %v4251, %v4247
    %v4288 = vpack.c.bf16 %v4252, %v4248
    %v4289 = vpack.c.bf16 %v4253, %v4249
    %v4322 = vunpack.c.l.b16 %v4258
    %v4323 = vunpack.c.l.b16 %v4259
    %v4324 = vunpack.c.l.b16 %v4260
    %v4325 = vunpack.c.l.b16 %v4261
    %v4326 = vunpack.c.h.b16 %v4258
    %v4327 = vunpack.c.h.b16 %v4259
    %v4328 = vunpack.c.h.b16 %v4260
    %v4329 = vunpack.c.h.b16 %v4261
    %v4330 = vunpack.c.l.b16 %v4262
    %v4331 = vunpack.c.l.b16 %v4263
    %v4332 = vunpack.c.l.b16 %v4264
    %v4333 = vunpack.c.l.b16 %v4265
    %v4334 = vunpack.c.h.b16 %v4262
    %v4335 = vunpack.c.h.b16 %v4263
    %v4336 = vunpack.c.h.b16 %v4264
    %v4337 = vunpack.c.h.b16 %v4265
    %v4338 = vunpack.c.l.b16 %v4266
    %v4339 = vunpack.c.l.b16 %v4267
    %v4340 = vunpack.c.l.b16 %v4268
    %v4341 = vunpack.c.l.b16 %v4269
    %v4342 = vunpack.c.h.b16 %v4266
    %v4343 = vunpack.c.h.b16 %v4267
    %v4344 = vunpack.c.h.b16 %v4268
    %v4345 = vunpack.c.h.b16 %v4269
    %v4346 = vunpack.c.l.b16 %v4270
    %v4347 = vunpack.c.l.b16 %v4271
    %v4348 = vunpack.c.l.b16 %v4272
    %v4349 = vunpack.c.l.b16 %v4273
    %v4350 = vunpack.c.h.b16 %v4270
    %v4351 = vunpack.c.h.b16 %v4271
    %v4352 = vunpack.c.h.b16 %v4272
    %v4353 = vunpack.c.h.b16 %v4273
    %v4354 = vunpack.c.l.b16 %v4274
    %v4355 = vunpack.c.l.b16 %v4275
    %v4356 = vunpack.c.l.b16 %v4276
    %v4357 = vunpack.c.l.b16 %v4277
    %v4358 = vunpack.c.h.b16 %v4274
    %v4359 = vunpack.c.h.b16 %v4275
    %v4360 = vunpack.c.h.b16 %v4276
    %v4361 = vunpack.c.h.b16 %v4277
    %v4362 = vunpack.c.l.b16 %v4278
    %v4363 = vunpack.c.l.b16 %v4279
    %v4364 = vunpack.c.l.b16 %v4280
    %v4365 = vunpack.c.l.b16 %v4281
    %v4366 = vunpack.c.h.b16 %v4278
    %v4367 = vunpack.c.h.b16 %v4279
    %v4368 = vunpack.c.h.b16 %v4280
    %v4369 = vunpack.c.h.b16 %v4281
    %v4370 = vunpack.c.l.b16 %v4282
    %v4371 = vunpack.c.l.b16 %v4283
    %v4372 = vunpack.c.l.b16 %v4284
    %v4373 = vunpack.c.l.b16 %v4285
    %v4374 = vunpack.c.h.b16 %v4282
    %v4375 = vunpack.c.h.b16 %v4283
    %v4376 = vunpack.c.h.b16 %v4284
    %v4377 = vunpack.c.h.b16 %v4285
    %v4378 = vunpack.c.l.b16 %v4286
    %v4379 = vunpack.c.l.b16 %v4287
    %v4380 = vunpack.c.l.b16 %v4288
    %v4381 = vunpack.c.l.b16 %v4289
    %v4382 = vunpack.c.h.b16 %v4286
    %v4383 = vunpack.c.h.b16 %v4287
    %v4384 = vunpack.c.h.b16 %v4288
    %v4385 = vunpack.c.h.b16 %v4289
    %v4386 = vpack.c.b16 %v4323, %v4322
    %v4387 = vpack.c.b16 %v4325, %v4324
    %v4388 = vpack.c.b16 %v4327, %v4326
    %v4389 = vpack.c.b16 %v4329, %v4328
    %v4390 = vpack.c.b16 %v4331, %v4330
    %v4391 = vpack.c.b16 %v4333, %v4332
    %v4392 = vpack.c.b16 %v4335, %v4334
    %v4393 = vpack.c.b16 %v4337, %v4336
    %v4394 = vpack.c.b16 %v4339, %v4338
    %v4395 = vpack.c.b16 %v4341, %v4340
    %v4396 = vpack.c.b16 %v4343, %v4342
    %v4397 = vpack.c.b16 %v4345, %v4344
    %v4398 = vpack.c.b16 %v4347, %v4346
    %v4399 = vpack.c.b16 %v4349, %v4348
    %v4400 = vpack.c.b16 %v4351, %v4350
    %v4401 = vpack.c.b16 %v4353, %v4352
    %v4402 = vpack.c.b16 %v4355, %v4354
    %v4403 = vpack.c.b16 %v4357, %v4356
    %v4404 = vpack.c.b16 %v4359, %v4358
    %v4405 = vpack.c.b16 %v4361, %v4360
    %v4406 = vpack.c.b16 %v4363, %v4362
    %v4407 = vpack.c.b16 %v4365, %v4364
    %v4408 = vpack.c.b16 %v4367, %v4366
    %v4409 = vpack.c.b16 %v4369, %v4368
    %v4410 = vpack.c.b16 %v4371, %v4370
    %v4411 = vpack.c.b16 %v4373, %v4372
    %v4412 = vpack.c.b16 %v4375, %v4374
    %v4413 = vpack.c.b16 %v4377, %v4376
    %v4414 = vpack.c.b16 %v4379, %v4378
    %v4415 = vpack.c.b16 %v4381, %v4380
    %v4416 = vpack.c.b16 %v4383, %v4382
    %v4417 = vpack.c.b16 %v4385, %v4384
    %4450 = vst [vmem:[#allocation2 + $0x10] sm:$0xff] %v4386
    %4451 = vst [vmem:[#allocation2 + $0x18] sm:$0xff] %v4387
    %4452 = vst [vmem:[#allocation2 + $0x20] sm:$0xff] %v4388
    %4453 = vst [vmem:[#allocation2 + $0x28] sm:$0xff] %v4389
    %4454 = vst [vmem:[#allocation2 + $0x30] sm:$0xff] %v4390
    %4455 = vst [vmem:[#allocation2 + $0x38] sm:$0xff] %v4391
    %4456 = vst [vmem:[#allocation2 + $0x40] sm:$0xff] %v4392
    %4457 = vst [vmem:[#allocation2 + $0x48] sm:$0xff] %v4393
    %4458 = vst [vmem:[#allocation2 + $0x50] sm:$0xff] %v4394
    %4459 = vst [vmem:[#allocation2 + $0x58] sm:$0xff] %v4395
    %4460 = vst [vmem:[#allocation2 + $0x60] sm:$0xff] %v4396
    %4461 = vst [vmem:[#allocation2 + $0x68] sm:$0xff] %v4397
    %4462 = vst [vmem:[#allocation2 + $0x70] sm:$0xff] %v4398
    %4463 = vst [vmem:[#allocation2 + $0x78] sm:$0xff] %v4399
    %4464 = vst [vmem:[#allocation2 + $0x80] sm:$0xff] %v4400
    %4465 = vst [vmem:[#allocation2 + $0x88] sm:$0xff] %v4401
    %4466 = vst [vmem:[#allocation2 + $0x90] sm:$0xff] %v4402
    %4467 = vst [vmem:[#allocation2 + $0x98] sm:$0xff] %v4403
    %4468 = vst [vmem:[#allocation2 + $0xa0] sm:$0xff] %v4404
    %4469 = vst [vmem:[#allocation2 + $0xa8] sm:$0xff] %v4405
    %4470 = vst [vmem:[#allocation2 + $0xb0] sm:$0xff] %v4406
    %4471 = vst [vmem:[#allocation2 + $0xb8] sm:$0xff] %v4407
    %4472 = vst [vmem:[#allocation2 + $0xc0] sm:$0xff] %v4408
    %4473 = vst [vmem:[#allocation2 + $0xc8] sm:$0xff] %v4409
    %4474 = vst [vmem:[#allocation2 + $0xd0] sm:$0xff] %v4410
    %4475 = vst [vmem:[#allocation2 + $0xd8] sm:$0xff] %v4411
    %4476 = vst [vmem:[#allocation2 + $0xe0] sm:$0xff] %v4412
    %4477 = vst [vmem:[#allocation2 + $0xe8] sm:$0xff] %v4413
    %4478 = vst [vmem:[#allocation2 + $0xf0] sm:$0xff] %v4414
    %4479 = vst [vmem:[#allocation2 + $0xf8] sm:$0xff] %v4415
    %4480 = vst [vmem:[#allocation2 + $0x100] sm:$0xff] %v4416
    %4481 = vst [vmem:[#allocation2 + $0x108] sm:$0xff] %v4417
    %v4482 = vld [vmem:[#allocation2] sm:$0xff]
    %v4483 = vld [vmem:[#allocation2 + $0x8] sm:$0xff]
    %v4484 = vld [vmem:[#allocation2 + $0x10] sm:$0xff]
    %v4485 = vld [vmem:[#allocation2 + $0x18] sm:$0xff]
    %v4486 = vld [vmem:[#allocation2 + $0x20] sm:$0xff]
    %v4487 = vld [vmem:[#allocation2 + $0x28] sm:$0xff]
    %v4488 = vld [vmem:[#allocation2 + $0x30] sm:$0xff]
    %v4489 = vld [vmem:[#allocation2 + $0x38] sm:$0xff]
    %v4490 = vld [vmem:[#allocation2 + $0x40] sm:$0xff]
    %v4491 = vld [vmem:[#allocation2 + $0x48] sm:$0xff]
    %v4492 = vld [vmem:[#allocation2 + $0x50] sm:$0xff]
    %v4493 = vld [vmem:[#allocation2 + $0x58] sm:$0xff]
    %v4494 = vld [vmem:[#allocation2 + $0x60] sm:$0xff]
    %v4495 = vld [vmem:[#allocation2 + $0x68] sm:$0xff]
    %v4496 = vld [vmem:[#allocation2 + $0x70] sm:$0xff]
    %v4497 = vld [vmem:[#allocation2 + $0x78] sm:$0xff]
    %v4498 = vld [vmem:[#allocation2 + $0x80] sm:$0xff]
    %v4499 = vld [vmem:[#allocation2 + $0x88] sm:$0xff]
    %v4500 = vld [vmem:[#allocation2 + $0x90] sm:$0xff]
    %v4501 = vld [vmem:[#allocation2 + $0x98] sm:$0xff]
    %v4502 = vld [vmem:[#allocation2 + $0xa0] sm:$0xff]
    %v4503 = vld [vmem:[#allocation2 + $0xa8] sm:$0xff]
    %v4504 = vld [vmem:[#allocation2 + $0xb0] sm:$0xff]
    %v4505 = vld [vmem:[#allocation2 + $0xb8] sm:$0xff]
    %v4506 = vld [vmem:[#allocation2 + $0xc0] sm:$0xff]
    %v4507 = vld [vmem:[#allocation2 + $0xc8] sm:$0xff]
    %v4508 = vld [vmem:[#allocation2 + $0xd0] sm:$0xff]
    %v4509 = vld [vmem:[#allocation2 + $0xd8] sm:$0xff]
    %v4510 = vld [vmem:[#allocation2 + $0xe0] sm:$0xff]
    %v4511 = vld [vmem:[#allocation2 + $0xe8] sm:$0xff]
    %v4512 = vld [vmem:[#allocation2 + $0xf0] sm:$0xff]
    %v4513 = vld [vmem:[#allocation2 + $0xf8] sm:$0xff]
    %v4514 = vld [vmem:[#allocation2 + $0x100] sm:$0xff]
    %v4515 = vld [vmem:[#allocation2 + $0x108] sm:$0xff]
    %v4516 = vld [vmem:[#allocation2 + $0x110] sm:$0xff]
    %v4517 = vld [vmem:[#allocation2 + $0x118] sm:$0xff]
    %v4518 = vld [vmem:[#allocation9] sm:$0xff]
    %v4519 = vld [vmem:[#allocation9 + $0x8] sm:$0xff]
    %v4520 = vld [vmem:[#allocation9 + $0x10] sm:$0xff]
    %v4521 = vld [vmem:[#allocation9 + $0x18] sm:$0xff]
    %v4522 = vld [vmem:[#allocation9 + $0x20] sm:$0xff]
    %v4523 = vld [vmem:[#allocation9 + $0x28] sm:$0xff]
    %v4524 = vld [vmem:[#allocation9 + $0x30] sm:$0xff]
    %v4525 = vld [vmem:[#allocation9 + $0x38] sm:$0xff]
    %v4526 = vld [vmem:[#allocation9 + $0x40] sm:$0xff]
    %v4527 = vld [vmem:[#allocation9 + $0x48] sm:$0xff]
    %v4528 = vld [vmem:[#allocation9 + $0x50] sm:$0xff]
    %v4529 = vld [vmem:[#allocation9 + $0x58] sm:$0xff]
    %v4530 = vld [vmem:[#allocation9 + $0x60] sm:$0xff]
    %v4531 = vld [vmem:[#allocation9 + $0x68] sm:$0xff]
    %v4532 = vld [vmem:[#allocation9 + $0x70] sm:$0xff]
    %v4533 = vld [vmem:[#allocation9 + $0x78] sm:$0xff]
    %v4534 = vld [vmem:[#allocation9 + $0x80] sm:$0xff]
    %v4535 = vld [vmem:[#allocation9 + $0x88] sm:$0xff]
    %v4536 = vld [vmem:[#allocation9 + $0x90] sm:$0xff]
    %v4537 = vld [vmem:[#allocation9 + $0x98] sm:$0xff]
    %v4538 = vld [vmem:[#allocation9 + $0xa0] sm:$0xff]
    %v4539 = vld [vmem:[#allocation9 + $0xa8] sm:$0xff]
    %v4540 = vld [vmem:[#allocation9 + $0xb0] sm:$0xff]
    %v4541 = vld [vmem:[#allocation9 + $0xb8] sm:$0xff]
    %v4542 = vld [vmem:[#allocation9 + $0xc0] sm:$0xff]
    %v4543 = vld [vmem:[#allocation9 + $0xc8] sm:$0xff]
    %v4544 = vld [vmem:[#allocation9 + $0xd0] sm:$0xff]
    %v4545 = vld [vmem:[#allocation9 + $0xd8] sm:$0xff]
    %v4546 = vld [vmem:[#allocation9 + $0xe0] sm:$0xff]
    %v4547 = vld [vmem:[#allocation9 + $0xe8] sm:$0xff]
    %v4548 = vld [vmem:[#allocation9 + $0xf0] sm:$0xff]
    %v4549 = vld [vmem:[#allocation9 + $0xf8] sm:$0xff]
    %v4550 = vld [vmem:[#allocation9 + $0x100] sm:$0xff]
    %v4551 = vld [vmem:[#allocation9 + $0x108] sm:$0xff]
    %v4552 = vld [vmem:[#allocation9 + $0x110] sm:$0xff]
    %v4553 = vld [vmem:[#allocation9 + $0x118] sm:$0xff]
    %v4554 = vld [vmem:[#allocation9 + $0x120] sm:$0xff]
    %v4555 = vld [vmem:[#allocation9 + $0x128] sm:$0xff]
    %v4556 = vld [vmem:[#allocation9 + $0x130] sm:$0xff]
    %v4557 = vld [vmem:[#allocation9 + $0x138] sm:$0xff]
    %v4558 = vld [vmem:[#allocation9 + $0x140] sm:$0xff]
    %v4559 = vld [vmem:[#allocation9 + $0x148] sm:$0xff]
    %v4560 = vld [vmem:[#allocation9 + $0x150] sm:$0xff]
    %v4561 = vld [vmem:[#allocation9 + $0x158] sm:$0xff]
    %v4562 = vld [vmem:[#allocation9 + $0x160] sm:$0xff]
    %v4563 = vld [vmem:[#allocation9 + $0x168] sm:$0xff]
    %v4564 = vld [vmem:[#allocation9 + $0x170] sm:$0xff]
    %v4565 = vld [vmem:[#allocation9 + $0x178] sm:$0xff]
    %v4566 = vld [vmem:[#allocation9 + $0x180] sm:$0xff]
    %v4567 = vld [vmem:[#allocation9 + $0x188] sm:$0xff]
    %v4568 = vld [vmem:[#allocation9 + $0x190] sm:$0xff]
    %v4569 = vld [vmem:[#allocation9 + $0x198] sm:$0xff]
    %v4570 = vld [vmem:[#allocation9 + $0x1a0] sm:$0xff]
    %v4571 = vld [vmem:[#allocation9 + $0x1a8] sm:$0xff]
    %v4572 = vld [vmem:[#allocation9 + $0x1b0] sm:$0xff]
    %v4573 = vld [vmem:[#allocation9 + $0x1b8] sm:$0xff]
    %v4574 = vld [vmem:[#allocation9 + $0x1c0] sm:$0xff]
    %v4575 = vld [vmem:[#allocation9 + $0x1c8] sm:$0xff]
    %v4576 = vld [vmem:[#allocation9 + $0x1d0] sm:$0xff]
    %v4577 = vld [vmem:[#allocation9 + $0x1d8] sm:$0xff]
    %v4578 = vld [vmem:[#allocation9 + $0x1e0] sm:$0xff]
    %v4579 = vld [vmem:[#allocation9 + $0x1e8] sm:$0xff]
    %v4580 = vld [vmem:[#allocation9 + $0x1f0] sm:$0xff]
    %v4581 = vld [vmem:[#allocation9 + $0x1f8] sm:$0xff]
    %v4582 = vld [vmem:[#allocation9 + $0x200] sm:$0xff]
    %v4583 = vld [vmem:[#allocation9 + $0x208] sm:$0xff]
    %v4584 = vld [vmem:[#allocation9 + $0x210] sm:$0xff]
    %v4585 = vld [vmem:[#allocation9 + $0x218] sm:$0xff]
    %v4586 = vld [vmem:[#allocation9 + $0x220] sm:$0xff]
    %v4587 = vld [vmem:[#allocation9 + $0x228] sm:$0xff]
    %v4588 = vld [vmem:[#allocation9 + $0x230] sm:$0xff]
    %v4589 = vld [vmem:[#allocation9 + $0x238] sm:$0xff]
    %v4590 = vld [vmem:[#allocation9 + $0x240] sm:$0xff]
    %v4591 = vld [vmem:[#allocation9 + $0x248] sm:$0xff]
    %v4592 = vld [vmem:[#allocation9 + $0x250] sm:$0xff]
    %v4593 = vld [vmem:[#allocation9 + $0x258] sm:$0xff]
    %v4594 = vld [vmem:[#allocation9 + $0x260] sm:$0xff]
    %v4595 = vld [vmem:[#allocation9 + $0x268] sm:$0xff]
    %v4596 = vld [vmem:[#allocation9 + $0x270] sm:$0xff]
    %v4597 = vld [vmem:[#allocation9 + $0x278] sm:$0xff]
    %v4598 = vld [vmem:[#allocation9 + $0x280] sm:$0xff]
    %v4599 = vld [vmem:[#allocation9 + $0x288] sm:$0xff]
    %v4600 = vld [vmem:[#allocation9 + $0x290] sm:$0xff]
    %v4601 = vld [vmem:[#allocation9 + $0x298] sm:$0xff]
    %v4602 = vld [vmem:[#allocation9 + $0x2a0] sm:$0xff]
    %v4603 = vld [vmem:[#allocation9 + $0x2a8] sm:$0xff]
    %v4604 = vld [vmem:[#allocation9 + $0x2b0] sm:$0xff]
    %v4605 = vld [vmem:[#allocation9 + $0x2b8] sm:$0xff]
    %v4606 = vld [vmem:[#allocation9 + $0x2c0] sm:$0xff]
    %v4607 = vld [vmem:[#allocation9 + $0x2c8] sm:$0xff]
    %v4608 = vld [vmem:[#allocation9 + $0x2d0] sm:$0xff]
    %v4609 = vld [vmem:[#allocation9 + $0x2d8] sm:$0xff]
    %v4610 = vld [vmem:[#allocation9 + $0x2e0] sm:$0xff]
    %v4611 = vld [vmem:[#allocation9 + $0x2e8] sm:$0xff]
    %v4612 = vld [vmem:[#allocation9 + $0x2f0] sm:$0xff]
    %v4613 = vld [vmem:[#allocation9 + $0x2f8] sm:$0xff]
    %v4614 = vld [vmem:[#allocation9 + $0x300] sm:$0xff]
    %v4615 = vld [vmem:[#allocation9 + $0x308] sm:$0xff]
    %v4616 = vld [vmem:[#allocation9 + $0x310] sm:$0xff]
    %v4617 = vld [vmem:[#allocation9 + $0x318] sm:$0xff]
    %v4618 = vld [vmem:[#allocation9 + $0x320] sm:$0xff]
    %v4619 = vld [vmem:[#allocation9 + $0x328] sm:$0xff]
    %v4620 = vld [vmem:[#allocation9 + $0x330] sm:$0xff]
    %v4621 = vld [vmem:[#allocation9 + $0x338] sm:$0xff]
    %v4622 = vld [vmem:[#allocation9 + $0x340] sm:$0xff]
    %v4623 = vld [vmem:[#allocation9 + $0x348] sm:$0xff]
    %v4624 = vld [vmem:[#allocation9 + $0x350] sm:$0xff]
    %v4625 = vld [vmem:[#allocation9 + $0x358] sm:$0xff]
    %v4626 = vld [vmem:[#allocation9 + $0x360] sm:$0xff]
    %v4627 = vld [vmem:[#allocation9 + $0x368] sm:$0xff]
    %v4628 = vld [vmem:[#allocation9 + $0x370] sm:$0xff]
    %v4629 = vld [vmem:[#allocation9 + $0x378] sm:$0xff]
    %v4630 = vld [vmem:[#allocation9 + $0x380] sm:$0xff]
    %v4631 = vld [vmem:[#allocation9 + $0x388] sm:$0xff]
    %v4632 = vld [vmem:[#allocation9 + $0x390] sm:$0xff]
    %v4633 = vld [vmem:[#allocation9 + $0x398] sm:$0xff]
    %v4634 = vld [vmem:[#allocation9 + $0x3a0] sm:$0xff]
    %v4635 = vld [vmem:[#allocation9 + $0x3a8] sm:$0xff]
    %v4636 = vld [vmem:[#allocation9 + $0x3b0] sm:$0xff]
    %v4637 = vld [vmem:[#allocation9 + $0x3b8] sm:$0xff]
    %v4638 = vld [vmem:[#allocation9 + $0x3c0] sm:$0xff]
    %v4639 = vld [vmem:[#allocation9 + $0x3c8] sm:$0xff]
    %v4640 = vld [vmem:[#allocation9 + $0x3d0] sm:$0xff]
    %v4641 = vld [vmem:[#allocation9 + $0x3d8] sm:$0xff]
    %v4642 = vld [vmem:[#allocation9 + $0x3e0] sm:$0xff]
    %v4643 = vld [vmem:[#allocation9 + $0x3e8] sm:$0xff]
    %v4644 = vld [vmem:[#allocation9 + $0x3f0] sm:$0xff]
    %v4645 = vld [vmem:[#allocation9 + $0x3f8] sm:$0xff]
    %s4646 = scalar_lea.vmem [#allocation9], 1024
    %v4647 = vld [vmem:[%s4646] sm:$0xff]
    %v4648 = vld [vmem:[%s4646 + $0x8] sm:$0xff]
    %v4649 = vld [vmem:[%s4646 + $0x10] sm:$0xff]
    %v4650 = vld [vmem:[%s4646 + $0x18] sm:$0xff]
    %v4651 = vld [vmem:[%s4646 + $0x20] sm:$0xff]
    %v4652 = vld [vmem:[%s4646 + $0x28] sm:$0xff]
    %v4653 = vld [vmem:[%s4646 + $0x30] sm:$0xff]
    %v4654 = vld [vmem:[%s4646 + $0x38] sm:$0xff]
    %v4655 = vld [vmem:[%s4646 + $0x40] sm:$0xff]
    %v4656 = vld [vmem:[%s4646 + $0x48] sm:$0xff]
    %v4657 = vld [vmem:[%s4646 + $0x50] sm:$0xff]
    %v4658 = vld [vmem:[%s4646 + $0x58] sm:$0xff]
    %v4659 = vld [vmem:[%s4646 + $0x60] sm:$0xff]
    %v4660 = vld [vmem:[%s4646 + $0x68] sm:$0xff]
    %v4661 = vld [vmem:[%s4646 + $0x70] sm:$0xff]
    %v4662 = vld [vmem:[%s4646 + $0x78] sm:$0xff]
    %v4663 = vld [vmem:[%s4646 + $0x80] sm:$0xff]
    %v4664 = vld [vmem:[%s4646 + $0x88] sm:$0xff]
    %v4665 = vld [vmem:[%s4646 + $0x90] sm:$0xff]
    %v4666 = vld [vmem:[%s4646 + $0x98] sm:$0xff]
    %v4667 = vld [vmem:[%s4646 + $0xa0] sm:$0xff]
    %v4668 = vld [vmem:[%s4646 + $0xa8] sm:$0xff]
    %v4669 = vld [vmem:[%s4646 + $0xb0] sm:$0xff]
    %v4670 = vld [vmem:[%s4646 + $0xb8] sm:$0xff]
    %v4671 = vld [vmem:[%s4646 + $0xc0] sm:$0xff]
    %v4672 = vld [vmem:[%s4646 + $0xc8] sm:$0xff]
    %v4673 = vld [vmem:[%s4646 + $0xd0] sm:$0xff]
    %v4674 = vld [vmem:[%s4646 + $0xd8] sm:$0xff]
    %v4675 = vld [vmem:[%s4646 + $0xe0] sm:$0xff]
    %v4676 = vld [vmem:[%s4646 + $0xe8] sm:$0xff]
    %v4677 = vld [vmem:[%s4646 + $0xf0] sm:$0xff]
    %v4678 = vld [vmem:[%s4646 + $0xf8] sm:$0xff]
    %v4679 = vld [vmem:[%s4646 + $0x100] sm:$0xff]
    %v4680 = vld [vmem:[%s4646 + $0x108] sm:$0xff]
    %v4681 = vld [vmem:[%s4646 + $0x110] sm:$0xff]
    %v4682 = vld [vmem:[%s4646 + $0x118] sm:$0xff]
    %v4683 = vld [vmem:[%s4646 + $0x120] sm:$0xff]
    %v4684 = vld [vmem:[%s4646 + $0x128] sm:$0xff]
    %v4685 = vld [vmem:[%s4646 + $0x130] sm:$0xff]
    %v4686 = vld [vmem:[%s4646 + $0x138] sm:$0xff]
    %v4687 = vld [vmem:[%s4646 + $0x140] sm:$0xff]
    %v4688 = vld [vmem:[%s4646 + $0x148] sm:$0xff]
    %v4689 = vld [vmem:[%s4646 + $0x150] sm:$0xff]
    %v4690 = vld [vmem:[%s4646 + $0x158] sm:$0xff]
    %v4691 = vld [vmem:[%s4646 + $0x160] sm:$0xff]
    %v4692 = vld [vmem:[%s4646 + $0x168] sm:$0xff]
    %v4693 = vld [vmem:[%s4646 + $0x170] sm:$0xff]
    %v4694 = vld [vmem:[%s4646 + $0x178] sm:$0xff]
    %v4695 = vld [vmem:[%s4646 + $0x180] sm:$0xff]
    %v4696 = vld [vmem:[%s4646 + $0x188] sm:$0xff]
    %v4697 = vld [vmem:[%s4646 + $0x190] sm:$0xff]
    %v4698 = vld [vmem:[%s4646 + $0x198] sm:$0xff]
    %v4699 = vld [vmem:[%s4646 + $0x1a0] sm:$0xff]
    %v4700 = vld [vmem:[%s4646 + $0x1a8] sm:$0xff]
    %v4701 = vld [vmem:[%s4646 + $0x1b0] sm:$0xff]
    %v4702 = vld [vmem:[%s4646 + $0x1b8] sm:$0xff]
    %v4703 = vld [vmem:[%s4646 + $0x1c0] sm:$0xff]
    %v4704 = vld [vmem:[%s4646 + $0x1c8] sm:$0xff]
    %v4705 = vld [vmem:[%s4646 + $0x1d0] sm:$0xff]
    %v4706 = vld [vmem:[%s4646 + $0x1d8] sm:$0xff]
    %v4707 = vld [vmem:[%s4646 + $0x1e0] sm:$0xff]
    %v4708 = vld [vmem:[%s4646 + $0x1e8] sm:$0xff]
    %v4709 = vld [vmem:[%s4646 + $0x1f0] sm:$0xff]
    %v4710 = vld [vmem:[%s4646 + $0x1f8] sm:$0xff]
    %v4711 = vld [vmem:[%s4646 + $0x200] sm:$0xff]
    %v4712 = vld [vmem:[%s4646 + $0x208] sm:$0xff]
    %v4713 = vld [vmem:[%s4646 + $0x210] sm:$0xff]
    %v4714 = vld [vmem:[%s4646 + $0x218] sm:$0xff]
    %v4715 = vld [vmem:[%s4646 + $0x220] sm:$0xff]
    %v4716 = vld [vmem:[%s4646 + $0x228] sm:$0xff]
    %v4717 = vld [vmem:[%s4646 + $0x230] sm:$0xff]
    %v4718 = vld [vmem:[%s4646 + $0x238] sm:$0xff]
    %v4719 = vld [vmem:[%s4646 + $0x240] sm:$0xff]
    %v4720 = vld [vmem:[%s4646 + $0x248] sm:$0xff]
    %v4721 = vld [vmem:[%s4646 + $0x250] sm:$0xff]
    %v4722 = vld [vmem:[%s4646 + $0x258] sm:$0xff]
    %v4723 = vld [vmem:[%s4646 + $0x260] sm:$0xff]
    %v4724 = vld [vmem:[%s4646 + $0x268] sm:$0xff]
    %v4725 = vld [vmem:[%s4646 + $0x270] sm:$0xff]
    %v4726 = vld [vmem:[%s4646 + $0x278] sm:$0xff]
    %v4727 = vld [vmem:[%s4646 + $0x280] sm:$0xff]
    %v4728 = vld [vmem:[%s4646 + $0x288] sm:$0xff]
    %v4729 = vld [vmem:[%s4646 + $0x290] sm:$0xff]
    %v4730 = vld [vmem:[%s4646 + $0x298] sm:$0xff]
    %v4731 = vld [vmem:[%s4646 + $0x2a0] sm:$0xff]
    %v4732 = vld [vmem:[%s4646 + $0x2a8] sm:$0xff]
    %v4733 = vld [vmem:[%s4646 + $0x2b0] sm:$0xff]
    %v4734 = vld [vmem:[%s4646 + $0x2b8] sm:$0xff]
    %v4735 = vld [vmem:[%s4646 + $0x2c0] sm:$0xff]
    %v4736 = vld [vmem:[%s4646 + $0x2c8] sm:$0xff]
    %v4737 = vld [vmem:[%s4646 + $0x2d0] sm:$0xff]
    %v4738 = vld [vmem:[%s4646 + $0x2d8] sm:$0xff]
    %v4739 = vld [vmem:[%s4646 + $0x2e0] sm:$0xff]
    %v4740 = vld [vmem:[%s4646 + $0x2e8] sm:$0xff]
    %v4741 = vld [vmem:[%s4646 + $0x2f0] sm:$0xff]
    %v4742 = vld [vmem:[%s4646 + $0x2f8] sm:$0xff]
    %v4743 = vld [vmem:[%s4646 + $0x300] sm:$0xff]
    %v4744 = vld [vmem:[%s4646 + $0x308] sm:$0xff]
    %v4745 = vld [vmem:[%s4646 + $0x310] sm:$0xff]
    %v4746 = vld [vmem:[%s4646 + $0x318] sm:$0xff]
    %v4747 = vld [vmem:[%s4646 + $0x320] sm:$0xff]
    %v4748 = vld [vmem:[%s4646 + $0x328] sm:$0xff]
    %v4749 = vld [vmem:[%s4646 + $0x330] sm:$0xff]
    %v4750 = vld [vmem:[%s4646 + $0x338] sm:$0xff]
    %v4751 = vld [vmem:[%s4646 + $0x340] sm:$0xff]
    %v4752 = vld [vmem:[%s4646 + $0x348] sm:$0xff]
    %v4753 = vld [vmem:[%s4646 + $0x350] sm:$0xff]
    %v4754 = vld [vmem:[%s4646 + $0x358] sm:$0xff]
    %v4755 = vld [vmem:[%s4646 + $0x360] sm:$0xff]
    %v4756 = vld [vmem:[%s4646 + $0x368] sm:$0xff]
    %v4757 = vld [vmem:[%s4646 + $0x370] sm:$0xff]
    %v4758 = vld [vmem:[%s4646 + $0x378] sm:$0xff]
    %v4759 = vld [vmem:[%s4646 + $0x380] sm:$0xff]
    %v4760 = vld [vmem:[%s4646 + $0x388] sm:$0xff]
    %v4761 = vld [vmem:[%s4646 + $0x390] sm:$0xff]
    %v4762 = vld [vmem:[%s4646 + $0x398] sm:$0xff]
    %v4763 = vld [vmem:[%s4646 + $0x3a0] sm:$0xff]
    %v4764 = vld [vmem:[%s4646 + $0x3a8] sm:$0xff]
    %v4765 = vld [vmem:[%s4646 + $0x3b0] sm:$0xff]
    %v4766 = vld [vmem:[%s4646 + $0x3b8] sm:$0xff]
    %v4767 = vld [vmem:[%s4646 + $0x3c0] sm:$0xff]
    %v4768 = vld [vmem:[%s4646 + $0x3c8] sm:$0xff]
    %v4769 = vld [vmem:[%s4646 + $0x3d0] sm:$0xff]
    %v4770 = vld [vmem:[%s4646 + $0x3d8] sm:$0xff]
    %v4771 = vld [vmem:[%s4646 + $0x3e0] sm:$0xff]
    %v4772 = vld [vmem:[%s4646 + $0x3e8] sm:$0xff]
    %v4773 = vld [vmem:[%s4646 + $0x3f0] sm:$0xff]
    %v4774 = vld [vmem:[%s4646 + $0x3f8] sm:$0xff]
    %v4807 = vunpack.c.l.b16 %v4484
    %v4808 = vunpack.c.h.b16 %v4484
    %v4809 = vunpack.c.l.b16 %v4485
    %v4810 = vunpack.c.h.b16 %v4485
    %v4811 = vunpack.c.l.b16 %v4486
    %v4812 = vunpack.c.h.b16 %v4486
    %v4813 = vunpack.c.l.b16 %v4487
    %v4814 = vunpack.c.h.b16 %v4487
    %v4815 = vunpack.c.l.b16 %v4488
    %v4816 = vunpack.c.h.b16 %v4488
    %v4817 = vunpack.c.l.b16 %v4489
    %v4818 = vunpack.c.h.b16 %v4489
    %v4819 = vunpack.c.l.b16 %v4490
    %v4820 = vunpack.c.h.b16 %v4490
    %v4821 = vunpack.c.l.b16 %v4491
    %v4822 = vunpack.c.h.b16 %v4491
    %v4823 = vunpack.c.l.b16 %v4492
    %v4824 = vunpack.c.h.b16 %v4492
    %v4825 = vunpack.c.l.b16 %v4493
    %v4826 = vunpack.c.h.b16 %v4493
    %v4827 = vunpack.c.l.b16 %v4494
    %v4828 = vunpack.c.h.b16 %v4494
    %v4829 = vunpack.c.l.b16 %v4495
    %v4830 = vunpack.c.h.b16 %v4495
    %v4831 = vunpack.c.l.b16 %v4496
    %v4832 = vunpack.c.h.b16 %v4496
    %v4833 = vunpack.c.l.b16 %v4497
    %v4834 = vunpack.c.h.b16 %v4497
    %v4835 = vunpack.c.l.b16 %v4498
    %v4836 = vunpack.c.h.b16 %v4498
    %v4837 = vunpack.c.l.b16 %v4499
    %v4838 = vunpack.c.h.b16 %v4499
    %v4839 = vunpack.c.l.b16 %v4500
    %v4840 = vunpack.c.h.b16 %v4500
    %v4841 = vunpack.c.l.b16 %v4501
    %v4842 = vunpack.c.h.b16 %v4501
    %v4843 = vunpack.c.l.b16 %v4502
    %v4844 = vunpack.c.h.b16 %v4502
    %v4845 = vunpack.c.l.b16 %v4503
    %v4846 = vunpack.c.h.b16 %v4503
    %v4847 = vunpack.c.l.b16 %v4504
    %v4848 = vunpack.c.h.b16 %v4504
    %v4849 = vunpack.c.l.b16 %v4505
    %v4850 = vunpack.c.h.b16 %v4505
    %v4851 = vunpack.c.l.b16 %v4506
    %v4852 = vunpack.c.h.b16 %v4506
    %v4853 = vunpack.c.l.b16 %v4507
    %v4854 = vunpack.c.h.b16 %v4507
    %v4855 = vunpack.c.l.b16 %v4508
    %v4856 = vunpack.c.h.b16 %v4508
    %v4857 = vunpack.c.l.b16 %v4509
    %v4858 = vunpack.c.h.b16 %v4509
    %v4859 = vunpack.c.l.b16 %v4510
    %v4860 = vunpack.c.h.b16 %v4510
    %v4861 = vunpack.c.l.b16 %v4511
    %v4862 = vunpack.c.h.b16 %v4511
    %v4863 = vunpack.c.l.b16 %v4512
    %v4864 = vunpack.c.h.b16 %v4512
    %v4865 = vunpack.c.l.b16 %v4513
    %v4866 = vunpack.c.h.b16 %v4513
    %v4867 = vunpack.c.l.b16 %v4514
    %v4868 = vunpack.c.h.b16 %v4514
    %v4869 = vunpack.c.l.b16 %v4515
    %v4870 = vunpack.c.h.b16 %v4515
    %v4871 = vpack.c.b16 %v4811, %v4807
    %v4872 = vpack.c.b16 %v4812, %v4808
    %v4873 = vpack.c.b16 %v4813, %v4809
    %v4874 = vpack.c.b16 %v4814, %v4810
    %v4875 = vpack.c.b16 %v4819, %v4815
    %v4876 = vpack.c.b16 %v4820, %v4816
    %v4877 = vpack.c.b16 %v4821, %v4817
    %v4878 = vpack.c.b16 %v4822, %v4818
    %v4879 = vpack.c.b16 %v4827, %v4823
    %v4880 = vpack.c.b16 %v4828, %v4824
    %v4881 = vpack.c.b16 %v4829, %v4825
    %v4882 = vpack.c.b16 %v4830, %v4826
    %v4883 = vpack.c.b16 %v4835, %v4831
    %v4884 = vpack.c.b16 %v4836, %v4832
    %v4885 = vpack.c.b16 %v4837, %v4833
    %v4886 = vpack.c.b16 %v4838, %v4834
    %v4887 = vpack.c.b16 %v4843, %v4839
    %v4888 = vpack.c.b16 %v4844, %v4840
    %v4889 = vpack.c.b16 %v4845, %v4841
    %v4890 = vpack.c.b16 %v4846, %v4842
    %v4891 = vpack.c.b16 %v4851, %v4847
    %v4892 = vpack.c.b16 %v4852, %v4848
    %v4893 = vpack.c.b16 %v4853, %v4849
    %v4894 = vpack.c.b16 %v4854, %v4850
    %v4895 = vpack.c.b16 %v4859, %v4855
    %v4896 = vpack.c.b16 %v4860, %v4856
    %v4897 = vpack.c.b16 %v4861, %v4857
    %v4898 = vpack.c.b16 %v4862, %v4858
    %v4899 = vpack.c.b16 %v4867, %v4863
    %v4900 = vpack.c.b16 %v4868, %v4864
    %v4901 = vpack.c.b16 %v4869, %v4865
    %v4902 = vpack.c.b16 %v4870, %v4866
    %v5063 = vunpack.c.l.b16 %v4647
    %v5064 = vunpack.c.h.b16 %v4647
    %v5065 = vunpack.c.l.b16 %v4648
    %v5066 = vunpack.c.h.b16 %v4648
    %v5067 = vunpack.c.l.b16 %v4649
    %v5068 = vunpack.c.h.b16 %v4649
    %v5069 = vunpack.c.l.b16 %v4650
    %v5070 = vunpack.c.h.b16 %v4650
    %v5071 = vunpack.c.l.b16 %v4651
    %v5072 = vunpack.c.h.b16 %v4651
    %v5073 = vunpack.c.l.b16 %v4652
    %v5074 = vunpack.c.h.b16 %v4652
    %v5075 = vunpack.c.l.b16 %v4653
    %v5076 = vunpack.c.h.b16 %v4653
    %v5077 = vunpack.c.l.b16 %v4654
    %v5078 = vunpack.c.h.b16 %v4654
    %v5079 = vunpack.c.l.b16 %v4655
    %v5080 = vunpack.c.h.b16 %v4655
    %v5081 = vunpack.c.l.b16 %v4656
    %v5082 = vunpack.c.h.b16 %v4656
    %v5083 = vunpack.c.l.b16 %v4657
    %v5084 = vunpack.c.h.b16 %v4657
    %v5085 = vunpack.c.l.b16 %v4658
    %v5086 = vunpack.c.h.b16 %v4658
    %v5087 = vunpack.c.l.b16 %v4659
    %v5088 = vunpack.c.h.b16 %v4659
    %v5089 = vunpack.c.l.b16 %v4660
    %v5090 = vunpack.c.h.b16 %v4660
    %v5091 = vunpack.c.l.b16 %v4661
    %v5092 = vunpack.c.h.b16 %v4661
    %v5093 = vunpack.c.l.b16 %v4662
    %v5094 = vunpack.c.h.b16 %v4662
    %v5095 = vunpack.c.l.b16 %v4663
    %v5096 = vunpack.c.h.b16 %v4663
    %v5097 = vunpack.c.l.b16 %v4664
    %v5098 = vunpack.c.h.b16 %v4664
    %v5099 = vunpack.c.l.b16 %v4665
    %v5100 = vunpack.c.h.b16 %v4665
    %v5101 = vunpack.c.l.b16 %v4666
    %v5102 = vunpack.c.h.b16 %v4666
    %v5103 = vunpack.c.l.b16 %v4667
    %v5104 = vunpack.c.h.b16 %v4667
    %v5105 = vunpack.c.l.b16 %v4668
    %v5106 = vunpack.c.h.b16 %v4668
    %v5107 = vunpack.c.l.b16 %v4669
    %v5108 = vunpack.c.h.b16 %v4669
    %v5109 = vunpack.c.l.b16 %v4670
    %v5110 = vunpack.c.h.b16 %v4670
    %v5111 = vunpack.c.l.b16 %v4671
    %v5112 = vunpack.c.h.b16 %v4671
    %v5113 = vunpack.c.l.b16 %v4672
    %v5114 = vunpack.c.h.b16 %v4672
    %v5115 = vunpack.c.l.b16 %v4673
    %v5116 = vunpack.c.h.b16 %v4673
    %v5117 = vunpack.c.l.b16 %v4674
    %v5118 = vunpack.c.h.b16 %v4674
    %v5119 = vunpack.c.l.b16 %v4675
    %v5120 = vunpack.c.h.b16 %v4675
    %v5121 = vunpack.c.l.b16 %v4676
    %v5122 = vunpack.c.h.b16 %v4676
    %v5123 = vunpack.c.l.b16 %v4677
    %v5124 = vunpack.c.h.b16 %v4677
    %v5125 = vunpack.c.l.b16 %v4678
    %v5126 = vunpack.c.h.b16 %v4678
    %v5127 = vunpack.c.l.b16 %v4679
    %v5128 = vunpack.c.h.b16 %v4679
    %v5129 = vunpack.c.l.b16 %v4680
    %v5130 = vunpack.c.h.b16 %v4680
    %v5131 = vunpack.c.l.b16 %v4681
    %v5132 = vunpack.c.h.b16 %v4681
    %v5133 = vunpack.c.l.b16 %v4682
    %v5134 = vunpack.c.h.b16 %v4682
    %v5135 = vunpack.c.l.b16 %v4683
    %v5136 = vunpack.c.h.b16 %v4683
    %v5137 = vunpack.c.l.b16 %v4684
    %v5138 = vunpack.c.h.b16 %v4684
    %v5139 = vunpack.c.l.b16 %v4685
    %v5140 = vunpack.c.h.b16 %v4685
    %v5141 = vunpack.c.l.b16 %v4686
    %v5142 = vunpack.c.h.b16 %v4686
    %v5143 = vunpack.c.l.b16 %v4687
    %v5144 = vunpack.c.h.b16 %v4687
    %v5145 = vunpack.c.l.b16 %v4688
    %v5146 = vunpack.c.h.b16 %v4688
    %v5147 = vunpack.c.l.b16 %v4689
    %v5148 = vunpack.c.h.b16 %v4689
    %v5149 = vunpack.c.l.b16 %v4690
    %v5150 = vunpack.c.h.b16 %v4690
    %v5151 = vunpack.c.l.b16 %v4691
    %v5152 = vunpack.c.h.b16 %v4691
    %v5153 = vunpack.c.l.b16 %v4692
    %v5154 = vunpack.c.h.b16 %v4692
    %v5155 = vunpack.c.l.b16 %v4693
    %v5156 = vunpack.c.h.b16 %v4693
    %v5157 = vunpack.c.l.b16 %v4694
    %v5158 = vunpack.c.h.b16 %v4694
    %v5159 = vunpack.c.l.b16 %v4695
    %v5160 = vunpack.c.h.b16 %v4695
    %v5161 = vunpack.c.l.b16 %v4696
    %v5162 = vunpack.c.h.b16 %v4696
    %v5163 = vunpack.c.l.b16 %v4697
    %v5164 = vunpack.c.h.b16 %v4697
    %v5165 = vunpack.c.l.b16 %v4698
    %v5166 = vunpack.c.h.b16 %v4698
    %v5167 = vunpack.c.l.b16 %v4699
    %v5168 = vunpack.c.h.b16 %v4699
    %v5169 = vunpack.c.l.b16 %v4700
    %v5170 = vunpack.c.h.b16 %v4700
    %v5171 = vunpack.c.l.b16 %v4701
    %v5172 = vunpack.c.h.b16 %v4701
    %v5173 = vunpack.c.l.b16 %v4702
    %v5174 = vunpack.c.h.b16 %v4702
    %v5175 = vunpack.c.l.b16 %v4703
    %v5176 = vunpack.c.h.b16 %v4703
    %v5177 = vunpack.c.l.b16 %v4704
    %v5178 = vunpack.c.h.b16 %v4704
    %v5179 = vunpack.c.l.b16 %v4705
    %v5180 = vunpack.c.h.b16 %v4705
    %v5181 = vunpack.c.l.b16 %v4706
    %v5182 = vunpack.c.h.b16 %v4706
    %v5183 = vunpack.c.l.b16 %v4707
    %v5184 = vunpack.c.h.b16 %v4707
    %v5185 = vunpack.c.l.b16 %v4708
    %v5186 = vunpack.c.h.b16 %v4708
    %v5187 = vunpack.c.l.b16 %v4709
    %v5188 = vunpack.c.h.b16 %v4709
    %v5189 = vunpack.c.l.b16 %v4710
    %v5190 = vunpack.c.h.b16 %v4710
    %v5191 = vunpack.c.l.b16 %v4711
    %v5192 = vunpack.c.h.b16 %v4711
    %v5193 = vunpack.c.l.b16 %v4712
    %v5194 = vunpack.c.h.b16 %v4712
    %v5195 = vunpack.c.l.b16 %v4713
    %v5196 = vunpack.c.h.b16 %v4713
    %v5197 = vunpack.c.l.b16 %v4714
    %v5198 = vunpack.c.h.b16 %v4714
    %v5199 = vunpack.c.l.b16 %v4715
    %v5200 = vunpack.c.h.b16 %v4715
    %v5201 = vunpack.c.l.b16 %v4716
    %v5202 = vunpack.c.h.b16 %v4716
    %v5203 = vunpack.c.l.b16 %v4717
    %v5204 = vunpack.c.h.b16 %v4717
    %v5205 = vunpack.c.l.b16 %v4718
    %v5206 = vunpack.c.h.b16 %v4718
    %v5207 = vunpack.c.l.b16 %v4719
    %v5208 = vunpack.c.h.b16 %v4719
    %v5209 = vunpack.c.l.b16 %v4720
    %v5210 = vunpack.c.h.b16 %v4720
    %v5211 = vunpack.c.l.b16 %v4721
    %v5212 = vunpack.c.h.b16 %v4721
    %v5213 = vunpack.c.l.b16 %v4722
    %v5214 = vunpack.c.h.b16 %v4722
    %v5215 = vunpack.c.l.b16 %v4723
    %v5216 = vunpack.c.h.b16 %v4723
    %v5217 = vunpack.c.l.b16 %v4724
    %v5218 = vunpack.c.h.b16 %v4724
    %v5219 = vunpack.c.l.b16 %v4725
    %v5220 = vunpack.c.h.b16 %v4725
    %v5221 = vunpack.c.l.b16 %v4726
    %v5222 = vunpack.c.h.b16 %v4726
    %v5223 = vunpack.c.l.b16 %v4727
    %v5224 = vunpack.c.h.b16 %v4727
    %v5225 = vunpack.c.l.b16 %v4728
    %v5226 = vunpack.c.h.b16 %v4728
    %v5227 = vunpack.c.l.b16 %v4729
    %v5228 = vunpack.c.h.b16 %v4729
    %v5229 = vunpack.c.l.b16 %v4730
    %v5230 = vunpack.c.h.b16 %v4730
    %v5231 = vunpack.c.l.b16 %v4731
    %v5232 = vunpack.c.h.b16 %v4731
    %v5233 = vunpack.c.l.b16 %v4732
    %v5234 = vunpack.c.h.b16 %v4732
    %v5235 = vunpack.c.l.b16 %v4733
    %v5236 = vunpack.c.h.b16 %v4733
    %v5237 = vunpack.c.l.b16 %v4734
    %v5238 = vunpack.c.h.b16 %v4734
    %v5239 = vunpack.c.l.b16 %v4735
    %v5240 = vunpack.c.h.b16 %v4735
    %v5241 = vunpack.c.l.b16 %v4736
    %v5242 = vunpack.c.h.b16 %v4736
    %v5243 = vunpack.c.l.b16 %v4737
    %v5244 = vunpack.c.h.b16 %v4737
    %v5245 = vunpack.c.l.b16 %v4738
    %v5246 = vunpack.c.h.b16 %v4738
    %v5247 = vunpack.c.l.b16 %v4739
    %v5248 = vunpack.c.h.b16 %v4739
    %v5249 = vunpack.c.l.b16 %v4740
    %v5250 = vunpack.c.h.b16 %v4740
    %v5251 = vunpack.c.l.b16 %v4741
    %v5252 = vunpack.c.h.b16 %v4741
    %v5253 = vunpack.c.l.b16 %v4742
    %v5254 = vunpack.c.h.b16 %v4742
    %v5255 = vunpack.c.l.b16 %v4743
    %v5256 = vunpack.c.h.b16 %v4743
    %v5257 = vunpack.c.l.b16 %v4744
    %v5258 = vunpack.c.h.b16 %v4744
    %v5259 = vunpack.c.l.b16 %v4745
    %v5260 = vunpack.c.h.b16 %v4745
    %v5261 = vunpack.c.l.b16 %v4746
    %v5262 = vunpack.c.h.b16 %v4746
    %v5263 = vunpack.c.l.b16 %v4747
    %v5264 = vunpack.c.h.b16 %v4747
    %v5265 = vunpack.c.l.b16 %v4748
    %v5266 = vunpack.c.h.b16 %v4748
    %v5267 = vunpack.c.l.b16 %v4749
    %v5268 = vunpack.c.h.b16 %v4749
    %v5269 = vunpack.c.l.b16 %v4750
    %v5270 = vunpack.c.h.b16 %v4750
    %v5271 = vunpack.c.l.b16 %v4751
    %v5272 = vunpack.c.h.b16 %v4751
    %v5273 = vunpack.c.l.b16 %v4752
    %v5274 = vunpack.c.h.b16 %v4752
    %v5275 = vunpack.c.l.b16 %v4753
    %v5276 = vunpack.c.h.b16 %v4753
    %v5277 = vunpack.c.l.b16 %v4754
    %v5278 = vunpack.c.h.b16 %v4754
    %v5279 = vunpack.c.l.b16 %v4755
    %v5280 = vunpack.c.h.b16 %v4755
    %v5281 = vunpack.c.l.b16 %v4756
    %v5282 = vunpack.c.h.b16 %v4756
    %v5283 = vunpack.c.l.b16 %v4757
    %v5284 = vunpack.c.h.b16 %v4757
    %v5285 = vunpack.c.l.b16 %v4758
    %v5286 = vunpack.c.h.b16 %v4758
    %v5287 = vunpack.c.l.b16 %v4759
    %v5288 = vunpack.c.h.b16 %v4759
    %v5289 = vunpack.c.l.b16 %v4760
    %v5290 = vunpack.c.h.b16 %v4760
    %v5291 = vunpack.c.l.b16 %v4761
    %v5292 = vunpack.c.h.b16 %v4761
    %v5293 = vunpack.c.l.b16 %v4762
    %v5294 = vunpack.c.h.b16 %v4762
    %v5295 = vunpack.c.l.b16 %v4763
    %v5296 = vunpack.c.h.b16 %v4763
    %v5297 = vunpack.c.l.b16 %v4764
    %v5298 = vunpack.c.h.b16 %v4764
    %v5299 = vunpack.c.l.b16 %v4765
    %v5300 = vunpack.c.h.b16 %v4765
    %v5301 = vunpack.c.l.b16 %v4766
    %v5302 = vunpack.c.h.b16 %v4766
    %v5303 = vunpack.c.l.b16 %v4767
    %v5304 = vunpack.c.h.b16 %v4767
    %v5305 = vunpack.c.l.b16 %v4768
    %v5306 = vunpack.c.h.b16 %v4768
    %v5307 = vunpack.c.l.b16 %v4769
    %v5308 = vunpack.c.h.b16 %v4769
    %v5309 = vunpack.c.l.b16 %v4770
    %v5310 = vunpack.c.h.b16 %v4770
    %v5311 = vunpack.c.l.b16 %v4771
    %v5312 = vunpack.c.h.b16 %v4771
    %v5313 = vunpack.c.l.b16 %v4772
    %v5314 = vunpack.c.h.b16 %v4772
    %v5315 = vunpack.c.l.b16 %v4773
    %v5316 = vunpack.c.h.b16 %v4773
    %v5317 = vunpack.c.l.b16 %v4774
    %v5318 = vunpack.c.h.b16 %v4774
    %v5319 = vpack.c.b16 %v5067, %v5063
    %v5320 = vpack.c.b16 %v5068, %v5064
    %v5321 = vpack.c.b16 %v5069, %v5065
    %v5322 = vpack.c.b16 %v5070, %v5066
    %v5323 = vpack.c.b16 %v5075, %v5071
    %v5324 = vpack.c.b16 %v5076, %v5072
    %v5325 = vpack.c.b16 %v5077, %v5073
    %v5326 = vpack.c.b16 %v5078, %v5074
    %v5327 = vpack.c.b16 %v5083, %v5079
    %v5328 = vpack.c.b16 %v5084, %v5080
    %v5329 = vpack.c.b16 %v5085, %v5081
    %v5330 = vpack.c.b16 %v5086, %v5082
    %v5331 = vpack.c.b16 %v5091, %v5087
    %v5332 = vpack.c.b16 %v5092, %v5088
    %v5333 = vpack.c.b16 %v5093, %v5089
    %v5334 = vpack.c.b16 %v5094, %v5090
    %v5335 = vpack.c.b16 %v5099, %v5095
    %v5336 = vpack.c.b16 %v5100, %v5096
    %v5337 = vpack.c.b16 %v5101, %v5097
    %v5338 = vpack.c.b16 %v5102, %v5098
    %v5339 = vpack.c.b16 %v5107, %v5103
    %v5340 = vpack.c.b16 %v5108, %v5104
    %v5341 = vpack.c.b16 %v5109, %v5105
    %v5342 = vpack.c.b16 %v5110, %v5106
    %v5343 = vpack.c.b16 %v5115, %v5111
    %v5344 = vpack.c.b16 %v5116, %v5112
    %v5345 = vpack.c.b16 %v5117, %v5113
    %v5346 = vpack.c.b16 %v5118, %v5114
    %v5347 = vpack.c.b16 %v5123, %v5119
    %v5348 = vpack.c.b16 %v5124, %v5120
    %v5349 = vpack.c.b16 %v5125, %v5121
    %v5350 = vpack.c.b16 %v5126, %v5122
    %v5351 = vpack.c.b16 %v5131, %v5127
    %v5352 = vpack.c.b16 %v5132, %v5128
    %v5353 = vpack.c.b16 %v5133, %v5129
    %v5354 = vpack.c.b16 %v5134, %v5130
    %v5355 = vpack.c.b16 %v5139, %v5135
    %v5356 = vpack.c.b16 %v5140, %v5136
    %v5357 = vpack.c.b16 %v5141, %v5137
    %v5358 = vpack.c.b16 %v5142, %v5138
    %v5359 = vpack.c.b16 %v5147, %v5143
    %v5360 = vpack.c.b16 %v5148, %v5144
    %v5361 = vpack.c.b16 %v5149, %v5145
    %v5362 = vpack.c.b16 %v5150, %v5146
    %v5363 = vpack.c.b16 %v5155, %v5151
    %v5364 = vpack.c.b16 %v5156, %v5152
    %v5365 = vpack.c.b16 %v5157, %v5153
    %v5366 = vpack.c.b16 %v5158, %v5154
    %v5367 = vpack.c.b16 %v5163, %v5159
    %v5368 = vpack.c.b16 %v5164, %v5160
    %v5369 = vpack.c.b16 %v5165, %v5161
    %v5370 = vpack.c.b16 %v5166, %v5162
    %v5371 = vpack.c.b16 %v5171, %v5167
    %v5372 = vpack.c.b16 %v5172, %v5168
    %v5373 = vpack.c.b16 %v5173, %v5169
    %v5374 = vpack.c.b16 %v5174, %v5170
    %v5375 = vpack.c.b16 %v5179, %v5175
    %v5376 = vpack.c.b16 %v5180, %v5176
    %v5377 = vpack.c.b16 %v5181, %v5177
    %v5378 = vpack.c.b16 %v5182, %v5178
    %v5379 = vpack.c.b16 %v5187, %v5183
    %v5380 = vpack.c.b16 %v5188, %v5184
    %v5381 = vpack.c.b16 %v5189, %v5185
    %v5382 = vpack.c.b16 %v5190, %v5186
    %v5383 = vpack.c.b16 %v5195, %v5191
    %v5384 = vpack.c.b16 %v5196, %v5192
    %v5385 = vpack.c.b16 %v5197, %v5193
    %v5386 = vpack.c.b16 %v5198, %v5194
    %v5387 = vpack.c.b16 %v5203, %v5199
    %v5388 = vpack.c.b16 %v5204, %v5200
    %v5389 = vpack.c.b16 %v5205, %v5201
    %v5390 = vpack.c.b16 %v5206, %v5202
    %v5391 = vpack.c.b16 %v5211, %v5207
    %v5392 = vpack.c.b16 %v5212, %v5208
    %v5393 = vpack.c.b16 %v5213, %v5209
    %v5394 = vpack.c.b16 %v5214, %v5210
    %v5395 = vpack.c.b16 %v5219, %v5215
    %v5396 = vpack.c.b16 %v5220, %v5216
    %v5397 = vpack.c.b16 %v5221, %v5217
    %v5398 = vpack.c.b16 %v5222, %v5218
    %v5399 = vpack.c.b16 %v5227, %v5223
    %v5400 = vpack.c.b16 %v5228, %v5224
    %v5401 = vpack.c.b16 %v5229, %v5225
    %v5402 = vpack.c.b16 %v5230, %v5226
    %v5403 = vpack.c.b16 %v5235, %v5231
    %v5404 = vpack.c.b16 %v5236, %v5232
    %v5405 = vpack.c.b16 %v5237, %v5233
    %v5406 = vpack.c.b16 %v5238, %v5234
    %v5407 = vpack.c.b16 %v5243, %v5239
    %v5408 = vpack.c.b16 %v5244, %v5240
    %v5409 = vpack.c.b16 %v5245, %v5241
    %v5410 = vpack.c.b16 %v5246, %v5242
    %v5411 = vpack.c.b16 %v5251, %v5247
    %v5412 = vpack.c.b16 %v5252, %v5248
    %v5413 = vpack.c.b16 %v5253, %v5249
    %v5414 = vpack.c.b16 %v5254, %v5250
    %v5415 = vpack.c.b16 %v5259, %v5255
    %v5416 = vpack.c.b16 %v5260, %v5256
    %v5417 = vpack.c.b16 %v5261, %v5257
    %v5418 = vpack.c.b16 %v5262, %v5258
    %v5419 = vpack.c.b16 %v5267, %v5263
    %v5420 = vpack.c.b16 %v5268, %v5264
    %v5421 = vpack.c.b16 %v5269, %v5265
    %v5422 = vpack.c.b16 %v5270, %v5266
    %v5423 = vpack.c.b16 %v5275, %v5271
    %v5424 = vpack.c.b16 %v5276, %v5272
    %v5425 = vpack.c.b16 %v5277, %v5273
    %v5426 = vpack.c.b16 %v5278, %v5274
    %v5427 = vpack.c.b16 %v5283, %v5279
    %v5428 = vpack.c.b16 %v5284, %v5280
    %v5429 = vpack.c.b16 %v5285, %v5281
    %v5430 = vpack.c.b16 %v5286, %v5282
    %v5431 = vpack.c.b16 %v5291, %v5287
    %v5432 = vpack.c.b16 %v5292, %v5288
    %v5433 = vpack.c.b16 %v5293, %v5289
    %v5434 = vpack.c.b16 %v5294, %v5290
    %v5435 = vpack.c.b16 %v5299, %v5295
    %v5436 = vpack.c.b16 %v5300, %v5296
    %v5437 = vpack.c.b16 %v5301, %v5297
    %v5438 = vpack.c.b16 %v5302, %v5298
    %v5439 = vpack.c.b16 %v5307, %v5303
    %v5440 = vpack.c.b16 %v5308, %v5304
    %v5441 = vpack.c.b16 %v5309, %v5305
    %v5442 = vpack.c.b16 %v5310, %v5306
    %v5443 = vpack.c.b16 %v5315, %v5311
    %v5444 = vpack.c.b16 %v5316, %v5312
    %v5445 = vpack.c.b16 %v5317, %v5313
    %v5446 = vpack.c.b16 %v5318, %v5314
    %5575 = vmatprep.subr.bf16.mxu0 %v5348
    %5576 = vmatpush1.bf16.msra.mxu0 %v5347
    %5577 = vmatprep.subr.bf16.mxu0 %v5344
    %5578 = vmatpush1.bf16.msra.mxu0 %v5343
    %5579 = vmatprep.subr.bf16.mxu0 %v5340
    %5580 = vmatpush1.bf16.msra.mxu0 %v5339
    %5581 = vmatprep.subr.bf16.mxu0 %v5336
    %5582 = vmatpush1.bf16.msra.mxu0 %v5335
    %5583 = vmatprep.subr.bf16.mxu0 %v5332
    %5584 = vmatpush1.bf16.msra.mxu0 %v5331
    %5585 = vmatprep.subr.bf16.mxu0 %v5328
    %5586 = vmatpush1.bf16.msra.mxu0 %v5327
    %5587 = vmatprep.subr.bf16.mxu0 %v5324
    %5588 = vmatpush1.bf16.msra.mxu0 %v5323
    %5589 = vmatprep.subr.bf16.mxu0 %v5320
    %5590 = vmatpush1.bf16.msra.mxu0 %v5319
    %5591 = vmatprep.subr.bf16.mxu0 %v5380
    %5592 = vmatpush2.bf16.msra.mxu0 %v5379
    %5593 = vmatprep.subr.bf16.mxu0 %v5376
    %5594 = vmatpush2.bf16.msra.mxu0 %v5375
    %5595 = vmatprep.subr.bf16.mxu0 %v5372
    %5596 = vmatpush2.bf16.msra.mxu0 %v5371
    %5597 = vmatprep.subr.bf16.mxu0 %v5368
    %5598 = vmatpush2.bf16.msra.mxu0 %v5367
    %5599 = vmatprep.subr.bf16.mxu0 %v5364
    %5600 = vmatpush2.bf16.msra.mxu0 %v5363
    %5601 = vmatprep.subr.bf16.mxu0 %v5360
    %5602 = vmatpush2.bf16.msra.mxu0 %v5359
    %5603 = vmatprep.subr.bf16.mxu0 %v5356
    %5604 = vmatpush2.bf16.msra.mxu0 %v5355
    %5605 = vmatprep.subr.bf16.mxu0 %v5352
    %5606 = vmatpush2.bf16.msra.mxu0 %v5351
    %5607 = vmatprep.mubr.bf16.mxu0 %v4872
    %5608 = vmatmul.mubr.bf16.gmra.mxu0 %v4871
    %v5609 = vpop.f32.mrf.mxu0
    %v5610 = vadd.f32 0.0, %v5609
    %v5611 = vpop.f32.mrf.mxu0
    %v5612 = vadd.f32 0.0, %v5611
    %v5613 = vpop.f32.mrf.mxu0
    %v5614 = vadd.f32 0.0, %v5613
    %v5615 = vpop.f32.mrf.mxu0
    %v5616 = vadd.f32 0.0, %v5615
    %5617 = vmatprep.mubr.bf16.mxu0 %v4876
    %5618 = vmatmul.mubr.bf16.gmra.mxu0 %v4875
    %v5619 = vpop.f32.mrf.mxu0
    %v5620 = vadd.f32 0.0, %v5619
    %v5621 = vpop.f32.mrf.mxu0
    %v5622 = vadd.f32 0.0, %v5621
    %v5623 = vpop.f32.mrf.mxu0
    %v5624 = vadd.f32 0.0, %v5623
    %v5625 = vpop.f32.mrf.mxu0
    %v5626 = vadd.f32 0.0, %v5625
    %5627 = vmatprep.mubr.bf16.mxu0 %v4880
    %5628 = vmatmul.mubr.bf16.gmra.mxu0 %v4879
    %v5629 = vpop.f32.mrf.mxu0
    %v5630 = vadd.f32 0.0, %v5629
    %v5631 = vpop.f32.mrf.mxu0
    %v5632 = vadd.f32 0.0, %v5631
    %v5633 = vpop.f32.mrf.mxu0
    %v5634 = vadd.f32 0.0, %v5633
    %v5635 = vpop.f32.mrf.mxu0
    %v5636 = vadd.f32 0.0, %v5635
    %5637 = vmatprep.mubr.bf16.mxu0 %v4884
    %5638 = vmatmul.mubr.bf16.gmra.mxu0 %v4883
    %v5639 = vpop.f32.mrf.mxu0
    %v5640 = vadd.f32 0.0, %v5639
    %v5641 = vpop.f32.mrf.mxu0
    %v5642 = vadd.f32 0.0, %v5641
    %v5643 = vpop.f32.mrf.mxu0
    %v5644 = vadd.f32 0.0, %v5643
    %v5645 = vpop.f32.mrf.mxu0
    %v5646 = vadd.f32 0.0, %v5645
    %5647 = vmatprep.mubr.bf16.mxu0 %v4888
    %5648 = vmatmul.mubr.bf16.gmra.mxu0 %v4887
    %v5649 = vpop.f32.mrf.mxu0
    %v5650 = vadd.f32 0.0, %v5649
    %v5651 = vpop.f32.mrf.mxu0
    %v5652 = vadd.f32 0.0, %v5651
    %v5653 = vpop.f32.mrf.mxu0
    %v5654 = vadd.f32 0.0, %v5653
    %v5655 = vpop.f32.mrf.mxu0
    %v5656 = vadd.f32 0.0, %v5655
    %5657 = vmatprep.mubr.bf16.mxu0 %v4892
    %5658 = vmatmul.mubr.bf16.gmra.mxu0 %v4891
    %v5659 = vpop.f32.mrf.mxu0
    %v5660 = vadd.f32 0.0, %v5659
    %v5661 = vpop.f32.mrf.mxu0
    %v5662 = vadd.f32 0.0, %v5661
    %v5663 = vpop.f32.mrf.mxu0
    %v5664 = vadd.f32 0.0, %v5663
    %v5665 = vpop.f32.mrf.mxu0
    %v5666 = vadd.f32 0.0, %v5665
    %5667 = vmatprep.mubr.bf16.mxu0 %v4896
    %5668 = vmatmul.mubr.bf16.gmra.mxu0 %v4895
    %v5669 = vpop.f32.mrf.mxu0
    %v5670 = vadd.f32 0.0, %v5669
    %v5671 = vpop.f32.mrf.mxu0
    %v5672 = vadd.f32 0.0, %v5671
    %v5673 = vpop.f32.mrf.mxu0
    %v5674 = vadd.f32 0.0, %v5673
    %v5675 = vpop.f32.mrf.mxu0
    %v5676 = vadd.f32 0.0, %v5675
    %5677 = vmatprep.mubr.bf16.mxu0 %v4900
    %5678 = vmatmul.mubr.bf16.gmra.mxu0 %v4899
    %v5679 = vpop.f32.mrf.mxu0
    %v5680 = vadd.f32 0.0, %v5679
    %v5681 = vpop.f32.mrf.mxu0
    %v5682 = vadd.f32 0.0, %v5681
    %v5683 = vpop.f32.mrf.mxu0
    %v5684 = vadd.f32 0.0, %v5683
    %v5685 = vpop.f32.mrf.mxu0
    %v5686 = vadd.f32 0.0, %v5685
    %5687 = vdwg.mxu0
    %5688 = vmatprep.subr.bf16.mxu0 %v5412
    %5689 = vmatpush1.bf16.msra.mxu0 %v5411
    %5690 = vmatprep.subr.bf16.mxu0 %v5408
    %5691 = vmatpush1.bf16.msra.mxu0 %v5407
    %5692 = vmatprep.subr.bf16.mxu0 %v5404
    %5693 = vmatpush1.bf16.msra.mxu0 %v5403
    %5694 = vmatprep.subr.bf16.mxu0 %v5400
    %5695 = vmatpush1.bf16.msra.mxu0 %v5399
    %5696 = vmatprep.subr.bf16.mxu0 %v5396
    %5697 = vmatpush1.bf16.msra.mxu0 %v5395
    %5698 = vmatprep.subr.bf16.mxu0 %v5392
    %5699 = vmatpush1.bf16.msra.mxu0 %v5391
    %5700 = vmatprep.subr.bf16.mxu0 %v5388
    %5701 = vmatpush1.bf16.msra.mxu0 %v5387
    %5702 = vmatprep.subr.bf16.mxu0 %v5384
    %5703 = vmatpush1.bf16.msra.mxu0 %v5383
    %5704 = vmatprep.subr.bf16.mxu0 %v5444
    %5705 = vmatpush2.bf16.msra.mxu0 %v5443
    %5706 = vmatprep.subr.bf16.mxu0 %v5440
    %5707 = vmatpush2.bf16.msra.mxu0 %v5439
    %5708 = vmatprep.subr.bf16.mxu0 %v5436
    %5709 = vmatpush2.bf16.msra.mxu0 %v5435
    %5710 = vmatprep.subr.bf16.mxu0 %v5432
    %5711 = vmatpush2.bf16.msra.mxu0 %v5431
    %5712 = vmatprep.subr.bf16.mxu0 %v5428
    %5713 = vmatpush2.bf16.msra.mxu0 %v5427
    %5714 = vmatprep.subr.bf16.mxu0 %v5424
    %5715 = vmatpush2.bf16.msra.mxu0 %v5423
    %5716 = vmatprep.subr.bf16.mxu0 %v5420
    %5717 = vmatpush2.bf16.msra.mxu0 %v5419
    %5718 = vmatprep.subr.bf16.mxu0 %v5416
    %5719 = vmatpush2.bf16.msra.mxu0 %v5415
    %5720 = vmatprep.mubr.bf16.mxu0 %v4874
    %5721 = vmatmul.mubr.bf16.gmra.mxu0 %v4873
    %v5722 = vpop.f32.mrf.mxu0
    %v5723 = vadd.f32 %v5610, %v5722
    %v5724 = vpop.f32.mrf.mxu0
    %v5725 = vadd.f32 %v5612, %v5724
    %v5726 = vpop.f32.mrf.mxu0
    %v5727 = vadd.f32 %v5614, %v5726
    %v5728 = vpop.f32.mrf.mxu0
    %v5729 = vadd.f32 %v5616, %v5728
    %5730 = vmatprep.mubr.bf16.mxu0 %v4878
    %5731 = vmatmul.mubr.bf16.gmra.mxu0 %v4877
    %v5732 = vpop.f32.mrf.mxu0
    %v5733 = vadd.f32 %v5620, %v5732
    %v5734 = vpop.f32.mrf.mxu0
    %v5735 = vadd.f32 %v5622, %v5734
    %v5736 = vpop.f32.mrf.mxu0
    %v5737 = vadd.f32 %v5624, %v5736
    %v5738 = vpop.f32.mrf.mxu0
    %v5739 = vadd.f32 %v5626, %v5738
    %5740 = vmatprep.mubr.bf16.mxu0 %v4882
    %5741 = vmatmul.mubr.bf16.gmra.mxu0 %v4881
    %v5742 = vpop.f32.mrf.mxu0
    %v5743 = vadd.f32 %v5630, %v5742
    %v5744 = vpop.f32.mrf.mxu0
    %v5745 = vadd.f32 %v5632, %v5744
    %v5746 = vpop.f32.mrf.mxu0
    %v5747 = vadd.f32 %v5634, %v5746
    %v5748 = vpop.f32.mrf.mxu0
    %v5749 = vadd.f32 %v5636, %v5748
    %5750 = vmatprep.mubr.bf16.mxu0 %v4886
    %5751 = vmatmul.mubr.bf16.gmra.mxu0 %v4885
    %v5752 = vpop.f32.mrf.mxu0
    %v5753 = vadd.f32 %v5640, %v5752
    %v5754 = vpop.f32.mrf.mxu0
    %v5755 = vadd.f32 %v5642, %v5754
    %v5756 = vpop.f32.mrf.mxu0
    %v5757 = vadd.f32 %v5644, %v5756
    %v5758 = vpop.f32.mrf.mxu0
    %v5759 = vadd.f32 %v5646, %v5758
    %5760 = vmatprep.mubr.bf16.mxu0 %v4890
    %5761 = vmatmul.mubr.bf16.gmra.mxu0 %v4889
    %v5762 = vpop.f32.mrf.mxu0
    %v5763 = vadd.f32 %v5650, %v5762
    %v5764 = vpop.f32.mrf.mxu0
    %v5765 = vadd.f32 %v5652, %v5764
    %v5766 = vpop.f32.mrf.mxu0
    %v5767 = vadd.f32 %v5654, %v5766
    %v5768 = vpop.f32.mrf.mxu0
    %v5769 = vadd.f32 %v5656, %v5768
    %5770 = vmatprep.mubr.bf16.mxu0 %v4894
    %5771 = vmatmul.mubr.bf16.gmra.mxu0 %v4893
    %v5772 = vpop.f32.mrf.mxu0
    %v5773 = vadd.f32 %v5660, %v5772
    %v5774 = vpop.f32.mrf.mxu0
    %v5775 = vadd.f32 %v5662, %v5774
    %v5776 = vpop.f32.mrf.mxu0
    %v5777 = vadd.f32 %v5664, %v5776
    %v5778 = vpop.f32.mrf.mxu0
    %v5779 = vadd.f32 %v5666, %v5778
    %5780 = vmatprep.mubr.bf16.mxu0 %v4898
    %5781 = vmatmul.mubr.bf16.gmra.mxu0 %v4897
    %v5782 = vpop.f32.mrf.mxu0
    %v5783 = vadd.f32 %v5670, %v5782
    %v5784 = vpop.f32.mrf.mxu0
    %v5785 = vadd.f32 %v5672, %v5784
    %v5786 = vpop.f32.mrf.mxu0
    %v5787 = vadd.f32 %v5674, %v5786
    %v5788 = vpop.f32.mrf.mxu0
    %v5789 = vadd.f32 %v5676, %v5788
    %5790 = vmatprep.mubr.bf16.mxu0 %v4902
    %5791 = vmatmul.mubr.bf16.gmra.mxu0 %v4901
    %v5792 = vpop.f32.mrf.mxu0
    %v5793 = vadd.f32 %v5680, %v5792
    %v5794 = vpop.f32.mrf.mxu0
    %v5795 = vadd.f32 %v5682, %v5794
    %v5796 = vpop.f32.mrf.mxu0
    %v5797 = vadd.f32 %v5684, %v5796
    %v5798 = vpop.f32.mrf.mxu0
    %v5799 = vadd.f32 %v5686, %v5798
    %5800 = vdwg.mxu0
    %5801 = vmatprep.subr.bf16.mxu0 %v5350
    %5802 = vmatpush1.bf16.msra.mxu0 %v5349
    %5803 = vmatprep.subr.bf16.mxu0 %v5346
    %5804 = vmatpush1.bf16.msra.mxu0 %v5345
    %5805 = vmatprep.subr.bf16.mxu0 %v5342
    %5806 = vmatpush1.bf16.msra.mxu0 %v5341
    %5807 = vmatprep.subr.bf16.mxu0 %v5338
    %5808 = vmatpush1.bf16.msra.mxu0 %v5337
    %5809 = vmatprep.subr.bf16.mxu0 %v5334
    %5810 = vmatpush1.bf16.msra.mxu0 %v5333
    %5811 = vmatprep.subr.bf16.mxu0 %v5330
    %5812 = vmatpush1.bf16.msra.mxu0 %v5329
    %5813 = vmatprep.subr.bf16.mxu0 %v5326
    %5814 = vmatpush1.bf16.msra.mxu0 %v5325
    %5815 = vmatprep.subr.bf16.mxu0 %v5322
    %5816 = vmatpush1.bf16.msra.mxu0 %v5321
    %5817 = vmatprep.subr.bf16.mxu0 %v5382
    %5818 = vmatpush2.bf16.msra.mxu0 %v5381
    %5819 = vmatprep.subr.bf16.mxu0 %v5378
    %5820 = vmatpush2.bf16.msra.mxu0 %v5377
    %5821 = vmatprep.subr.bf16.mxu0 %v5374
    %5822 = vmatpush2.bf16.msra.mxu0 %v5373
    %5823 = vmatprep.subr.bf16.mxu0 %v5370
    %5824 = vmatpush2.bf16.msra.mxu0 %v5369
    %5825 = vmatprep.subr.bf16.mxu0 %v5366
    %5826 = vmatpush2.bf16.msra.mxu0 %v5365
    %5827 = vmatprep.subr.bf16.mxu0 %v5362
    %5828 = vmatpush2.bf16.msra.mxu0 %v5361
    %5829 = vmatprep.subr.bf16.mxu0 %v5358
    %5830 = vmatpush2.bf16.msra.mxu0 %v5357
    %5831 = vmatprep.subr.bf16.mxu0 %v5354
    %5832 = vmatpush2.bf16.msra.mxu0 %v5353
    %5833 = vmatprep.mubr.bf16.mxu0 %v4872
    %5834 = vmatmul.mubr.bf16.gmra.mxu0 %v4871
    %v5835 = vpop.f32.mrf.mxu0
    %v5836 = vadd.f32 0.0, %v5835
    %v5837 = vpop.f32.mrf.mxu0
    %v5838 = vadd.f32 0.0, %v5837
    %v5839 = vpop.f32.mrf.mxu0
    %v5840 = vadd.f32 0.0, %v5839
    %v5841 = vpop.f32.mrf.mxu0
    %v5842 = vadd.f32 0.0, %v5841
    %5843 = vmatprep.mubr.bf16.mxu0 %v4876
    %5844 = vmatmul.mubr.bf16.gmra.mxu0 %v4875
    %v5845 = vpop.f32.mrf.mxu0
    %v5846 = vadd.f32 0.0, %v5845
    %v5847 = vpop.f32.mrf.mxu0
    %v5848 = vadd.f32 0.0, %v5847
    %v5849 = vpop.f32.mrf.mxu0
    %v5850 = vadd.f32 0.0, %v5849
    %v5851 = vpop.f32.mrf.mxu0
    %v5852 = vadd.f32 0.0, %v5851
    %5853 = vmatprep.mubr.bf16.mxu0 %v4880
    %5854 = vmatmul.mubr.bf16.gmra.mxu0 %v4879
    %v5855 = vpop.f32.mrf.mxu0
    %v5856 = vadd.f32 0.0, %v5855
    %v5857 = vpop.f32.mrf.mxu0
    %v5858 = vadd.f32 0.0, %v5857
    %v5859 = vpop.f32.mrf.mxu0
    %v5860 = vadd.f32 0.0, %v5859
    %v5861 = vpop.f32.mrf.mxu0
    %v5862 = vadd.f32 0.0, %v5861
    %5863 = vmatprep.mubr.bf16.mxu0 %v4884
    %5864 = vmatmul.mubr.bf16.gmra.mxu0 %v4883
    %v5865 = vpop.f32.mrf.mxu0
    %v5866 = vadd.f32 0.0, %v5865
    %v5867 = vpop.f32.mrf.mxu0
    %v5868 = vadd.f32 0.0, %v5867
    %v5869 = vpop.f32.mrf.mxu0
    %v5870 = vadd.f32 0.0, %v5869
    %v5871 = vpop.f32.mrf.mxu0
    %v5872 = vadd.f32 0.0, %v5871
    %5873 = vmatprep.mubr.bf16.mxu0 %v4888
    %5874 = vmatmul.mubr.bf16.gmra.mxu0 %v4887
    %v5875 = vpop.f32.mrf.mxu0
    %v5876 = vadd.f32 0.0, %v5875
    %v5877 = vpop.f32.mrf.mxu0
    %v5878 = vadd.f32 0.0, %v5877
    %v5879 = vpop.f32.mrf.mxu0
    %v5880 = vadd.f32 0.0, %v5879
    %v5881 = vpop.f32.mrf.mxu0
    %v5882 = vadd.f32 0.0, %v5881
    %5883 = vmatprep.mubr.bf16.mxu0 %v4892
    %5884 = vmatmul.mubr.bf16.gmra.mxu0 %v4891
    %v5885 = vpop.f32.mrf.mxu0
    %v5886 = vadd.f32 0.0, %v5885
    %v5887 = vpop.f32.mrf.mxu0
    %v5888 = vadd.f32 0.0, %v5887
    %v5889 = vpop.f32.mrf.mxu0
    %v5890 = vadd.f32 0.0, %v5889
    %v5891 = vpop.f32.mrf.mxu0
    %v5892 = vadd.f32 0.0, %v5891
    %5893 = vmatprep.mubr.bf16.mxu0 %v4896
    %5894 = vmatmul.mubr.bf16.gmra.mxu0 %v4895
    %v5895 = vpop.f32.mrf.mxu0
    %v5896 = vadd.f32 0.0, %v5895
    %v5897 = vpop.f32.mrf.mxu0
    %v5898 = vadd.f32 0.0, %v5897
    %v5899 = vpop.f32.mrf.mxu0
    %v5900 = vadd.f32 0.0, %v5899
    %v5901 = vpop.f32.mrf.mxu0
    %v5902 = vadd.f32 0.0, %v5901
    %5903 = vmatprep.mubr.bf16.mxu0 %v4900
    %5904 = vmatmul.mubr.bf16.gmra.mxu0 %v4899
    %v5905 = vpop.f32.mrf.mxu0
    %v5906 = vadd.f32 0.0, %v5905
    %v5907 = vpop.f32.mrf.mxu0
    %v5908 = vadd.f32 0.0, %v5907
    %v5909 = vpop.f32.mrf.mxu0
    %v5910 = vadd.f32 0.0, %v5909
    %v5911 = vpop.f32.mrf.mxu0
    %v5912 = vadd.f32 0.0, %v5911
    %5913 = vdwg.mxu0
    %5914 = vmatprep.subr.bf16.mxu0 %v5414
    %5915 = vmatpush1.bf16.msra.mxu0 %v5413
    %5916 = vmatprep.subr.bf16.mxu0 %v5410
    %5917 = vmatpush1.bf16.msra.mxu0 %v5409
    %5918 = vmatprep.subr.bf16.mxu0 %v5406
    %5919 = vmatpush1.bf16.msra.mxu0 %v5405
    %5920 = vmatprep.subr.bf16.mxu0 %v5402
    %5921 = vmatpush1.bf16.msra.mxu0 %v5401
    %5922 = vmatprep.subr.bf16.mxu0 %v5398
    %5923 = vmatpush1.bf16.msra.mxu0 %v5397
    %5924 = vmatprep.subr.bf16.mxu0 %v5394
    %5925 = vmatpush1.bf16.msra.mxu0 %v5393
    %5926 = vmatprep.subr.bf16.mxu0 %v5390
    %5927 = vmatpush1.bf16.msra.mxu0 %v5389
    %5928 = vmatprep.subr.bf16.mxu0 %v5386
    %5929 = vmatpush1.bf16.msra.mxu0 %v5385
    %5930 = vmatprep.subr.bf16.mxu0 %v5446
    %5931 = vmatpush2.bf16.msra.mxu0 %v5445
    %5932 = vmatprep.subr.bf16.mxu0 %v5442
    %5933 = vmatpush2.bf16.msra.mxu0 %v5441
    %5934 = vmatprep.subr.bf16.mxu0 %v5438
    %5935 = vmatpush2.bf16.msra.mxu0 %v5437
    %5936 = vmatprep.subr.bf16.mxu0 %v5434
    %5937 = vmatpush2.bf16.msra.mxu0 %v5433
    %5938 = vmatprep.subr.bf16.mxu0 %v5430
    %5939 = vmatpush2.bf16.msra.mxu0 %v5429
    %5940 = vmatprep.subr.bf16.mxu0 %v5426
    %5941 = vmatpush2.bf16.msra.mxu0 %v5425
    %5942 = vmatprep.subr.bf16.mxu0 %v5422
    %5943 = vmatpush2.bf16.msra.mxu0 %v5421
    %5944 = vmatprep.subr.bf16.mxu0 %v5418
    %5945 = vmatpush2.bf16.msra.mxu0 %v5417
    %5946 = vmatprep.mubr.bf16.mxu0 %v4874
    %5947 = vmatmul.mubr.bf16.gmra.mxu0 %v4873
    %v5948 = vpop.f32.mrf.mxu0
    %v5949 = vadd.f32 %v5836, %v5948
    %v5950 = vpop.f32.mrf.mxu0
    %v5951 = vadd.f32 %v5838, %v5950
    %v5952 = vpop.f32.mrf.mxu0
    %v5953 = vadd.f32 %v5840, %v5952
    %v5954 = vpop.f32.mrf.mxu0
    %v5955 = vadd.f32 %v5842, %v5954
    %5956 = vmatprep.mubr.bf16.mxu0 %v4878
    %5957 = vmatmul.mubr.bf16.gmra.mxu0 %v4877
    %v5958 = vpop.f32.mrf.mxu0
    %v5959 = vadd.f32 %v5846, %v5958
    %v5960 = vpop.f32.mrf.mxu0
    %v5961 = vadd.f32 %v5848, %v5960
    %v5962 = vpop.f32.mrf.mxu0
    %v5963 = vadd.f32 %v5850, %v5962
    %v5964 = vpop.f32.mrf.mxu0
    %v5965 = vadd.f32 %v5852, %v5964
    %5966 = vmatprep.mubr.bf16.mxu0 %v4882
    %5967 = vmatmul.mubr.bf16.gmra.mxu0 %v4881
    %v5968 = vpop.f32.mrf.mxu0
    %v5969 = vadd.f32 %v5856, %v5968
    %v5970 = vpop.f32.mrf.mxu0
    %v5971 = vadd.f32 %v5858, %v5970
    %v5972 = vpop.f32.mrf.mxu0
    %v5973 = vadd.f32 %v5860, %v5972
    %v5974 = vpop.f32.mrf.mxu0
    %v5975 = vadd.f32 %v5862, %v5974
    %5976 = vmatprep.mubr.bf16.mxu0 %v4886
    %5977 = vmatmul.mubr.bf16.gmra.mxu0 %v4885
    %v5978 = vpop.f32.mrf.mxu0
    %v5979 = vadd.f32 %v5866, %v5978
    %v5980 = vpop.f32.mrf.mxu0
    %v5981 = vadd.f32 %v5868, %v5980
    %v5982 = vpop.f32.mrf.mxu0
    %v5983 = vadd.f32 %v5870, %v5982
    %v5984 = vpop.f32.mrf.mxu0
    %v5985 = vadd.f32 %v5872, %v5984
    %5986 = vmatprep.mubr.bf16.mxu0 %v4890
    %5987 = vmatmul.mubr.bf16.gmra.mxu0 %v4889
    %v5988 = vpop.f32.mrf.mxu0
    %v5989 = vadd.f32 %v5876, %v5988
    %v5990 = vpop.f32.mrf.mxu0
    %v5991 = vadd.f32 %v5878, %v5990
    %v5992 = vpop.f32.mrf.mxu0
    %v5993 = vadd.f32 %v5880, %v5992
    %v5994 = vpop.f32.mrf.mxu0
    %v5995 = vadd.f32 %v5882, %v5994
    %5996 = vmatprep.mubr.bf16.mxu0 %v4894
    %5997 = vmatmul.mubr.bf16.gmra.mxu0 %v4893
    %v5998 = vpop.f32.mrf.mxu0
    %v5999 = vadd.f32 %v5886, %v5998
    %v6000 = vpop.f32.mrf.mxu0
    %v6001 = vadd.f32 %v5888, %v6000
    %v6002 = vpop.f32.mrf.mxu0
    %v6003 = vadd.f32 %v5890, %v6002
    %v6004 = vpop.f32.mrf.mxu0
    %v6005 = vadd.f32 %v5892, %v6004
    %6006 = vmatprep.mubr.bf16.mxu0 %v4898
    %6007 = vmatmul.mubr.bf16.gmra.mxu0 %v4897
    %v6008 = vpop.f32.mrf.mxu0
    %v6009 = vadd.f32 %v5896, %v6008
    %v6010 = vpop.f32.mrf.mxu0
    %v6011 = vadd.f32 %v5898, %v6010
    %v6012 = vpop.f32.mrf.mxu0
    %v6013 = vadd.f32 %v5900, %v6012
    %v6014 = vpop.f32.mrf.mxu0
    %v6015 = vadd.f32 %v5902, %v6014
    %6016 = vmatprep.mubr.bf16.mxu0 %v4902
    %6017 = vmatmul.mubr.bf16.gmra.mxu0 %v4901
    %v6018 = vpop.f32.mrf.mxu0
    %v6019 = vadd.f32 %v5906, %v6018
    %v6020 = vpop.f32.mrf.mxu0
    %v6021 = vadd.f32 %v5908, %v6020
    %v6022 = vpop.f32.mrf.mxu0
    %v6023 = vadd.f32 %v5910, %v6022
    %v6024 = vpop.f32.mrf.mxu0
    %v6025 = vadd.f32 %v5912, %v6024
    %6026 = vdwg.mxu0
    %v6029 = vunpack.c.l.b16 %v4482
    %v6030 = vunpack.c.h.b16 %v4482
    %v6031 = vunpack.c.l.b16 %v4483
    %v6032 = vunpack.c.h.b16 %v4483
    %v6033 = vpack.c.b16 %v4807, %v6029
    %v6034 = vpack.c.b16 %v4808, %v6030
    %v6035 = vpack.c.b16 %v4809, %v6031
    %v6036 = vpack.c.b16 %v4810, %v6032
    %v6037 = vpack.c.b16 %v4815, %v4811
    %v6038 = vpack.c.b16 %v4816, %v4812
    %v6039 = vpack.c.b16 %v4817, %v4813
    %v6040 = vpack.c.b16 %v4818, %v4814
    %v6041 = vpack.c.b16 %v4823, %v4819
    %v6042 = vpack.c.b16 %v4824, %v4820
    %v6043 = vpack.c.b16 %v4825, %v4821
    %v6044 = vpack.c.b16 %v4826, %v4822
    %v6045 = vpack.c.b16 %v4831, %v4827
    %v6046 = vpack.c.b16 %v4832, %v4828
    %v6047 = vpack.c.b16 %v4833, %v4829
    %v6048 = vpack.c.b16 %v4834, %v4830
    %v6049 = vpack.c.b16 %v4839, %v4835
    %v6050 = vpack.c.b16 %v4840, %v4836
    %v6051 = vpack.c.b16 %v4841, %v4837
    %v6052 = vpack.c.b16 %v4842, %v4838
    %v6053 = vpack.c.b16 %v4847, %v4843
    %v6054 = vpack.c.b16 %v4848, %v4844
    %v6055 = vpack.c.b16 %v4849, %v4845
    %v6056 = vpack.c.b16 %v4850, %v4846
    %v6057 = vpack.c.b16 %v4855, %v4851
    %v6058 = vpack.c.b16 %v4856, %v4852
    %v6059 = vpack.c.b16 %v4857, %v4853
    %v6060 = vpack.c.b16 %v4858, %v4854
    %v6061 = vpack.c.b16 %v4863, %v4859
    %v6062 = vpack.c.b16 %v4864, %v4860
    %v6063 = vpack.c.b16 %v4865, %v4861
    %v6064 = vpack.c.b16 %v4866, %v4862
    %v6225 = vunpack.c.l.b16 %v4518
    %v6226 = vunpack.c.h.b16 %v4518
    %v6227 = vunpack.c.l.b16 %v4519
    %v6228 = vunpack.c.h.b16 %v4519
    %v6229 = vunpack.c.l.b16 %v4520
    %v6230 = vunpack.c.h.b16 %v4520
    %v6231 = vunpack.c.l.b16 %v4521
    %v6232 = vunpack.c.h.b16 %v4521
    %v6233 = vunpack.c.l.b16 %v4522
    %v6234 = vunpack.c.h.b16 %v4522
    %v6235 = vunpack.c.l.b16 %v4523
    %v6236 = vunpack.c.h.b16 %v4523
    %v6237 = vunpack.c.l.b16 %v4524
    %v6238 = vunpack.c.h.b16 %v4524
    %v6239 = vunpack.c.l.b16 %v4525
    %v6240 = vunpack.c.h.b16 %v4525
    %v6241 = vunpack.c.l.b16 %v4526
    %v6242 = vunpack.c.h.b16 %v4526
    %v6243 = vunpack.c.l.b16 %v4527
    %v6244 = vunpack.c.h.b16 %v4527
    %v6245 = vunpack.c.l.b16 %v4528
    %v6246 = vunpack.c.h.b16 %v4528
    %v6247 = vunpack.c.l.b16 %v4529
    %v6248 = vunpack.c.h.b16 %v4529
    %v6249 = vunpack.c.l.b16 %v4530
    %v6250 = vunpack.c.h.b16 %v4530
    %v6251 = vunpack.c.l.b16 %v4531
    %v6252 = vunpack.c.h.b16 %v4531
    %v6253 = vunpack.c.l.b16 %v4532
    %v6254 = vunpack.c.h.b16 %v4532
    %v6255 = vunpack.c.l.b16 %v4533
    %v6256 = vunpack.c.h.b16 %v4533
    %v6257 = vunpack.c.l.b16 %v4534
    %v6258 = vunpack.c.h.b16 %v4534
    %v6259 = vunpack.c.l.b16 %v4535
    %v6260 = vunpack.c.h.b16 %v4535
    %v6261 = vunpack.c.l.b16 %v4536
    %v6262 = vunpack.c.h.b16 %v4536
    %v6263 = vunpack.c.l.b16 %v4537
    %v6264 = vunpack.c.h.b16 %v4537
    %v6265 = vunpack.c.l.b16 %v4538
    %v6266 = vunpack.c.h.b16 %v4538
    %v6267 = vunpack.c.l.b16 %v4539
    %v6268 = vunpack.c.h.b16 %v4539
    %v6269 = vunpack.c.l.b16 %v4540
    %v6270 = vunpack.c.h.b16 %v4540
    %v6271 = vunpack.c.l.b16 %v4541
    %v6272 = vunpack.c.h.b16 %v4541
    %v6273 = vunpack.c.l.b16 %v4542
    %v6274 = vunpack.c.h.b16 %v4542
    %v6275 = vunpack.c.l.b16 %v4543
    %v6276 = vunpack.c.h.b16 %v4543
    %v6277 = vunpack.c.l.b16 %v4544
    %v6278 = vunpack.c.h.b16 %v4544
    %v6279 = vunpack.c.l.b16 %v4545
    %v6280 = vunpack.c.h.b16 %v4545
    %v6281 = vunpack.c.l.b16 %v4546
    %v6282 = vunpack.c.h.b16 %v4546
    %v6283 = vunpack.c.l.b16 %v4547
    %v6284 = vunpack.c.h.b16 %v4547
    %v6285 = vunpack.c.l.b16 %v4548
    %v6286 = vunpack.c.h.b16 %v4548
    %v6287 = vunpack.c.l.b16 %v4549
    %v6288 = vunpack.c.h.b16 %v4549
    %v6289 = vunpack.c.l.b16 %v4550
    %v6290 = vunpack.c.h.b16 %v4550
    %v6291 = vunpack.c.l.b16 %v4551
    %v6292 = vunpack.c.h.b16 %v4551
    %v6293 = vunpack.c.l.b16 %v4552
    %v6294 = vunpack.c.h.b16 %v4552
    %v6295 = vunpack.c.l.b16 %v4553
    %v6296 = vunpack.c.h.b16 %v4553
    %v6297 = vunpack.c.l.b16 %v4554
    %v6298 = vunpack.c.h.b16 %v4554
    %v6299 = vunpack.c.l.b16 %v4555
    %v6300 = vunpack.c.h.b16 %v4555
    %v6301 = vunpack.c.l.b16 %v4556
    %v6302 = vunpack.c.h.b16 %v4556
    %v6303 = vunpack.c.l.b16 %v4557
    %v6304 = vunpack.c.h.b16 %v4557
    %v6305 = vunpack.c.l.b16 %v4558
    %v6306 = vunpack.c.h.b16 %v4558
    %v6307 = vunpack.c.l.b16 %v4559
    %v6308 = vunpack.c.h.b16 %v4559
    %v6309 = vunpack.c.l.b16 %v4560
    %v6310 = vunpack.c.h.b16 %v4560
    %v6311 = vunpack.c.l.b16 %v4561
    %v6312 = vunpack.c.h.b16 %v4561
    %v6313 = vunpack.c.l.b16 %v4562
    %v6314 = vunpack.c.h.b16 %v4562
    %v6315 = vunpack.c.l.b16 %v4563
    %v6316 = vunpack.c.h.b16 %v4563
    %v6317 = vunpack.c.l.b16 %v4564
    %v6318 = vunpack.c.h.b16 %v4564
    %v6319 = vunpack.c.l.b16 %v4565
    %v6320 = vunpack.c.h.b16 %v4565
    %v6321 = vunpack.c.l.b16 %v4566
    %v6322 = vunpack.c.h.b16 %v4566
    %v6323 = vunpack.c.l.b16 %v4567
    %v6324 = vunpack.c.h.b16 %v4567
    %v6325 = vunpack.c.l.b16 %v4568
    %v6326 = vunpack.c.h.b16 %v4568
    %v6327 = vunpack.c.l.b16 %v4569
    %v6328 = vunpack.c.h.b16 %v4569
    %v6329 = vunpack.c.l.b16 %v4570
    %v6330 = vunpack.c.h.b16 %v4570
    %v6331 = vunpack.c.l.b16 %v4571
    %v6332 = vunpack.c.h.b16 %v4571
    %v6333 = vunpack.c.l.b16 %v4572
    %v6334 = vunpack.c.h.b16 %v4572
    %v6335 = vunpack.c.l.b16 %v4573
    %v6336 = vunpack.c.h.b16 %v4573
    %v6337 = vunpack.c.l.b16 %v4574
    %v6338 = vunpack.c.h.b16 %v4574
    %v6339 = vunpack.c.l.b16 %v4575
    %v6340 = vunpack.c.h.b16 %v4575
    %v6341 = vunpack.c.l.b16 %v4576
    %v6342 = vunpack.c.h.b16 %v4576
    %v6343 = vunpack.c.l.b16 %v4577
    %v6344 = vunpack.c.h.b16 %v4577
    %v6345 = vunpack.c.l.b16 %v4578
    %v6346 = vunpack.c.h.b16 %v4578
    %v6347 = vunpack.c.l.b16 %v4579
    %v6348 = vunpack.c.h.b16 %v4579
    %v6349 = vunpack.c.l.b16 %v4580
    %v6350 = vunpack.c.h.b16 %v4580
    %v6351 = vunpack.c.l.b16 %v4581
    %v6352 = vunpack.c.h.b16 %v4581
    %v6353 = vunpack.c.l.b16 %v4582
    %v6354 = vunpack.c.h.b16 %v4582
    %v6355 = vunpack.c.l.b16 %v4583
    %v6356 = vunpack.c.h.b16 %v4583
    %v6357 = vunpack.c.l.b16 %v4584
    %v6358 = vunpack.c.h.b16 %v4584
    %v6359 = vunpack.c.l.b16 %v4585
    %v6360 = vunpack.c.h.b16 %v4585
    %v6361 = vunpack.c.l.b16 %v4586
    %v6362 = vunpack.c.h.b16 %v4586
    %v6363 = vunpack.c.l.b16 %v4587
    %v6364 = vunpack.c.h.b16 %v4587
    %v6365 = vunpack.c.l.b16 %v4588
    %v6366 = vunpack.c.h.b16 %v4588
    %v6367 = vunpack.c.l.b16 %v4589
    %v6368 = vunpack.c.h.b16 %v4589
    %v6369 = vunpack.c.l.b16 %v4590
    %v6370 = vunpack.c.h.b16 %v4590
    %v6371 = vunpack.c.l.b16 %v4591
    %v6372 = vunpack.c.h.b16 %v4591
    %v6373 = vunpack.c.l.b16 %v4592
    %v6374 = vunpack.c.h.b16 %v4592
    %v6375 = vunpack.c.l.b16 %v4593
    %v6376 = vunpack.c.h.b16 %v4593
    %v6377 = vunpack.c.l.b16 %v4594
    %v6378 = vunpack.c.h.b16 %v4594
    %v6379 = vunpack.c.l.b16 %v4595
    %v6380 = vunpack.c.h.b16 %v4595
    %v6381 = vunpack.c.l.b16 %v4596
    %v6382 = vunpack.c.h.b16 %v4596
    %v6383 = vunpack.c.l.b16 %v4597
    %v6384 = vunpack.c.h.b16 %v4597
    %v6385 = vunpack.c.l.b16 %v4598
    %v6386 = vunpack.c.h.b16 %v4598
    %v6387 = vunpack.c.l.b16 %v4599
    %v6388 = vunpack.c.h.b16 %v4599
    %v6389 = vunpack.c.l.b16 %v4600
    %v6390 = vunpack.c.h.b16 %v4600
    %v6391 = vunpack.c.l.b16 %v4601
    %v6392 = vunpack.c.h.b16 %v4601
    %v6393 = vunpack.c.l.b16 %v4602
    %v6394 = vunpack.c.h.b16 %v4602
    %v6395 = vunpack.c.l.b16 %v4603
    %v6396 = vunpack.c.h.b16 %v4603
    %v6397 = vunpack.c.l.b16 %v4604
    %v6398 = vunpack.c.h.b16 %v4604
    %v6399 = vunpack.c.l.b16 %v4605
    %v6400 = vunpack.c.h.b16 %v4605
    %v6401 = vunpack.c.l.b16 %v4606
    %v6402 = vunpack.c.h.b16 %v4606
    %v6403 = vunpack.c.l.b16 %v4607
    %v6404 = vunpack.c.h.b16 %v4607
    %v6405 = vunpack.c.l.b16 %v4608
    %v6406 = vunpack.c.h.b16 %v4608
    %v6407 = vunpack.c.l.b16 %v4609
    %v6408 = vunpack.c.h.b16 %v4609
    %v6409 = vunpack.c.l.b16 %v4610
    %v6410 = vunpack.c.h.b16 %v4610
    %v6411 = vunpack.c.l.b16 %v4611
    %v6412 = vunpack.c.h.b16 %v4611
    %v6413 = vunpack.c.l.b16 %v4612
    %v6414 = vunpack.c.h.b16 %v4612
    %v6415 = vunpack.c.l.b16 %v4613
    %v6416 = vunpack.c.h.b16 %v4613
    %v6417 = vunpack.c.l.b16 %v4614
    %v6418 = vunpack.c.h.b16 %v4614
    %v6419 = vunpack.c.l.b16 %v4615
    %v6420 = vunpack.c.h.b16 %v4615
    %v6421 = vunpack.c.l.b16 %v4616
    %v6422 = vunpack.c.h.b16 %v4616
    %v6423 = vunpack.c.l.b16 %v4617
    %v6424 = vunpack.c.h.b16 %v4617
    %v6425 = vunpack.c.l.b16 %v4618
    %v6426 = vunpack.c.h.b16 %v4618
    %v6427 = vunpack.c.l.b16 %v4619
    %v6428 = vunpack.c.h.b16 %v4619
    %v6429 = vunpack.c.l.b16 %v4620
    %v6430 = vunpack.c.h.b16 %v4620
    %v6431 = vunpack.c.l.b16 %v4621
    %v6432 = vunpack.c.h.b16 %v4621
    %v6433 = vunpack.c.l.b16 %v4622
    %v6434 = vunpack.c.h.b16 %v4622
    %v6435 = vunpack.c.l.b16 %v4623
    %v6436 = vunpack.c.h.b16 %v4623
    %v6437 = vunpack.c.l.b16 %v4624
    %v6438 = vunpack.c.h.b16 %v4624
    %v6439 = vunpack.c.l.b16 %v4625
    %v6440 = vunpack.c.h.b16 %v4625
    %v6441 = vunpack.c.l.b16 %v4626
    %v6442 = vunpack.c.h.b16 %v4626
    %v6443 = vunpack.c.l.b16 %v4627
    %v6444 = vunpack.c.h.b16 %v4627
    %v6445 = vunpack.c.l.b16 %v4628
    %v6446 = vunpack.c.h.b16 %v4628
    %v6447 = vunpack.c.l.b16 %v4629
    %v6448 = vunpack.c.h.b16 %v4629
    %v6449 = vunpack.c.l.b16 %v4630
    %v6450 = vunpack.c.h.b16 %v4630
    %v6451 = vunpack.c.l.b16 %v4631
    %v6452 = vunpack.c.h.b16 %v4631
    %v6453 = vunpack.c.l.b16 %v4632
    %v6454 = vunpack.c.h.b16 %v4632
    %v6455 = vunpack.c.l.b16 %v4633
    %v6456 = vunpack.c.h.b16 %v4633
    %v6457 = vunpack.c.l.b16 %v4634
    %v6458 = vunpack.c.h.b16 %v4634
    %v6459 = vunpack.c.l.b16 %v4635
    %v6460 = vunpack.c.h.b16 %v4635
    %v6461 = vunpack.c.l.b16 %v4636
    %v6462 = vunpack.c.h.b16 %v4636
    %v6463 = vunpack.c.l.b16 %v4637
    %v6464 = vunpack.c.h.b16 %v4637
    %v6465 = vunpack.c.l.b16 %v4638
    %v6466 = vunpack.c.h.b16 %v4638
    %v6467 = vunpack.c.l.b16 %v4639
    %v6468 = vunpack.c.h.b16 %v4639
    %v6469 = vunpack.c.l.b16 %v4640
    %v6470 = vunpack.c.h.b16 %v4640
    %v6471 = vunpack.c.l.b16 %v4641
    %v6472 = vunpack.c.h.b16 %v4641
    %v6473 = vunpack.c.l.b16 %v4642
    %v6474 = vunpack.c.h.b16 %v4642
    %v6475 = vunpack.c.l.b16 %v4643
    %v6476 = vunpack.c.h.b16 %v4643
    %v6477 = vunpack.c.l.b16 %v4644
    %v6478 = vunpack.c.h.b16 %v4644
    %v6479 = vunpack.c.l.b16 %v4645
    %v6480 = vunpack.c.h.b16 %v4645
    %v6481 = vpack.c.b16 %v6229, %v6225
    %v6482 = vpack.c.b16 %v6230, %v6226
    %v6483 = vpack.c.b16 %v6231, %v6227
    %v6484 = vpack.c.b16 %v6232, %v6228
    %v6485 = vpack.c.b16 %v6237, %v6233
    %v6486 = vpack.c.b16 %v6238, %v6234
    %v6487 = vpack.c.b16 %v6239, %v6235
    %v6488 = vpack.c.b16 %v6240, %v6236
    %v6489 = vpack.c.b16 %v6245, %v6241
    %v6490 = vpack.c.b16 %v6246, %v6242
    %v6491 = vpack.c.b16 %v6247, %v6243
    %v6492 = vpack.c.b16 %v6248, %v6244
    %v6493 = vpack.c.b16 %v6253, %v6249
    %v6494 = vpack.c.b16 %v6254, %v6250
    %v6495 = vpack.c.b16 %v6255, %v6251
    %v6496 = vpack.c.b16 %v6256, %v6252
    %v6497 = vpack.c.b16 %v6261, %v6257
    %v6498 = vpack.c.b16 %v6262, %v6258
    %v6499 = vpack.c.b16 %v6263, %v6259
    %v6500 = vpack.c.b16 %v6264, %v6260
    %v6501 = vpack.c.b16 %v6269, %v6265
    %v6502 = vpack.c.b16 %v6270, %v6266
    %v6503 = vpack.c.b16 %v6271, %v6267
    %v6504 = vpack.c.b16 %v6272, %v6268
    %v6505 = vpack.c.b16 %v6277, %v6273
    %v6506 = vpack.c.b16 %v6278, %v6274
    %v6507 = vpack.c.b16 %v6279, %v6275
    %v6508 = vpack.c.b16 %v6280, %v6276
    %v6509 = vpack.c.b16 %v6285, %v6281
    %v6510 = vpack.c.b16 %v6286, %v6282
    %v6511 = vpack.c.b16 %v6287, %v6283
    %v6512 = vpack.c.b16 %v6288, %v6284
    %v6513 = vpack.c.b16 %v6293, %v6289
    %v6514 = vpack.c.b16 %v6294, %v6290
    %v6515 = vpack.c.b16 %v6295, %v6291
    %v6516 = vpack.c.b16 %v6296, %v6292
    %v6517 = vpack.c.b16 %v6301, %v6297
    %v6518 = vpack.c.b16 %v6302, %v6298
    %v6519 = vpack.c.b16 %v6303, %v6299
    %v6520 = vpack.c.b16 %v6304, %v6300
    %v6521 = vpack.c.b16 %v6309, %v6305
    %v6522 = vpack.c.b16 %v6310, %v6306
    %v6523 = vpack.c.b16 %v6311, %v6307
    %v6524 = vpack.c.b16 %v6312, %v6308
    %v6525 = vpack.c.b16 %v6317, %v6313
    %v6526 = vpack.c.b16 %v6318, %v6314
    %v6527 = vpack.c.b16 %v6319, %v6315
    %v6528 = vpack.c.b16 %v6320, %v6316
    %v6529 = vpack.c.b16 %v6325, %v6321
    %v6530 = vpack.c.b16 %v6326, %v6322
    %v6531 = vpack.c.b16 %v6327, %v6323
    %v6532 = vpack.c.b16 %v6328, %v6324
    %v6533 = vpack.c.b16 %v6333, %v6329
    %v6534 = vpack.c.b16 %v6334, %v6330
    %v6535 = vpack.c.b16 %v6335, %v6331
    %v6536 = vpack.c.b16 %v6336, %v6332
    %v6537 = vpack.c.b16 %v6341, %v6337
    %v6538 = vpack.c.b16 %v6342, %v6338
    %v6539 = vpack.c.b16 %v6343, %v6339
    %v6540 = vpack.c.b16 %v6344, %v6340
    %v6541 = vpack.c.b16 %v6349, %v6345
    %v6542 = vpack.c.b16 %v6350, %v6346
    %v6543 = vpack.c.b16 %v6351, %v6347
    %v6544 = vpack.c.b16 %v6352, %v6348
    %v6545 = vpack.c.b16 %v6357, %v6353
    %v6546 = vpack.c.b16 %v6358, %v6354
    %v6547 = vpack.c.b16 %v6359, %v6355
    %v6548 = vpack.c.b16 %v6360, %v6356
    %v6549 = vpack.c.b16 %v6365, %v6361
    %v6550 = vpack.c.b16 %v6366, %v6362
    %v6551 = vpack.c.b16 %v6367, %v6363
    %v6552 = vpack.c.b16 %v6368, %v6364
    %v6553 = vpack.c.b16 %v6373, %v6369
    %v6554 = vpack.c.b16 %v6374, %v6370
    %v6555 = vpack.c.b16 %v6375, %v6371
    %v6556 = vpack.c.b16 %v6376, %v6372
    %v6557 = vpack.c.b16 %v6381, %v6377
    %v6558 = vpack.c.b16 %v6382, %v6378
    %v6559 = vpack.c.b16 %v6383, %v6379
    %v6560 = vpack.c.b16 %v6384, %v6380
    %v6561 = vpack.c.b16 %v6389, %v6385
    %v6562 = vpack.c.b16 %v6390, %v6386
    %v6563 = vpack.c.b16 %v6391, %v6387
    %v6564 = vpack.c.b16 %v6392, %v6388
    %v6565 = vpack.c.b16 %v6397, %v6393
    %v6566 = vpack.c.b16 %v6398, %v6394
    %v6567 = vpack.c.b16 %v6399, %v6395
    %v6568 = vpack.c.b16 %v6400, %v6396
    %v6569 = vpack.c.b16 %v6405, %v6401
    %v6570 = vpack.c.b16 %v6406, %v6402
    %v6571 = vpack.c.b16 %v6407, %v6403
    %v6572 = vpack.c.b16 %v6408, %v6404
    %v6573 = vpack.c.b16 %v6413, %v6409
    %v6574 = vpack.c.b16 %v6414, %v6410
    %v6575 = vpack.c.b16 %v6415, %v6411
    %v6576 = vpack.c.b16 %v6416, %v6412
    %v6577 = vpack.c.b16 %v6421, %v6417
    %v6578 = vpack.c.b16 %v6422, %v6418
    %v6579 = vpack.c.b16 %v6423, %v6419
    %v6580 = vpack.c.b16 %v6424, %v6420
    %v6581 = vpack.c.b16 %v6429, %v6425
    %v6582 = vpack.c.b16 %v6430, %v6426
    %v6583 = vpack.c.b16 %v6431, %v6427
    %v6584 = vpack.c.b16 %v6432, %v6428
    %v6585 = vpack.c.b16 %v6437, %v6433
    %v6586 = vpack.c.b16 %v6438, %v6434
    %v6587 = vpack.c.b16 %v6439, %v6435
    %v6588 = vpack.c.b16 %v6440, %v6436
    %v6589 = vpack.c.b16 %v6445, %v6441
    %v6590 = vpack.c.b16 %v6446, %v6442
    %v6591 = vpack.c.b16 %v6447, %v6443
    %v6592 = vpack.c.b16 %v6448, %v6444
    %v6593 = vpack.c.b16 %v6453, %v6449
    %v6594 = vpack.c.b16 %v6454, %v6450
    %v6595 = vpack.c.b16 %v6455, %v6451
    %v6596 = vpack.c.b16 %v6456, %v6452
    %v6597 = vpack.c.b16 %v6461, %v6457
    %v6598 = vpack.c.b16 %v6462, %v6458
    %v6599 = vpack.c.b16 %v6463, %v6459
    %v6600 = vpack.c.b16 %v6464, %v6460
    %v6601 = vpack.c.b16 %v6469, %v6465
    %v6602 = vpack.c.b16 %v6470, %v6466
    %v6603 = vpack.c.b16 %v6471, %v6467
    %v6604 = vpack.c.b16 %v6472, %v6468
    %v6605 = vpack.c.b16 %v6477, %v6473
    %v6606 = vpack.c.b16 %v6478, %v6474
    %v6607 = vpack.c.b16 %v6479, %v6475
    %v6608 = vpack.c.b16 %v6480, %v6476
    %6737 = vmatprep.subr.bf16.mxu0 %v6510
    %6738 = vmatpush1.bf16.msra.mxu0 %v6509
    %6739 = vmatprep.subr.bf16.mxu0 %v6506
    %6740 = vmatpush1.bf16.msra.mxu0 %v6505
    %6741 = vmatprep.subr.bf16.mxu0 %v6502
    %6742 = vmatpush1.bf16.msra.mxu0 %v6501
    %6743 = vmatprep.subr.bf16.mxu0 %v6498
    %6744 = vmatpush1.bf16.msra.mxu0 %v6497
    %6745 = vmatprep.subr.bf16.mxu0 %v6494
    %6746 = vmatpush1.bf16.msra.mxu0 %v6493
    %6747 = vmatprep.subr.bf16.mxu0 %v6490
    %6748 = vmatpush1.bf16.msra.mxu0 %v6489
    %6749 = vmatprep.subr.bf16.mxu0 %v6486
    %6750 = vmatpush1.bf16.msra.mxu0 %v6485
    %6751 = vmatprep.subr.bf16.mxu0 %v6482
    %6752 = vmatpush1.bf16.msra.mxu0 %v6481
    %6753 = vmatprep.subr.bf16.mxu0 %v6542
    %6754 = vmatpush2.bf16.msra.mxu0 %v6541
    %6755 = vmatprep.subr.bf16.mxu0 %v6538
    %6756 = vmatpush2.bf16.msra.mxu0 %v6537
    %6757 = vmatprep.subr.bf16.mxu0 %v6534
    %6758 = vmatpush2.bf16.msra.mxu0 %v6533
    %6759 = vmatprep.subr.bf16.mxu0 %v6530
    %6760 = vmatpush2.bf16.msra.mxu0 %v6529
    %6761 = vmatprep.subr.bf16.mxu0 %v6526
    %6762 = vmatpush2.bf16.msra.mxu0 %v6525
    %6763 = vmatprep.subr.bf16.mxu0 %v6522
    %6764 = vmatpush2.bf16.msra.mxu0 %v6521
    %6765 = vmatprep.subr.bf16.mxu0 %v6518
    %6766 = vmatpush2.bf16.msra.mxu0 %v6517
    %6767 = vmatprep.subr.bf16.mxu0 %v6514
    %6768 = vmatpush2.bf16.msra.mxu0 %v6513
    %6769 = vmatprep.mubr.bf16.mxu0 %v6034
    %6770 = vmatmul.mubr.bf16.gmra.mxu0 %v6033
    %v6771 = vpop.f32.mrf.mxu0
    %v6772 = vadd.f32 %v5723, %v6771
    %v6773 = vpop.f32.mrf.mxu0
    %v6774 = vadd.f32 %v5725, %v6773
    %v6775 = vpop.f32.mrf.mxu0
    %v6776 = vadd.f32 %v5727, %v6775
    %v6777 = vpop.f32.mrf.mxu0
    %v6778 = vadd.f32 %v5729, %v6777
    %6779 = vmatprep.mubr.bf16.mxu0 %v6038
    %6780 = vmatmul.mubr.bf16.gmra.mxu0 %v6037
    %v6781 = vpop.f32.mrf.mxu0
    %v6782 = vadd.f32 %v5733, %v6781
    %v6783 = vpop.f32.mrf.mxu0
    %v6784 = vadd.f32 %v5735, %v6783
    %v6785 = vpop.f32.mrf.mxu0
    %v6786 = vadd.f32 %v5737, %v6785
    %v6787 = vpop.f32.mrf.mxu0
    %v6788 = vadd.f32 %v5739, %v6787
    %6789 = vmatprep.mubr.bf16.mxu0 %v6042
    %6790 = vmatmul.mubr.bf16.gmra.mxu0 %v6041
    %v6791 = vpop.f32.mrf.mxu0
    %v6792 = vadd.f32 %v5743, %v6791
    %v6793 = vpop.f32.mrf.mxu0
    %v6794 = vadd.f32 %v5745, %v6793
    %v6795 = vpop.f32.mrf.mxu0
    %v6796 = vadd.f32 %v5747, %v6795
    %v6797 = vpop.f32.mrf.mxu0
    %v6798 = vadd.f32 %v5749, %v6797
    %6799 = vmatprep.mubr.bf16.mxu0 %v6046
    %6800 = vmatmul.mubr.bf16.gmra.mxu0 %v6045
    %v6801 = vpop.f32.mrf.mxu0
    %v6802 = vadd.f32 %v5753, %v6801
    %v6803 = vpop.f32.mrf.mxu0
    %v6804 = vadd.f32 %v5755, %v6803
    %v6805 = vpop.f32.mrf.mxu0
    %v6806 = vadd.f32 %v5757, %v6805
    %v6807 = vpop.f32.mrf.mxu0
    %v6808 = vadd.f32 %v5759, %v6807
    %6809 = vmatprep.mubr.bf16.mxu0 %v6050
    %6810 = vmatmul.mubr.bf16.gmra.mxu0 %v6049
    %v6811 = vpop.f32.mrf.mxu0
    %v6812 = vadd.f32 %v5763, %v6811
    %v6813 = vpop.f32.mrf.mxu0
    %v6814 = vadd.f32 %v5765, %v6813
    %v6815 = vpop.f32.mrf.mxu0
    %v6816 = vadd.f32 %v5767, %v6815
    %v6817 = vpop.f32.mrf.mxu0
    %v6818 = vadd.f32 %v5769, %v6817
    %6819 = vmatprep.mubr.bf16.mxu0 %v6054
    %6820 = vmatmul.mubr.bf16.gmra.mxu0 %v6053
    %v6821 = vpop.f32.mrf.mxu0
    %v6822 = vadd.f32 %v5773, %v6821
    %v6823 = vpop.f32.mrf.mxu0
    %v6824 = vadd.f32 %v5775, %v6823
    %v6825 = vpop.f32.mrf.mxu0
    %v6826 = vadd.f32 %v5777, %v6825
    %v6827 = vpop.f32.mrf.mxu0
    %v6828 = vadd.f32 %v5779, %v6827
    %6829 = vmatprep.mubr.bf16.mxu0 %v6058
    %6830 = vmatmul.mubr.bf16.gmra.mxu0 %v6057
    %v6831 = vpop.f32.mrf.mxu0
    %v6832 = vadd.f32 %v5783, %v6831
    %v6833 = vpop.f32.mrf.mxu0
    %v6834 = vadd.f32 %v5785, %v6833
    %v6835 = vpop.f32.mrf.mxu0
    %v6836 = vadd.f32 %v5787, %v6835
    %v6837 = vpop.f32.mrf.mxu0
    %v6838 = vadd.f32 %v5789, %v6837
    %6839 = vmatprep.mubr.bf16.mxu0 %v6062
    %6840 = vmatmul.mubr.bf16.gmra.mxu0 %v6061
    %v6841 = vpop.f32.mrf.mxu0
    %v6842 = vadd.f32 %v5793, %v6841
    %v6843 = vpop.f32.mrf.mxu0
    %v6844 = vadd.f32 %v5795, %v6843
    %v6845 = vpop.f32.mrf.mxu0
    %v6846 = vadd.f32 %v5797, %v6845
    %v6847 = vpop.f32.mrf.mxu0
    %v6848 = vadd.f32 %v5799, %v6847
    %6849 = vdwg.mxu0
    %6850 = vmatprep.subr.bf16.mxu0 %v6574
    %6851 = vmatpush1.bf16.msra.mxu0 %v6573
    %6852 = vmatprep.subr.bf16.mxu0 %v6570
    %6853 = vmatpush1.bf16.msra.mxu0 %v6569
    %6854 = vmatprep.subr.bf16.mxu0 %v6566
    %6855 = vmatpush1.bf16.msra.mxu0 %v6565
    %6856 = vmatprep.subr.bf16.mxu0 %v6562
    %6857 = vmatpush1.bf16.msra.mxu0 %v6561
    %6858 = vmatprep.subr.bf16.mxu0 %v6558
    %6859 = vmatpush1.bf16.msra.mxu0 %v6557
    %6860 = vmatprep.subr.bf16.mxu0 %v6554
    %6861 = vmatpush1.bf16.msra.mxu0 %v6553
    %6862 = vmatprep.subr.bf16.mxu0 %v6550
    %6863 = vmatpush1.bf16.msra.mxu0 %v6549
    %6864 = vmatprep.subr.bf16.mxu0 %v6546
    %6865 = vmatpush1.bf16.msra.mxu0 %v6545
    %6866 = vmatprep.subr.bf16.mxu0 %v6606
    %6867 = vmatpush2.bf16.msra.mxu0 %v6605
    %6868 = vmatprep.subr.bf16.mxu0 %v6602
    %6869 = vmatpush2.bf16.msra.mxu0 %v6601
    %6870 = vmatprep.subr.bf16.mxu0 %v6598
    %6871 = vmatpush2.bf16.msra.mxu0 %v6597
    %6872 = vmatprep.subr.bf16.mxu0 %v6594
    %6873 = vmatpush2.bf16.msra.mxu0 %v6593
    %6874 = vmatprep.subr.bf16.mxu0 %v6590
    %6875 = vmatpush2.bf16.msra.mxu0 %v6589
    %6876 = vmatprep.subr.bf16.mxu0 %v6586
    %6877 = vmatpush2.bf16.msra.mxu0 %v6585
    %6878 = vmatprep.subr.bf16.mxu0 %v6582
    %6879 = vmatpush2.bf16.msra.mxu0 %v6581
    %6880 = vmatprep.subr.bf16.mxu0 %v6578
    %6881 = vmatpush2.bf16.msra.mxu0 %v6577
    %6882 = vmatprep.mubr.bf16.mxu0 %v6036
    %6883 = vmatmul.mubr.bf16.gmra.mxu0 %v6035
    %v6884 = vpop.f32.mrf.mxu0
    %v6885 = vadd.f32 %v6772, %v6884
    %v6886 = vpop.f32.mrf.mxu0
    %v6887 = vadd.f32 %v6774, %v6886
    %v6888 = vpop.f32.mrf.mxu0
    %v6889 = vadd.f32 %v6776, %v6888
    %v6890 = vpop.f32.mrf.mxu0
    %v6891 = vadd.f32 %v6778, %v6890
    %6892 = vmatprep.mubr.bf16.mxu0 %v6040
    %6893 = vmatmul.mubr.bf16.gmra.mxu0 %v6039
    %v6894 = vpop.f32.mrf.mxu0
    %v6895 = vadd.f32 %v6782, %v6894
    %v6896 = vpop.f32.mrf.mxu0
    %v6897 = vadd.f32 %v6784, %v6896
    %v6898 = vpop.f32.mrf.mxu0
    %v6899 = vadd.f32 %v6786, %v6898
    %v6900 = vpop.f32.mrf.mxu0
    %v6901 = vadd.f32 %v6788, %v6900
    %6902 = vmatprep.mubr.bf16.mxu0 %v6044
    %6903 = vmatmul.mubr.bf16.gmra.mxu0 %v6043
    %v6904 = vpop.f32.mrf.mxu0
    %v6905 = vadd.f32 %v6792, %v6904
    %v6906 = vpop.f32.mrf.mxu0
    %v6907 = vadd.f32 %v6794, %v6906
    %v6908 = vpop.f32.mrf.mxu0
    %v6909 = vadd.f32 %v6796, %v6908
    %v6910 = vpop.f32.mrf.mxu0
    %v6911 = vadd.f32 %v6798, %v6910
    %6912 = vmatprep.mubr.bf16.mxu0 %v6048
    %6913 = vmatmul.mubr.bf16.gmra.mxu0 %v6047
    %v6914 = vpop.f32.mrf.mxu0
    %v6915 = vadd.f32 %v6802, %v6914
    %v6916 = vpop.f32.mrf.mxu0
    %v6917 = vadd.f32 %v6804, %v6916
    %v6918 = vpop.f32.mrf.mxu0
    %v6919 = vadd.f32 %v6806, %v6918
    %v6920 = vpop.f32.mrf.mxu0
    %v6921 = vadd.f32 %v6808, %v6920
    %6922 = vmatprep.mubr.bf16.mxu0 %v6052
    %6923 = vmatmul.mubr.bf16.gmra.mxu0 %v6051
    %v6924 = vpop.f32.mrf.mxu0
    %v6925 = vadd.f32 %v6812, %v6924
    %v6926 = vpop.f32.mrf.mxu0
    %v6927 = vadd.f32 %v6814, %v6926
    %v6928 = vpop.f32.mrf.mxu0
    %v6929 = vadd.f32 %v6816, %v6928
    %v6930 = vpop.f32.mrf.mxu0
    %v6931 = vadd.f32 %v6818, %v6930
    %6932 = vmatprep.mubr.bf16.mxu0 %v6056
    %6933 = vmatmul.mubr.bf16.gmra.mxu0 %v6055
    %v6934 = vpop.f32.mrf.mxu0
    %v6935 = vadd.f32 %v6822, %v6934
    %v6936 = vpop.f32.mrf.mxu0
    %v6937 = vadd.f32 %v6824, %v6936
    %v6938 = vpop.f32.mrf.mxu0
    %v6939 = vadd.f32 %v6826, %v6938
    %v6940 = vpop.f32.mrf.mxu0
    %v6941 = vadd.f32 %v6828, %v6940
    %6942 = vmatprep.mubr.bf16.mxu0 %v6060
    %6943 = vmatmul.mubr.bf16.gmra.mxu0 %v6059
    %v6944 = vpop.f32.mrf.mxu0
    %v6945 = vadd.f32 %v6832, %v6944
    %v6946 = vpop.f32.mrf.mxu0
    %v6947 = vadd.f32 %v6834, %v6946
    %v6948 = vpop.f32.mrf.mxu0
    %v6949 = vadd.f32 %v6836, %v6948
    %v6950 = vpop.f32.mrf.mxu0
    %v6951 = vadd.f32 %v6838, %v6950
    %6952 = vmatprep.mubr.bf16.mxu0 %v6064
    %6953 = vmatmul.mubr.bf16.gmra.mxu0 %v6063
    %v6954 = vpop.f32.mrf.mxu0
    %v6955 = vadd.f32 %v6842, %v6954
    %v6956 = vpop.f32.mrf.mxu0
    %v6957 = vadd.f32 %v6844, %v6956
    %v6958 = vpop.f32.mrf.mxu0
    %v6959 = vadd.f32 %v6846, %v6958
    %v6960 = vpop.f32.mrf.mxu0
    %v6961 = vadd.f32 %v6848, %v6960
    %6962 = vdwg.mxu0
    %6963 = vmatprep.subr.bf16.mxu0 %v6512
    %6964 = vmatpush1.bf16.msra.mxu0 %v6511
    %6965 = vmatprep.subr.bf16.mxu0 %v6508
    %6966 = vmatpush1.bf16.msra.mxu0 %v6507
    %6967 = vmatprep.subr.bf16.mxu0 %v6504
    %6968 = vmatpush1.bf16.msra.mxu0 %v6503
    %6969 = vmatprep.subr.bf16.mxu0 %v6500
    %6970 = vmatpush1.bf16.msra.mxu0 %v6499
    %6971 = vmatprep.subr.bf16.mxu0 %v6496
    %6972 = vmatpush1.bf16.msra.mxu0 %v6495
    %6973 = vmatprep.subr.bf16.mxu0 %v6492
    %6974 = vmatpush1.bf16.msra.mxu0 %v6491
    %6975 = vmatprep.subr.bf16.mxu0 %v6488
    %6976 = vmatpush1.bf16.msra.mxu0 %v6487
    %6977 = vmatprep.subr.bf16.mxu0 %v6484
    %6978 = vmatpush1.bf16.msra.mxu0 %v6483
    %6979 = vmatprep.subr.bf16.mxu0 %v6544
    %6980 = vmatpush2.bf16.msra.mxu0 %v6543
    %6981 = vmatprep.subr.bf16.mxu0 %v6540
    %6982 = vmatpush2.bf16.msra.mxu0 %v6539
    %6983 = vmatprep.subr.bf16.mxu0 %v6536
    %6984 = vmatpush2.bf16.msra.mxu0 %v6535
    %6985 = vmatprep.subr.bf16.mxu0 %v6532
    %6986 = vmatpush2.bf16.msra.mxu0 %v6531
    %6987 = vmatprep.subr.bf16.mxu0 %v6528
    %6988 = vmatpush2.bf16.msra.mxu0 %v6527
    %6989 = vmatprep.subr.bf16.mxu0 %v6524
    %6990 = vmatpush2.bf16.msra.mxu0 %v6523
    %6991 = vmatprep.subr.bf16.mxu0 %v6520
    %6992 = vmatpush2.bf16.msra.mxu0 %v6519
    %6993 = vmatprep.subr.bf16.mxu0 %v6516
    %6994 = vmatpush2.bf16.msra.mxu0 %v6515
    %6995 = vmatprep.mubr.bf16.mxu0 %v6034
    %6996 = vmatmul.mubr.bf16.gmra.mxu0 %v6033
    %v6997 = vpop.f32.mrf.mxu0
    %v6998 = vadd.f32 %v5949, %v6997
    %v6999 = vpop.f32.mrf.mxu0
    %v7000 = vadd.f32 %v5951, %v6999
    %v7001 = vpop.f32.mrf.mxu0
    %v7002 = vadd.f32 %v5953, %v7001
    %v7003 = vpop.f32.mrf.mxu0
    %v7004 = vadd.f32 %v5955, %v7003
    %7005 = vmatprep.mubr.bf16.mxu0 %v6038
    %7006 = vmatmul.mubr.bf16.gmra.mxu0 %v6037
    %v7007 = vpop.f32.mrf.mxu0
    %v7008 = vadd.f32 %v5959, %v7007
    %v7009 = vpop.f32.mrf.mxu0
    %v7010 = vadd.f32 %v5961, %v7009
    %v7011 = vpop.f32.mrf.mxu0
    %v7012 = vadd.f32 %v5963, %v7011
    %v7013 = vpop.f32.mrf.mxu0
    %v7014 = vadd.f32 %v5965, %v7013
    %7015 = vmatprep.mubr.bf16.mxu0 %v6042
    %7016 = vmatmul.mubr.bf16.gmra.mxu0 %v6041
    %v7017 = vpop.f32.mrf.mxu0
    %v7018 = vadd.f32 %v5969, %v7017
    %v7019 = vpop.f32.mrf.mxu0
    %v7020 = vadd.f32 %v5971, %v7019
    %v7021 = vpop.f32.mrf.mxu0
    %v7022 = vadd.f32 %v5973, %v7021
    %v7023 = vpop.f32.mrf.mxu0
    %v7024 = vadd.f32 %v5975, %v7023
    %7025 = vmatprep.mubr.bf16.mxu0 %v6046
    %7026 = vmatmul.mubr.bf16.gmra.mxu0 %v6045
    %v7027 = vpop.f32.mrf.mxu0
    %v7028 = vadd.f32 %v5979, %v7027
    %v7029 = vpop.f32.mrf.mxu0
    %v7030 = vadd.f32 %v5981, %v7029
    %v7031 = vpop.f32.mrf.mxu0
    %v7032 = vadd.f32 %v5983, %v7031
    %v7033 = vpop.f32.mrf.mxu0
    %v7034 = vadd.f32 %v5985, %v7033
    %7035 = vmatprep.mubr.bf16.mxu0 %v6050
    %7036 = vmatmul.mubr.bf16.gmra.mxu0 %v6049
    %v7037 = vpop.f32.mrf.mxu0
    %v7038 = vadd.f32 %v5989, %v7037
    %v7039 = vpop.f32.mrf.mxu0
    %v7040 = vadd.f32 %v5991, %v7039
    %v7041 = vpop.f32.mrf.mxu0
    %v7042 = vadd.f32 %v5993, %v7041
    %v7043 = vpop.f32.mrf.mxu0
    %v7044 = vadd.f32 %v5995, %v7043
    %7045 = vmatprep.mubr.bf16.mxu0 %v6054
    %7046 = vmatmul.mubr.bf16.gmra.mxu0 %v6053
    %v7047 = vpop.f32.mrf.mxu0
    %v7048 = vadd.f32 %v5999, %v7047
    %v7049 = vpop.f32.mrf.mxu0
    %v7050 = vadd.f32 %v6001, %v7049
    %v7051 = vpop.f32.mrf.mxu0
    %v7052 = vadd.f32 %v6003, %v7051
    %v7053 = vpop.f32.mrf.mxu0
    %v7054 = vadd.f32 %v6005, %v7053
    %7055 = vmatprep.mubr.bf16.mxu0 %v6058
    %7056 = vmatmul.mubr.bf16.gmra.mxu0 %v6057
    %v7057 = vpop.f32.mrf.mxu0
    %v7058 = vadd.f32 %v6009, %v7057
    %v7059 = vpop.f32.mrf.mxu0
    %v7060 = vadd.f32 %v6011, %v7059
    %v7061 = vpop.f32.mrf.mxu0
    %v7062 = vadd.f32 %v6013, %v7061
    %v7063 = vpop.f32.mrf.mxu0
    %v7064 = vadd.f32 %v6015, %v7063
    %7065 = vmatprep.mubr.bf16.mxu0 %v6062
    %7066 = vmatmul.mubr.bf16.gmra.mxu0 %v6061
    %v7067 = vpop.f32.mrf.mxu0
    %v7068 = vadd.f32 %v6019, %v7067
    %v7069 = vpop.f32.mrf.mxu0
    %v7070 = vadd.f32 %v6021, %v7069
    %v7071 = vpop.f32.mrf.mxu0
    %v7072 = vadd.f32 %v6023, %v7071
    %v7073 = vpop.f32.mrf.mxu0
    %v7074 = vadd.f32 %v6025, %v7073
    %7075 = vdwg.mxu0
    %7076 = vmatprep.subr.bf16.mxu0 %v6576
    %7077 = vmatpush1.bf16.msra.mxu0 %v6575
    %7078 = vmatprep.subr.bf16.mxu0 %v6572
    %7079 = vmatpush1.bf16.msra.mxu0 %v6571
    %7080 = vmatprep.subr.bf16.mxu0 %v6568
    %7081 = vmatpush1.bf16.msra.mxu0 %v6567
    %7082 = vmatprep.subr.bf16.mxu0 %v6564
    %7083 = vmatpush1.bf16.msra.mxu0 %v6563
    %7084 = vmatprep.subr.bf16.mxu0 %v6560
    %7085 = vmatpush1.bf16.msra.mxu0 %v6559
    %7086 = vmatprep.subr.bf16.mxu0 %v6556
    %7087 = vmatpush1.bf16.msra.mxu0 %v6555
    %7088 = vmatprep.subr.bf16.mxu0 %v6552
    %7089 = vmatpush1.bf16.msra.mxu0 %v6551
    %7090 = vmatprep.subr.bf16.mxu0 %v6548
    %7091 = vmatpush1.bf16.msra.mxu0 %v6547
    %7092 = vmatprep.subr.bf16.mxu0 %v6608
    %7093 = vmatpush2.bf16.msra.mxu0 %v6607
    %7094 = vmatprep.subr.bf16.mxu0 %v6604
    %7095 = vmatpush2.bf16.msra.mxu0 %v6603
    %7096 = vmatprep.subr.bf16.mxu0 %v6600
    %7097 = vmatpush2.bf16.msra.mxu0 %v6599
    %7098 = vmatprep.subr.bf16.mxu0 %v6596
    %7099 = vmatpush2.bf16.msra.mxu0 %v6595
    %7100 = vmatprep.subr.bf16.mxu0 %v6592
    %7101 = vmatpush2.bf16.msra.mxu0 %v6591
    %7102 = vmatprep.subr.bf16.mxu0 %v6588
    %7103 = vmatpush2.bf16.msra.mxu0 %v6587
    %7104 = vmatprep.subr.bf16.mxu0 %v6584
    %7105 = vmatpush2.bf16.msra.mxu0 %v6583
    %7106 = vmatprep.subr.bf16.mxu0 %v6580
    %7107 = vmatpush2.bf16.msra.mxu0 %v6579
    %7108 = vmatprep.mubr.bf16.mxu0 %v6036
    %7109 = vmatmul.mubr.bf16.gmra.mxu0 %v6035
    %v7110 = vpop.f32.mrf.mxu0
    %v7111 = vadd.f32 %v6998, %v7110
    %v7112 = vpop.f32.mrf.mxu0
    %v7113 = vadd.f32 %v7000, %v7112
    %v7114 = vpop.f32.mrf.mxu0
    %v7115 = vadd.f32 %v7002, %v7114
    %v7116 = vpop.f32.mrf.mxu0
    %v7117 = vadd.f32 %v7004, %v7116
    %7118 = vmatprep.mubr.bf16.mxu0 %v6040
    %7119 = vmatmul.mubr.bf16.gmra.mxu0 %v6039
    %v7120 = vpop.f32.mrf.mxu0
    %v7121 = vadd.f32 %v7008, %v7120
    %v7122 = vpop.f32.mrf.mxu0
    %v7123 = vadd.f32 %v7010, %v7122
    %v7124 = vpop.f32.mrf.mxu0
    %v7125 = vadd.f32 %v7012, %v7124
    %v7126 = vpop.f32.mrf.mxu0
    %v7127 = vadd.f32 %v7014, %v7126
    %7128 = vmatprep.mubr.bf16.mxu0 %v6044
    %7129 = vmatmul.mubr.bf16.gmra.mxu0 %v6043
    %v7130 = vpop.f32.mrf.mxu0
    %v7131 = vadd.f32 %v7018, %v7130
    %v7132 = vpop.f32.mrf.mxu0
    %v7133 = vadd.f32 %v7020, %v7132
    %v7134 = vpop.f32.mrf.mxu0
    %v7135 = vadd.f32 %v7022, %v7134
    %v7136 = vpop.f32.mrf.mxu0
    %v7137 = vadd.f32 %v7024, %v7136
    %7138 = vmatprep.mubr.bf16.mxu0 %v6048
    %7139 = vmatmul.mubr.bf16.gmra.mxu0 %v6047
    %v7140 = vpop.f32.mrf.mxu0
    %v7141 = vadd.f32 %v7028, %v7140
    %v7142 = vpop.f32.mrf.mxu0
    %v7143 = vadd.f32 %v7030, %v7142
    %v7144 = vpop.f32.mrf.mxu0
    %v7145 = vadd.f32 %v7032, %v7144
    %v7146 = vpop.f32.mrf.mxu0
    %v7147 = vadd.f32 %v7034, %v7146
    %7148 = vmatprep.mubr.bf16.mxu0 %v6052
    %7149 = vmatmul.mubr.bf16.gmra.mxu0 %v6051
    %v7150 = vpop.f32.mrf.mxu0
    %v7151 = vadd.f32 %v7038, %v7150
    %v7152 = vpop.f32.mrf.mxu0
    %v7153 = vadd.f32 %v7040, %v7152
    %v7154 = vpop.f32.mrf.mxu0
    %v7155 = vadd.f32 %v7042, %v7154
    %v7156 = vpop.f32.mrf.mxu0
    %v7157 = vadd.f32 %v7044, %v7156
    %7158 = vmatprep.mubr.bf16.mxu0 %v6056
    %7159 = vmatmul.mubr.bf16.gmra.mxu0 %v6055
    %v7160 = vpop.f32.mrf.mxu0
    %v7161 = vadd.f32 %v7048, %v7160
    %v7162 = vpop.f32.mrf.mxu0
    %v7163 = vadd.f32 %v7050, %v7162
    %v7164 = vpop.f32.mrf.mxu0
    %v7165 = vadd.f32 %v7052, %v7164
    %v7166 = vpop.f32.mrf.mxu0
    %v7167 = vadd.f32 %v7054, %v7166
    %7168 = vmatprep.mubr.bf16.mxu0 %v6060
    %7169 = vmatmul.mubr.bf16.gmra.mxu0 %v6059
    %v7170 = vpop.f32.mrf.mxu0
    %v7171 = vadd.f32 %v7058, %v7170
    %v7172 = vpop.f32.mrf.mxu0
    %v7173 = vadd.f32 %v7060, %v7172
    %v7174 = vpop.f32.mrf.mxu0
    %v7175 = vadd.f32 %v7062, %v7174
    %v7176 = vpop.f32.mrf.mxu0
    %v7177 = vadd.f32 %v7064, %v7176
    %7178 = vmatprep.mubr.bf16.mxu0 %v6064
    %7179 = vmatmul.mubr.bf16.gmra.mxu0 %v6063
    %v7180 = vpop.f32.mrf.mxu0
    %v7181 = vadd.f32 %v7068, %v7180
    %v7182 = vpop.f32.mrf.mxu0
    %v7183 = vadd.f32 %v7070, %v7182
    %v7184 = vpop.f32.mrf.mxu0
    %v7185 = vadd.f32 %v7072, %v7184
    %v7186 = vpop.f32.mrf.mxu0
    %v7187 = vadd.f32 %v7074, %v7186
    %7188 = vdwg.mxu0
    %s7189 = scalar_lea.vmem [#allocation9], 2048
    %v7190 = vld [vmem:[%s7189] sm:$0xff]
    %v7191 = vld [vmem:[%s7189 + $0x8] sm:$0xff]
    %v7192 = vld [vmem:[%s7189 + $0x10] sm:$0xff]
    %v7193 = vld [vmem:[%s7189 + $0x18] sm:$0xff]
    %v7194 = vld [vmem:[%s7189 + $0x20] sm:$0xff]
    %v7195 = vld [vmem:[%s7189 + $0x28] sm:$0xff]
    %v7196 = vld [vmem:[%s7189 + $0x30] sm:$0xff]
    %v7197 = vld [vmem:[%s7189 + $0x38] sm:$0xff]
    %v7198 = vld [vmem:[%s7189 + $0x40] sm:$0xff]
    %v7199 = vld [vmem:[%s7189 + $0x48] sm:$0xff]
    %v7200 = vld [vmem:[%s7189 + $0x50] sm:$0xff]
    %v7201 = vld [vmem:[%s7189 + $0x58] sm:$0xff]
    %v7202 = vld [vmem:[%s7189 + $0x60] sm:$0xff]
    %v7203 = vld [vmem:[%s7189 + $0x68] sm:$0xff]
    %v7204 = vld [vmem:[%s7189 + $0x70] sm:$0xff]
    %v7205 = vld [vmem:[%s7189 + $0x78] sm:$0xff]
    %v7206 = vld [vmem:[%s7189 + $0x80] sm:$0xff]
    %v7207 = vld [vmem:[%s7189 + $0x88] sm:$0xff]
    %v7208 = vld [vmem:[%s7189 + $0x90] sm:$0xff]
    %v7209 = vld [vmem:[%s7189 + $0x98] sm:$0xff]
    %v7210 = vld [vmem:[%s7189 + $0xa0] sm:$0xff]
    %v7211 = vld [vmem:[%s7189 + $0xa8] sm:$0xff]
    %v7212 = vld [vmem:[%s7189 + $0xb0] sm:$0xff]
    %v7213 = vld [vmem:[%s7189 + $0xb8] sm:$0xff]
    %v7214 = vld [vmem:[%s7189 + $0xc0] sm:$0xff]
    %v7215 = vld [vmem:[%s7189 + $0xc8] sm:$0xff]
    %v7216 = vld [vmem:[%s7189 + $0xd0] sm:$0xff]
    %v7217 = vld [vmem:[%s7189 + $0xd8] sm:$0xff]
    %v7218 = vld [vmem:[%s7189 + $0xe0] sm:$0xff]
    %v7219 = vld [vmem:[%s7189 + $0xe8] sm:$0xff]
    %v7220 = vld [vmem:[%s7189 + $0xf0] sm:$0xff]
    %v7221 = vld [vmem:[%s7189 + $0xf8] sm:$0xff]
    %v7222 = vld [vmem:[%s7189 + $0x100] sm:$0xff]
    %v7223 = vld [vmem:[%s7189 + $0x108] sm:$0xff]
    %v7224 = vld [vmem:[%s7189 + $0x110] sm:$0xff]
    %v7225 = vld [vmem:[%s7189 + $0x118] sm:$0xff]
    %v7226 = vld [vmem:[%s7189 + $0x120] sm:$0xff]
    %v7227 = vld [vmem:[%s7189 + $0x128] sm:$0xff]
    %v7228 = vld [vmem:[%s7189 + $0x130] sm:$0xff]
    %v7229 = vld [vmem:[%s7189 + $0x138] sm:$0xff]
    %v7230 = vld [vmem:[%s7189 + $0x140] sm:$0xff]
    %v7231 = vld [vmem:[%s7189 + $0x148] sm:$0xff]
    %v7232 = vld [vmem:[%s7189 + $0x150] sm:$0xff]
    %v7233 = vld [vmem:[%s7189 + $0x158] sm:$0xff]
    %v7234 = vld [vmem:[%s7189 + $0x160] sm:$0xff]
    %v7235 = vld [vmem:[%s7189 + $0x168] sm:$0xff]
    %v7236 = vld [vmem:[%s7189 + $0x170] sm:$0xff]
    %v7237 = vld [vmem:[%s7189 + $0x178] sm:$0xff]
    %v7238 = vld [vmem:[%s7189 + $0x180] sm:$0xff]
    %v7239 = vld [vmem:[%s7189 + $0x188] sm:$0xff]
    %v7240 = vld [vmem:[%s7189 + $0x190] sm:$0xff]
    %v7241 = vld [vmem:[%s7189 + $0x198] sm:$0xff]
    %v7242 = vld [vmem:[%s7189 + $0x1a0] sm:$0xff]
    %v7243 = vld [vmem:[%s7189 + $0x1a8] sm:$0xff]
    %v7244 = vld [vmem:[%s7189 + $0x1b0] sm:$0xff]
    %v7245 = vld [vmem:[%s7189 + $0x1b8] sm:$0xff]
    %v7246 = vld [vmem:[%s7189 + $0x1c0] sm:$0xff]
    %v7247 = vld [vmem:[%s7189 + $0x1c8] sm:$0xff]
    %v7248 = vld [vmem:[%s7189 + $0x1d0] sm:$0xff]
    %v7249 = vld [vmem:[%s7189 + $0x1d8] sm:$0xff]
    %v7250 = vld [vmem:[%s7189 + $0x1e0] sm:$0xff]
    %v7251 = vld [vmem:[%s7189 + $0x1e8] sm:$0xff]
    %v7252 = vld [vmem:[%s7189 + $0x1f0] sm:$0xff]
    %v7253 = vld [vmem:[%s7189 + $0x1f8] sm:$0xff]
    %v7254 = vld [vmem:[%s7189 + $0x200] sm:$0xff]
    %v7255 = vld [vmem:[%s7189 + $0x208] sm:$0xff]
    %v7256 = vld [vmem:[%s7189 + $0x210] sm:$0xff]
    %v7257 = vld [vmem:[%s7189 + $0x218] sm:$0xff]
    %v7258 = vld [vmem:[%s7189 + $0x220] sm:$0xff]
    %v7259 = vld [vmem:[%s7189 + $0x228] sm:$0xff]
    %v7260 = vld [vmem:[%s7189 + $0x230] sm:$0xff]
    %v7261 = vld [vmem:[%s7189 + $0x238] sm:$0xff]
    %v7262 = vld [vmem:[%s7189 + $0x240] sm:$0xff]
    %v7263 = vld [vmem:[%s7189 + $0x248] sm:$0xff]
    %v7264 = vld [vmem:[%s7189 + $0x250] sm:$0xff]
    %v7265 = vld [vmem:[%s7189 + $0x258] sm:$0xff]
    %v7266 = vld [vmem:[%s7189 + $0x260] sm:$0xff]
    %v7267 = vld [vmem:[%s7189 + $0x268] sm:$0xff]
    %v7268 = vld [vmem:[%s7189 + $0x270] sm:$0xff]
    %v7269 = vld [vmem:[%s7189 + $0x278] sm:$0xff]
    %v7270 = vld [vmem:[%s7189 + $0x280] sm:$0xff]
    %v7271 = vld [vmem:[%s7189 + $0x288] sm:$0xff]
    %v7272 = vld [vmem:[%s7189 + $0x290] sm:$0xff]
    %v7273 = vld [vmem:[%s7189 + $0x298] sm:$0xff]
    %v7274 = vld [vmem:[%s7189 + $0x2a0] sm:$0xff]
    %v7275 = vld [vmem:[%s7189 + $0x2a8] sm:$0xff]
    %v7276 = vld [vmem:[%s7189 + $0x2b0] sm:$0xff]
    %v7277 = vld [vmem:[%s7189 + $0x2b8] sm:$0xff]
    %v7278 = vld [vmem:[%s7189 + $0x2c0] sm:$0xff]
    %v7279 = vld [vmem:[%s7189 + $0x2c8] sm:$0xff]
    %v7280 = vld [vmem:[%s7189 + $0x2d0] sm:$0xff]
    %v7281 = vld [vmem:[%s7189 + $0x2d8] sm:$0xff]
    %v7282 = vld [vmem:[%s7189 + $0x2e0] sm:$0xff]
    %v7283 = vld [vmem:[%s7189 + $0x2e8] sm:$0xff]
    %v7284 = vld [vmem:[%s7189 + $0x2f0] sm:$0xff]
    %v7285 = vld [vmem:[%s7189 + $0x2f8] sm:$0xff]
    %v7286 = vld [vmem:[%s7189 + $0x300] sm:$0xff]
    %v7287 = vld [vmem:[%s7189 + $0x308] sm:$0xff]
    %v7288 = vld [vmem:[%s7189 + $0x310] sm:$0xff]
    %v7289 = vld [vmem:[%s7189 + $0x318] sm:$0xff]
    %v7290 = vld [vmem:[%s7189 + $0x320] sm:$0xff]
    %v7291 = vld [vmem:[%s7189 + $0x328] sm:$0xff]
    %v7292 = vld [vmem:[%s7189 + $0x330] sm:$0xff]
    %v7293 = vld [vmem:[%s7189 + $0x338] sm:$0xff]
    %v7294 = vld [vmem:[%s7189 + $0x340] sm:$0xff]
    %v7295 = vld [vmem:[%s7189 + $0x348] sm:$0xff]
    %v7296 = vld [vmem:[%s7189 + $0x350] sm:$0xff]
    %v7297 = vld [vmem:[%s7189 + $0x358] sm:$0xff]
    %v7298 = vld [vmem:[%s7189 + $0x360] sm:$0xff]
    %v7299 = vld [vmem:[%s7189 + $0x368] sm:$0xff]
    %v7300 = vld [vmem:[%s7189 + $0x370] sm:$0xff]
    %v7301 = vld [vmem:[%s7189 + $0x378] sm:$0xff]
    %v7302 = vld [vmem:[%s7189 + $0x380] sm:$0xff]
    %v7303 = vld [vmem:[%s7189 + $0x388] sm:$0xff]
    %v7304 = vld [vmem:[%s7189 + $0x390] sm:$0xff]
    %v7305 = vld [vmem:[%s7189 + $0x398] sm:$0xff]
    %v7306 = vld [vmem:[%s7189 + $0x3a0] sm:$0xff]
    %v7307 = vld [vmem:[%s7189 + $0x3a8] sm:$0xff]
    %v7308 = vld [vmem:[%s7189 + $0x3b0] sm:$0xff]
    %v7309 = vld [vmem:[%s7189 + $0x3b8] sm:$0xff]
    %v7310 = vld [vmem:[%s7189 + $0x3c0] sm:$0xff]
    %v7311 = vld [vmem:[%s7189 + $0x3c8] sm:$0xff]
    %v7312 = vld [vmem:[%s7189 + $0x3d0] sm:$0xff]
    %v7313 = vld [vmem:[%s7189 + $0x3d8] sm:$0xff]
    %v7314 = vld [vmem:[%s7189 + $0x3e0] sm:$0xff]
    %v7315 = vld [vmem:[%s7189 + $0x3e8] sm:$0xff]
    %v7316 = vld [vmem:[%s7189 + $0x3f0] sm:$0xff]
    %v7317 = vld [vmem:[%s7189 + $0x3f8] sm:$0xff]
    %v7320 = vunpack.c.l.b16 %v4516
    %v7321 = vunpack.c.h.b16 %v4516
    %v7322 = vunpack.c.l.b16 %v4517
    %v7323 = vunpack.c.h.b16 %v4517
    %v7324 = vpack.c.b16 %v7320, %v4867
    %v7325 = vpack.c.b16 %v7321, %v4868
    %v7326 = vpack.c.b16 %v7322, %v4869
    %v7327 = vpack.c.b16 %v7323, %v4870
    %v7460 = vunpack.c.l.b16 %v7190
    %v7461 = vunpack.c.h.b16 %v7190
    %v7462 = vunpack.c.l.b16 %v7191
    %v7463 = vunpack.c.h.b16 %v7191
    %v7464 = vunpack.c.l.b16 %v7192
    %v7465 = vunpack.c.h.b16 %v7192
    %v7466 = vunpack.c.l.b16 %v7193
    %v7467 = vunpack.c.h.b16 %v7193
    %v7468 = vunpack.c.l.b16 %v7194
    %v7469 = vunpack.c.h.b16 %v7194
    %v7470 = vunpack.c.l.b16 %v7195
    %v7471 = vunpack.c.h.b16 %v7195
    %v7472 = vunpack.c.l.b16 %v7196
    %v7473 = vunpack.c.h.b16 %v7196
    %v7474 = vunpack.c.l.b16 %v7197
    %v7475 = vunpack.c.h.b16 %v7197
    %v7476 = vunpack.c.l.b16 %v7198
    %v7477 = vunpack.c.h.b16 %v7198
    %v7478 = vunpack.c.l.b16 %v7199
    %v7479 = vunpack.c.h.b16 %v7199
    %v7480 = vunpack.c.l.b16 %v7200
    %v7481 = vunpack.c.h.b16 %v7200
    %v7482 = vunpack.c.l.b16 %v7201
    %v7483 = vunpack.c.h.b16 %v7201
    %v7484 = vunpack.c.l.b16 %v7202
    %v7485 = vunpack.c.h.b16 %v7202
    %v7486 = vunpack.c.l.b16 %v7203
    %v7487 = vunpack.c.h.b16 %v7203
    %v7488 = vunpack.c.l.b16 %v7204
    %v7489 = vunpack.c.h.b16 %v7204
    %v7490 = vunpack.c.l.b16 %v7205
    %v7491 = vunpack.c.h.b16 %v7205
    %v7492 = vunpack.c.l.b16 %v7206
    %v7493 = vunpack.c.h.b16 %v7206
    %v7494 = vunpack.c.l.b16 %v7207
    %v7495 = vunpack.c.h.b16 %v7207
    %v7496 = vunpack.c.l.b16 %v7208
    %v7497 = vunpack.c.h.b16 %v7208
    %v7498 = vunpack.c.l.b16 %v7209
    %v7499 = vunpack.c.h.b16 %v7209
    %v7500 = vunpack.c.l.b16 %v7210
    %v7501 = vunpack.c.h.b16 %v7210
    %v7502 = vunpack.c.l.b16 %v7211
    %v7503 = vunpack.c.h.b16 %v7211
    %v7504 = vunpack.c.l.b16 %v7212
    %v7505 = vunpack.c.h.b16 %v7212
    %v7506 = vunpack.c.l.b16 %v7213
    %v7507 = vunpack.c.h.b16 %v7213
    %v7508 = vunpack.c.l.b16 %v7214
    %v7509 = vunpack.c.h.b16 %v7214
    %v7510 = vunpack.c.l.b16 %v7215
    %v7511 = vunpack.c.h.b16 %v7215
    %v7512 = vunpack.c.l.b16 %v7216
    %v7513 = vunpack.c.h.b16 %v7216
    %v7514 = vunpack.c.l.b16 %v7217
    %v7515 = vunpack.c.h.b16 %v7217
    %v7516 = vunpack.c.l.b16 %v7218
    %v7517 = vunpack.c.h.b16 %v7218
    %v7518 = vunpack.c.l.b16 %v7219
    %v7519 = vunpack.c.h.b16 %v7219
    %v7520 = vunpack.c.l.b16 %v7220
    %v7521 = vunpack.c.h.b16 %v7220
    %v7522 = vunpack.c.l.b16 %v7221
    %v7523 = vunpack.c.h.b16 %v7221
    %v7524 = vunpack.c.l.b16 %v7222
    %v7525 = vunpack.c.h.b16 %v7222
    %v7526 = vunpack.c.l.b16 %v7223
    %v7527 = vunpack.c.h.b16 %v7223
    %v7528 = vunpack.c.l.b16 %v7224
    %v7529 = vunpack.c.h.b16 %v7224
    %v7530 = vunpack.c.l.b16 %v7225
    %v7531 = vunpack.c.h.b16 %v7225
    %v7532 = vunpack.c.l.b16 %v7226
    %v7533 = vunpack.c.h.b16 %v7226
    %v7534 = vunpack.c.l.b16 %v7227
    %v7535 = vunpack.c.h.b16 %v7227
    %v7536 = vunpack.c.l.b16 %v7228
    %v7537 = vunpack.c.h.b16 %v7228
    %v7538 = vunpack.c.l.b16 %v7229
    %v7539 = vunpack.c.h.b16 %v7229
    %v7540 = vunpack.c.l.b16 %v7230
    %v7541 = vunpack.c.h.b16 %v7230
    %v7542 = vunpack.c.l.b16 %v7231
    %v7543 = vunpack.c.h.b16 %v7231
    %v7544 = vunpack.c.l.b16 %v7232
    %v7545 = vunpack.c.h.b16 %v7232
    %v7546 = vunpack.c.l.b16 %v7233
    %v7547 = vunpack.c.h.b16 %v7233
    %v7548 = vunpack.c.l.b16 %v7234
    %v7549 = vunpack.c.h.b16 %v7234
    %v7550 = vunpack.c.l.b16 %v7235
    %v7551 = vunpack.c.h.b16 %v7235
    %v7552 = vunpack.c.l.b16 %v7236
    %v7553 = vunpack.c.h.b16 %v7236
    %v7554 = vunpack.c.l.b16 %v7237
    %v7555 = vunpack.c.h.b16 %v7237
    %v7556 = vunpack.c.l.b16 %v7238
    %v7557 = vunpack.c.h.b16 %v7238
    %v7558 = vunpack.c.l.b16 %v7239
    %v7559 = vunpack.c.h.b16 %v7239
    %v7560 = vunpack.c.l.b16 %v7240
    %v7561 = vunpack.c.h.b16 %v7240
    %v7562 = vunpack.c.l.b16 %v7241
    %v7563 = vunpack.c.h.b16 %v7241
    %v7564 = vunpack.c.l.b16 %v7242
    %v7565 = vunpack.c.h.b16 %v7242
    %v7566 = vunpack.c.l.b16 %v7243
    %v7567 = vunpack.c.h.b16 %v7243
    %v7568 = vunpack.c.l.b16 %v7244
    %v7569 = vunpack.c.h.b16 %v7244
    %v7570 = vunpack.c.l.b16 %v7245
    %v7571 = vunpack.c.h.b16 %v7245
    %v7572 = vunpack.c.l.b16 %v7246
    %v7573 = vunpack.c.h.b16 %v7246
    %v7574 = vunpack.c.l.b16 %v7247
    %v7575 = vunpack.c.h.b16 %v7247
    %v7576 = vunpack.c.l.b16 %v7248
    %v7577 = vunpack.c.h.b16 %v7248
    %v7578 = vunpack.c.l.b16 %v7249
    %v7579 = vunpack.c.h.b16 %v7249
    %v7580 = vunpack.c.l.b16 %v7250
    %v7581 = vunpack.c.h.b16 %v7250
    %v7582 = vunpack.c.l.b16 %v7251
    %v7583 = vunpack.c.h.b16 %v7251
    %v7584 = vunpack.c.l.b16 %v7252
    %v7585 = vunpack.c.h.b16 %v7252
    %v7586 = vunpack.c.l.b16 %v7253
    %v7587 = vunpack.c.h.b16 %v7253
    %v7588 = vunpack.c.l.b16 %v7254
    %v7589 = vunpack.c.h.b16 %v7254
    %v7590 = vunpack.c.l.b16 %v7255
    %v7591 = vunpack.c.h.b16 %v7255
    %v7592 = vunpack.c.l.b16 %v7256
    %v7593 = vunpack.c.h.b16 %v7256
    %v7594 = vunpack.c.l.b16 %v7257
    %v7595 = vunpack.c.h.b16 %v7257
    %v7596 = vunpack.c.l.b16 %v7258
    %v7597 = vunpack.c.h.b16 %v7258
    %v7598 = vunpack.c.l.b16 %v7259
    %v7599 = vunpack.c.h.b16 %v7259
    %v7600 = vunpack.c.l.b16 %v7260
    %v7601 = vunpack.c.h.b16 %v7260
    %v7602 = vunpack.c.l.b16 %v7261
    %v7603 = vunpack.c.h.b16 %v7261
    %v7604 = vunpack.c.l.b16 %v7262
    %v7605 = vunpack.c.h.b16 %v7262
    %v7606 = vunpack.c.l.b16 %v7263
    %v7607 = vunpack.c.h.b16 %v7263
    %v7608 = vunpack.c.l.b16 %v7264
    %v7609 = vunpack.c.h.b16 %v7264
    %v7610 = vunpack.c.l.b16 %v7265
    %v7611 = vunpack.c.h.b16 %v7265
    %v7612 = vunpack.c.l.b16 %v7266
    %v7613 = vunpack.c.h.b16 %v7266
    %v7614 = vunpack.c.l.b16 %v7267
    %v7615 = vunpack.c.h.b16 %v7267
    %v7616 = vunpack.c.l.b16 %v7268
    %v7617 = vunpack.c.h.b16 %v7268
    %v7618 = vunpack.c.l.b16 %v7269
    %v7619 = vunpack.c.h.b16 %v7269
    %v7620 = vunpack.c.l.b16 %v7270
    %v7621 = vunpack.c.h.b16 %v7270
    %v7622 = vunpack.c.l.b16 %v7271
    %v7623 = vunpack.c.h.b16 %v7271
    %v7624 = vunpack.c.l.b16 %v7272
    %v7625 = vunpack.c.h.b16 %v7272
    %v7626 = vunpack.c.l.b16 %v7273
    %v7627 = vunpack.c.h.b16 %v7273
    %v7628 = vunpack.c.l.b16 %v7274
    %v7629 = vunpack.c.h.b16 %v7274
    %v7630 = vunpack.c.l.b16 %v7275
    %v7631 = vunpack.c.h.b16 %v7275
    %v7632 = vunpack.c.l.b16 %v7276
    %v7633 = vunpack.c.h.b16 %v7276
    %v7634 = vunpack.c.l.b16 %v7277
    %v7635 = vunpack.c.h.b16 %v7277
    %v7636 = vunpack.c.l.b16 %v7278
    %v7637 = vunpack.c.h.b16 %v7278
    %v7638 = vunpack.c.l.b16 %v7279
    %v7639 = vunpack.c.h.b16 %v7279
    %v7640 = vunpack.c.l.b16 %v7280
    %v7641 = vunpack.c.h.b16 %v7280
    %v7642 = vunpack.c.l.b16 %v7281
    %v7643 = vunpack.c.h.b16 %v7281
    %v7644 = vunpack.c.l.b16 %v7282
    %v7645 = vunpack.c.h.b16 %v7282
    %v7646 = vunpack.c.l.b16 %v7283
    %v7647 = vunpack.c.h.b16 %v7283
    %v7648 = vunpack.c.l.b16 %v7284
    %v7649 = vunpack.c.h.b16 %v7284
    %v7650 = vunpack.c.l.b16 %v7285
    %v7651 = vunpack.c.h.b16 %v7285
    %v7652 = vunpack.c.l.b16 %v7286
    %v7653 = vunpack.c.h.b16 %v7286
    %v7654 = vunpack.c.l.b16 %v7287
    %v7655 = vunpack.c.h.b16 %v7287
    %v7656 = vunpack.c.l.b16 %v7288
    %v7657 = vunpack.c.h.b16 %v7288
    %v7658 = vunpack.c.l.b16 %v7289
    %v7659 = vunpack.c.h.b16 %v7289
    %v7660 = vunpack.c.l.b16 %v7290
    %v7661 = vunpack.c.h.b16 %v7290
    %v7662 = vunpack.c.l.b16 %v7291
    %v7663 = vunpack.c.h.b16 %v7291
    %v7664 = vunpack.c.l.b16 %v7292
    %v7665 = vunpack.c.h.b16 %v7292
    %v7666 = vunpack.c.l.b16 %v7293
    %v7667 = vunpack.c.h.b16 %v7293
    %v7668 = vunpack.c.l.b16 %v7294
    %v7669 = vunpack.c.h.b16 %v7294
    %v7670 = vunpack.c.l.b16 %v7295
    %v7671 = vunpack.c.h.b16 %v7295
    %v7672 = vunpack.c.l.b16 %v7296
    %v7673 = vunpack.c.h.b16 %v7296
    %v7674 = vunpack.c.l.b16 %v7297
    %v7675 = vunpack.c.h.b16 %v7297
    %v7676 = vunpack.c.l.b16 %v7298
    %v7677 = vunpack.c.h.b16 %v7298
    %v7678 = vunpack.c.l.b16 %v7299
    %v7679 = vunpack.c.h.b16 %v7299
    %v7680 = vunpack.c.l.b16 %v7300
    %v7681 = vunpack.c.h.b16 %v7300
    %v7682 = vunpack.c.l.b16 %v7301
    %v7683 = vunpack.c.h.b16 %v7301
    %v7684 = vunpack.c.l.b16 %v7302
    %v7685 = vunpack.c.h.b16 %v7302
    %v7686 = vunpack.c.l.b16 %v7303
    %v7687 = vunpack.c.h.b16 %v7303
    %v7688 = vunpack.c.l.b16 %v7304
    %v7689 = vunpack.c.h.b16 %v7304
    %v7690 = vunpack.c.l.b16 %v7305
    %v7691 = vunpack.c.h.b16 %v7305
    %v7692 = vunpack.c.l.b16 %v7306
    %v7693 = vunpack.c.h.b16 %v7306
    %v7694 = vunpack.c.l.b16 %v7307
    %v7695 = vunpack.c.h.b16 %v7307
    %v7696 = vunpack.c.l.b16 %v7308
    %v7697 = vunpack.c.h.b16 %v7308
    %v7698 = vunpack.c.l.b16 %v7309
    %v7699 = vunpack.c.h.b16 %v7309
    %v7700 = vunpack.c.l.b16 %v7310
    %v7701 = vunpack.c.h.b16 %v7310
    %v7702 = vunpack.c.l.b16 %v7311
    %v7703 = vunpack.c.h.b16 %v7311
    %v7704 = vunpack.c.l.b16 %v7312
    %v7705 = vunpack.c.h.b16 %v7312
    %v7706 = vunpack.c.l.b16 %v7313
    %v7707 = vunpack.c.h.b16 %v7313
    %v7708 = vunpack.c.l.b16 %v7314
    %v7709 = vunpack.c.h.b16 %v7314
    %v7710 = vunpack.c.l.b16 %v7315
    %v7711 = vunpack.c.h.b16 %v7315
    %v7712 = vunpack.c.l.b16 %v7316
    %v7713 = vunpack.c.h.b16 %v7316
    %v7714 = vunpack.c.l.b16 %v7317
    %v7715 = vunpack.c.h.b16 %v7317
    %v7716 = vpack.c.b16 %v7464, %v7460
    %v7717 = vpack.c.b16 %v7465, %v7461
    %v7718 = vpack.c.b16 %v7466, %v7462
    %v7719 = vpack.c.b16 %v7467, %v7463
    %v7720 = vpack.c.b16 %v7472, %v7468
    %v7721 = vpack.c.b16 %v7473, %v7469
    %v7722 = vpack.c.b16 %v7474, %v7470
    %v7723 = vpack.c.b16 %v7475, %v7471
    %v7724 = vpack.c.b16 %v7480, %v7476
    %v7725 = vpack.c.b16 %v7481, %v7477
    %v7726 = vpack.c.b16 %v7482, %v7478
    %v7727 = vpack.c.b16 %v7483, %v7479
    %v7728 = vpack.c.b16 %v7488, %v7484
    %v7729 = vpack.c.b16 %v7489, %v7485
    %v7730 = vpack.c.b16 %v7490, %v7486
    %v7731 = vpack.c.b16 %v7491, %v7487
    %v7732 = vpack.c.b16 %v7496, %v7492
    %v7733 = vpack.c.b16 %v7497, %v7493
    %v7734 = vpack.c.b16 %v7498, %v7494
    %v7735 = vpack.c.b16 %v7499, %v7495
    %v7736 = vpack.c.b16 %v7504, %v7500
    %v7737 = vpack.c.b16 %v7505, %v7501
    %v7738 = vpack.c.b16 %v7506, %v7502
    %v7739 = vpack.c.b16 %v7507, %v7503
    %v7740 = vpack.c.b16 %v7512, %v7508
    %v7741 = vpack.c.b16 %v7513, %v7509
    %v7742 = vpack.c.b16 %v7514, %v7510
    %v7743 = vpack.c.b16 %v7515, %v7511
    %v7744 = vpack.c.b16 %v7520, %v7516
    %v7745 = vpack.c.b16 %v7521, %v7517
    %v7746 = vpack.c.b16 %v7522, %v7518
    %v7747 = vpack.c.b16 %v7523, %v7519
    %v7748 = vpack.c.b16 %v7528, %v7524
    %v7749 = vpack.c.b16 %v7529, %v7525
    %v7750 = vpack.c.b16 %v7530, %v7526
    %v7751 = vpack.c.b16 %v7531, %v7527
    %v7752 = vpack.c.b16 %v7536, %v7532
    %v7753 = vpack.c.b16 %v7537, %v7533
    %v7754 = vpack.c.b16 %v7538, %v7534
    %v7755 = vpack.c.b16 %v7539, %v7535
    %v7756 = vpack.c.b16 %v7544, %v7540
    %v7757 = vpack.c.b16 %v7545, %v7541
    %v7758 = vpack.c.b16 %v7546, %v7542
    %v7759 = vpack.c.b16 %v7547, %v7543
    %v7760 = vpack.c.b16 %v7552, %v7548
    %v7761 = vpack.c.b16 %v7553, %v7549
    %v7762 = vpack.c.b16 %v7554, %v7550
    %v7763 = vpack.c.b16 %v7555, %v7551
    %v7764 = vpack.c.b16 %v7560, %v7556
    %v7765 = vpack.c.b16 %v7561, %v7557
    %v7766 = vpack.c.b16 %v7562, %v7558
    %v7767 = vpack.c.b16 %v7563, %v7559
    %v7768 = vpack.c.b16 %v7568, %v7564
    %v7769 = vpack.c.b16 %v7569, %v7565
    %v7770 = vpack.c.b16 %v7570, %v7566
    %v7771 = vpack.c.b16 %v7571, %v7567
    %v7772 = vpack.c.b16 %v7576, %v7572
    %v7773 = vpack.c.b16 %v7577, %v7573
    %v7774 = vpack.c.b16 %v7578, %v7574
    %v7775 = vpack.c.b16 %v7579, %v7575
    %v7776 = vpack.c.b16 %v7584, %v7580
    %v7777 = vpack.c.b16 %v7585, %v7581
    %v7778 = vpack.c.b16 %v7586, %v7582
    %v7779 = vpack.c.b16 %v7587, %v7583
    %v7780 = vpack.c.b16 %v7592, %v7588
    %v7781 = vpack.c.b16 %v7593, %v7589
    %v7782 = vpack.c.b16 %v7594, %v7590
    %v7783 = vpack.c.b16 %v7595, %v7591
    %v7784 = vpack.c.b16 %v7600, %v7596
    %v7785 = vpack.c.b16 %v7601, %v7597
    %v7786 = vpack.c.b16 %v7602, %v7598
    %v7787 = vpack.c.b16 %v7603, %v7599
    %v7788 = vpack.c.b16 %v7608, %v7604
    %v7789 = vpack.c.b16 %v7609, %v7605
    %v7790 = vpack.c.b16 %v7610, %v7606
    %v7791 = vpack.c.b16 %v7611, %v7607
    %v7792 = vpack.c.b16 %v7616, %v7612
    %v7793 = vpack.c.b16 %v7617, %v7613
    %v7794 = vpack.c.b16 %v7618, %v7614
    %v7795 = vpack.c.b16 %v7619, %v7615
    %v7796 = vpack.c.b16 %v7624, %v7620
    %v7797 = vpack.c.b16 %v7625, %v7621
    %v7798 = vpack.c.b16 %v7626, %v7622
    %v7799 = vpack.c.b16 %v7627, %v7623
    %v7800 = vpack.c.b16 %v7632, %v7628
    %v7801 = vpack.c.b16 %v7633, %v7629
    %v7802 = vpack.c.b16 %v7634, %v7630
    %v7803 = vpack.c.b16 %v7635, %v7631
    %v7804 = vpack.c.b16 %v7640, %v7636
    %v7805 = vpack.c.b16 %v7641, %v7637
    %v7806 = vpack.c.b16 %v7642, %v7638
    %v7807 = vpack.c.b16 %v7643, %v7639
    %v7808 = vpack.c.b16 %v7648, %v7644
    %v7809 = vpack.c.b16 %v7649, %v7645
    %v7810 = vpack.c.b16 %v7650, %v7646
    %v7811 = vpack.c.b16 %v7651, %v7647
    %v7812 = vpack.c.b16 %v7656, %v7652
    %v7813 = vpack.c.b16 %v7657, %v7653
    %v7814 = vpack.c.b16 %v7658, %v7654
    %v7815 = vpack.c.b16 %v7659, %v7655
    %v7816 = vpack.c.b16 %v7664, %v7660
    %v7817 = vpack.c.b16 %v7665, %v7661
    %v7818 = vpack.c.b16 %v7666, %v7662
    %v7819 = vpack.c.b16 %v7667, %v7663
    %v7820 = vpack.c.b16 %v7672, %v7668
    %v7821 = vpack.c.b16 %v7673, %v7669
    %v7822 = vpack.c.b16 %v7674, %v7670
    %v7823 = vpack.c.b16 %v7675, %v7671
    %v7824 = vpack.c.b16 %v7680, %v7676
    %v7825 = vpack.c.b16 %v7681, %v7677
    %v7826 = vpack.c.b16 %v7682, %v7678
    %v7827 = vpack.c.b16 %v7683, %v7679
    %v7828 = vpack.c.b16 %v7688, %v7684
    %v7829 = vpack.c.b16 %v7689, %v7685
    %v7830 = vpack.c.b16 %v7690, %v7686
    %v7831 = vpack.c.b16 %v7691, %v7687
    %v7832 = vpack.c.b16 %v7696, %v7692
    %v7833 = vpack.c.b16 %v7697, %v7693
    %v7834 = vpack.c.b16 %v7698, %v7694
    %v7835 = vpack.c.b16 %v7699, %v7695
    %v7836 = vpack.c.b16 %v7704, %v7700
    %v7837 = vpack.c.b16 %v7705, %v7701
    %v7838 = vpack.c.b16 %v7706, %v7702
    %v7839 = vpack.c.b16 %v7707, %v7703
    %v7840 = vpack.c.b16 %v7712, %v7708
    %v7841 = vpack.c.b16 %v7713, %v7709
    %v7842 = vpack.c.b16 %v7714, %v7710
    %v7843 = vpack.c.b16 %v7715, %v7711
    %7972 = vmatprep.subr.bf16.mxu0 %v7745
    %7973 = vmatpush1.bf16.msra.mxu0 %v7744
    %7974 = vmatprep.subr.bf16.mxu0 %v7741
    %7975 = vmatpush1.bf16.msra.mxu0 %v7740
    %7976 = vmatprep.subr.bf16.mxu0 %v7737
    %7977 = vmatpush1.bf16.msra.mxu0 %v7736
    %7978 = vmatprep.subr.bf16.mxu0 %v7733
    %7979 = vmatpush1.bf16.msra.mxu0 %v7732
    %7980 = vmatprep.subr.bf16.mxu0 %v7729
    %7981 = vmatpush1.bf16.msra.mxu0 %v7728
    %7982 = vmatprep.subr.bf16.mxu0 %v7725
    %7983 = vmatpush1.bf16.msra.mxu0 %v7724
    %7984 = vmatprep.subr.bf16.mxu0 %v7721
    %7985 = vmatpush1.bf16.msra.mxu0 %v7720
    %7986 = vmatprep.subr.bf16.mxu0 %v7717
    %7987 = vmatpush1.bf16.msra.mxu0 %v7716
    %7988 = vmatprep.subr.bf16.mxu0 %v7777
    %7989 = vmatpush2.bf16.msra.mxu0 %v7776
    %7990 = vmatprep.subr.bf16.mxu0 %v7773
    %7991 = vmatpush2.bf16.msra.mxu0 %v7772
    %7992 = vmatprep.subr.bf16.mxu0 %v7769
    %7993 = vmatpush2.bf16.msra.mxu0 %v7768
    %7994 = vmatprep.subr.bf16.mxu0 %v7765
    %7995 = vmatpush2.bf16.msra.mxu0 %v7764
    %7996 = vmatprep.subr.bf16.mxu0 %v7761
    %7997 = vmatpush2.bf16.msra.mxu0 %v7760
    %7998 = vmatprep.subr.bf16.mxu0 %v7757
    %7999 = vmatpush2.bf16.msra.mxu0 %v7756
    %8000 = vmatprep.subr.bf16.mxu0 %v7753
    %8001 = vmatpush2.bf16.msra.mxu0 %v7752
    %8002 = vmatprep.subr.bf16.mxu0 %v7749
    %8003 = vmatpush2.bf16.msra.mxu0 %v7748
    %8004 = vmatprep.mubr.bf16.mxu0 %v6038
    %8005 = vmatmul.mubr.bf16.gmra.mxu0 %v6037
    %v8006 = vpop.f32.mrf.mxu0
    %v8007 = vadd.f32 0.0, %v8006
    %v8008 = vpop.f32.mrf.mxu0
    %v8009 = vadd.f32 0.0, %v8008
    %v8010 = vpop.f32.mrf.mxu0
    %v8011 = vadd.f32 0.0, %v8010
    %v8012 = vpop.f32.mrf.mxu0
    %v8013 = vadd.f32 0.0, %v8012
    %8014 = vmatprep.mubr.bf16.mxu0 %v6042
    %8015 = vmatmul.mubr.bf16.gmra.mxu0 %v6041
    %v8016 = vpop.f32.mrf.mxu0
    %v8017 = vadd.f32 0.0, %v8016
    %v8018 = vpop.f32.mrf.mxu0
    %v8019 = vadd.f32 0.0, %v8018
    %v8020 = vpop.f32.mrf.mxu0
    %v8021 = vadd.f32 0.0, %v8020
    %v8022 = vpop.f32.mrf.mxu0
    %v8023 = vadd.f32 0.0, %v8022
    %8024 = vmatprep.mubr.bf16.mxu0 %v6046
    %8025 = vmatmul.mubr.bf16.gmra.mxu0 %v6045
    %v8026 = vpop.f32.mrf.mxu0
    %v8027 = vadd.f32 0.0, %v8026
    %v8028 = vpop.f32.mrf.mxu0
    %v8029 = vadd.f32 0.0, %v8028
    %v8030 = vpop.f32.mrf.mxu0
    %v8031 = vadd.f32 0.0, %v8030
    %v8032 = vpop.f32.mrf.mxu0
    %v8033 = vadd.f32 0.0, %v8032
    %8034 = vmatprep.mubr.bf16.mxu0 %v6050
    %8035 = vmatmul.mubr.bf16.gmra.mxu0 %v6049
    %v8036 = vpop.f32.mrf.mxu0
    %v8037 = vadd.f32 0.0, %v8036
    %v8038 = vpop.f32.mrf.mxu0
    %v8039 = vadd.f32 0.0, %v8038
    %v8040 = vpop.f32.mrf.mxu0
    %v8041 = vadd.f32 0.0, %v8040
    %v8042 = vpop.f32.mrf.mxu0
    %v8043 = vadd.f32 0.0, %v8042
    %8044 = vmatprep.mubr.bf16.mxu0 %v6054
    %8045 = vmatmul.mubr.bf16.gmra.mxu0 %v6053
    %v8046 = vpop.f32.mrf.mxu0
    %v8047 = vadd.f32 0.0, %v8046
    %v8048 = vpop.f32.mrf.mxu0
    %v8049 = vadd.f32 0.0, %v8048
    %v8050 = vpop.f32.mrf.mxu0
    %v8051 = vadd.f32 0.0, %v8050
    %v8052 = vpop.f32.mrf.mxu0
    %v8053 = vadd.f32 0.0, %v8052
    %8054 = vmatprep.mubr.bf16.mxu0 %v6058
    %8055 = vmatmul.mubr.bf16.gmra.mxu0 %v6057
    %v8056 = vpop.f32.mrf.mxu0
    %v8057 = vadd.f32 0.0, %v8056
    %v8058 = vpop.f32.mrf.mxu0
    %v8059 = vadd.f32 0.0, %v8058
    %v8060 = vpop.f32.mrf.mxu0
    %v8061 = vadd.f32 0.0, %v8060
    %v8062 = vpop.f32.mrf.mxu0
    %v8063 = vadd.f32 0.0, %v8062
    %8064 = vmatprep.mubr.bf16.mxu0 %v6062
    %8065 = vmatmul.mubr.bf16.gmra.mxu0 %v6061
    %v8066 = vpop.f32.mrf.mxu0
    %v8067 = vadd.f32 0.0, %v8066
    %v8068 = vpop.f32.mrf.mxu0
    %v8069 = vadd.f32 0.0, %v8068
    %v8070 = vpop.f32.mrf.mxu0
    %v8071 = vadd.f32 0.0, %v8070
    %v8072 = vpop.f32.mrf.mxu0
    %v8073 = vadd.f32 0.0, %v8072
    %8074 = vmatprep.mubr.bf16.mxu0 %v7325
    %8075 = vmatmul.mubr.bf16.gmra.mxu0 %v7324
    %v8076 = vpop.f32.mrf.mxu0
    %v8077 = vadd.f32 0.0, %v8076
    %v8078 = vpop.f32.mrf.mxu0
    %v8079 = vadd.f32 0.0, %v8078
    %v8080 = vpop.f32.mrf.mxu0
    %v8081 = vadd.f32 0.0, %v8080
    %v8082 = vpop.f32.mrf.mxu0
    %v8083 = vadd.f32 0.0, %v8082
    %8084 = vdwg.mxu0
    %8085 = vmatprep.subr.bf16.mxu0 %v7809
    %8086 = vmatpush1.bf16.msra.mxu0 %v7808
    %8087 = vmatprep.subr.bf16.mxu0 %v7805
    %8088 = vmatpush1.bf16.msra.mxu0 %v7804
    %8089 = vmatprep.subr.bf16.mxu0 %v7801
    %8090 = vmatpush1.bf16.msra.mxu0 %v7800
    %8091 = vmatprep.subr.bf16.mxu0 %v7797
    %8092 = vmatpush1.bf16.msra.mxu0 %v7796
    %8093 = vmatprep.subr.bf16.mxu0 %v7793
    %8094 = vmatpush1.bf16.msra.mxu0 %v7792
    %8095 = vmatprep.subr.bf16.mxu0 %v7789
    %8096 = vmatpush1.bf16.msra.mxu0 %v7788
    %8097 = vmatprep.subr.bf16.mxu0 %v7785
    %8098 = vmatpush1.bf16.msra.mxu0 %v7784
    %8099 = vmatprep.subr.bf16.mxu0 %v7781
    %8100 = vmatpush1.bf16.msra.mxu0 %v7780
    %8101 = vmatprep.subr.bf16.mxu0 %v7841
    %8102 = vmatpush2.bf16.msra.mxu0 %v7840
    %8103 = vmatprep.subr.bf16.mxu0 %v7837
    %8104 = vmatpush2.bf16.msra.mxu0 %v7836
    %8105 = vmatprep.subr.bf16.mxu0 %v7833
    %8106 = vmatpush2.bf16.msra.mxu0 %v7832
    %8107 = vmatprep.subr.bf16.mxu0 %v7829
    %8108 = vmatpush2.bf16.msra.mxu0 %v7828
    %8109 = vmatprep.subr.bf16.mxu0 %v7825
    %8110 = vmatpush2.bf16.msra.mxu0 %v7824
    %8111 = vmatprep.subr.bf16.mxu0 %v7821
    %8112 = vmatpush2.bf16.msra.mxu0 %v7820
    %8113 = vmatprep.subr.bf16.mxu0 %v7817
    %8114 = vmatpush2.bf16.msra.mxu0 %v7816
    %8115 = vmatprep.subr.bf16.mxu0 %v7813
    %8116 = vmatpush2.bf16.msra.mxu0 %v7812
    %8117 = vmatprep.mubr.bf16.mxu0 %v6040
    %8118 = vmatmul.mubr.bf16.gmra.mxu0 %v6039
    %v8119 = vpop.f32.mrf.mxu0
    %v8120 = vadd.f32 %v8007, %v8119
    %v8121 = vpop.f32.mrf.mxu0
    %v8122 = vadd.f32 %v8009, %v8121
    %v8123 = vpop.f32.mrf.mxu0
    %v8124 = vadd.f32 %v8011, %v8123
    %v8125 = vpop.f32.mrf.mxu0
    %v8126 = vadd.f32 %v8013, %v8125
    %8127 = vmatprep.mubr.bf16.mxu0 %v6044
    %8128 = vmatmul.mubr.bf16.gmra.mxu0 %v6043
    %v8129 = vpop.f32.mrf.mxu0
    %v8130 = vadd.f32 %v8017, %v8129
    %v8131 = vpop.f32.mrf.mxu0
    %v8132 = vadd.f32 %v8019, %v8131
    %v8133 = vpop.f32.mrf.mxu0
    %v8134 = vadd.f32 %v8021, %v8133
    %v8135 = vpop.f32.mrf.mxu0
    %v8136 = vadd.f32 %v8023, %v8135
    %8137 = vmatprep.mubr.bf16.mxu0 %v6048
    %8138 = vmatmul.mubr.bf16.gmra.mxu0 %v6047
    %v8139 = vpop.f32.mrf.mxu0
    %v8140 = vadd.f32 %v8027, %v8139
    %v8141 = vpop.f32.mrf.mxu0
    %v8142 = vadd.f32 %v8029, %v8141
    %v8143 = vpop.f32.mrf.mxu0
    %v8144 = vadd.f32 %v8031, %v8143
    %v8145 = vpop.f32.mrf.mxu0
    %v8146 = vadd.f32 %v8033, %v8145
    %8147 = vmatprep.mubr.bf16.mxu0 %v6052
    %8148 = vmatmul.mubr.bf16.gmra.mxu0 %v6051
    %v8149 = vpop.f32.mrf.mxu0
    %v8150 = vadd.f32 %v8037, %v8149
    %v8151 = vpop.f32.mrf.mxu0
    %v8152 = vadd.f32 %v8039, %v8151
    %v8153 = vpop.f32.mrf.mxu0
    %v8154 = vadd.f32 %v8041, %v8153
    %v8155 = vpop.f32.mrf.mxu0
    %v8156 = vadd.f32 %v8043, %v8155
    %8157 = vmatprep.mubr.bf16.mxu0 %v6056
    %8158 = vmatmul.mubr.bf16.gmra.mxu0 %v6055
    %v8159 = vpop.f32.mrf.mxu0
    %v8160 = vadd.f32 %v8047, %v8159
    %v8161 = vpop.f32.mrf.mxu0
    %v8162 = vadd.f32 %v8049, %v8161
    %v8163 = vpop.f32.mrf.mxu0
    %v8164 = vadd.f32 %v8051, %v8163
    %v8165 = vpop.f32.mrf.mxu0
    %v8166 = vadd.f32 %v8053, %v8165
    %8167 = vmatprep.mubr.bf16.mxu0 %v6060
    %8168 = vmatmul.mubr.bf16.gmra.mxu0 %v6059
    %v8169 = vpop.f32.mrf.mxu0
    %v8170 = vadd.f32 %v8057, %v8169
    %v8171 = vpop.f32.mrf.mxu0
    %v8172 = vadd.f32 %v8059, %v8171
    %v8173 = vpop.f32.mrf.mxu0
    %v8174 = vadd.f32 %v8061, %v8173
    %v8175 = vpop.f32.mrf.mxu0
    %v8176 = vadd.f32 %v8063, %v8175
    %8177 = vmatprep.mubr.bf16.mxu0 %v6064
    %8178 = vmatmul.mubr.bf16.gmra.mxu0 %v6063
    %v8179 = vpop.f32.mrf.mxu0
    %v8180 = vadd.f32 %v8067, %v8179
    %v8181 = vpop.f32.mrf.mxu0
    %v8182 = vadd.f32 %v8069, %v8181
    %v8183 = vpop.f32.mrf.mxu0
    %v8184 = vadd.f32 %v8071, %v8183
    %v8185 = vpop.f32.mrf.mxu0
    %v8186 = vadd.f32 %v8073, %v8185
    %8187 = vmatprep.mubr.bf16.mxu0 %v7327
    %8188 = vmatmul.mubr.bf16.gmra.mxu0 %v7326
    %v8189 = vpop.f32.mrf.mxu0
    %v8190 = vadd.f32 %v8077, %v8189
    %v8191 = vpop.f32.mrf.mxu0
    %v8192 = vadd.f32 %v8079, %v8191
    %v8193 = vpop.f32.mrf.mxu0
    %v8194 = vadd.f32 %v8081, %v8193
    %v8195 = vpop.f32.mrf.mxu0
    %v8196 = vadd.f32 %v8083, %v8195
    %8197 = vdwg.mxu0
    %8198 = vmatprep.subr.bf16.mxu0 %v7747
    %8199 = vmatpush1.bf16.msra.mxu0 %v7746
    %8200 = vmatprep.subr.bf16.mxu0 %v7743
    %8201 = vmatpush1.bf16.msra.mxu0 %v7742
    %8202 = vmatprep.subr.bf16.mxu0 %v7739
    %8203 = vmatpush1.bf16.msra.mxu0 %v7738
    %8204 = vmatprep.subr.bf16.mxu0 %v7735
    %8205 = vmatpush1.bf16.msra.mxu0 %v7734
    %8206 = vmatprep.subr.bf16.mxu0 %v7731
    %8207 = vmatpush1.bf16.msra.mxu0 %v7730
    %8208 = vmatprep.subr.bf16.mxu0 %v7727
    %8209 = vmatpush1.bf16.msra.mxu0 %v7726
    %8210 = vmatprep.subr.bf16.mxu0 %v7723
    %8211 = vmatpush1.bf16.msra.mxu0 %v7722
    %8212 = vmatprep.subr.bf16.mxu0 %v7719
    %8213 = vmatpush1.bf16.msra.mxu0 %v7718
    %8214 = vmatprep.subr.bf16.mxu0 %v7779
    %8215 = vmatpush2.bf16.msra.mxu0 %v7778
    %8216 = vmatprep.subr.bf16.mxu0 %v7775
    %8217 = vmatpush2.bf16.msra.mxu0 %v7774
    %8218 = vmatprep.subr.bf16.mxu0 %v7771
    %8219 = vmatpush2.bf16.msra.mxu0 %v7770
    %8220 = vmatprep.subr.bf16.mxu0 %v7767
    %8221 = vmatpush2.bf16.msra.mxu0 %v7766
    %8222 = vmatprep.subr.bf16.mxu0 %v7763
    %8223 = vmatpush2.bf16.msra.mxu0 %v7762
    %8224 = vmatprep.subr.bf16.mxu0 %v7759
    %8225 = vmatpush2.bf16.msra.mxu0 %v7758
    %8226 = vmatprep.subr.bf16.mxu0 %v7755
    %8227 = vmatpush2.bf16.msra.mxu0 %v7754
    %8228 = vmatprep.subr.bf16.mxu0 %v7751
    %8229 = vmatpush2.bf16.msra.mxu0 %v7750
    %8230 = vmatprep.mubr.bf16.mxu0 %v6038
    %8231 = vmatmul.mubr.bf16.gmra.mxu0 %v6037
    %v8232 = vpop.f32.mrf.mxu0
    %v8233 = vadd.f32 0.0, %v8232
    %v8234 = vpop.f32.mrf.mxu0
    %v8235 = vadd.f32 0.0, %v8234
    %v8236 = vpop.f32.mrf.mxu0
    %v8237 = vadd.f32 0.0, %v8236
    %v8238 = vpop.f32.mrf.mxu0
    %v8239 = vadd.f32 0.0, %v8238
    %8240 = vmatprep.mubr.bf16.mxu0 %v6042
    %8241 = vmatmul.mubr.bf16.gmra.mxu0 %v6041
    %v8242 = vpop.f32.mrf.mxu0
    %v8243 = vadd.f32 0.0, %v8242
    %v8244 = vpop.f32.mrf.mxu0
    %v8245 = vadd.f32 0.0, %v8244
    %v8246 = vpop.f32.mrf.mxu0
    %v8247 = vadd.f32 0.0, %v8246
    %v8248 = vpop.f32.mrf.mxu0
    %v8249 = vadd.f32 0.0, %v8248
    %8250 = vmatprep.mubr.bf16.mxu0 %v6046
    %8251 = vmatmul.mubr.bf16.gmra.mxu0 %v6045
    %v8252 = vpop.f32.mrf.mxu0
    %v8253 = vadd.f32 0.0, %v8252
    %v8254 = vpop.f32.mrf.mxu0
    %v8255 = vadd.f32 0.0, %v8254
    %v8256 = vpop.f32.mrf.mxu0
    %v8257 = vadd.f32 0.0, %v8256
    %v8258 = vpop.f32.mrf.mxu0
    %v8259 = vadd.f32 0.0, %v8258
    %8260 = vmatprep.mubr.bf16.mxu0 %v6050
    %8261 = vmatmul.mubr.bf16.gmra.mxu0 %v6049
    %v8262 = vpop.f32.mrf.mxu0
    %v8263 = vadd.f32 0.0, %v8262
    %v8264 = vpop.f32.mrf.mxu0
    %v8265 = vadd.f32 0.0, %v8264
    %v8266 = vpop.f32.mrf.mxu0
    %v8267 = vadd.f32 0.0, %v8266
    %v8268 = vpop.f32.mrf.mxu0
    %v8269 = vadd.f32 0.0, %v8268
    %8270 = vmatprep.mubr.bf16.mxu0 %v6054
    %8271 = vmatmul.mubr.bf16.gmra.mxu0 %v6053
    %v8272 = vpop.f32.mrf.mxu0
    %v8273 = vadd.f32 0.0, %v8272
    %v8274 = vpop.f32.mrf.mxu0
    %v8275 = vadd.f32 0.0, %v8274
    %v8276 = vpop.f32.mrf.mxu0
    %v8277 = vadd.f32 0.0, %v8276
    %v8278 = vpop.f32.mrf.mxu0
    %v8279 = vadd.f32 0.0, %v8278
    %8280 = vmatprep.mubr.bf16.mxu0 %v6058
    %8281 = vmatmul.mubr.bf16.gmra.mxu0 %v6057
    %v8282 = vpop.f32.mrf.mxu0
    %v8283 = vadd.f32 0.0, %v8282
    %v8284 = vpop.f32.mrf.mxu0
    %v8285 = vadd.f32 0.0, %v8284
    %v8286 = vpop.f32.mrf.mxu0
    %v8287 = vadd.f32 0.0, %v8286
    %v8288 = vpop.f32.mrf.mxu0
    %v8289 = vadd.f32 0.0, %v8288
    %8290 = vmatprep.mubr.bf16.mxu0 %v6062
    %8291 = vmatmul.mubr.bf16.gmra.mxu0 %v6061
    %v8292 = vpop.f32.mrf.mxu0
    %v8293 = vadd.f32 0.0, %v8292
    %v8294 = vpop.f32.mrf.mxu0
    %v8295 = vadd.f32 0.0, %v8294
    %v8296 = vpop.f32.mrf.mxu0
    %v8297 = vadd.f32 0.0, %v8296
    %v8298 = vpop.f32.mrf.mxu0
    %v8299 = vadd.f32 0.0, %v8298
    %8300 = vmatprep.mubr.bf16.mxu0 %v7325
    %8301 = vmatmul.mubr.bf16.gmra.mxu0 %v7324
    %v8302 = vpop.f32.mrf.mxu0
    %v8303 = vadd.f32 0.0, %v8302
    %v8304 = vpop.f32.mrf.mxu0
    %v8305 = vadd.f32 0.0, %v8304
    %v8306 = vpop.f32.mrf.mxu0
    %v8307 = vadd.f32 0.0, %v8306
    %v8308 = vpop.f32.mrf.mxu0
    %v8309 = vadd.f32 0.0, %v8308
    %8310 = vdwg.mxu0
    %8311 = vmatprep.subr.bf16.mxu0 %v7811
    %8312 = vmatpush1.bf16.msra.mxu0 %v7810
    %8313 = vmatprep.subr.bf16.mxu0 %v7807
    %8314 = vmatpush1.bf16.msra.mxu0 %v7806
    %8315 = vmatprep.subr.bf16.mxu0 %v7803
    %8316 = vmatpush1.bf16.msra.mxu0 %v7802
    %8317 = vmatprep.subr.bf16.mxu0 %v7799
    %8318 = vmatpush1.bf16.msra.mxu0 %v7798
    %8319 = vmatprep.subr.bf16.mxu0 %v7795
    %8320 = vmatpush1.bf16.msra.mxu0 %v7794
    %8321 = vmatprep.subr.bf16.mxu0 %v7791
    %8322 = vmatpush1.bf16.msra.mxu0 %v7790
    %8323 = vmatprep.subr.bf16.mxu0 %v7787
    %8324 = vmatpush1.bf16.msra.mxu0 %v7786
    %8325 = vmatprep.subr.bf16.mxu0 %v7783
    %8326 = vmatpush1.bf16.msra.mxu0 %v7782
    %8327 = vmatprep.subr.bf16.mxu0 %v7843
    %8328 = vmatpush2.bf16.msra.mxu0 %v7842
    %8329 = vmatprep.subr.bf16.mxu0 %v7839
    %8330 = vmatpush2.bf16.msra.mxu0 %v7838
    %8331 = vmatprep.subr.bf16.mxu0 %v7835
    %8332 = vmatpush2.bf16.msra.mxu0 %v7834
    %8333 = vmatprep.subr.bf16.mxu0 %v7831
    %8334 = vmatpush2.bf16.msra.mxu0 %v7830
    %8335 = vmatprep.subr.bf16.mxu0 %v7827
    %8336 = vmatpush2.bf16.msra.mxu0 %v7826
    %8337 = vmatprep.subr.bf16.mxu0 %v7823
    %8338 = vmatpush2.bf16.msra.mxu0 %v7822
    %8339 = vmatprep.subr.bf16.mxu0 %v7819
    %8340 = vmatpush2.bf16.msra.mxu0 %v7818
    %8341 = vmatprep.subr.bf16.mxu0 %v7815
    %8342 = vmatpush2.bf16.msra.mxu0 %v7814
    %8343 = vmatprep.mubr.bf16.mxu0 %v6040
    %8344 = vmatmul.mubr.bf16.gmra.mxu0 %v6039
    %v8345 = vpop.f32.mrf.mxu0
    %v8346 = vadd.f32 %v8233, %v8345
    %v8347 = vpop.f32.mrf.mxu0
    %v8348 = vadd.f32 %v8235, %v8347
    %v8349 = vpop.f32.mrf.mxu0
    %v8350 = vadd.f32 %v8237, %v8349
    %v8351 = vpop.f32.mrf.mxu0
    %v8352 = vadd.f32 %v8239, %v8351
    %8353 = vmatprep.mubr.bf16.mxu0 %v6044
    %8354 = vmatmul.mubr.bf16.gmra.mxu0 %v6043
    %v8355 = vpop.f32.mrf.mxu0
    %v8356 = vadd.f32 %v8243, %v8355
    %v8357 = vpop.f32.mrf.mxu0
    %v8358 = vadd.f32 %v8245, %v8357
    %v8359 = vpop.f32.mrf.mxu0
    %v8360 = vadd.f32 %v8247, %v8359
    %v8361 = vpop.f32.mrf.mxu0
    %v8362 = vadd.f32 %v8249, %v8361
    %8363 = vmatprep.mubr.bf16.mxu0 %v6048
    %8364 = vmatmul.mubr.bf16.gmra.mxu0 %v6047
    %v8365 = vpop.f32.mrf.mxu0
    %v8366 = vadd.f32 %v8253, %v8365
    %v8367 = vpop.f32.mrf.mxu0
    %v8368 = vadd.f32 %v8255, %v8367
    %v8369 = vpop.f32.mrf.mxu0
    %v8370 = vadd.f32 %v8257, %v8369
    %v8371 = vpop.f32.mrf.mxu0
    %v8372 = vadd.f32 %v8259, %v8371
    %8373 = vmatprep.mubr.bf16.mxu0 %v6052
    %8374 = vmatmul.mubr.bf16.gmra.mxu0 %v6051
    %v8375 = vpop.f32.mrf.mxu0
    %v8376 = vadd.f32 %v8263, %v8375
    %v8377 = vpop.f32.mrf.mxu0
    %v8378 = vadd.f32 %v8265, %v8377
    %v8379 = vpop.f32.mrf.mxu0
    %v8380 = vadd.f32 %v8267, %v8379
    %v8381 = vpop.f32.mrf.mxu0
    %v8382 = vadd.f32 %v8269, %v8381
    %8383 = vmatprep.mubr.bf16.mxu0 %v6056
    %8384 = vmatmul.mubr.bf16.gmra.mxu0 %v6055
    %v8385 = vpop.f32.mrf.mxu0
    %v8386 = vadd.f32 %v8273, %v8385
    %v8387 = vpop.f32.mrf.mxu0
    %v8388 = vadd.f32 %v8275, %v8387
    %v8389 = vpop.f32.mrf.mxu0
    %v8390 = vadd.f32 %v8277, %v8389
    %v8391 = vpop.f32.mrf.mxu0
    %v8392 = vadd.f32 %v8279, %v8391
    %8393 = vmatprep.mubr.bf16.mxu0 %v6060
    %8394 = vmatmul.mubr.bf16.gmra.mxu0 %v6059
    %v8395 = vpop.f32.mrf.mxu0
    %v8396 = vadd.f32 %v8283, %v8395
    %v8397 = vpop.f32.mrf.mxu0
    %v8398 = vadd.f32 %v8285, %v8397
    %v8399 = vpop.f32.mrf.mxu0
    %v8400 = vadd.f32 %v8287, %v8399
    %v8401 = vpop.f32.mrf.mxu0
    %v8402 = vadd.f32 %v8289, %v8401
    %8403 = vmatprep.mubr.bf16.mxu0 %v6064
    %8404 = vmatmul.mubr.bf16.gmra.mxu0 %v6063
    %v8405 = vpop.f32.mrf.mxu0
    %v8406 = vadd.f32 %v8293, %v8405
    %v8407 = vpop.f32.mrf.mxu0
    %v8408 = vadd.f32 %v8295, %v8407
    %v8409 = vpop.f32.mrf.mxu0
    %v8410 = vadd.f32 %v8297, %v8409
    %v8411 = vpop.f32.mrf.mxu0
    %v8412 = vadd.f32 %v8299, %v8411
    %8413 = vmatprep.mubr.bf16.mxu0 %v7327
    %8414 = vmatmul.mubr.bf16.gmra.mxu0 %v7326
    %v8415 = vpop.f32.mrf.mxu0
    %v8416 = vadd.f32 %v8303, %v8415
    %v8417 = vpop.f32.mrf.mxu0
    %v8418 = vadd.f32 %v8305, %v8417
    %v8419 = vpop.f32.mrf.mxu0
    %v8420 = vadd.f32 %v8307, %v8419
    %v8421 = vpop.f32.mrf.mxu0
    %v8422 = vadd.f32 %v8309, %v8421
    %8423 = vdwg.mxu0
    %v8424 = vadd.f32 %v6885, %v8120
    %v8425 = vadd.f32 %v6887, %v8122
    %v8426 = vadd.f32 %v7111, %v8346
    %v8427 = vadd.f32 %v7113, %v8348
    %v8428 = vadd.f32 %v6889, %v8124
    %v8429 = vadd.f32 %v6891, %v8126
    %v8430 = vadd.f32 %v7115, %v8350
    %v8431 = vadd.f32 %v7117, %v8352
    %v8432 = vadd.f32 %v6895, %v8130
    %v8433 = vadd.f32 %v6897, %v8132
    %v8434 = vadd.f32 %v7121, %v8356
    %v8435 = vadd.f32 %v7123, %v8358
    %v8436 = vadd.f32 %v6899, %v8134
    %v8437 = vadd.f32 %v6901, %v8136
    %v8438 = vadd.f32 %v7125, %v8360
    %v8439 = vadd.f32 %v7127, %v8362
    %v8440 = vadd.f32 %v6905, %v8140
    %v8441 = vadd.f32 %v6907, %v8142
    %v8442 = vadd.f32 %v7131, %v8366
    %v8443 = vadd.f32 %v7133, %v8368
    %v8444 = vadd.f32 %v6909, %v8144
    %v8445 = vadd.f32 %v6911, %v8146
    %v8446 = vadd.f32 %v7135, %v8370
    %v8447 = vadd.f32 %v7137, %v8372
    %v8448 = vadd.f32 %v6915, %v8150
    %v8449 = vadd.f32 %v6917, %v8152
    %v8450 = vadd.f32 %v7141, %v8376
    %v8451 = vadd.f32 %v7143, %v8378
    %v8452 = vadd.f32 %v6919, %v8154
    %v8453 = vadd.f32 %v6921, %v8156
    %v8454 = vadd.f32 %v7145, %v8380
    %v8455 = vadd.f32 %v7147, %v8382
    %v8456 = vadd.f32 %v6925, %v8160
    %v8457 = vadd.f32 %v6927, %v8162
    %v8458 = vadd.f32 %v7151, %v8386
    %v8459 = vadd.f32 %v7153, %v8388
    %v8460 = vadd.f32 %v6929, %v8164
    %v8461 = vadd.f32 %v6931, %v8166
    %v8462 = vadd.f32 %v7155, %v8390
    %v8463 = vadd.f32 %v7157, %v8392
    %v8464 = vadd.f32 %v6935, %v8170
    %v8465 = vadd.f32 %v6937, %v8172
    %v8466 = vadd.f32 %v7161, %v8396
    %v8467 = vadd.f32 %v7163, %v8398
    %v8468 = vadd.f32 %v6939, %v8174
    %v8469 = vadd.f32 %v6941, %v8176
    %v8470 = vadd.f32 %v7165, %v8400
    %v8471 = vadd.f32 %v7167, %v8402
    %v8472 = vadd.f32 %v6945, %v8180
    %v8473 = vadd.f32 %v6947, %v8182
    %v8474 = vadd.f32 %v7171, %v8406
    %v8475 = vadd.f32 %v7173, %v8408
    %v8476 = vadd.f32 %v6949, %v8184
    %v8477 = vadd.f32 %v6951, %v8186
    %v8478 = vadd.f32 %v7175, %v8410
    %v8479 = vadd.f32 %v7177, %v8412
    %v8480 = vadd.f32 %v6955, %v8190
    %v8481 = vadd.f32 %v6957, %v8192
    %v8482 = vadd.f32 %v7181, %v8416
    %v8483 = vadd.f32 %v7183, %v8418
    %v8484 = vadd.f32 %v6959, %v8194
    %v8485 = vadd.f32 %v6961, %v8196
    %v8486 = vadd.f32 %v7185, %v8420
    %v8487 = vadd.f32 %v7187, %v8422
    %v8488 = vld [vmem:[#allocation11] sm:$0xf]
    %v8490 = vlaneseq
    %v8491 = vshrl.u32 %v8490, 7
    %v8492 = vsub.s32 0, %v8491
    %v8493 = vrot.slane %v8488, %v8492
    %v8494 = vlaneseq
    %v8495 = vshrl.u32 %v8494, 7
    %v8496 = vsub.s32 1, %v8495
    %v8497 = vrot.slane %v8488, %v8496
    %v8498 = vlaneseq
    %v8499 = vshrl.u32 %v8498, 7
    %v8500 = vsub.s32 2, %v8499
    %v8501 = vrot.slane %v8488, %v8500
    %v8502 = vlaneseq
    %v8503 = vshrl.u32 %v8502, 7
    %v8504 = vsub.s32 3, %v8503
    %v8505 = vrot.slane %v8488, %v8504
    %v8510 = vadd.f32 %v8424, %v8493
    %v8511 = vadd.f32 %v8425, %v8497
    %v8512 = vadd.f32 %v8426, %v8501
    %v8513 = vadd.f32 %v8427, %v8505
    %v8514 = vadd.f32 %v8428, %v8493
    %v8515 = vadd.f32 %v8429, %v8497
    %v8516 = vadd.f32 %v8430, %v8501
    %v8517 = vadd.f32 %v8431, %v8505
    %v8518 = vadd.f32 %v8432, %v8493
    %v8519 = vadd.f32 %v8433, %v8497
    %v8520 = vadd.f32 %v8434, %v8501
    %v8521 = vadd.f32 %v8435, %v8505
    %v8522 = vadd.f32 %v8436, %v8493
    %v8523 = vadd.f32 %v8437, %v8497
    %v8524 = vadd.f32 %v8438, %v8501
    %v8525 = vadd.f32 %v8439, %v8505
    %v8526 = vadd.f32 %v8440, %v8493
    %v8527 = vadd.f32 %v8441, %v8497
    %v8528 = vadd.f32 %v8442, %v8501
    %v8529 = vadd.f32 %v8443, %v8505
    %v8530 = vadd.f32 %v8444, %v8493
    %v8531 = vadd.f32 %v8445, %v8497
    %v8532 = vadd.f32 %v8446, %v8501
    %v8533 = vadd.f32 %v8447, %v8505
    %v8534 = vadd.f32 %v8448, %v8493
    %v8535 = vadd.f32 %v8449, %v8497
    %v8536 = vadd.f32 %v8450, %v8501
    %v8537 = vadd.f32 %v8451, %v8505
    %v8538 = vadd.f32 %v8452, %v8493
    %v8539 = vadd.f32 %v8453, %v8497
    %v8540 = vadd.f32 %v8454, %v8501
    %v8541 = vadd.f32 %v8455, %v8505
    %v8542 = vadd.f32 %v8456, %v8493
    %v8543 = vadd.f32 %v8457, %v8497
    %v8544 = vadd.f32 %v8458, %v8501
    %v8545 = vadd.f32 %v8459, %v8505
    %v8546 = vadd.f32 %v8460, %v8493
    %v8547 = vadd.f32 %v8461, %v8497
    %v8548 = vadd.f32 %v8462, %v8501
    %v8549 = vadd.f32 %v8463, %v8505
    %v8550 = vadd.f32 %v8464, %v8493
    %v8551 = vadd.f32 %v8465, %v8497
    %v8552 = vadd.f32 %v8466, %v8501
    %v8553 = vadd.f32 %v8467, %v8505
    %v8554 = vadd.f32 %v8468, %v8493
    %v8555 = vadd.f32 %v8469, %v8497
    %v8556 = vadd.f32 %v8470, %v8501
    %v8557 = vadd.f32 %v8471, %v8505
    %v8558 = vadd.f32 %v8472, %v8493
    %v8559 = vadd.f32 %v8473, %v8497
    %v8560 = vadd.f32 %v8474, %v8501
    %v8561 = vadd.f32 %v8475, %v8505
    %v8562 = vadd.f32 %v8476, %v8493
    %v8563 = vadd.f32 %v8477, %v8497
    %v8564 = vadd.f32 %v8478, %v8501
    %v8565 = vadd.f32 %v8479, %v8505
    %v8566 = vadd.f32 %v8480, %v8493
    %v8567 = vadd.f32 %v8481, %v8497
    %v8568 = vadd.f32 %v8482, %v8501
    %v8569 = vadd.f32 %v8483, %v8505
    %v8570 = vadd.f32 %v8484, %v8493
    %v8571 = vadd.f32 %v8485, %v8497
    %v8572 = vadd.f32 %v8486, %v8501
    %v8573 = vadd.f32 %v8487, %v8505
    %v8574 = vadd.f32 %v8510, %v8514
    %v8575 = vadd.f32 %v8574, %v8518
    %v8576 = vadd.f32 %v8575, %v8522
    %v8577 = vadd.f32 %v8576, %v8526
    %v8578 = vadd.f32 %v8577, %v8530
    %v8579 = vadd.f32 %v8578, %v8534
    %v8580 = vadd.f32 %v8579, %v8538
    %v8581 = vadd.f32 %v8580, %v8542
    %v8582 = vadd.f32 %v8581, %v8546
    %v8583 = vadd.f32 %v8582, %v8550
    %v8584 = vadd.f32 %v8583, %v8554
    %v8585 = vadd.f32 %v8584, %v8558
    %v8586 = vadd.f32 %v8585, %v8562
    %v8587 = vadd.f32 %v8586, %v8566
    %v8588 = vadd.f32 %v8587, %v8570
    %v8589 = vadd.f32 %v8511, %v8515
    %v8590 = vadd.f32 %v8589, %v8519
    %v8591 = vadd.f32 %v8590, %v8523
    %v8592 = vadd.f32 %v8591, %v8527
    %v8593 = vadd.f32 %v8592, %v8531
    %v8594 = vadd.f32 %v8593, %v8535
    %v8595 = vadd.f32 %v8594, %v8539
    %v8596 = vadd.f32 %v8595, %v8543
    %v8597 = vadd.f32 %v8596, %v8547
    %v8598 = vadd.f32 %v8597, %v8551
    %v8599 = vadd.f32 %v8598, %v8555
    %v8600 = vadd.f32 %v8599, %v8559
    %v8601 = vadd.f32 %v8600, %v8563
    %v8602 = vadd.f32 %v8601, %v8567
    %v8603 = vadd.f32 %v8602, %v8571
    %v8604 = vadd.f32 %v8512, %v8516
    %v8605 = vadd.f32 %v8604, %v8520
    %v8606 = vadd.f32 %v8605, %v8524
    %v8607 = vadd.f32 %v8606, %v8528
    %v8608 = vadd.f32 %v8607, %v8532
    %v8609 = vadd.f32 %v8608, %v8536
    %v8610 = vadd.f32 %v8609, %v8540
    %v8611 = vadd.f32 %v8610, %v8544
    %v8612 = vadd.f32 %v8611, %v8548
    %v8613 = vadd.f32 %v8612, %v8552
    %v8614 = vadd.f32 %v8613, %v8556
    %v8615 = vadd.f32 %v8614, %v8560
    %v8616 = vadd.f32 %v8615, %v8564
    %v8617 = vadd.f32 %v8616, %v8568
    %v8618 = vadd.f32 %v8617, %v8572
    %v8619 = vadd.f32 %v8513, %v8517
    %v8620 = vadd.f32 %v8619, %v8521
    %v8621 = vadd.f32 %v8620, %v8525
    %v8622 = vadd.f32 %v8621, %v8529
    %v8623 = vadd.f32 %v8622, %v8533
    %v8624 = vadd.f32 %v8623, %v8537
    %v8625 = vadd.f32 %v8624, %v8541
    %v8626 = vadd.f32 %v8625, %v8545
    %v8627 = vadd.f32 %v8626, %v8549
    %v8628 = vadd.f32 %v8627, %v8553
    %v8629 = vadd.f32 %v8628, %v8557
    %v8630 = vadd.f32 %v8629, %v8561
    %v8631 = vadd.f32 %v8630, %v8565
    %v8632 = vadd.f32 %v8631, %v8569
    %v8633 = vadd.f32 %v8632, %v8573
    %v8634 = vld [vmem:[%s5] sm:$0xff]
    %v8635 = vld [vmem:[%s5 + $0x8] sm:$0xff]
    %v8636 = vld [vmem:[%s5 + $0x10] sm:$0xff]
    %v8637 = vld [vmem:[%s5 + $0x18] sm:$0xff]
    %v8638 = vld [vmem:[%s5 + $0x20] sm:$0xff]
    %v8639 = vld [vmem:[%s5 + $0x28] sm:$0xff]
    %v8640 = vld [vmem:[%s5 + $0x30] sm:$0xff]
    %v8641 = vld [vmem:[%s5 + $0x38] sm:$0xff]
    %v8642 = vld [vmem:[%s5 + $0x40] sm:$0xff]
    %v8643 = vld [vmem:[%s5 + $0x48] sm:$0xff]
    %v8644 = vld [vmem:[%s5 + $0x50] sm:$0xff]
    %v8645 = vld [vmem:[%s5 + $0x58] sm:$0xff]
    %v8646 = vld [vmem:[%s5 + $0x60] sm:$0xff]
    %v8647 = vld [vmem:[%s5 + $0x68] sm:$0xff]
    %v8648 = vld [vmem:[%s5 + $0x70] sm:$0xff]
    %v8649 = vld [vmem:[%s5 + $0x78] sm:$0xff]
    %v8650 = vld [vmem:[%s5 + $0x80] sm:$0xff]
    %v8651 = vld [vmem:[%s5 + $0x88] sm:$0xff]
    %v8652 = vld [vmem:[%s5 + $0x90] sm:$0xff]
    %v8653 = vld [vmem:[%s5 + $0x98] sm:$0xff]
    %v8654 = vld [vmem:[%s5 + $0xa0] sm:$0xff]
    %v8655 = vld [vmem:[%s5 + $0xa8] sm:$0xff]
    %v8656 = vld [vmem:[%s5 + $0xb0] sm:$0xff]
    %v8657 = vld [vmem:[%s5 + $0xb8] sm:$0xff]
    %v8658 = vld [vmem:[%s5 + $0xc0] sm:$0xff]
    %v8659 = vld [vmem:[%s5 + $0xc8] sm:$0xff]
    %v8660 = vld [vmem:[%s5 + $0xd0] sm:$0xff]
    %v8661 = vld [vmem:[%s5 + $0xd8] sm:$0xff]
    %v8662 = vld [vmem:[%s5 + $0xe0] sm:$0xff]
    %v8663 = vld [vmem:[%s5 + $0xe8] sm:$0xff]
    %v8664 = vld [vmem:[%s5 + $0xf0] sm:$0xff]
    %v8665 = vld [vmem:[%s5 + $0xf8] sm:$0xff]
    %v8666 = vld [vmem:[%s5 + $0x100] sm:$0xff]
    %v8667 = vld [vmem:[%s5 + $0x108] sm:$0xff]
    %v8668 = vld [vmem:[%s5 + $0x110] sm:$0xff]
    %v8669 = vld [vmem:[%s5 + $0x118] sm:$0xff]
    %v8670 = vld [vmem:[%s5 + $0x120] sm:$0xff]
    %v8671 = vld [vmem:[%s5 + $0x128] sm:$0xff]
    %v8672 = vld [vmem:[%s5 + $0x130] sm:$0xff]
    %v8673 = vld [vmem:[%s5 + $0x138] sm:$0xff]
    %v8674 = vld [vmem:[%s5 + $0x140] sm:$0xff]
    %v8675 = vld [vmem:[%s5 + $0x148] sm:$0xff]
    %v8676 = vld [vmem:[%s5 + $0x150] sm:$0xff]
    %v8677 = vld [vmem:[%s5 + $0x158] sm:$0xff]
    %v8678 = vld [vmem:[%s5 + $0x160] sm:$0xff]
    %v8679 = vld [vmem:[%s5 + $0x168] sm:$0xff]
    %v8680 = vld [vmem:[%s5 + $0x170] sm:$0xff]
    %v8681 = vld [vmem:[%s5 + $0x178] sm:$0xff]
    %v8682 = vld [vmem:[%s5 + $0x180] sm:$0xff]
    %v8683 = vld [vmem:[%s5 + $0x188] sm:$0xff]
    %v8684 = vld [vmem:[%s5 + $0x190] sm:$0xff]
    %v8685 = vld [vmem:[%s5 + $0x198] sm:$0xff]
    %v8686 = vld [vmem:[%s5 + $0x1a0] sm:$0xff]
    %v8687 = vld [vmem:[%s5 + $0x1a8] sm:$0xff]
    %v8688 = vld [vmem:[%s5 + $0x1b0] sm:$0xff]
    %v8689 = vld [vmem:[%s5 + $0x1b8] sm:$0xff]
    %v8690 = vld [vmem:[%s5 + $0x1c0] sm:$0xff]
    %v8691 = vld [vmem:[%s5 + $0x1c8] sm:$0xff]
    %v8692 = vld [vmem:[%s5 + $0x1d0] sm:$0xff]
    %v8693 = vld [vmem:[%s5 + $0x1d8] sm:$0xff]
    %v8694 = vld [vmem:[%s5 + $0x1e0] sm:$0xff]
    %v8695 = vld [vmem:[%s5 + $0x1e8] sm:$0xff]
    %v8696 = vld [vmem:[%s5 + $0x1f0] sm:$0xff]
    %v8697 = vld [vmem:[%s5 + $0x1f8] sm:$0xff]
    %v8698 = vld [vmem:[#allocation12] sm:$0x1]
    %v8700 = vlaneseq
    %v8701 = vshrl.u32 %v8700, 7
    %v8702 = vsub.s32 0, %v8701
    %v8703 = vrot.slane %v8698, %v8702
    %8705 = vmatprep.subr.mxu0 0.0
    %8706 = vmatpush1.msra.mxu0 %v8649
    %8707 = vmatprep.subr.mxu0 0.0
    %8708 = vmatpush1.msra.mxu0 %v8648
    %8709 = vmatprep.subr.mxu0 0.0
    %8710 = vmatpush1.msra.mxu0 %v8647
    %8711 = vmatprep.subr.mxu0 0.0
    %8712 = vmatpush1.msra.mxu0 %v8646
    %8713 = vmatprep.subr.mxu0 0.0
    %8714 = vmatpush1.msra.mxu0 %v8645
    %8715 = vmatprep.subr.mxu0 0.0
    %8716 = vmatpush1.msra.mxu0 %v8644
    %8717 = vmatprep.subr.mxu0 0.0
    %8718 = vmatpush1.msra.mxu0 %v8643
    %8719 = vmatprep.subr.mxu0 0.0
    %8720 = vmatpush1.msra.mxu0 %v8642
    %8721 = vmatprep.subr.mxu0 0.0
    %8722 = vmatpush1.msra.mxu0 %v8641
    %8723 = vmatprep.subr.mxu0 0.0
    %8724 = vmatpush1.msra.mxu0 %v8640
    %8725 = vmatprep.subr.mxu0 0.0
    %8726 = vmatpush1.msra.mxu0 %v8639
    %8727 = vmatprep.subr.mxu0 0.0
    %8728 = vmatpush1.msra.mxu0 %v8638
    %8729 = vmatprep.subr.mxu0 0.0
    %8730 = vmatpush1.msra.mxu0 %v8637
    %8731 = vmatprep.subr.mxu0 0.0
    %8732 = vmatpush1.msra.mxu0 %v8636
    %8733 = vmatprep.subr.mxu0 0.0
    %8734 = vmatpush1.msra.mxu0 %v8635
    %8735 = vmatprep.subr.mxu0 0.0
    %8736 = vmatpush1.msra.mxu0 %v8634
    %8737 = vmatprep.subr.mxu0 0.0
    %8738 = vmatpush2.msra.mxu0 %v8665
    %8739 = vmatprep.subr.mxu0 0.0
    %8740 = vmatpush2.msra.mxu0 %v8664
    %8741 = vmatprep.subr.mxu0 0.0
    %8742 = vmatpush2.msra.mxu0 %v8663
    %8743 = vmatprep.subr.mxu0 0.0
    %8744 = vmatpush2.msra.mxu0 %v8662
    %8745 = vmatprep.subr.mxu0 0.0
    %8746 = vmatpush2.msra.mxu0 %v8661
    %8747 = vmatprep.subr.mxu0 0.0
    %8748 = vmatpush2.msra.mxu0 %v8660
    %8749 = vmatprep.subr.mxu0 0.0
    %8750 = vmatpush2.msra.mxu0 %v8659
    %8751 = vmatprep.subr.mxu0 0.0
    %8752 = vmatpush2.msra.mxu0 %v8658
    %8753 = vmatprep.subr.mxu0 0.0
    %8754 = vmatpush2.msra.mxu0 %v8657
    %8755 = vmatprep.subr.mxu0 0.0
    %8756 = vmatpush2.msra.mxu0 %v8656
    %8757 = vmatprep.subr.mxu0 0.0
    %8758 = vmatpush2.msra.mxu0 %v8655
    %8759 = vmatprep.subr.mxu0 0.0
    %8760 = vmatpush2.msra.mxu0 %v8654
    %8761 = vmatprep.subr.mxu0 0.0
    %8762 = vmatpush2.msra.mxu0 %v8653
    %8763 = vmatprep.subr.mxu0 0.0
    %8764 = vmatpush2.msra.mxu0 %v8652
    %8765 = vmatprep.subr.mxu0 0.0
    %8766 = vmatpush2.msra.mxu0 %v8651
    %8767 = vmatprep.subr.mxu0 0.0
    %8768 = vmatpush2.msra.mxu0 %v8650
    %8769 = vmatprep.mubr.f32.mxu0 %v8603
    %8770 = vmatmul.mubr.f32.gmra.mxu0 %v8588
    %v8771 = vpop.f32.mrf.mxu0
    %v8772 = vadd.f32 %v8703, %v8771
    %v8773 = vpop.f32.mrf.mxu0
    %8774 = vdwg.mxu0
    %8775 = vmatprep.subr.mxu0 0.0
    %8776 = vmatpush1.msra.mxu0 %v8681
    %8777 = vmatprep.subr.mxu0 0.0
    %8778 = vmatpush1.msra.mxu0 %v8680
    %8779 = vmatprep.subr.mxu0 0.0
    %8780 = vmatpush1.msra.mxu0 %v8679
    %8781 = vmatprep.subr.mxu0 0.0
    %8782 = vmatpush1.msra.mxu0 %v8678
    %8783 = vmatprep.subr.mxu0 0.0
    %8784 = vmatpush1.msra.mxu0 %v8677
    %8785 = vmatprep.subr.mxu0 0.0
    %8786 = vmatpush1.msra.mxu0 %v8676
    %8787 = vmatprep.subr.mxu0 0.0
    %8788 = vmatpush1.msra.mxu0 %v8675
    %8789 = vmatprep.subr.mxu0 0.0
    %8790 = vmatpush1.msra.mxu0 %v8674
    %8791 = vmatprep.subr.mxu0 0.0
    %8792 = vmatpush1.msra.mxu0 %v8673
    %8793 = vmatprep.subr.mxu0 0.0
    %8794 = vmatpush1.msra.mxu0 %v8672
    %8795 = vmatprep.subr.mxu0 0.0
    %8796 = vmatpush1.msra.mxu0 %v8671
    %8797 = vmatprep.subr.mxu0 0.0
    %8798 = vmatpush1.msra.mxu0 %v8670
    %8799 = vmatprep.subr.mxu0 0.0
    %8800 = vmatpush1.msra.mxu0 %v8669
    %8801 = vmatprep.subr.mxu0 0.0
    %8802 = vmatpush1.msra.mxu0 %v8668
    %8803 = vmatprep.subr.mxu0 0.0
    %8804 = vmatpush1.msra.mxu0 %v8667
    %8805 = vmatprep.subr.mxu0 0.0
    %8806 = vmatpush1.msra.mxu0 %v8666
    %8807 = vmatprep.subr.mxu0 0.0
    %8808 = vmatpush2.msra.mxu0 %v8697
    %8809 = vmatprep.subr.mxu0 0.0
    %8810 = vmatpush2.msra.mxu0 %v8696
    %8811 = vmatprep.subr.mxu0 0.0
    %8812 = vmatpush2.msra.mxu0 %v8695
    %8813 = vmatprep.subr.mxu0 0.0
    %8814 = vmatpush2.msra.mxu0 %v8694
    %8815 = vmatprep.subr.mxu0 0.0
    %8816 = vmatpush2.msra.mxu0 %v8693
    %8817 = vmatprep.subr.mxu0 0.0
    %8818 = vmatpush2.msra.mxu0 %v8692
    %8819 = vmatprep.subr.mxu0 0.0
    %8820 = vmatpush2.msra.mxu0 %v8691
    %8821 = vmatprep.subr.mxu0 0.0
    %8822 = vmatpush2.msra.mxu0 %v8690
    %8823 = vmatprep.subr.mxu0 0.0
    %8824 = vmatpush2.msra.mxu0 %v8689
    %8825 = vmatprep.subr.mxu0 0.0
    %8826 = vmatpush2.msra.mxu0 %v8688
    %8827 = vmatprep.subr.mxu0 0.0
    %8828 = vmatpush2.msra.mxu0 %v8687
    %8829 = vmatprep.subr.mxu0 0.0
    %8830 = vmatpush2.msra.mxu0 %v8686
    %8831 = vmatprep.subr.mxu0 0.0
    %8832 = vmatpush2.msra.mxu0 %v8685
    %8833 = vmatprep.subr.mxu0 0.0
    %8834 = vmatpush2.msra.mxu0 %v8684
    %8835 = vmatprep.subr.mxu0 0.0
    %8836 = vmatpush2.msra.mxu0 %v8683
    %8837 = vmatprep.subr.mxu0 0.0
    %8838 = vmatpush2.msra.mxu0 %v8682
    %8839 = vmatprep.mubr.f32.mxu0 %v8633
    %8840 = vmatmul.mubr.f32.gmra.mxu0 %v8618
    %v8841 = vpop.f32.mrf.mxu0
    %v8842 = vadd.f32 %v8772, %v8841
    %v8843 = vpop.f32.mrf.mxu0
    %8844 = vdwg.mxu0
    %v8845 = vmax.f32 %v8842, 0.0
    %v8846 = vld [vmem:[#allocation14] sm:$0xff]
    %v8847 = vld [vmem:[#allocation14 + $0x8] sm:$0xff]
    %v8848 = vld [vmem:[#allocation14 + $0x10] sm:$0xff]
    %v8849 = vld [vmem:[#allocation14 + $0x18] sm:$0xff]
    %v8850 = vld [vmem:[#allocation15] sm:$0xf]
    %v8852 = vlaneseq
    %v8853 = vshrl.u32 %v8852, 7
    %v8854 = vsub.s32 0, %v8853
    %v8855 = vrot.slane %v8850, %v8854
    %v8856 = vlaneseq
    %v8857 = vshrl.u32 %v8856, 7
    %v8858 = vsub.s32 1, %v8857
    %v8859 = vrot.slane %v8850, %v8858
    %v8860 = vlaneseq
    %v8861 = vshrl.u32 %v8860, 7
    %v8862 = vsub.s32 2, %v8861
    %v8863 = vrot.slane %v8850, %v8862
    %v8864 = vlaneseq
    %v8865 = vshrl.u32 %v8864, 7
    %v8866 = vsub.s32 3, %v8865
    %v8867 = vrot.slane %v8850, %v8866
    %vm8872 = vcmask 64512
    %v8874 = vsel %vm8872, %v8845, 0
    %8876 = vmatprep.subr.mxu0 0.0
    %8877 = vmatpush1.msra.mxu0 0.0
    %8878 = vmatprep.subr.mxu0 0.0
    %8879 = vmatpush1.msra.mxu0 0.0
    %8880 = vmatprep.subr.mxu0 0.0
    %8881 = vmatpush1.msra.mxu0 0.0
    %8882 = vmatprep.subr.mxu0 0.0
    %8883 = vmatpush1.msra.mxu0 0.0
    %8884 = vmatprep.subr.mxu0 0.0
    %8885 = vmatpush1.msra.mxu0 0.0
    %8886 = vmatprep.subr.mxu0 0.0
    %8887 = vmatpush1.msra.mxu0 0.0
    %8888 = vmatprep.subr.mxu0 0.0
    %8889 = vmatpush1.msra.mxu0 0.0
    %8890 = vmatprep.subr.mxu0 0.0
    %8891 = vmatpush1.msra.mxu0 0.0
    %8892 = vmatprep.subr.mxu0 0.0
    %8893 = vmatpush1.msra.mxu0 0.0
    %8894 = vmatprep.subr.mxu0 0.0
    %8895 = vmatpush1.msra.mxu0 0.0
    %8896 = vmatprep.subr.mxu0 0.0
    %8897 = vmatpush1.msra.mxu0 0.0
    %8898 = vmatprep.subr.mxu0 0.0
    %8899 = vmatpush1.msra.mxu0 0.0
    %8900 = vmatprep.subr.mxu0 0.0
    %8901 = vmatpush1.msra.mxu0 0.0
    %8902 = vmatprep.subr.mxu0 0.0
    %8903 = vmatpush1.msra.mxu0 0.0
    %8904 = vmatprep.subr.mxu0 0.0
    %8905 = vmatpush1.msra.mxu0 0.0
    %8906 = vmatprep.subr.mxu0 %v8847
    %8907 = vmatpush1.msra.mxu0 %v8846
    %8908 = vmatprep.subr.mxu0 0.0
    %8909 = vmatpush2.msra.mxu0 0.0
    %8910 = vmatprep.subr.mxu0 0.0
    %8911 = vmatpush2.msra.mxu0 0.0
    %8912 = vmatprep.subr.mxu0 0.0
    %8913 = vmatpush2.msra.mxu0 0.0
    %8914 = vmatprep.subr.mxu0 0.0
    %8915 = vmatpush2.msra.mxu0 0.0
    %8916 = vmatprep.subr.mxu0 0.0
    %8917 = vmatpush2.msra.mxu0 0.0
    %8918 = vmatprep.subr.mxu0 0.0
    %8919 = vmatpush2.msra.mxu0 0.0
    %8920 = vmatprep.subr.mxu0 0.0
    %8921 = vmatpush2.msra.mxu0 0.0
    %8922 = vmatprep.subr.mxu0 0.0
    %8923 = vmatpush2.msra.mxu0 0.0
    %8924 = vmatprep.subr.mxu0 0.0
    %8925 = vmatpush2.msra.mxu0 0.0
    %8926 = vmatprep.subr.mxu0 0.0
    %8927 = vmatpush2.msra.mxu0 0.0
    %8928 = vmatprep.subr.mxu0 0.0
    %8929 = vmatpush2.msra.mxu0 0.0
    %8930 = vmatprep.subr.mxu0 0.0
    %8931 = vmatpush2.msra.mxu0 0.0
    %8932 = vmatprep.subr.mxu0 0.0
    %8933 = vmatpush2.msra.mxu0 0.0
    %8934 = vmatprep.subr.mxu0 0.0
    %8935 = vmatpush2.msra.mxu0 0.0
    %8936 = vmatprep.subr.mxu0 0.0
    %8937 = vmatpush2.msra.mxu0 0.0
    %8938 = vmatprep.subr.mxu0 0.0
    %8939 = vmatpush2.msra.mxu0 0.0
    %8940 = vmatprep.mubr.f32.mxu0 0.0
    %8941 = vmatmul.mubr.f32.gmra.mxu0 %v8874
    %v8942 = vpop.f32.mrf.mxu0
    %v8943 = vadd.f32 %v8855, %v8942
    %v8944 = vpop.f32.mrf.mxu0
    %v8945 = vadd.f32 %v8859, %v8944
    %8946 = vdwg.mxu0
    %8947 = vmatprep.subr.mxu0 0.0
    %8948 = vmatpush1.msra.mxu0 0.0
    %8949 = vmatprep.subr.mxu0 0.0
    %8950 = vmatpush1.msra.mxu0 0.0
    %8951 = vmatprep.subr.mxu0 0.0
    %8952 = vmatpush1.msra.mxu0 0.0
    %8953 = vmatprep.subr.mxu0 0.0
    %8954 = vmatpush1.msra.mxu0 0.0
    %8955 = vmatprep.subr.mxu0 0.0
    %8956 = vmatpush1.msra.mxu0 0.0
    %8957 = vmatprep.subr.mxu0 0.0
    %8958 = vmatpush1.msra.mxu0 0.0
    %8959 = vmatprep.subr.mxu0 0.0
    %8960 = vmatpush1.msra.mxu0 0.0
    %8961 = vmatprep.subr.mxu0 0.0
    %8962 = vmatpush1.msra.mxu0 0.0
    %8963 = vmatprep.subr.mxu0 0.0
    %8964 = vmatpush1.msra.mxu0 0.0
    %8965 = vmatprep.subr.mxu0 0.0
    %8966 = vmatpush1.msra.mxu0 0.0
    %8967 = vmatprep.subr.mxu0 0.0
    %8968 = vmatpush1.msra.mxu0 0.0
    %8969 = vmatprep.subr.mxu0 0.0
    %8970 = vmatpush1.msra.mxu0 0.0
    %8971 = vmatprep.subr.mxu0 0.0
    %8972 = vmatpush1.msra.mxu0 0.0
    %8973 = vmatprep.subr.mxu0 0.0
    %8974 = vmatpush1.msra.mxu0 0.0
    %8975 = vmatprep.subr.mxu0 0.0
    %8976 = vmatpush1.msra.mxu0 0.0
    %8977 = vmatprep.subr.mxu0 %v8849
    %8978 = vmatpush1.msra.mxu0 %v8848
    %8979 = vmatprep.subr.mxu0 0.0
    %8980 = vmatpush2.msra.mxu0 0.0
    %8981 = vmatprep.subr.mxu0 0.0
    %8982 = vmatpush2.msra.mxu0 0.0
    %8983 = vmatprep.subr.mxu0 0.0
    %8984 = vmatpush2.msra.mxu0 0.0
    %8985 = vmatprep.subr.mxu0 0.0
    %8986 = vmatpush2.msra.mxu0 0.0
    %8987 = vmatprep.subr.mxu0 0.0
    %8988 = vmatpush2.msra.mxu0 0.0
    %8989 = vmatprep.subr.mxu0 0.0
    %8990 = vmatpush2.msra.mxu0 0.0
    %8991 = vmatprep.subr.mxu0 0.0
    %8992 = vmatpush2.msra.mxu0 0.0
    %8993 = vmatprep.subr.mxu0 0.0
    %8994 = vmatpush2.msra.mxu0 0.0
    %8995 = vmatprep.subr.mxu0 0.0
    %8996 = vmatpush2.msra.mxu0 0.0
    %8997 = vmatprep.subr.mxu0 0.0
    %8998 = vmatpush2.msra.mxu0 0.0
    %8999 = vmatprep.subr.mxu0 0.0
    %9000 = vmatpush2.msra.mxu0 0.0
    %9001 = vmatprep.subr.mxu0 0.0
    %9002 = vmatpush2.msra.mxu0 0.0
    %9003 = vmatprep.subr.mxu0 0.0
    %9004 = vmatpush2.msra.mxu0 0.0
    %9005 = vmatprep.subr.mxu0 0.0
    %9006 = vmatpush2.msra.mxu0 0.0
    %9007 = vmatprep.subr.mxu0 0.0
    %9008 = vmatpush2.msra.mxu0 0.0
    %9009 = vmatprep.subr.mxu0 0.0
    %9010 = vmatpush2.msra.mxu0 0.0
    %9011 = vmatprep.mubr.f32.mxu0 0.0
    %9012 = vmatmul.mubr.f32.gmra.mxu0 %v8874
    %v9013 = vpop.f32.mrf.mxu0
    %v9014 = vadd.f32 %v8863, %v9013
    %v9015 = vpop.f32.mrf.mxu0
    %v9016 = vadd.f32 %v8867, %v9015
    %9017 = vdwg.mxu0
    %v9018 = vxor.u32 %v8943, 2147483648
    %v9019 = vxor.u32 %v8945, 2147483648
    %v9020 = vxor.u32 %v9014, 2147483648
    %v9021 = vxor.u32 %v9016, 2147483648
    %v9022 = vmul.f32 %v9018, 1.442695
    %v9023 = vpow.pop %v9022
    %v9024 = vmul.f32 %v9019, 1.442695
    %v9025 = vpow.pop %v9024
    %v9026 = vmul.f32 %v9020, 1.442695
    %v9027 = vpow.pop %v9026
    %v9028 = vmul.f32 %v9021, 1.442695
    %v9029 = vpow.pop %v9028
    %v9030 = vadd.f32 %v9023, 1.0
    %v9031 = vadd.f32 %v9025, 1.0
    %v9032 = vadd.f32 %v9027, 1.0
    %v9033 = vadd.f32 %v9029, 1.0
    %v9034 = vrcp.pop %v9030
    %v9035 = vmul.f32 1.0, %v9034
    %v9036 = vrcp.pop %v9031
    %v9037 = vmul.f32 1.0, %v9036
    %v9038 = vrcp.pop %v9032
    %v9039 = vmul.f32 1.0, %v9038
    %v9040 = vrcp.pop %v9033
    %v9041 = vmul.f32 1.0, %v9040
    %v9042 = vmul.f32 %v8510, %v9035
    %v9043 = vmul.f32 %v8511, %v9037
    %v9044 = vmul.f32 %v8512, %v9039
    %v9045 = vmul.f32 %v8513, %v9041
    %v9046 = vmul.f32 %v8514, %v9035
    %v9047 = vmul.f32 %v8515, %v9037
    %v9048 = vmul.f32 %v8516, %v9039
    %v9049 = vmul.f32 %v8517, %v9041
    %v9050 = vmul.f32 %v8518, %v9035
    %v9051 = vmul.f32 %v8519, %v9037
    %v9052 = vmul.f32 %v8520, %v9039
    %v9053 = vmul.f32 %v8521, %v9041
    %v9054 = vmul.f32 %v8522, %v9035
    %v9055 = vmul.f32 %v8523, %v9037
    %v9056 = vmul.f32 %v8524, %v9039
    %v9057 = vmul.f32 %v8525, %v9041
    %v9058 = vmul.f32 %v8526, %v9035
    %v9059 = vmul.f32 %v8527, %v9037
    %v9060 = vmul.f32 %v8528, %v9039
    %v9061 = vmul.f32 %v8529, %v9041
    %v9062 = vmul.f32 %v8530, %v9035
    %v9063 = vmul.f32 %v8531, %v9037
    %v9064 = vmul.f32 %v8532, %v9039
    %v9065 = vmul.f32 %v8533, %v9041
    %v9066 = vmul.f32 %v8534, %v9035
    %v9067 = vmul.f32 %v8535, %v9037
    %v9068 = vmul.f32 %v8536, %v9039
    %v9069 = vmul.f32 %v8537, %v9041
    %v9070 = vmul.f32 %v8538, %v9035
    %v9071 = vmul.f32 %v8539, %v9037
    %v9072 = vmul.f32 %v8540, %v9039
    %v9073 = vmul.f32 %v8541, %v9041
    %v9074 = vmul.f32 %v8542, %v9035
    %v9075 = vmul.f32 %v8543, %v9037
    %v9076 = vmul.f32 %v8544, %v9039
    %v9077 = vmul.f32 %v8545, %v9041
    %v9078 = vmul.f32 %v8546, %v9035
    %v9079 = vmul.f32 %v8547, %v9037
    %v9080 = vmul.f32 %v8548, %v9039
    %v9081 = vmul.f32 %v8549, %v9041
    %v9082 = vmul.f32 %v8550, %v9035
    %v9083 = vmul.f32 %v8551, %v9037
    %v9084 = vmul.f32 %v8552, %v9039
    %v9085 = vmul.f32 %v8553, %v9041
    %v9086 = vmul.f32 %v8554, %v9035
    %v9087 = vmul.f32 %v8555, %v9037
    %v9088 = vmul.f32 %v8556, %v9039
    %v9089 = vmul.f32 %v8557, %v9041
    %v9090 = vmul.f32 %v8558, %v9035
    %v9091 = vmul.f32 %v8559, %v9037
    %v9092 = vmul.f32 %v8560, %v9039
    %v9093 = vmul.f32 %v8561, %v9041
    %v9094 = vmul.f32 %v8562, %v9035
    %v9095 = vmul.f32 %v8563, %v9037
    %v9096 = vmul.f32 %v8564, %v9039
    %v9097 = vmul.f32 %v8565, %v9041
    %v9098 = vmul.f32 %v8566, %v9035
    %v9099 = vmul.f32 %v8567, %v9037
    %v9100 = vmul.f32 %v8568, %v9039
    %v9101 = vmul.f32 %v8569, %v9041
    %v9102 = vmul.f32 %v8570, %v9035
    %v9103 = vmul.f32 %v8571, %v9037
    %v9104 = vmul.f32 %v8572, %v9039
    %v9105 = vmul.f32 %v8573, %v9041
    %v9106 = vadd.f32 %v9042, %v137
    %v9107 = vadd.f32 %v9043, %v138
    %v9108 = vadd.f32 %v9044, %v139
    %v9109 = vadd.f32 %v9045, %v140
    %v9110 = vadd.f32 %v9046, %v141
    %v9111 = vadd.f32 %v9047, %v142
    %v9112 = vadd.f32 %v9048, %v143
    %v9113 = vadd.f32 %v9049, %v144
    %v9114 = vadd.f32 %v9050, %v145
    %v9115 = vadd.f32 %v9051, %v146
    %v9116 = vadd.f32 %v9052, %v147
    %v9117 = vadd.f32 %v9053, %v148
    %v9118 = vadd.f32 %v9054, %v149
    %v9119 = vadd.f32 %v9055, %v150
    %v9120 = vadd.f32 %v9056, %v151
    %v9121 = vadd.f32 %v9057, %v152
    %v9122 = vadd.f32 %v9058, %v153
    %v9123 = vadd.f32 %v9059, %v154
    %v9124 = vadd.f32 %v9060, %v155
    %v9125 = vadd.f32 %v9061, %v156
    %v9126 = vadd.f32 %v9062, %v157
    %v9127 = vadd.f32 %v9063, %v158
    %v9128 = vadd.f32 %v9064, %v159
    %v9129 = vadd.f32 %v9065, %v160
    %v9130 = vadd.f32 %v9066, %v161
    %v9131 = vadd.f32 %v9067, %v162
    %v9132 = vadd.f32 %v9068, %v163
    %v9133 = vadd.f32 %v9069, %v164
    %v9134 = vadd.f32 %v9070, %v165
    %v9135 = vadd.f32 %v9071, %v166
    %v9136 = vadd.f32 %v9072, %v167
    %v9137 = vadd.f32 %v9073, %v168
    %v9138 = vadd.f32 %v9074, %v169
    %v9139 = vadd.f32 %v9075, %v170
    %v9140 = vadd.f32 %v9076, %v171
    %v9141 = vadd.f32 %v9077, %v172
    %v9142 = vadd.f32 %v9078, %v173
    %v9143 = vadd.f32 %v9079, %v174
    %v9144 = vadd.f32 %v9080, %v175
    %v9145 = vadd.f32 %v9081, %v176
    %v9146 = vadd.f32 %v9082, %v177
    %v9147 = vadd.f32 %v9083, %v178
    %v9148 = vadd.f32 %v9084, %v179
    %v9149 = vadd.f32 %v9085, %v180
    %v9150 = vadd.f32 %v9086, %v181
    %v9151 = vadd.f32 %v9087, %v182
    %v9152 = vadd.f32 %v9088, %v183
    %v9153 = vadd.f32 %v9089, %v184
    %v9154 = vadd.f32 %v9090, %v185
    %v9155 = vadd.f32 %v9091, %v186
    %v9156 = vadd.f32 %v9092, %v187
    %v9157 = vadd.f32 %v9093, %v188
    %v9158 = vadd.f32 %v9094, %v189
    %v9159 = vadd.f32 %v9095, %v190
    %v9160 = vadd.f32 %v9096, %v191
    %v9161 = vadd.f32 %v9097, %v192
    %v9162 = vadd.f32 %v9098, %v193
    %v9163 = vadd.f32 %v9099, %v194
    %v9164 = vadd.f32 %v9100, %v195
    %v9165 = vadd.f32 %v9101, %v196
    %v9166 = vadd.f32 %v9102, %v197
    %v9167 = vadd.f32 %v9103, %v198
    %v9168 = vadd.f32 %v9104, %v199
    %v9169 = vadd.f32 %v9105, %v200
    %9170 = vst [vmem:[#allocation17] sm:$0xff] %v9106
    %9171 = vst [vmem:[#allocation17 + $0x8] sm:$0xff] %v9107
    %9172 = vst [vmem:[#allocation17 + $0x10] sm:$0xff] %v9108
    %9173 = vst [vmem:[#allocation17 + $0x18] sm:$0xff] %v9109
    %9174 = vst [vmem:[#allocation17 + $0x20] sm:$0xff] %v9110
    %9175 = vst [vmem:[#allocation17 + $0x28] sm:$0xff] %v9111
    %9176 = vst [vmem:[#allocation17 + $0x30] sm:$0xff] %v9112
    %9177 = vst [vmem:[#allocation17 + $0x38] sm:$0xff] %v9113
    %9178 = vst [vmem:[#allocation17 + $0x40] sm:$0xff] %v9114
    %9179 = vst [vmem:[#allocation17 + $0x48] sm:$0xff] %v9115
    %9180 = vst [vmem:[#allocation17 + $0x50] sm:$0xff] %v9116
    %9181 = vst [vmem:[#allocation17 + $0x58] sm:$0xff] %v9117
    %9182 = vst [vmem:[#allocation17 + $0x60] sm:$0xff] %v9118
    %9183 = vst [vmem:[#allocation17 + $0x68] sm:$0xff] %v9119
    %9184 = vst [vmem:[#allocation17 + $0x70] sm:$0xff] %v9120
    %9185 = vst [vmem:[#allocation17 + $0x78] sm:$0xff] %v9121
    %9186 = vst [vmem:[#allocation17 + $0x80] sm:$0xff] %v9122
    %9187 = vst [vmem:[#allocation17 + $0x88] sm:$0xff] %v9123
    %9188 = vst [vmem:[#allocation17 + $0x90] sm:$0xff] %v9124
    %9189 = vst [vmem:[#allocation17 + $0x98] sm:$0xff] %v9125
    %9190 = vst [vmem:[#allocation17 + $0xa0] sm:$0xff] %v9126
    %9191 = vst [vmem:[#allocation17 + $0xa8] sm:$0xff] %v9127
    %9192 = vst [vmem:[#allocation17 + $0xb0] sm:$0xff] %v9128
    %9193 = vst [vmem:[#allocation17 + $0xb8] sm:$0xff] %v9129
    %9194 = vst [vmem:[#allocation17 + $0xc0] sm:$0xff] %v9130
    %9195 = vst [vmem:[#allocation17 + $0xc8] sm:$0xff] %v9131
    %9196 = vst [vmem:[#allocation17 + $0xd0] sm:$0xff] %v9132
    %9197 = vst [vmem:[#allocation17 + $0xd8] sm:$0xff] %v9133
    %9198 = vst [vmem:[#allocation17 + $0xe0] sm:$0xff] %v9134
    %9199 = vst [vmem:[#allocation17 + $0xe8] sm:$0xff] %v9135
    %9200 = vst [vmem:[#allocation17 + $0xf0] sm:$0xff] %v9136
    %9201 = vst [vmem:[#allocation17 + $0xf8] sm:$0xff] %v9137
    %9202 = vst [vmem:[#allocation17 + $0x100] sm:$0xff] %v9138
    %9203 = vst [vmem:[#allocation17 + $0x108] sm:$0xff] %v9139
    %9204 = vst [vmem:[#allocation17 + $0x110] sm:$0xff] %v9140
    %9205 = vst [vmem:[#allocation17 + $0x118] sm:$0xff] %v9141
    %9206 = vst [vmem:[#allocation17 + $0x120] sm:$0xff] %v9142
    %9207 = vst [vmem:[#allocation17 + $0x128] sm:$0xff] %v9143
    %9208 = vst [vmem:[#allocation17 + $0x130] sm:$0xff] %v9144
    %9209 = vst [vmem:[#allocation17 + $0x138] sm:$0xff] %v9145
    %9210 = vst [vmem:[#allocation17 + $0x140] sm:$0xff] %v9146
    %9211 = vst [vmem:[#allocation17 + $0x148] sm:$0xff] %v9147
    %9212 = vst [vmem:[#allocation17 + $0x150] sm:$0xff] %v9148
    %9213 = vst [vmem:[#allocation17 + $0x158] sm:$0xff] %v9149
    %9214 = vst [vmem:[#allocation17 + $0x160] sm:$0xff] %v9150
    %9215 = vst [vmem:[#allocation17 + $0x168] sm:$0xff] %v9151
    %9216 = vst [vmem:[#allocation17 + $0x170] sm:$0xff] %v9152
    %9217 = vst [vmem:[#allocation17 + $0x178] sm:$0xff] %v9153
    %9218 = vst [vmem:[#allocation17 + $0x180] sm:$0xff] %v9154
    %9219 = vst [vmem:[#allocation17 + $0x188] sm:$0xff] %v9155
    %9220 = vst [vmem:[#allocation17 + $0x190] sm:$0xff] %v9156
    %9221 = vst [vmem:[#allocation17 + $0x198] sm:$0xff] %v9157
    %9222 = vst [vmem:[#allocation17 + $0x1a0] sm:$0xff] %v9158
    %9223 = vst [vmem:[#allocation17 + $0x1a8] sm:$0xff] %v9159
    %9224 = vst [vmem:[#allocation17 + $0x1b0] sm:$0xff] %v9160
    %9225 = vst [vmem:[#allocation17 + $0x1b8] sm:$0xff] %v9161
    %9226 = vst [vmem:[#allocation17 + $0x1c0] sm:$0xff] %v9162
    %9227 = vst [vmem:[#allocation17 + $0x1c8] sm:$0xff] %v9163
    %9228 = vst [vmem:[#allocation17 + $0x1d0] sm:$0xff] %v9164
    %9229 = vst [vmem:[#allocation17 + $0x1d8] sm:$0xff] %v9165
    %9230 = vst [vmem:[#allocation17 + $0x1e0] sm:$0xff] %v9166
    %9231 = vst [vmem:[#allocation17 + $0x1e8] sm:$0xff] %v9167
    %9232 = vst [vmem:[#allocation17 + $0x1f0] sm:$0xff] %v9168
    %9233 = vst [vmem:[#allocation17 + $0x1f8] sm:$0xff] %v9169
    // Predicated region
    $region70: #{tpu_custom_call.1} parent=1 // pred_check
      _
    $region71: #{tpu_custom_call.1} parent=1 // pred_check_branch
      %9235 = sbr.rel (0) target = $region73
    $region72: #{tpu_custom_call.1} parent=1 // pred_region
      %s9237 = ssub.s32 8192, 8192
      %9238 = vsyncadd [#allocation5], %s9237
      %s9239 = sshll.u32 [#allocation17], 4
      %s9240 = int_to_ptr.vmem [resolvable:$true] %s9239
      %9245 = dma.vmem_to_hbm [thread:$0]  %s9240, 8192, %s9, [#allocation5], 512, 512, 32
    $region73: #{tpu_custom_call.1} parent=1 // pred_fallthru
      _
    // Predicated region
    $region74: #{tpu_custom_call.1} parent=1 // pred_check
      _
    $region75: #{tpu_custom_call.1} parent=1 // pred_check_branch
      %9247 = sbr.rel (0) target = $region77
    $region76: #{tpu_custom_call.1} parent=1 // pred_region
      %9248 = dma.done [#allocation5], 8192
    $region77: #{tpu_custom_call.1} parent=1 // pred_fallthru
      _
    %9249 = vsyncpa [#allocation4], 1
    %9250 = vsyncpa [#allocation7], 1
    %9251 = vsyncpa [#allocation10], 1
    %9252 = vsyncpa [#allocation13], 1
    %9253 = vsyncpa [#allocation16], 1
    %9254 = vsyncpa [#allocation5], 1

</llo_original>
